<compile_context>
chip_gen: v6e
topology: v6e:2x2x1
jax: 0.10.0
libtpu: 0.0.40
codegen_flags: <defaults>
</compile_context>

<pallas_src>
import jax
import jax.numpy as jnp
from jax import lax
from jax.experimental import pallas as pl
from jax.experimental.pallas import tpu as pltpu

N_BLOCKS = 20


# ----------------------------------------------------------------------------
# Fused kernel: 20 residual blocks + conv3x3 + skip, one batch image per grid step
# ----------------------------------------------------------------------------
def residual_group_kernel(x_ref,
                          w1s_ref, b1s_ref, w2s_ref, b2s_ref,
                          wa1s_ref, ba1s_ref, wa2s_ref, ba2s_ref,
                          wf_ref, bf_ref,
                          out_ref,
                          pad_ref):
    _, H, W, C = out_ref.shape
    HW = H * W

    # Halo scratch: zero once per grid step.  Every conv only rewrites the
    # interior, so the 1-pixel border stays zero for all 41 convs of this image.
    pad_ref[...] = jnp.zeros_like(pad_ref)

    def conv3x3(h_flat, w9, b_row):
        """3x3 'same' conv: 9 shifted taps x (C,C) MXU dots, accumulated in f32.

        h_flat: (HW, C) f32, w9: (9, C, C), b_row: (1, C).
        Taps are sliced straight out of the padded VMEM buffer; no im2col patch
        matrix is materialized, so the store slot only sees the interior write.
        """
        pad_ref[1:H + 1, 1:W + 1, :] = h_flat.reshape(H, W, C)
        xpad = pad_ref[...]                                     # (H+2, W+2, C)
        acc = None
        for t in range(9):                                      # static unroll
            dy, dx = t // 3, t % 3
            tap = xpad[dy:dy + H, dx:dx + W, :].reshape(HW, C)  # (HW, C)
            d = jnp.dot(tap, w9[t], preferred_element_type=jnp.float32)
            acc = d if acc is None else acc + d
        return acc + b_row

    x0 = x_ref[0].astype(jnp.float32).reshape(HW, C)            # long-skip source

    def block_body(i, h):
        # fe1: conv3x3 -> ReLU -> conv3x3
        h1 = jnp.maximum(conv3x3(h, w1s_ref[i], b1s_ref[i]), 0.0)
        m = conv3x3(h1, w2s_ref[i], b2s_ref[i])
        # attention: global avg-pool -> 1x1 -> sigmoid -> 1x1 -> ReLU
        pooled = jnp.mean(m, axis=0, keepdims=True)             # (1, C)
        a = jax.nn.sigmoid(
            jnp.dot(pooled, wa1s_ref[i], preferred_element_type=jnp.float32)
            + ba1s_ref[i])                                      # (1, Cr)
        s = jnp.maximum(
            jnp.dot(a, wa2s_ref[i], preferred_element_type=jnp.float32)
            + ba2s_ref[i], 0.0)                                 # (1, C)
        return s * m                                            # (HW, C)

    h = lax.fori_loop(0, N_BLOCKS, block_body, x0)

    # trailing conv3x3 + long skip
    y = conv3x3(h, wf_ref[...], bf_ref[...])
    out_ref[0] = (x0 + y).reshape(H, W, C).astype(out_ref.dtype)


# ----------------------------------------------------------------------------
# Wrapper
# ----------------------------------------------------------------------------
def _full_spec(shape):
    nd = len(shape)
    return pl.BlockSpec(shape, lambda n, _nd=nd: (0,) * _nd)


def residual_group_forward(x, packed):
    N, H, W, C = x.shape
    Cr = packed['wa1'].shape[-1]
    nb = packed['w1'].shape[0]
    assert nb == N_BLOCKS
    return pl.pallas_call(
        residual_group_kernel,
        out_shape=jax.ShapeDtypeStruct((N, H, W, C), x.dtype),
        grid=(N,),
        in_specs=[
            pl.BlockSpec((1, H, W, C), lambda n: (n, 0, 0, 0)),
            _full_spec((nb, 9, C, C)), _full_spec((nb, 1, C)),
            _full_spec((nb, 9, C, C)), _full_spec((nb, 1, C)),
            _full_spec((nb, C, Cr)), _full_spec((nb, 1, Cr)),
            _full_spec((nb, Cr, C)), _full_spec((nb, 1, C)),
            _full_spec((9, C, C)), _full_spec((1, C)),
        ],
        out_specs=pl.BlockSpec((1, H, W, C), lambda n: (n, 0, 0, 0)),
        scratch_shapes=[
            pltpu.VMEM((H + 2, W + 2, C), jnp.float32),   # zero-halo buffer
        ],
        compiler_params=pltpu.CompilerParams(
            dimension_semantics=("parallel",)),
    )(x, packed['w1'], packed['b1'], packed['w2'], packed['b2'],
      packed['wa1'], packed['ba1'], packed['wa2'], packed['ba2'],
      packed['conv_w'], packed['conv_b'])


# ----------------------------------------------------------------------------
# Deterministic parameter init + packing for the fused kernel
# ----------------------------------------------------------------------------
def init_params(key, C, n_blocks=N_BLOCKS):
    Cr = C // 2
    keys = iter(jax.random.split(key, 8 * n_blocks + 2))

    def nrm(shape, fan_in):
        return jax.random.normal(next(keys), shape, jnp.float32) / jnp.sqrt(float(fan_in))

    blocks = []
    for _ in range(n_blocks):
        blocks.append(dict(
            w1=nrm((3, 3, C, C), 9 * C), b1=nrm((1, C), C),
            w2=nrm((3, 3, C, C), 9 * C), b2=nrm((1, C), C),
            wa1=nrm((C, Cr), C), ba1=nrm((1, Cr), C),
            wa2=nrm((Cr, C), Cr), ba2=nrm((1, C), Cr)))
    conv_w = nrm((3, 3, C, C), 9 * C)
    conv_b = nrm((1, C), C)
    return blocks, conv_w, conv_b


def pack_params(blocks, conv_w, conv_b):
    C = conv_w.shape[2]
    nb = len(blocks)
    stack = lambda k: jnp.stack([b[k] for b in blocks])
    return dict(
        w1=stack('w1').reshape(nb, 9, C, C), b1=stack('b1'),
        w2=stack('w2').reshape(nb, 9, C, C), b2=stack('b2'),
        wa1=stack('wa1'), ba1=stack('ba1'),
        wa2=stack('wa2'), ba2=stack('ba2'),
        conv_w=conv_w.reshape(9, C, C), conv_b=conv_b)


# ----------------------------------------------------------------------------
# Pure-JAX reference (NHWC) for the correctness check
# ----------------------------------------------------------------------------
def _ref_conv3x3(x, w, b):
    y = lax.conv_general_dilated(x, w, (1, 1), 'SAME',
                                 dimension_numbers=('NHWC', 'HWIO', 'NHWC'))
    return y + b.reshape(1, 1, 1, -1)


def _ref_block(x, p):
    m = _ref_conv3x3(jax.nn.relu(_ref_conv3x3(x, p['w1'], p['b1'])), p['w2'], p['b2'])
    pooled = jnp.mean(m, axis=(1, 2))                       # (N, C)
    a = jax.nn.sigmoid(pooled @ p['wa1'] + p['ba1'])
    s = jax.nn.relu(a @ p['wa2'] + p['ba2'])
    return s[:, None, None, :] * m


def _ref_group(x, blocks, conv_w, conv_b):
    h = x
    for p in blocks:
        h = _ref_block(h, p)
    return x + _ref_conv3x3(h, conv_w, conv_b)


# ----------------------------------------------------------------------------
if __name__ == "__main__":
    N, C, H, W = 2, 4, 16, 16                 # PyTorch NCHW shape: (2, 4, 16, 16)
    key = jax.random.PRNGKey(0)
    pkey, xkey = jax.random.split(key)

    blocks, conv_w, conv_b = init_params(pkey, C)
    packed = pack_params(blocks, conv_w, conv_b)

    x_nchw = jax.random.normal(xkey, (N, C, H, W), jnp.float32)
    x = jnp.transpose(x_nchw, (0, 2, 3, 1))   # -> NHWC for the kernel

    out = jax.jit(residual_group_forward)(x, packed)
    out = jax.block_until_ready(out)

    ref = _ref_group(x, blocks, conv_w, conv_b)
    assert out.shape == (N, H, W, C)
    max_err = float(jnp.max(jnp.abs(out - ref)))
    assert jnp.allclose(out, ref, rtol=1e-3, atol=1e-4), f"max_err={max_err}"

    print("KERNEL_OK")
</pallas_src>

<mosaic_0001>
module attributes {stable_mosaic.version = 11 : i64} {
  func.func @residual_group_kernel(%arg0: i32, %arg1: memref<1x16x16x4xf32, #tpu.memory_space<vmem>>, %arg2: memref<20x9x4x4xf32, #tpu.memory_space<vmem>>, %arg3: memref<20x1x4xf32, #tpu.memory_space<vmem>>, %arg4: memref<20x9x4x4xf32, #tpu.memory_space<vmem>>, %arg5: memref<20x1x4xf32, #tpu.memory_space<vmem>>, %arg6: memref<20x4x2xf32, #tpu.memory_space<vmem>>, %arg7: memref<20x1x2xf32, #tpu.memory_space<vmem>>, %arg8: memref<20x2x4xf32, #tpu.memory_space<vmem>>, %arg9: memref<20x1x4xf32, #tpu.memory_space<vmem>>, %arg10: memref<9x4x4xf32, #tpu.memory_space<vmem>>, %arg11: memref<1x4xf32, #tpu.memory_space<vmem>>, %arg12: memref<1x16x16x4xf32, #tpu.memory_space<vmem>>, %arg13: memref<18x18x4xf32, #tpu.memory_space<vmem>>) attributes {dimension_semantics = [#tpu.dimension_semantics<parallel>], iteration_bounds = array<i64: 2>, scalar_prefetch = 0 : i64, scratch_operands = 1 : i64, tpu.core_type = #tpu.core_type<tc>, window_params = [{transform_indices = @transform_0, window_bounds = array<i64: 1, 16, 16, 4>}, {pipeline_mode = #tpu.pipeline_mode<synchronous>, transform_indices = @transform_1, window_bounds = array<i64: 20, 9, 4, 4>}, {pipeline_mode = #tpu.pipeline_mode<synchronous>, transform_indices = @transform_2, window_bounds = array<i64: 20, 1, 4>}, {pipeline_mode = #tpu.pipeline_mode<synchronous>, transform_indices = @transform_3, window_bounds = array<i64: 20, 9, 4, 4>}, {pipeline_mode = #tpu.pipeline_mode<synchronous>, transform_indices = @transform_4, window_bounds = array<i64: 20, 1, 4>}, {pipeline_mode = #tpu.pipeline_mode<synchronous>, transform_indices = @transform_5, window_bounds = array<i64: 20, 4, 2>}, {pipeline_mode = #tpu.pipeline_mode<synchronous>, transform_indices = @transform_6, window_bounds = array<i64: 20, 1, 2>}, {pipeline_mode = #tpu.pipeline_mode<synchronous>, transform_indices = @transform_7, window_bounds = array<i64: 20, 2, 4>}, {pipeline_mode = #tpu.pipeline_mode<synchronous>, transform_indices = @transform_8, window_bounds = array<i64: 20, 1, 4>}, {pipeline_mode = #tpu.pipeline_mode<synchronous>, transform_indices = @transform_9, window_bounds = array<i64: 9, 4, 4>}, {pipeline_mode = #tpu.pipeline_mode<synchronous>, transform_indices = @transform_10, window_bounds = array<i64: 1, 4>}, {transform_indices = @transform_11, window_bounds = array<i64: 1, 16, 16, 4>}]} {
    %cst = arith.constant 0.000000e+00 : f32
    %0 = vector.broadcast %cst : f32 to vector<18x18x4xf32>
    %c0 = arith.constant 0 : index
    %c0_0 = arith.constant 0 : index
    %c0_1 = arith.constant 0 : index
    %1 = vector.load %arg13[%c0, %c0_0, %c0_1] : memref<18x18x4xf32, #tpu.memory_space<vmem>>, vector<18x18x4xf32>
    tpu.vector_store %arg13[%c0, %c0_0, %c0_1], %0 {strides = array<i32>} : memref<18x18x4xf32, #tpu.memory_space<vmem>>, vector<18x18x4xf32>,
    %c0_2 = arith.constant 0 : index
    %c0_3 = arith.constant 0 : index
    %c0_4 = arith.constant 0 : index
    %c0_5 = arith.constant 0 : index
    %2 = vector.load %arg1[%c0_2, %c0_3, %c0_4, %c0_5] : memref<1x16x16x4xf32, #tpu.memory_space<vmem>>, vector<1x16x16x4xf32>
    %3 = vector.shape_cast %2 : vector<1x16x16x4xf32> to vector<16x16x4xf32>
    %4 = vector.shape_cast %3 : vector<16x16x4xf32> to vector<256x4xf32>
    %c0_i32 = arith.constant 0 : i32
    %c20_i32 = arith.constant 20 : i32
    %5 = arith.addi %c0_i32, %c20_i32 : i32
    %c1_i32 = arith.constant 1 : i32
    %6 = scf.for %arg14 = %c0_i32 to %5 step %c1_i32 iter_args(%arg15 = %4) -> (vector<256x4xf32>)  : i32 {
      %72 = arith.index_cast %arg14 : i32 to index
      %c0_30 = arith.constant 0 : index
      %c0_31 = arith.constant 0 : index
      %c0_32 = arith.constant 0 : index
      %73 = vector.load %arg2[%72, %c0_30, %c0_31, %c0_32] : memref<20x9x4x4xf32, #tpu.memory_space<vmem>>, vector<1x9x4x4xf32>
      %74 = vector.shape_cast %73 : vector<1x9x4x4xf32> to vector<9x4x4xf32>
      %75 = arith.index_cast %arg14 : i32 to index
      %c0_33 = arith.constant 0 : index
      %c0_34 = arith.constant 0 : index
      %76 = vector.load %arg3[%75, %c0_33, %c0_34] : memref<20x1x4xf32, #tpu.memory_space<vmem>>, vector<1x1x4xf32>
      %77 = vector.shape_cast %76 : vector<1x1x4xf32> to vector<1x4xf32>
      %78 = vector.shape_cast %arg15 : vector<256x4xf32> to vector<16x16x4xf32>
      %c1_35 = arith.constant 1 : index
      %c1_36 = arith.constant 1 : index
      %c0_37 = arith.constant 0 : index
      %79 = vector.load %arg13[%c1_35, %c1_36, %c0_37] : memref<18x18x4xf32, #tpu.memory_space<vmem>>, vector<16x16x4xf32>
      tpu.vector_store %arg13[%c1_35, %c1_36, %c0_37], %78 {strides = array<i32>} : memref<18x18x4xf32, #tpu.memory_space<vmem>>, vector<16x16x4xf32>,
      %c0_38 = arith.constant 0 : index
      %c0_39 = arith.constant 0 : index
      %c0_40 = arith.constant 0 : index
      %80 = vector.load %arg13[%c0_38, %c0_39, %c0_40] : memref<18x18x4xf32, #tpu.memory_space<vmem>>, vector<18x18x4xf32>
      %81 = vector.extract_strided_slice %80 {offsets = [0, 0, 0], sizes = [16, 16, 4], strides = [1, 1, 1]} : vector<18x18x4xf32> to vector<16x16x4xf32>
      %82 = vector.shape_cast %81 : vector<16x16x4xf32> to vector<256x4xf32>
      %83 = vector.extract_strided_slice %74 {offsets = [0, 0, 0], sizes = [1, 4, 4], strides = [1, 1, 1]} : vector<9x4x4xf32> to vector<1x4x4xf32>
      %84 = vector.shape_cast %83 : vector<1x4x4xf32> to vector<4x4xf32>
      %cst_41 = arith.constant dense<0.000000e+00> : vector<256x4xf32>
      %85 = tpu.matmul %82, %84, %cst_41 {dimension_numbers = #tpu.dot_dimension_numbers<[1], [0], [0], [1], [0, 0, 1, 1], [], []>} : vector<256x4xf32>, vector<4x4xf32>, vector<256x4xf32> -> vector<256x4xf32>
      %86 = vector.extract_strided_slice %80 {offsets = [0, 1, 0], sizes = [16, 16, 4], strides = [1, 1, 1]} : vector<18x18x4xf32> to vector<16x16x4xf32>
      %87 = vector.shape_cast %86 : vector<16x16x4xf32> to vector<256x4xf32>
      %88 = vector.extract_strided_slice %74 {offsets = [1, 0, 0], sizes = [1, 4, 4], strides = [1, 1, 1]} : vector<9x4x4xf32> to vector<1x4x4xf32>
      %89 = vector.shape_cast %88 : vector<1x4x4xf32> to vector<4x4xf32>
      %cst_42 = arith.constant dense<0.000000e+00> : vector<256x4xf32>
      %90 = tpu.matmul %87, %89, %cst_42 {dimension_numbers = #tpu.dot_dimension_numbers<[1], [0], [0], [1], [0, 0, 1, 1], [], []>} : vector<256x4xf32>, vector<4x4xf32>, vector<256x4xf32> -> vector<256x4xf32>
      %91 = arith.addf %85, %90 : vector<256x4xf32>
      %92 = vector.extract_strided_slice %80 {offsets = [0, 2, 0], sizes = [16, 16, 4], strides = [1, 1, 1]} : vector<18x18x4xf32> to vector<16x16x4xf32>
      %93 = vector.shape_cast %92 : vector<16x16x4xf32> to vector<256x4xf32>
      %94 = vector.extract_strided_slice %74 {offsets = [2, 0, 0], sizes = [1, 4, 4], strides = [1, 1, 1]} : vector<9x4x4xf32> to vector<1x4x4xf32>
      %95 = vector.shape_cast %94 : vector<1x4x4xf32> to vector<4x4xf32>
      %cst_43 = arith.constant dense<0.000000e+00> : vector<256x4xf32>
      %96 = tpu.matmul %93, %95, %cst_43 {dimension_numbers = #tpu.dot_dimension_numbers<[1], [0], [0], [1], [0, 0, 1, 1], [], []>} : vector<256x4xf32>, vector<4x4xf32>, vector<256x4xf32> -> vector<256x4xf32>
      %97 = arith.addf %91, %96 : vector<256x4xf32>
      %98 = vector.extract_strided_slice %80 {offsets = [1, 0, 0], sizes = [16, 16, 4], strides = [1, 1, 1]} : vector<18x18x4xf32> to vector<16x16x4xf32>
      %99 = vector.shape_cast %98 : vector<16x16x4xf32> to vector<256x4xf32>
      %100 = vector.extract_strided_slice %74 {offsets = [3, 0, 0], sizes = [1, 4, 4], strides = [1, 1, 1]} : vector<9x4x4xf32> to vector<1x4x4xf32>
      %101 = vector.shape_cast %100 : vector<1x4x4xf32> to vector<4x4xf32>
      %cst_44 = arith.constant dense<0.000000e+00> : vector<256x4xf32>
      %102 = tpu.matmul %99, %101, %cst_44 {dimension_numbers = #tpu.dot_dimension_numbers<[1], [0], [0], [1], [0, 0, 1, 1], [], []>} : vector<256x4xf32>, vector<4x4xf32>, vector<256x4xf32> -> vector<256x4xf32>
      %103 = arith.addf %97, %102 : vector<256x4xf32>
      %104 = vector.extract_strided_slice %80 {offsets = [1, 1, 0], sizes = [16, 16, 4], strides = [1, 1, 1]} : vector<18x18x4xf32> to vector<16x16x4xf32>
      %105 = vector.shape_cast %104 : vector<16x16x4xf32> to vector<256x4xf32>
      %106 = vector.extract_strided_slice %74 {offsets = [4, 0, 0], sizes = [1, 4, 4], strides = [1, 1, 1]} : vector<9x4x4xf32> to vector<1x4x4xf32>
      %107 = vector.shape_cast %106 : vector<1x4x4xf32> to vector<4x4xf32>
      %cst_45 = arith.constant dense<0.000000e+00> : vector<256x4xf32>
      %108 = tpu.matmul %105, %107, %cst_45 {dimension_numbers = #tpu.dot_dimension_numbers<[1], [0], [0], [1], [0, 0, 1, 1], [], []>} : vector<256x4xf32>, vector<4x4xf32>, vector<256x4xf32> -> vector<256x4xf32>
      %109 = arith.addf %103, %108 : vector<256x4xf32>
      %110 = vector.extract_strided_slice %80 {offsets = [1, 2, 0], sizes = [16, 16, 4], strides = [1, 1, 1]} : vector<18x18x4xf32> to vector<16x16x4xf32>
      %111 = vector.shape_cast %110 : vector<16x16x4xf32> to vector<256x4xf32>
      %112 = vector.extract_strided_slice %74 {offsets = [5, 0, 0], sizes = [1, 4, 4], strides = [1, 1, 1]} : vector<9x4x4xf32> to vector<1x4x4xf32>
      %113 = vector.shape_cast %112 : vector<1x4x4xf32> to vector<4x4xf32>
      %cst_46 = arith.constant dense<0.000000e+00> : vector<256x4xf32>
      %114 = tpu.matmul %111, %113, %cst_46 {dimension_numbers = #tpu.dot_dimension_numbers<[1], [0], [0], [1], [0, 0, 1, 1], [], []>} : vector<256x4xf32>, vector<4x4xf32>, vector<256x4xf32> -> vector<256x4xf32>
      %115 = arith.addf %109, %114 : vector<256x4xf32>
      %116 = vector.extract_strided_slice %80 {offsets = [2, 0, 0], sizes = [16, 16, 4], strides = [1, 1, 1]} : vector<18x18x4xf32> to vector<16x16x4xf32>
      %117 = vector.shape_cast %116 : vector<16x16x4xf32> to vector<256x4xf32>
      %118 = vector.extract_strided_slice %74 {offsets = [6, 0, 0], sizes = [1, 4, 4], strides = [1, 1, 1]} : vector<9x4x4xf32> to vector<1x4x4xf32>
      %119 = vector.shape_cast %118 : vector<1x4x4xf32> to vector<4x4xf32>
      %cst_47 = arith.constant dense<0.000000e+00> : vector<256x4xf32>
      %120 = tpu.matmul %117, %119, %cst_47 {dimension_numbers = #tpu.dot_dimension_numbers<[1], [0], [0], [1], [0, 0, 1, 1], [], []>} : vector<256x4xf32>, vector<4x4xf32>, vector<256x4xf32> -> vector<256x4xf32>
      %121 = arith.addf %115, %120 : vector<256x4xf32>
      %122 = vector.extract_strided_slice %80 {offsets = [2, 1, 0], sizes = [16, 16, 4], strides = [1, 1, 1]} : vector<18x18x4xf32> to vector<16x16x4xf32>
      %123 = vector.shape_cast %122 : vector<16x16x4xf32> to vector<256x4xf32>
      %124 = vector.extract_strided_slice %74 {offsets = [7, 0, 0], sizes = [1, 4, 4], strides = [1, 1, 1]} : vector<9x4x4xf32> to vector<1x4x4xf32>
      %125 = vector.shape_cast %124 : vector<1x4x4xf32> to vector<4x4xf32>
      %cst_48 = arith.constant dense<0.000000e+00> : vector<256x4xf32>
      %126 = tpu.matmul %123, %125, %cst_48 {dimension_numbers = #tpu.dot_dimension_numbers<[1], [0], [0], [1], [0, 0, 1, 1], [], []>} : vector<256x4xf32>, vector<4x4xf32>, vector<256x4xf32> -> vector<256x4xf32>
      %127 = arith.addf %121, %126 : vector<256x4xf32>
      %128 = vector.extract_strided_slice %80 {offsets = [2, 2, 0], sizes = [16, 16, 4], strides = [1, 1, 1]} : vector<18x18x4xf32> to vector<16x16x4xf32>
      %129 = vector.shape_cast %128 : vector<16x16x4xf32> to vector<256x4xf32>
      %130 = vector.extract_strided_slice %74 {offsets = [8, 0, 0], sizes = [1, 4, 4], strides = [1, 1, 1]} : vector<9x4x4xf32> to vector<1x4x4xf32>
      %131 = vector.shape_cast %130 : vector<1x4x4xf32> to vector<4x4xf32>
      %cst_49 = arith.constant dense<0.000000e+00> : vector<256x4xf32>
      %132 = tpu.matmul %129, %131, %cst_49 {dimension_numbers = #tpu.dot_dimension_numbers<[1], [0], [0], [1], [0, 0, 1, 1], [], []>} : vector<256x4xf32>, vector<4x4xf32>, vector<256x4xf32> -> vector<256x4xf32>
      %133 = arith.addf %127, %132 : vector<256x4xf32>
      %134 = vector.broadcast %77 : vector<1x4xf32> to vector<256x4xf32>
      %135 = arith.addf %133, %134 : vector<256x4xf32>
      %cst_50 = arith.constant 0.000000e+00 : f32
      %136 = vector.broadcast %cst_50 : f32 to vector<256x4xf32>
      %137 = arith.maximumf %135, %136 : vector<256x4xf32>
      %138 = arith.index_cast %arg14 : i32 to index
      %c0_51 = arith.constant 0 : index
      %c0_52 = arith.constant 0 : index
      %c0_53 = arith.constant 0 : index
      %139 = vector.load %arg4[%138, %c0_51, %c0_52, %c0_53] : memref<20x9x4x4xf32, #tpu.memory_space<vmem>>, vector<1x9x4x4xf32>
      %140 = vector.shape_cast %139 : vector<1x9x4x4xf32> to vector<9x4x4xf32>
      %141 = arith.index_cast %arg14 : i32 to index
      %c0_54 = arith.constant 0 : index
      %c0_55 = arith.constant 0 : index
      %142 = vector.load %arg5[%141, %c0_54, %c0_55] : memref<20x1x4xf32, #tpu.memory_space<vmem>>, vector<1x1x4xf32>
      %143 = vector.shape_cast %142 : vector<1x1x4xf32> to vector<1x4xf32>
      %144 = vector.shape_cast %137 : vector<256x4xf32> to vector<16x16x4xf32>
      %c1_56 = arith.constant 1 : index
      %c1_57 = arith.constant 1 : index
      %c0_58 = arith.constant 0 : index
      %145 = vector.load %arg13[%c1_56, %c1_57, %c0_58] : memref<18x18x4xf32, #tpu.memory_space<vmem>>, vector<16x16x4xf32>
      tpu.vector_store %arg13[%c1_56, %c1_57, %c0_58], %144 {strides = array<i32>} : memref<18x18x4xf32, #tpu.memory_space<vmem>>, vector<16x16x4xf32>,
      %c0_59 = arith.constant 0 : index
      %c0_60 = arith.constant 0 : index
      %c0_61 = arith.constant 0 : index
      %146 = vector.load %arg13[%c0_59, %c0_60, %c0_61] : memref<18x18x4xf32, #tpu.memory_space<vmem>>, vector<18x18x4xf32>
      %147 = vector.extract_strided_slice %146 {offsets = [0, 0, 0], sizes = [16, 16, 4], strides = [1, 1, 1]} : vector<18x18x4xf32> to vector<16x16x4xf32>
      %148 = vector.shape_cast %147 : vector<16x16x4xf32> to vector<256x4xf32>
      %149 = vector.extract_strided_slice %140 {offsets = [0, 0, 0], sizes = [1, 4, 4], strides = [1, 1, 1]} : vector<9x4x4xf32> to vector<1x4x4xf32>
      %150 = vector.shape_cast %149 : vector<1x4x4xf32> to vector<4x4xf32>
      %cst_62 = arith.constant dense<0.000000e+00> : vector<256x4xf32>
      %151 = tpu.matmul %148, %150, %cst_62 {dimension_numbers = #tpu.dot_dimension_numbers<[1], [0], [0], [1], [0, 0, 1, 1], [], []>} : vector<256x4xf32>, vector<4x4xf32>, vector<256x4xf32> -> vector<256x4xf32>
      %152 = vector.extract_strided_slice %146 {offsets = [0, 1, 0], sizes = [16, 16, 4], strides = [1, 1, 1]} : vector<18x18x4xf32> to vector<16x16x4xf32>
      %153 = vector.shape_cast %152 : vector<16x16x4xf32> to vector<256x4xf32>
      %154 = vector.extract_strided_slice %140 {offsets = [1, 0, 0], sizes = [1, 4, 4], strides = [1, 1, 1]} : vector<9x4x4xf32> to vector<1x4x4xf32>
      %155 = vector.shape_cast %154 : vector<1x4x4xf32> to vector<4x4xf32>
      %cst_63 = arith.constant dense<0.000000e+00> : vector<256x4xf32>
      %156 = tpu.matmul %153, %155, %cst_63 {dimension_numbers = #tpu.dot_dimension_numbers<[1], [0], [0], [1], [0, 0, 1, 1], [], []>} : vector<256x4xf32>, vector<4x4xf32>, vector<256x4xf32> -> vector<256x4xf32>
      %157 = arith.addf %151, %156 : vector<256x4xf32>
      %158 = vector.extract_strided_slice %146 {offsets = [0, 2, 0], sizes = [16, 16, 4], strides = [1, 1, 1]} : vector<18x18x4xf32> to vector<16x16x4xf32>
      %159 = vector.shape_cast %158 : vector<16x16x4xf32> to vector<256x4xf32>
      %160 = vector.extract_strided_slice %140 {offsets = [2, 0, 0], sizes = [1, 4, 4], strides = [1, 1, 1]} : vector<9x4x4xf32> to vector<1x4x4xf32>
      %161 = vector.shape_cast %160 : vector<1x4x4xf32> to vector<4x4xf32>
      %cst_64 = arith.constant dense<0.000000e+00> : vector<256x4xf32>
      %162 = tpu.matmul %159, %161, %cst_64 {dimension_numbers = #tpu.dot_dimension_numbers<[1], [0], [0], [1], [0, 0, 1, 1], [], []>} : vector<256x4xf32>, vector<4x4xf32>, vector<256x4xf32> -> vector<256x4xf32>
      %163 = arith.addf %157, %162 : vector<256x4xf32>
      %164 = vector.extract_strided_slice %146 {offsets = [1, 0, 0], sizes = [16, 16, 4], strides = [1, 1, 1]} : vector<18x18x4xf32> to vector<16x16x4xf32>
      %165 = vector.shape_cast %164 : vector<16x16x4xf32> to vector<256x4xf32>
      %166 = vector.extract_strided_slice %140 {offsets = [3, 0, 0], sizes = [1, 4, 4], strides = [1, 1, 1]} : vector<9x4x4xf32> to vector<1x4x4xf32>
      %167 = vector.shape_cast %166 : vector<1x4x4xf32> to vector<4x4xf32>
      %cst_65 = arith.constant dense<0.000000e+00> : vector<256x4xf32>
      %168 = tpu.matmul %165, %167, %cst_65 {dimension_numbers = #tpu.dot_dimension_numbers<[1], [0], [0], [1], [0, 0, 1, 1], [], []>} : vector<256x4xf32>, vector<4x4xf32>, vector<256x4xf32> -> vector<256x4xf32>
      %169 = arith.addf %163, %168 : vector<256x4xf32>
      %170 = vector.extract_strided_slice %146 {offsets = [1, 1, 0], sizes = [16, 16, 4], strides = [1, 1, 1]} : vector<18x18x4xf32> to vector<16x16x4xf32>
      %171 = vector.shape_cast %170 : vector<16x16x4xf32> to vector<256x4xf32>
      %172 = vector.extract_strided_slice %140 {offsets = [4, 0, 0], sizes = [1, 4, 4], strides = [1, 1, 1]} : vector<9x4x4xf32> to vector<1x4x4xf32>
      %173 = vector.shape_cast %172 : vector<1x4x4xf32> to vector<4x4xf32>
      %cst_66 = arith.constant dense<0.000000e+00> : vector<256x4xf32>
      %174 = tpu.matmul %171, %173, %cst_66 {dimension_numbers = #tpu.dot_dimension_numbers<[1], [0], [0], [1], [0, 0, 1, 1], [], []>} : vector<256x4xf32>, vector<4x4xf32>, vector<256x4xf32> -> vector<256x4xf32>
      %175 = arith.addf %169, %174 : vector<256x4xf32>
      %176 = vector.extract_strided_slice %146 {offsets = [1, 2, 0], sizes = [16, 16, 4], strides = [1, 1, 1]} : vector<18x18x4xf32> to vector<16x16x4xf32>
      %177 = vector.shape_cast %176 : vector<16x16x4xf32> to vector<256x4xf32>
      %178 = vector.extract_strided_slice %140 {offsets = [5, 0, 0], sizes = [1, 4, 4], strides = [1, 1, 1]} : vector<9x4x4xf32> to vector<1x4x4xf32>
      %179 = vector.shape_cast %178 : vector<1x4x4xf32> to vector<4x4xf32>
      %cst_67 = arith.constant dense<0.000000e+00> : vector<256x4xf32>
      %180 = tpu.matmul %177, %179, %cst_67 {dimension_numbers = #tpu.dot_dimension_numbers<[1], [0], [0], [1], [0, 0, 1, 1], [], []>} : vector<256x4xf32>, vector<4x4xf32>, vector<256x4xf32> -> vector<256x4xf32>
      %181 = arith.addf %175, %180 : vector<256x4xf32>
      %182 = vector.extract_strided_slice %146 {offsets = [2, 0, 0], sizes = [16, 16, 4], strides = [1, 1, 1]} : vector<18x18x4xf32> to vector<16x16x4xf32>
      %183 = vector.shape_cast %182 : vector<16x16x4xf32> to vector<256x4xf32>
      %184 = vector.extract_strided_slice %140 {offsets = [6, 0, 0], sizes = [1, 4, 4], strides = [1, 1, 1]} : vector<9x4x4xf32> to vector<1x4x4xf32>
      %185 = vector.shape_cast %184 : vector<1x4x4xf32> to vector<4x4xf32>
      %cst_68 = arith.constant dense<0.000000e+00> : vector<256x4xf32>
      %186 = tpu.matmul %183, %185, %cst_68 {dimension_numbers = #tpu.dot_dimension_numbers<[1], [0], [0], [1], [0, 0, 1, 1], [], []>} : vector<256x4xf32>, vector<4x4xf32>, vector<256x4xf32> -> vector<256x4xf32>
      %187 = arith.addf %181, %186 : vector<256x4xf32>
      %188 = vector.extract_strided_slice %146 {offsets = [2, 1, 0], sizes = [16, 16, 4], strides = [1, 1, 1]} : vector<18x18x4xf32> to vector<16x16x4xf32>
      %189 = vector.shape_cast %188 : vector<16x16x4xf32> to vector<256x4xf32>
      %190 = vector.extract_strided_slice %140 {offsets = [7, 0, 0], sizes = [1, 4, 4], strides = [1, 1, 1]} : vector<9x4x4xf32> to vector<1x4x4xf32>
      %191 = vector.shape_cast %190 : vector<1x4x4xf32> to vector<4x4xf32>
      %cst_69 = arith.constant dense<0.000000e+00> : vector<256x4xf32>
      %192 = tpu.matmul %189, %191, %cst_69 {dimension_numbers = #tpu.dot_dimension_numbers<[1], [0], [0], [1], [0, 0, 1, 1], [], []>} : vector<256x4xf32>, vector<4x4xf32>, vector<256x4xf32> -> vector<256x4xf32>
      %193 = arith.addf %187, %192 : vector<256x4xf32>
      %194 = vector.extract_strided_slice %146 {offsets = [2, 2, 0], sizes = [16, 16, 4], strides = [1, 1, 1]} : vector<18x18x4xf32> to vector<16x16x4xf32>
      %195 = vector.shape_cast %194 : vector<16x16x4xf32> to vector<256x4xf32>
      %196 = vector.extract_strided_slice %140 {offsets = [8, 0, 0], sizes = [1, 4, 4], strides = [1, 1, 1]} : vector<9x4x4xf32> to vector<1x4x4xf32>
      %197 = vector.shape_cast %196 : vector<1x4x4xf32> to vector<4x4xf32>
      %cst_70 = arith.constant dense<0.000000e+00> : vector<256x4xf32>
      %198 = tpu.matmul %195, %197, %cst_70 {dimension_numbers = #tpu.dot_dimension_numbers<[1], [0], [0], [1], [0, 0, 1, 1], [], []>} : vector<256x4xf32>, vector<4x4xf32>, vector<256x4xf32> -> vector<256x4xf32>
      %199 = arith.addf %193, %198 : vector<256x4xf32>
      %200 = vector.broadcast %143 : vector<1x4xf32> to vector<256x4xf32>
      %201 = arith.addf %199, %200 : vector<256x4xf32>
      %cst_71 = arith.constant dense<0.000000e+00> : vector<4xf32>
      %202 = vector.multi_reduction <add>, %201, %cst_71 [0] : vector<256x4xf32> to vector<4xf32>
      %203 = vector.shape_cast %202 : vector<4xf32> to vector<1x4xf32>
      %cst_72 = arith.constant 2.560000e+02 : f32
      %204 = vector.broadcast %cst_72 : f32 to vector<1x4xf32>
      %205 = arith.divf %203, %204 : vector<1x4xf32>
      %206 = arith.index_cast %arg14 : i32 to index
      %c0_73 = arith.constant 0 : index
      %c0_74 = arith.constant 0 : index
      %207 = vector.load %arg6[%206, %c0_73, %c0_74] : memref<20x4x2xf32, #tpu.memory_space<vmem>>, vector<1x4x2xf32>
      %208 = vector.shape_cast %207 : vector<1x4x2xf32> to vector<4x2xf32>
      %cst_75 = arith.constant dense<0.000000e+00> : vector<1x2xf32>
      %209 = tpu.matmul %205, %208, %cst_75 {dimension_numbers = #tpu.dot_dimension_numbers<[1], [0], [0], [1], [0, 0, 1, 1], [], []>} : vector<1x4xf32>, vector<4x2xf32>, vector<1x2xf32> -> vector<1x2xf32>
      %210 = arith.index_cast %arg14 : i32 to index
      %c0_76 = arith.constant 0 : index
      %c0_77 = arith.constant 0 : index
      %211 = vector.load %arg7[%210, %c0_76, %c0_77] : memref<20x1x2xf32, #tpu.memory_space<vmem>>, vector<1x1x2xf32>
      %212 = vector.shape_cast %211 : vector<1x1x2xf32> to vector<1x2xf32>
      %213 = arith.addf %209, %212 : vector<1x2xf32>
      %214 = arith.negf %213 : vector<1x2xf32>
      %215 = math.exp %214 : vector<1x2xf32>
      %cst_78 = arith.constant 1.000000e+00 : f32
      %216 = vector.broadcast %cst_78 : f32 to vector<1x2xf32>
      %217 = arith.addf %216, %215 : vector<1x2xf32>
      %218 = arith.divf %216, %217 : vector<1x2xf32>
      %219 = arith.index_cast %arg14 : i32 to index
      %c0_79 = arith.constant 0 : index
      %c0_80 = arith.constant 0 : index
      %220 = vector.load %arg8[%219, %c0_79, %c0_80] : memref<20x2x4xf32, #tpu.memory_space<vmem>>, vector<1x2x4xf32>
      %221 = vector.shape_cast %220 : vector<1x2x4xf32> to vector<2x4xf32>
      %cst_81 = arith.constant dense<0.000000e+00> : vector<1x4xf32>
      %222 = tpu.matmul %218, %221, %cst_81 {dimension_numbers = #tpu.dot_dimension_numbers<[1], [0], [0], [1], [0, 0, 1, 1], [], []>} : vector<1x2xf32>, vector<2x4xf32>, vector<1x4xf32> -> vector<1x4xf32>
      %223 = arith.index_cast %arg14 : i32 to index
      %c0_82 = arith.constant 0 : index
      %c0_83 = arith.constant 0 : index
      %224 = vector.load %arg9[%223, %c0_82, %c0_83] : memref<20x1x4xf32, #tpu.memory_space<vmem>>, vector<1x1x4xf32>
      %225 = vector.shape_cast %224 : vector<1x1x4xf32> to vector<1x4xf32>
      %226 = arith.addf %222, %225 : vector<1x4xf32>
      %cst_84 = arith.constant 0.000000e+00 : f32
      %227 = vector.broadcast %cst_84 : f32 to vector<1x4xf32>
      %228 = arith.maximumf %226, %227 : vector<1x4xf32>
      %229 = vector.broadcast %228 : vector<1x4xf32> to vector<256x4xf32>
      %230 = arith.mulf %229, %201 : vector<256x4xf32>
      scf.yield %230 : vector<256x4xf32>
    }
    %c20_i32_6 = arith.constant 20 : i32
    %c0_7 = arith.constant 0 : index
    %c0_8 = arith.constant 0 : index
    %c0_9 = arith.constant 0 : index
    %7 = vector.load %arg10[%c0_7, %c0_8, %c0_9] : memref<9x4x4xf32, #tpu.memory_space<vmem>>, vector<9x4x4xf32>
    %c0_10 = arith.constant 0 : index
    %c0_11 = arith.constant 0 : index
    %8 = vector.load %arg11[%c0_10, %c0_11] : memref<1x4xf32, #tpu.memory_space<vmem>>, vector<1x4xf32>
    %9 = vector.shape_cast %6 : vector<256x4xf32> to vector<16x16x4xf32>
    %c1 = arith.constant 1 : index
    %c1_12 = arith.constant 1 : index
    %c0_13 = arith.constant 0 : index
    %10 = vector.load %arg13[%c1, %c1_12, %c0_13] : memref<18x18x4xf32, #tpu.memory_space<vmem>>, vector<16x16x4xf32>
    tpu.vector_store %arg13[%c1, %c1_12, %c0_13], %9 {strides = array<i32>} : memref<18x18x4xf32, #tpu.memory_space<vmem>>, vector<16x16x4xf32>,
    %c0_14 = arith.constant 0 : index
    %c0_15 = arith.constant 0 : index
    %c0_16 = arith.constant 0 : index
    %11 = vector.load %arg13[%c0_14, %c0_15, %c0_16] : memref<18x18x4xf32, #tpu.memory_space<vmem>>, vector<18x18x4xf32>
    %12 = vector.extract_strided_slice %11 {offsets = [0, 0, 0], sizes = [16, 16, 4], strides = [1, 1, 1]} : vector<18x18x4xf32> to vector<16x16x4xf32>
    %13 = vector.shape_cast %12 : vector<16x16x4xf32> to vector<256x4xf32>
    %14 = vector.extract_strided_slice %7 {offsets = [0, 0, 0], sizes = [1, 4, 4], strides = [1, 1, 1]} : vector<9x4x4xf32> to vector<1x4x4xf32>
    %15 = vector.shape_cast %14 : vector<1x4x4xf32> to vector<4x4xf32>
    %cst_17 = arith.constant dense<0.000000e+00> : vector<256x4xf32>
    %16 = tpu.matmul %13, %15, %cst_17 {dimension_numbers = #tpu.dot_dimension_numbers<[1], [0], [0], [1], [0, 0, 1, 1], [], []>} : vector<256x4xf32>, vector<4x4xf32>, vector<256x4xf32> -> vector<256x4xf32>
    %17 = vector.extract_strided_slice %11 {offsets = [0, 1, 0], sizes = [16, 16, 4], strides = [1, 1, 1]} : vector<18x18x4xf32> to vector<16x16x4xf32>
    %18 = vector.shape_cast %17 : vector<16x16x4xf32> to vector<256x4xf32>
    %19 = vector.extract_strided_slice %7 {offsets = [1, 0, 0], sizes = [1, 4, 4], strides = [1, 1, 1]} : vector<9x4x4xf32> to vector<1x4x4xf32>
    %20 = vector.shape_cast %19 : vector<1x4x4xf32> to vector<4x4xf32>
    %cst_18 = arith.constant dense<0.000000e+00> : vector<256x4xf32>
    %21 = tpu.matmul %18, %20, %cst_18 {dimension_numbers = #tpu.dot_dimension_numbers<[1], [0], [0], [1], [0, 0, 1, 1], [], []>} : vector<256x4xf32>, vector<4x4xf32>, vector<256x4xf32> -> vector<256x4xf32>
    %22 = arith.addf %16, %21 : vector<256x4xf32>
    %23 = vector.extract_strided_slice %11 {offsets = [0, 2, 0], sizes = [16, 16, 4], strides = [1, 1, 1]} : vector<18x18x4xf32> to vector<16x16x4xf32>
    %24 = vector.shape_cast %23 : vector<16x16x4xf32> to vector<256x4xf32>
    %25 = vector.extract_strided_slice %7 {offsets = [2, 0, 0], sizes = [1, 4, 4], strides = [1, 1, 1]} : vector<9x4x4xf32> to vector<1x4x4xf32>
    %26 = vector.shape_cast %25 : vector<1x4x4xf32> to vector<4x4xf32>
    %cst_19 = arith.constant dense<0.000000e+00> : vector<256x4xf32>
    %27 = tpu.matmul %24, %26, %cst_19 {dimension_numbers = #tpu.dot_dimension_numbers<[1], [0], [0], [1], [0, 0, 1, 1], [], []>} : vector<256x4xf32>, vector<4x4xf32>, vector<256x4xf32> -> vector<256x4xf32>
    %28 = arith.addf %22, %27 : vector<256x4xf32>
    %29 = vector.extract_strided_slice %11 {offsets = [1, 0, 0], sizes = [16, 16, 4], strides = [1, 1, 1]} : vector<18x18x4xf32> to vector<16x16x4xf32>
    %30 = vector.shape_cast %29 : vector<16x16x4xf32> to vector<256x4xf32>
    %31 = vector.extract_strided_slice %7 {offsets = [3, 0, 0], sizes = [1, 4, 4], strides = [1, 1, 1]} : vector<9x4x4xf32> to vector<1x4x4xf32>
    %32 = vector.shape_cast %31 : vector<1x4x4xf32> to vector<4x4xf32>
    %cst_20 = arith.constant dense<0.000000e+00> : vector<256x4xf32>
    %33 = tpu.matmul %30, %32, %cst_20 {dimension_numbers = #tpu.dot_dimension_numbers<[1], [0], [0], [1], [0, 0, 1, 1], [], []>} : vector<256x4xf32>, vector<4x4xf32>, vector<256x4xf32> -> vector<256x4xf32>
    %34 = arith.addf %28, %33 : vector<256x4xf32>
    %35 = vector.extract_strided_slice %11 {offsets = [1, 1, 0], sizes = [16, 16, 4], strides = [1, 1, 1]} : vector<18x18x4xf32> to vector<16x16x4xf32>
    %36 = vector.shape_cast %35 : vector<16x16x4xf32> to vector<256x4xf32>
    %37 = vector.extract_strided_slice %7 {offsets = [4, 0, 0], sizes = [1, 4, 4], strides = [1, 1, 1]} : vector<9x4x4xf32> to vector<1x4x4xf32>
    %38 = vector.shape_cast %37 : vector<1x4x4xf32> to vector<4x4xf32>
    %cst_21 = arith.constant dense<0.000000e+00> : vector<256x4xf32>
    %39 = tpu.matmul %36, %38, %cst_21 {dimension_numbers = #tpu.dot_dimension_numbers<[1], [0], [0], [1], [0, 0, 1, 1], [], []>} : vector<256x4xf32>, vector<4x4xf32>, vector<256x4xf32> -> vector<256x4xf32>
    %40 = arith.addf %34, %39 : vector<256x4xf32>
    %41 = vector.extract_strided_slice %11 {offsets = [1, 2, 0], sizes = [16, 16, 4], strides = [1, 1, 1]} : vector<18x18x4xf32> to vector<16x16x4xf32>
    %42 = vector.shape_cast %41 : vector<16x16x4xf32> to vector<256x4xf32>
    %43 = vector.extract_strided_slice %7 {offsets = [5, 0, 0], sizes = [1, 4, 4], strides = [1, 1, 1]} : vector<9x4x4xf32> to vector<1x4x4xf32>
    %44 = vector.shape_cast %43 : vector<1x4x4xf32> to vector<4x4xf32>
    %cst_22 = arith.constant dense<0.000000e+00> : vector<256x4xf32>
    %45 = tpu.matmul %42, %44, %cst_22 {dimension_numbers = #tpu.dot_dimension_numbers<[1], [0], [0], [1], [0, 0, 1, 1], [], []>} : vector<256x4xf32>, vector<4x4xf32>, vector<256x4xf32> -> vector<256x4xf32>
    %46 = arith.addf %40, %45 : vector<256x4xf32>
    %47 = vector.extract_strided_slice %11 {offsets = [2, 0, 0], sizes = [16, 16, 4], strides = [1, 1, 1]} : vector<18x18x4xf32> to vector<16x16x4xf32>
    %48 = vector.shape_cast %47 : vector<16x16x4xf32> to vector<256x4xf32>
    %49 = vector.extract_strided_slice %7 {offsets = [6, 0, 0], sizes = [1, 4, 4], strides = [1, 1, 1]} : vector<9x4x4xf32> to vector<1x4x4xf32>
    %50 = vector.shape_cast %49 : vector<1x4x4xf32> to vector<4x4xf32>
    %cst_23 = arith.constant dense<0.000000e+00> : vector<256x4xf32>
    %51 = tpu.matmul %48, %50, %cst_23 {dimension_numbers = #tpu.dot_dimension_numbers<[1], [0], [0], [1], [0, 0, 1, 1], [], []>} : vector<256x4xf32>, vector<4x4xf32>, vector<256x4xf32> -> vector<256x4xf32>
    %52 = arith.addf %46, %51 : vector<256x4xf32>
    %53 = vector.extract_strided_slice %11 {offsets = [2, 1, 0], sizes = [16, 16, 4], strides = [1, 1, 1]} : vector<18x18x4xf32> to vector<16x16x4xf32>
    %54 = vector.shape_cast %53 : vector<16x16x4xf32> to vector<256x4xf32>
    %55 = vector.extract_strided_slice %7 {offsets = [7, 0, 0], sizes = [1, 4, 4], strides = [1, 1, 1]} : vector<9x4x4xf32> to vector<1x4x4xf32>
    %56 = vector.shape_cast %55 : vector<1x4x4xf32> to vector<4x4xf32>
    %cst_24 = arith.constant dense<0.000000e+00> : vector<256x4xf32>
    %57 = tpu.matmul %54, %56, %cst_24 {dimension_numbers = #tpu.dot_dimension_numbers<[1], [0], [0], [1], [0, 0, 1, 1], [], []>} : vector<256x4xf32>, vector<4x4xf32>, vector<256x4xf32> -> vector<256x4xf32>
    %58 = arith.addf %52, %57 : vector<256x4xf32>
    %59 = vector.extract_strided_slice %11 {offsets = [2, 2, 0], sizes = [16, 16, 4], strides = [1, 1, 1]} : vector<18x18x4xf32> to vector<16x16x4xf32>
    %60 = vector.shape_cast %59 : vector<16x16x4xf32> to vector<256x4xf32>
    %61 = vector.extract_strided_slice %7 {offsets = [8, 0, 0], sizes = [1, 4, 4], strides = [1, 1, 1]} : vector<9x4x4xf32> to vector<1x4x4xf32>
    %62 = vector.shape_cast %61 : vector<1x4x4xf32> to vector<4x4xf32>
    %cst_25 = arith.constant dense<0.000000e+00> : vector<256x4xf32>
    %63 = tpu.matmul %60, %62, %cst_25 {dimension_numbers = #tpu.dot_dimension_numbers<[1], [0], [0], [1], [0, 0, 1, 1], [], []>} : vector<256x4xf32>, vector<4x4xf32>, vector<256x4xf32> -> vector<256x4xf32>
    %64 = arith.addf %58, %63 : vector<256x4xf32>
    %65 = vector.broadcast %8 : vector<1x4xf32> to vector<256x4xf32>
    %66 = arith.addf %64, %65 : vector<256x4xf32>
    %67 = arith.addf %4, %66 : vector<256x4xf32>
    %68 = vector.shape_cast %67 : vector<256x4xf32> to vector<16x16x4xf32>
    %c0_26 = arith.constant 0 : index
    %c0_27 = arith.constant 0 : index
    %c0_28 = arith.constant 0 : index
    %c0_29 = arith.constant 0 : index
    %69 = vector.load %arg12[%c0_26, %c0_27, %c0_28, %c0_29] : memref<1x16x16x4xf32, #tpu.memory_space<vmem>>, vector<1x16x16x4xf32>
    %70 = vector.shape_cast %69 : vector<1x16x16x4xf32> to vector<16x16x4xf32>
    %71 = vector.shape_cast %68 : vector<16x16x4xf32> to vector<1x16x16x4xf32>
    tpu.vector_store %arg12[%c0_26, %c0_27, %c0_28, %c0_29], %71 {strides = array<i32>} : memref<1x16x16x4xf32, #tpu.memory_space<vmem>>, vector<1x16x16x4xf32>,
    return
  }
  func.func @transform_0(%arg0: i32) -> (i32, i32, i32, i32) {
    %c0_i32 = arith.constant 0 : i32
    %c0_i32_0 = arith.constant 0 : i32
    %c0_i32_1 = arith.constant 0 : i32
    %c0_i32_2 = arith.constant 0 : i32
    return %arg0, %c0_i32, %c0_i32_0, %c0_i32_1 : i32, i32, i32, i32
  }
  func.func @transform_1(%arg0: i32) -> (i32, i32, i32, i32) {
    %c0_i32 = arith.constant 0 : i32
    %c0_i32_0 = arith.constant 0 : i32
    %c0_i32_1 = arith.constant 0 : i32
    %c0_i32_2 = arith.constant 0 : i32
    %c0_i32_3 = arith.constant 0 : i32
    return %c0_i32, %c0_i32_0, %c0_i32_1, %c0_i32_2 : i32, i32, i32, i32
  }
  func.func @transform_2(%arg0: i32) -> (i32, i32, i32) {
    %c0_i32 = arith.constant 0 : i32
    %c0_i32_0 = arith.constant 0 : i32
    %c0_i32_1 = arith.constant 0 : i32
    %c0_i32_2 = arith.constant 0 : i32
    return %c0_i32, %c0_i32_0, %c0_i32_1 : i32, i32, i32
  }
  func.func @transform_3(%arg0: i32) -> (i32, i32, i32, i32) {
    %c0_i32 = arith.constant 0 : i32
    %c0_i32_0 = arith.constant 0 : i32
    %c0_i32_1 = arith.constant 0 : i32
    %c0_i32_2 = arith.constant 0 : i32
    %c0_i32_3 = arith.constant 0 : i32
    return %c0_i32, %c0_i32_0, %c0_i32_1, %c0_i32_2 : i32, i32, i32, i32
  }
  func.func @transform_4(%arg0: i32) -> (i32, i32, i32) {
    %c0_i32 = arith.constant 0 : i32
    %c0_i32_0 = arith.constant 0 : i32
    %c0_i32_1 = arith.constant 0 : i32
    %c0_i32_2 = arith.constant 0 : i32
    return %c0_i32, %c0_i32_0, %c0_i32_1 : i32, i32, i32
  }
  func.func @transform_5(%arg0: i32) -> (i32, i32, i32) {
    %c0_i32 = arith.constant 0 : i32
    %c0_i32_0 = arith.constant 0 : i32
    %c0_i32_1 = arith.constant 0 : i32
    %c0_i32_2 = arith.constant 0 : i32
    return %c0_i32, %c0_i32_0, %c0_i32_1 : i32, i32, i32
  }
  func.func @transform_6(%arg0: i32) -> (i32, i32, i32) {
    %c0_i32 = arith.constant 0 : i32
    %c0_i32_0 = arith.constant 0 : i32
    %c0_i32_1 = arith.constant 0 : i32
    %c0_i32_2 = arith.constant 0 : i32
    return %c0_i32, %c0_i32_0, %c0_i32_1 : i32, i32, i32
  }
  func.func @transform_7(%arg0: i32) -> (i32, i32, i32) {
    %c0_i32 = arith.constant 0 : i32
    %c0_i32_0 = arith.constant 0 : i32
    %c0_i32_1 = arith.constant 0 : i32
    %c0_i32_2 = arith.constant 0 : i32
    return %c0_i32, %c0_i32_0, %c0_i32_1 : i32, i32, i32
  }
  func.func @transform_8(%arg0: i32) -> (i32, i32, i32) {
    %c0_i32 = arith.constant 0 : i32
    %c0_i32_0 = arith.constant 0 : i32
    %c0_i32_1 = arith.constant 0 : i32
    %c0_i32_2 = arith.constant 0 : i32
    return %c0_i32, %c0_i32_0, %c0_i32_1 : i32, i32, i32
  }
  func.func @transform_9(%arg0: i32) -> (i32, i32, i32) {
    %c0_i32 = arith.constant 0 : i32
    %c0_i32_0 = arith.constant 0 : i32
    %c0_i32_1 = arith.constant 0 : i32
    %c0_i32_2 = arith.constant 0 : i32
    return %c0_i32, %c0_i32_0, %c0_i32_1 : i32, i32, i32
  }
  func.func @transform_10(%arg0: i32) -> (i32, i32) {
    %c0_i32 = arith.constant 0 : i32
    %c0_i32_0 = arith.constant 0 : i32
    %c0_i32_1 = arith.constant 0 : i32
    return %c0_i32, %c0_i32_0 : i32, i32
  }
  func.func @transform_11(%arg0: i32) -> (i32, i32, i32, i32) {
    %c0_i32 = arith.constant 0 : i32
    %c0_i32_0 = arith.constant 0 : i32
    %c0_i32_1 = arith.constant 0 : i32
    %c0_i32_2 = arith.constant 0 : i32
    return %arg0, %c0_i32, %c0_i32_0, %c0_i32_1 : i32, i32, i32, i32
  }
}

</mosaic_0001>

<llo_original>
// kernel: residual_group_forward.1
$region0: #{residual_group_forward.1}
  #allocation0 [shape = 'u32[]', space=smem, size = 0x4, offset = 0x4, fixed_abs, tag = 'smem constant byte address 0x4 - core index']
  #allocation1 [shape = 'u32[144,128]{1,0:T(1,128)}', space=vmem, size = 0x12000, scoped, tag = 'internal scratch']
  #allocation2 [shape = 'f32[18,18,4]{2,1,0:T(8,128)}', space=vmem, size = 0x36000, scoped, tag = 'scratch operand']
  %s0 = inlined_call_operand.vmem [shape: f32[2,16,16,4], index: 0, kind: input, shape index: {}]
  %s1 = inlined_call_operand.vmem [shape: f32[20,9,4,4], index: 1, kind: input, shape index: {}]
  %s2 = inlined_call_operand.vmem [shape: f32[20,1,4], index: 2, kind: input, shape index: {}]
  %s3 = inlined_call_operand.vmem [shape: f32[20,9,4,4], index: 3, kind: input, shape index: {}]
  %s4 = inlined_call_operand.vmem [shape: f32[20,1,4], index: 4, kind: input, shape index: {}]
  %s5 = inlined_call_operand.vmem [shape: f32[20,4,2], index: 5, kind: input, shape index: {}]
  %s6 = inlined_call_operand.vmem [shape: f32[20,1,2], index: 6, kind: input, shape index: {}]
  %s7 = inlined_call_operand.vmem [shape: f32[20,2,4], index: 7, kind: input, shape index: {}]
  %s8 = inlined_call_operand.vmem [shape: f32[20,1,4], index: 8, kind: input, shape index: {}]
  %s9 = inlined_call_operand.vmem [shape: f32[9,4,4], index: 9, kind: input, shape index: {}]
  %s10 = inlined_call_operand.vmem [shape: f32[1,4], index: 10, kind: input, shape index: {}]
  %s11 = inlined_call_operand.vmem [shape: f32[2,16,16,4], index: 11, kind: output, shape index: {}]
  %s12 = sld [smem:[#allocation0]]
  $region84: #{residual_group_forward.1} parent=0
    _
  %s14 = ssub.s32 1, %s12
  %s15 = scalar_select 0, %s14, %s12
  loop: start=0, step=1, limit=4
  $region2: #{residual_group_forward.1} parent=0 // loop_pre_header
    _
  $region3: #{residual_group_forward.1} parent=0 // loop_header
    %s17 = sphi 0, %s21
    %p18 = scmp.ge.s32.totalorder %s17, 4
    %s27 = sphi 0, %s29
    %s30 = sphi 0, %s27
    %s31 = sphi 0, %s30
    %s47 = sphi 0, %s31
    %s51 = sphi 0, %s51
    %s53 = sphi 0, %s51
    %s54 = sphi 0, %s53
    %s68 = sphi 0, %s54
    %s72 = sphi 0, %s72
    %s74 = sphi 0, %s72
    %s75 = sphi 0, %s74
    %s89 = sphi 0, %s75
    %s93 = sphi 0, %s93
    %s95 = sphi 0, %s93
    %s96 = sphi 0, %s95
    %s110 = sphi 0, %s96
    %s114 = sphi 0, %s114
    %s116 = sphi 0, %s114
    %s117 = sphi 0, %s116
    %s131 = sphi 0, %s117
    %s135 = sphi 0, %s135
    %s137 = sphi 0, %s135
    %s138 = sphi 0, %s137
    %s152 = sphi 0, %s138
    %s156 = sphi 0, %s156
    %s158 = sphi 0, %s156
    %s159 = sphi 0, %s158
    %s173 = sphi 0, %s159
    %s177 = sphi 0, %s177
    %s179 = sphi 0, %s177
    %s180 = sphi 0, %s179
    %s194 = sphi 0, %s180
    %s198 = sphi 0, %s198
    %s200 = sphi 0, %s198
    %s201 = sphi 0, %s200
    %s215 = sphi 0, %s201
    %s219 = sphi 0, %s219
    %s221 = sphi 0, %s219
    %s222 = sphi 0, %s221
    %s236 = sphi 0, %s222
    %s240 = sphi 0, %s240
    %s242 = sphi 0, %s240
    %s243 = sphi 0, %s242
    %s257 = sphi 0, %s243
    %s263 = sphi 0, %s265
    %s266 = sphi 0, %s263
    %s267 = sphi 0, %s266
    %s283 = sphi 0, %s267
  $region4: #{residual_group_forward.1} parent=0 // loop_header_branch
    %20 = sbr.rel (%p18) target = $region8
  $region5: #{residual_group_forward.1} parent=0 // loop_body
    %s22 = ssub.s32 %s17, 1
    %s23 = ssub.s32 %s17, 2
    %s24 = sadd.s32 %s17, 1
    %s25 = ssub.s32 %s17, %s24
    %p26 = scmp.eq.s32.totalorder %s25, 0
    %s28 = sadd.s32 %s27, 1
    %s29 = scalar_select %p26, %s27, %s28
    %p32 = pneg %p26
    %p33 = scmp.eq.s32.totalorder %s17, 1
    %p34 = por %p32, %p33
    %p35 = scmp.ne.s32.totalorder %s27, %s30
    %p36 = scmp.eq.s32.totalorder %s17, 0
    %p37 = por %p35, %p36
    %p38 = scmp.ne.s32.totalorder %s27, %s30
    %p39 = scmp.eq.s32.totalorder %s22, 1
    %p40 = por %p38, %p39
    %p41 = scmp.ne.s32.totalorder %s30, %s31
    %p42 = scmp.eq.s32.totalorder %s22, 0
    %p43 = por %p41, %p42
    %p44 = scmp.ne.s32.totalorder %s30, %s31
    %p45 = scmp.eq.s32.totalorder %s23, 1
    %p46 = por %p44, %p45
    %p48 = scmp.ne.s32.totalorder %s31, %s47
    %p49 = scmp.eq.s32.totalorder %s23, 0
    %p50 = por %p48, %p49
    %s52 = sadd.s32 %s51, 1
    %p55 = scmp.eq.s32.totalorder %s17, 1
    %p56 = scmp.ne.s32.totalorder %s51, %s53
    %p57 = scmp.eq.s32.totalorder %s17, 0
    %p58 = por %p56, %p57
    %p59 = scmp.ne.s32.totalorder %s51, %s53
    %p60 = scmp.eq.s32.totalorder %s22, 1
    %p61 = por %p59, %p60
    %p62 = scmp.ne.s32.totalorder %s53, %s54
    %p63 = scmp.eq.s32.totalorder %s22, 0
    %p64 = por %p62, %p63
    %p65 = scmp.ne.s32.totalorder %s53, %s54
    %p66 = scmp.eq.s32.totalorder %s23, 1
    %p67 = por %p65, %p66
    %p69 = scmp.ne.s32.totalorder %s54, %s68
    %p70 = scmp.eq.s32.totalorder %s23, 0
    %p71 = por %p69, %p70
    %s73 = sadd.s32 %s72, 1
    %p76 = scmp.eq.s32.totalorder %s17, 1
    %p77 = scmp.ne.s32.totalorder %s72, %s74
    %p78 = scmp.eq.s32.totalorder %s17, 0
    %p79 = por %p77, %p78
    %p80 = scmp.ne.s32.totalorder %s72, %s74
    %p81 = scmp.eq.s32.totalorder %s22, 1
    %p82 = por %p80, %p81
    %p83 = scmp.ne.s32.totalorder %s74, %s75
    %p84 = scmp.eq.s32.totalorder %s22, 0
    %p85 = por %p83, %p84
    %p86 = scmp.ne.s32.totalorder %s74, %s75
    %p87 = scmp.eq.s32.totalorder %s23, 1
    %p88 = por %p86, %p87
    %p90 = scmp.ne.s32.totalorder %s75, %s89
    %p91 = scmp.eq.s32.totalorder %s23, 0
    %p92 = por %p90, %p91
    %s94 = sadd.s32 %s93, 1
    %p97 = scmp.eq.s32.totalorder %s17, 1
    %p98 = scmp.ne.s32.totalorder %s93, %s95
    %p99 = scmp.eq.s32.totalorder %s17, 0
    %p100 = por %p98, %p99
    %p101 = scmp.ne.s32.totalorder %s93, %s95
    %p102 = scmp.eq.s32.totalorder %s22, 1
    %p103 = por %p101, %p102
    %p104 = scmp.ne.s32.totalorder %s95, %s96
    %p105 = scmp.eq.s32.totalorder %s22, 0
    %p106 = por %p104, %p105
    %p107 = scmp.ne.s32.totalorder %s95, %s96
    %p108 = scmp.eq.s32.totalorder %s23, 1
    %p109 = por %p107, %p108
    %p111 = scmp.ne.s32.totalorder %s96, %s110
    %p112 = scmp.eq.s32.totalorder %s23, 0
    %p113 = por %p111, %p112
    %s115 = sadd.s32 %s114, 1
    %p118 = scmp.eq.s32.totalorder %s17, 1
    %p119 = scmp.ne.s32.totalorder %s114, %s116
    %p120 = scmp.eq.s32.totalorder %s17, 0
    %p121 = por %p119, %p120
    %p122 = scmp.ne.s32.totalorder %s114, %s116
    %p123 = scmp.eq.s32.totalorder %s22, 1
    %p124 = por %p122, %p123
    %p125 = scmp.ne.s32.totalorder %s116, %s117
    %p126 = scmp.eq.s32.totalorder %s22, 0
    %p127 = por %p125, %p126
    %p128 = scmp.ne.s32.totalorder %s116, %s117
    %p129 = scmp.eq.s32.totalorder %s23, 1
    %p130 = por %p128, %p129
    %p132 = scmp.ne.s32.totalorder %s117, %s131
    %p133 = scmp.eq.s32.totalorder %s23, 0
    %p134 = por %p132, %p133
    %s136 = sadd.s32 %s135, 1
    %p139 = scmp.eq.s32.totalorder %s17, 1
    %p140 = scmp.ne.s32.totalorder %s135, %s137
    %p141 = scmp.eq.s32.totalorder %s17, 0
    %p142 = por %p140, %p141
    %p143 = scmp.ne.s32.totalorder %s135, %s137
    %p144 = scmp.eq.s32.totalorder %s22, 1
    %p145 = por %p143, %p144
    %p146 = scmp.ne.s32.totalorder %s137, %s138
    %p147 = scmp.eq.s32.totalorder %s22, 0
    %p148 = por %p146, %p147
    %p149 = scmp.ne.s32.totalorder %s137, %s138
    %p150 = scmp.eq.s32.totalorder %s23, 1
    %p151 = por %p149, %p150
    %p153 = scmp.ne.s32.totalorder %s138, %s152
    %p154 = scmp.eq.s32.totalorder %s23, 0
    %p155 = por %p153, %p154
    %s157 = sadd.s32 %s156, 1
    %p160 = scmp.eq.s32.totalorder %s17, 1
    %p161 = scmp.ne.s32.totalorder %s156, %s158
    %p162 = scmp.eq.s32.totalorder %s17, 0
    %p163 = por %p161, %p162
    %p164 = scmp.ne.s32.totalorder %s156, %s158
    %p165 = scmp.eq.s32.totalorder %s22, 1
    %p166 = por %p164, %p165
    %p167 = scmp.ne.s32.totalorder %s158, %s159
    %p168 = scmp.eq.s32.totalorder %s22, 0
    %p169 = por %p167, %p168
    %p170 = scmp.ne.s32.totalorder %s158, %s159
    %p171 = scmp.eq.s32.totalorder %s23, 1
    %p172 = por %p170, %p171
    %p174 = scmp.ne.s32.totalorder %s159, %s173
    %p175 = scmp.eq.s32.totalorder %s23, 0
    %p176 = por %p174, %p175
    %s178 = sadd.s32 %s177, 1
    %p181 = scmp.eq.s32.totalorder %s17, 1
    %p182 = scmp.ne.s32.totalorder %s177, %s179
    %p183 = scmp.eq.s32.totalorder %s17, 0
    %p184 = por %p182, %p183
    %p185 = scmp.ne.s32.totalorder %s177, %s179
    %p186 = scmp.eq.s32.totalorder %s22, 1
    %p187 = por %p185, %p186
    %p188 = scmp.ne.s32.totalorder %s179, %s180
    %p189 = scmp.eq.s32.totalorder %s22, 0
    %p190 = por %p188, %p189
    %p191 = scmp.ne.s32.totalorder %s179, %s180
    %p192 = scmp.eq.s32.totalorder %s23, 1
    %p193 = por %p191, %p192
    %p195 = scmp.ne.s32.totalorder %s180, %s194
    %p196 = scmp.eq.s32.totalorder %s23, 0
    %p197 = por %p195, %p196
    %s199 = sadd.s32 %s198, 1
    %p202 = scmp.eq.s32.totalorder %s17, 1
    %p203 = scmp.ne.s32.totalorder %s198, %s200
    %p204 = scmp.eq.s32.totalorder %s17, 0
    %p205 = por %p203, %p204
    %p206 = scmp.ne.s32.totalorder %s198, %s200
    %p207 = scmp.eq.s32.totalorder %s22, 1
    %p208 = por %p206, %p207
    %p209 = scmp.ne.s32.totalorder %s200, %s201
    %p210 = scmp.eq.s32.totalorder %s22, 0
    %p211 = por %p209, %p210
    %p212 = scmp.ne.s32.totalorder %s200, %s201
    %p213 = scmp.eq.s32.totalorder %s23, 1
    %p214 = por %p212, %p213
    %p216 = scmp.ne.s32.totalorder %s201, %s215
    %p217 = scmp.eq.s32.totalorder %s23, 0
    %p218 = por %p216, %p217
    %s220 = sadd.s32 %s219, 1
    %p223 = scmp.eq.s32.totalorder %s17, 1
    %p224 = scmp.ne.s32.totalorder %s219, %s221
    %p225 = scmp.eq.s32.totalorder %s17, 0
    %p226 = por %p224, %p225
    %p227 = scmp.ne.s32.totalorder %s219, %s221
    %p228 = scmp.eq.s32.totalorder %s22, 1
    %p229 = por %p227, %p228
    %p230 = scmp.ne.s32.totalorder %s221, %s222
    %p231 = scmp.eq.s32.totalorder %s22, 0
    %p232 = por %p230, %p231
    %p233 = scmp.ne.s32.totalorder %s221, %s222
    %p234 = scmp.eq.s32.totalorder %s23, 1
    %p235 = por %p233, %p234
    %p237 = scmp.ne.s32.totalorder %s222, %s236
    %p238 = scmp.eq.s32.totalorder %s23, 0
    %p239 = por %p237, %p238
    %s241 = sadd.s32 %s240, 1
    %p244 = scmp.eq.s32.totalorder %s17, 1
    %p245 = scmp.ne.s32.totalorder %s240, %s242
    %p246 = scmp.eq.s32.totalorder %s17, 0
    %p247 = por %p245, %p246
    %p248 = scmp.ne.s32.totalorder %s240, %s242
    %p249 = scmp.eq.s32.totalorder %s22, 1
    %p250 = por %p248, %p249
    %p251 = scmp.ne.s32.totalorder %s242, %s243
    %p252 = scmp.eq.s32.totalorder %s22, 0
    %p253 = por %p251, %p252
    %p254 = scmp.ne.s32.totalorder %s242, %s243
    %p255 = scmp.eq.s32.totalorder %s23, 1
    %p256 = por %p254, %p255
    %p258 = scmp.ne.s32.totalorder %s243, %s257
    %p259 = scmp.eq.s32.totalorder %s23, 0
    %p260 = por %p258, %p259
    %s261 = ssub.s32 %s17, %s24
    %p262 = scmp.eq.s32.totalorder %s261, 0
    %s264 = sadd.s32 %s263, 1
    %s265 = scalar_select %p262, %s263, %s264
    %p268 = pneg %p262
    %p269 = scmp.eq.s32.totalorder %s17, 1
    %p270 = por %p268, %p269
    %p271 = scmp.ne.s32.totalorder %s263, %s266
    %p272 = scmp.eq.s32.totalorder %s17, 0
    %p273 = por %p271, %p272
    %p274 = scmp.ne.s32.totalorder %s263, %s266
    %p275 = scmp.eq.s32.totalorder %s22, 1
    %p276 = por %p274, %p275
    %p277 = scmp.ne.s32.totalorder %s266, %s267
    %p278 = scmp.eq.s32.totalorder %s22, 0
    %p279 = por %p277, %p278
    %p280 = scmp.ne.s32.totalorder %s266, %s267
    %p281 = scmp.eq.s32.totalorder %s23, 1
    %p282 = por %p280, %p281
    %p284 = scmp.ne.s32.totalorder %s267, %s283
    %p285 = scmp.eq.s32.totalorder %s23, 0
    %p286 = por %p284, %p285
    %p287 = scmp.le.s32.totalorder 1, %s17
    %p288 = scmp.lt.s32.totalorder %s17, 3
    %p289 = pnand %p287, %p288
    %p290 = pneg %p289
    // Predicated region
    $region9: #{residual_group_forward.1} parent=5 // pred_check
      _
    $region10: #{residual_group_forward.1} parent=5 // pred_check_branch
      %292 = sbr.rel (%p289) target = $region12
    $region11: #{residual_group_forward.1} parent=5 // pred_region
      %s293 = ssub.s32 %s17, 1
      // Predicated region
      $region13: #{residual_group_forward.1} parent=11 // pred_check
        %p294 = pneg %p64
      $region14: #{residual_group_forward.1} parent=11 // pred_check_branch
        %296 = sbr.rel (%p294) target = $region16
      $region15: #{residual_group_forward.1} parent=11 // pred_region
        _
      $region16: #{residual_group_forward.1} parent=11 // pred_fallthru
        _
      // Predicated region
      $region17: #{residual_group_forward.1} parent=11 // pred_check
        %p297 = pneg %p85
      $region18: #{residual_group_forward.1} parent=11 // pred_check_branch
        %299 = sbr.rel (%p297) target = $region20
      $region19: #{residual_group_forward.1} parent=11 // pred_region
        _
      $region20: #{residual_group_forward.1} parent=11 // pred_fallthru
        _
      // Predicated region
      $region21: #{residual_group_forward.1} parent=11 // pred_check
        %p300 = pneg %p106
      $region22: #{residual_group_forward.1} parent=11 // pred_check_branch
        %302 = sbr.rel (%p300) target = $region24
      $region23: #{residual_group_forward.1} parent=11 // pred_region
        _
      $region24: #{residual_group_forward.1} parent=11 // pred_fallthru
        _
      // Predicated region
      $region25: #{residual_group_forward.1} parent=11 // pred_check
        %p303 = pneg %p127
      $region26: #{residual_group_forward.1} parent=11 // pred_check_branch
        %305 = sbr.rel (%p303) target = $region28
      $region27: #{residual_group_forward.1} parent=11 // pred_region
        _
      $region28: #{residual_group_forward.1} parent=11 // pred_fallthru
        _
      // Predicated region
      $region29: #{residual_group_forward.1} parent=11 // pred_check
        %p306 = pneg %p148
      $region30: #{residual_group_forward.1} parent=11 // pred_check_branch
        %308 = sbr.rel (%p306) target = $region32
      $region31: #{residual_group_forward.1} parent=11 // pred_region
        _
      $region32: #{residual_group_forward.1} parent=11 // pred_fallthru
        _
      // Predicated region
      $region33: #{residual_group_forward.1} parent=11 // pred_check
        %p309 = pneg %p169
      $region34: #{residual_group_forward.1} parent=11 // pred_check_branch
        %311 = sbr.rel (%p309) target = $region36
      $region35: #{residual_group_forward.1} parent=11 // pred_region
        _
      $region36: #{residual_group_forward.1} parent=11 // pred_fallthru
        _
      // Predicated region
      $region37: #{residual_group_forward.1} parent=11 // pred_check
        %p312 = pneg %p190
      $region38: #{residual_group_forward.1} parent=11 // pred_check_branch
        %314 = sbr.rel (%p312) target = $region40
      $region39: #{residual_group_forward.1} parent=11 // pred_region
        _
      $region40: #{residual_group_forward.1} parent=11 // pred_fallthru
        _
      // Predicated region
      $region41: #{residual_group_forward.1} parent=11 // pred_check
        %p315 = pneg %p211
      $region42: #{residual_group_forward.1} parent=11 // pred_check_branch
        %317 = sbr.rel (%p315) target = $region44
      $region43: #{residual_group_forward.1} parent=11 // pred_region
        _
      $region44: #{residual_group_forward.1} parent=11 // pred_fallthru
        _
      // Predicated region
      $region45: #{residual_group_forward.1} parent=11 // pred_check
        %p318 = pneg %p232
      $region46: #{residual_group_forward.1} parent=11 // pred_check_branch
        %320 = sbr.rel (%p318) target = $region48
      $region47: #{residual_group_forward.1} parent=11 // pred_region
        _
      $region48: #{residual_group_forward.1} parent=11 // pred_fallthru
        _
      // Predicated region
      $region49: #{residual_group_forward.1} parent=11 // pred_check
        %p321 = pneg %p253
      $region50: #{residual_group_forward.1} parent=11 // pred_check_branch
        %323 = sbr.rel (%p321) target = $region52
      $region51: #{residual_group_forward.1} parent=11 // pred_region
        _
      $region52: #{residual_group_forward.1} parent=11 // pred_fallthru
        _
    $region12: #{residual_group_forward.1} parent=5 // pred_fallthru
      _
    %p324 = scmp.lt.s32.totalorder %s17, 2
    // Predicated region
    $region53: #{residual_group_forward.1} parent=5 // pred_check
      %p325 = pneg %p324
    $region54: #{residual_group_forward.1} parent=5 // pred_check_branch
      %327 = sbr.rel (%p325) target = $region56
    $region55: #{residual_group_forward.1} parent=5 // pred_region
      // Predicated region
      $region57: #{residual_group_forward.1} parent=55 // pred_check
        %p328 = pneg %p37
      $region58: #{residual_group_forward.1} parent=55 // pred_check_branch
        %330 = sbr.rel (%p328) target = $region60
      $region59: #{residual_group_forward.1} parent=55 // pred_region
        %p331 = scmp.lt.s32.totalorder %s17, 1
        %s332 = scalar_select %p331, %s17, 1
        %s333 = smul.addr %s332, 32
        %s334 = smul.addr %s333, 8
        %s335 = scalar_lea.vmem %s0, %s334
      $region60: #{residual_group_forward.1} parent=55 // pred_fallthru
        _
    $region56: #{residual_group_forward.1} parent=5 // pred_fallthru
      _
    %p336 = scmp.le.s32.totalorder 1, %s17
    %p337 = scmp.lt.s32.totalorder %s17, 3
    %p338 = pnand %p336, %p337
    %p339 = pneg %p338
    // Predicated region
    $region61: #{residual_group_forward.1} parent=5 // pred_check
      _
    $region62: #{residual_group_forward.1} parent=5 // pred_check_branch
      %341 = sbr.rel (%p338) target = $region64
    $region63: #{residual_group_forward.1} parent=5 // pred_region
      %s342 = ssub.s32 %s17, 1
      %p343 = scmp.lt.s32.totalorder %s22, 1
      %s344 = scalar_select %p343, %s22, 1
      %s345 = smul.addr %s344, 32
      %s346 = smul.addr %s345, 8
      %s347 = scalar_lea.vmem %s0, %s346
      %p348 = pneg %p43
      %p349 = pneg %p40
      %p350 = pneg %p64
      %p351 = pneg %p61
      %p352 = pneg %p85
      %p353 = pneg %p82
      %p354 = pneg %p106
      %p355 = pneg %p103
      %p356 = pneg %p127
      %p357 = pneg %p124
      %p358 = pneg %p148
      %p359 = pneg %p145
      %p360 = pneg %p169
      %p361 = pneg %p166
      %p362 = pneg %p190
      %p363 = pneg %p187
      %p364 = pneg %p211
      %p365 = pneg %p208
      %p366 = pneg %p232
      %p367 = pneg %p229
      %p368 = pneg %p253
      %p369 = pneg %p250
      %p370 = pneg %p279
      %p371 = pneg %p276
      %p372 = scmp.lt.s32.totalorder %s22, 1
      %s373 = scalar_select %p372, %s22, 1
      %s374 = smul.addr %s373, 32
      %s375 = smul.addr %s374, 8
      %s376 = scalar_lea.vmem %s11, %s375
      %p377 = scmp.lt.s32.totalorder %s22, 1
      %s378 = scalar_select %p377, %s22, 1
      %s379 = smul.addr %s378, 32
      %s380 = smul.addr %s379, 8
      %s381 = scalar_lea.vmem %s0, %s380
      %p382 = scmp.lt.s32.totalorder %s22, 1
      %s383 = scalar_select %p382, %s22, 1
      %s384 = smul.addr %s383, 32
      %s385 = smul.addr %s384, 8
      %s386 = scalar_lea.vmem %s11, %s385
      %vm387 = vcmask 31744
      %388 = vst.msk [vmem:[#allocation2] sm:$0xff] %vm387, 0.0
      %389 = vst.msk [vmem:[#allocation2 + $0x8] sm:$0xff] %vm387, 0.0
      %vm390 = vcmask 25600
      %391 = vst.msk [vmem:[#allocation2 + $0x10] sm:$0x3] %vm390, 0.0
      %392 = vst.msk [vmem:[#allocation2 + $0x18] sm:$0xff] %vm387, 0.0
      %393 = vst.msk [vmem:[#allocation2 + $0x20] sm:$0xff] %vm387, 0.0
      %394 = vst.msk [vmem:[#allocation2 + $0x28] sm:$0x3] %vm390, 0.0
      %395 = vst.msk [vmem:[#allocation2 + $0x30] sm:$0xff] %vm387, 0.0
      %396 = vst.msk [vmem:[#allocation2 + $0x38] sm:$0xff] %vm387, 0.0
      %397 = vst.msk [vmem:[#allocation2 + $0x40] sm:$0x3] %vm390, 0.0
      %398 = vst.msk [vmem:[#allocation2 + $0x48] sm:$0xff] %vm387, 0.0
      %399 = vst.msk [vmem:[#allocation2 + $0x50] sm:$0xff] %vm387, 0.0
      %400 = vst.msk [vmem:[#allocation2 + $0x58] sm:$0x3] %vm390, 0.0
      %401 = vst.msk [vmem:[#allocation2 + $0x60] sm:$0xff] %vm387, 0.0
      %402 = vst.msk [vmem:[#allocation2 + $0x68] sm:$0xff] %vm387, 0.0
      %403 = vst.msk [vmem:[#allocation2 + $0x70] sm:$0x3] %vm390, 0.0
      %404 = vst.msk [vmem:[#allocation2 + $0x78] sm:$0xff] %vm387, 0.0
      %405 = vst.msk [vmem:[#allocation2 + $0x80] sm:$0xff] %vm387, 0.0
      %406 = vst.msk [vmem:[#allocation2 + $0x88] sm:$0x3] %vm390, 0.0
      %407 = vst.msk [vmem:[#allocation2 + $0x90] sm:$0xff] %vm387, 0.0
      %408 = vst.msk [vmem:[#allocation2 + $0x98] sm:$0xff] %vm387, 0.0
      %409 = vst.msk [vmem:[#allocation2 + $0xa0] sm:$0x3] %vm390, 0.0
      %410 = vst.msk [vmem:[#allocation2 + $0xa8] sm:$0xff] %vm387, 0.0
      %411 = vst.msk [vmem:[#allocation2 + $0xb0] sm:$0xff] %vm387, 0.0
      %412 = vst.msk [vmem:[#allocation2 + $0xb8] sm:$0x3] %vm390, 0.0
      %413 = vst.msk [vmem:[#allocation2 + $0xc0] sm:$0xff] %vm387, 0.0
      %414 = vst.msk [vmem:[#allocation2 + $0xc8] sm:$0xff] %vm387, 0.0
      %415 = vst.msk [vmem:[#allocation2 + $0xd0] sm:$0x3] %vm390, 0.0
      %416 = vst.msk [vmem:[#allocation2 + $0xd8] sm:$0xff] %vm387, 0.0
      %417 = vst.msk [vmem:[#allocation2 + $0xe0] sm:$0xff] %vm387, 0.0
      %418 = vst.msk [vmem:[#allocation2 + $0xe8] sm:$0x3] %vm390, 0.0
      %419 = vst.msk [vmem:[#allocation2 + $0xf0] sm:$0xff] %vm387, 0.0
      %420 = vst.msk [vmem:[#allocation2 + $0xf8] sm:$0xff] %vm387, 0.0
      %421 = vst.msk [vmem:[#allocation2 + $0x100] sm:$0x3] %vm390, 0.0
      %422 = vst.msk [vmem:[#allocation2 + $0x108] sm:$0xff] %vm387, 0.0
      %423 = vst.msk [vmem:[#allocation2 + $0x110] sm:$0xff] %vm387, 0.0
      %424 = vst.msk [vmem:[#allocation2 + $0x118] sm:$0x3] %vm390, 0.0
      %425 = vst.msk [vmem:[#allocation2 + $0x120] sm:$0xff] %vm387, 0.0
      %426 = vst.msk [vmem:[#allocation2 + $0x128] sm:$0xff] %vm387, 0.0
      %427 = vst.msk [vmem:[#allocation2 + $0x130] sm:$0x3] %vm390, 0.0
      %428 = vst.msk [vmem:[#allocation2 + $0x138] sm:$0xff] %vm387, 0.0
      %429 = vst.msk [vmem:[#allocation2 + $0x140] sm:$0xff] %vm387, 0.0
      %430 = vst.msk [vmem:[#allocation2 + $0x148] sm:$0x3] %vm390, 0.0
      %431 = vst.msk [vmem:[#allocation2 + $0x150] sm:$0xff] %vm387, 0.0
      %432 = vst.msk [vmem:[#allocation2 + $0x158] sm:$0xff] %vm387, 0.0
      %433 = vst.msk [vmem:[#allocation2 + $0x160] sm:$0x3] %vm390, 0.0
      %434 = vst.msk [vmem:[#allocation2 + $0x168] sm:$0xff] %vm387, 0.0
      %435 = vst.msk [vmem:[#allocation2 + $0x170] sm:$0xff] %vm387, 0.0
      %436 = vst.msk [vmem:[#allocation2 + $0x178] sm:$0x3] %vm390, 0.0
      %437 = vst.msk [vmem:[#allocation2 + $0x180] sm:$0xff] %vm387, 0.0
      %438 = vst.msk [vmem:[#allocation2 + $0x188] sm:$0xff] %vm387, 0.0
      %439 = vst.msk [vmem:[#allocation2 + $0x190] sm:$0x3] %vm390, 0.0
      %440 = vst.msk [vmem:[#allocation2 + $0x198] sm:$0xff] %vm387, 0.0
      %441 = vst.msk [vmem:[#allocation2 + $0x1a0] sm:$0xff] %vm387, 0.0
      %442 = vst.msk [vmem:[#allocation2 + $0x1a8] sm:$0x3] %vm390, 0.0
      %v443 = vld [vmem:[%s381] sm:$0xff]
      %v444 = vld [vmem:[%s381 + $0x8] sm:$0xff]
      %v445 = vld [vmem:[%s381 + $0x10] sm:$0xff]
      %v446 = vld [vmem:[%s381 + $0x18] sm:$0xff]
      %v447 = vld [vmem:[%s381 + $0x20] sm:$0xff]
      %v448 = vld [vmem:[%s381 + $0x28] sm:$0xff]
      %v449 = vld [vmem:[%s381 + $0x30] sm:$0xff]
      %v450 = vld [vmem:[%s381 + $0x38] sm:$0xff]
      %v451 = vld [vmem:[%s381 + $0x40] sm:$0xff]
      %v452 = vld [vmem:[%s381 + $0x48] sm:$0xff]
      %v453 = vld [vmem:[%s381 + $0x50] sm:$0xff]
      %v454 = vld [vmem:[%s381 + $0x58] sm:$0xff]
      %v455 = vld [vmem:[%s381 + $0x60] sm:$0xff]
      %v456 = vld [vmem:[%s381 + $0x68] sm:$0xff]
      %v457 = vld [vmem:[%s381 + $0x70] sm:$0xff]
      %v458 = vld [vmem:[%s381 + $0x78] sm:$0xff]
      %v459 = vld [vmem:[%s381 + $0x80] sm:$0xff]
      %v460 = vld [vmem:[%s381 + $0x88] sm:$0xff]
      %v461 = vld [vmem:[%s381 + $0x90] sm:$0xff]
      %v462 = vld [vmem:[%s381 + $0x98] sm:$0xff]
      %v463 = vld [vmem:[%s381 + $0xa0] sm:$0xff]
      %v464 = vld [vmem:[%s381 + $0xa8] sm:$0xff]
      %v465 = vld [vmem:[%s381 + $0xb0] sm:$0xff]
      %v466 = vld [vmem:[%s381 + $0xb8] sm:$0xff]
      %v467 = vld [vmem:[%s381 + $0xc0] sm:$0xff]
      %v468 = vld [vmem:[%s381 + $0xc8] sm:$0xff]
      %v469 = vld [vmem:[%s381 + $0xd0] sm:$0xff]
      %v470 = vld [vmem:[%s381 + $0xd8] sm:$0xff]
      %v471 = vld [vmem:[%s381 + $0xe0] sm:$0xff]
      %v472 = vld [vmem:[%s381 + $0xe8] sm:$0xff]
      %v473 = vld [vmem:[%s381 + $0xf0] sm:$0xff]
      %v474 = vld [vmem:[%s381 + $0xf8] sm:$0xff]
      loop: start=0, step=1, limit=20
      $region65: #{residual_group_forward.1} parent=63 // loop_pre_header
        _
      $region66: #{residual_group_forward.1} parent=63 // loop_header
        %s476 = sphi 0, %s480
        %p477 = scmp.ge.s32.totalorder %s476, 20
        %v481 = vphi %v443, %v6520
        %v482 = vphi %v444, %v6521
        %v483 = vphi %v445, %v6522
        %v484 = vphi %v446, %v6523
        %v485 = vphi %v447, %v6524
        %v486 = vphi %v448, %v6525
        %v487 = vphi %v449, %v6526
        %v488 = vphi %v450, %v6527
        %v489 = vphi %v451, %v6528
        %v490 = vphi %v452, %v6529
        %v491 = vphi %v453, %v6530
        %v492 = vphi %v454, %v6531
        %v493 = vphi %v455, %v6532
        %v494 = vphi %v456, %v6533
        %v495 = vphi %v457, %v6534
        %v496 = vphi %v458, %v6535
        %v497 = vphi %v459, %v6536
        %v498 = vphi %v460, %v6537
        %v499 = vphi %v461, %v6538
        %v500 = vphi %v462, %v6539
        %v501 = vphi %v463, %v6540
        %v502 = vphi %v464, %v6541
        %v503 = vphi %v465, %v6542
        %v504 = vphi %v466, %v6543
        %v505 = vphi %v467, %v6544
        %v506 = vphi %v468, %v6545
        %v507 = vphi %v469, %v6546
        %v508 = vphi %v470, %v6547
        %v509 = vphi %v471, %v6548
        %v510 = vphi %v472, %v6549
        %v511 = vphi %v473, %v6550
        %v512 = vphi %v474, %v6551
      $region67: #{residual_group_forward.1} parent=63 // loop_header_branch
        %479 = sbr.rel (%p477) target = $region71
      $region68: #{residual_group_forward.1} parent=63 // loop_body
        %s513 = smul.u32 %s476, 36
        %s514 = scalar_lea.vmem %s1, %s513
        %v515 = vld [vmem:[%s514] sm:$0xf]
        %v516 = vld [vmem:[%s514 + $0x4] sm:$0xf]
        %v517 = vld [vmem:[%s514 + $0x8] sm:$0xf]
        %v518 = vld [vmem:[%s514 + $0xc] sm:$0xf]
        %v519 = vld [vmem:[%s514 + $0x10] sm:$0xf]
        %v520 = vld [vmem:[%s514 + $0x14] sm:$0xf]
        %v521 = vld [vmem:[%s514 + $0x18] sm:$0xf]
        %v522 = vld [vmem:[%s514 + $0x1c] sm:$0xf]
        %v523 = vld [vmem:[%s514 + $0x20] sm:$0xf]
        %s524 = scalar_lea.vmem %s2, %s476
        %v525 = vld [vmem:[%s524] sm:$0x1]
        %s526 = scalar_lea.vmem [#allocation2], 24
        %527 = vst.msk [vmem:[%s526 + $0x1] sm:$0xff] %vm387, %v481
        %528 = vst.msk [vmem:[%s526 + $0x9] sm:$0xff] %vm387, %v482
        %529 = vst.msk [vmem:[%s526 + $0x19] sm:$0xff] %vm387, %v483
        %530 = vst.msk [vmem:[%s526 + $0x21] sm:$0xff] %vm387, %v484
        %531 = vst.msk [vmem:[%s526 + $0x31] sm:$0xff] %vm387, %v485
        %532 = vst.msk [vmem:[%s526 + $0x39] sm:$0xff] %vm387, %v486
        %533 = vst.msk [vmem:[%s526 + $0x49] sm:$0xff] %vm387, %v487
        %534 = vst.msk [vmem:[%s526 + $0x51] sm:$0xff] %vm387, %v488
        %535 = vst.msk [vmem:[%s526 + $0x61] sm:$0xff] %vm387, %v489
        %536 = vst.msk [vmem:[%s526 + $0x69] sm:$0xff] %vm387, %v490
        %537 = vst.msk [vmem:[%s526 + $0x79] sm:$0xff] %vm387, %v491
        %538 = vst.msk [vmem:[%s526 + $0x81] sm:$0xff] %vm387, %v492
        %539 = vst.msk [vmem:[%s526 + $0x91] sm:$0xff] %vm387, %v493
        %540 = vst.msk [vmem:[%s526 + $0x99] sm:$0xff] %vm387, %v494
        %541 = vst.msk [vmem:[%s526 + $0xa9] sm:$0xff] %vm387, %v495
        %542 = vst.msk [vmem:[%s526 + $0xb1] sm:$0xff] %vm387, %v496
        %543 = vst.msk [vmem:[%s526 + $0xc1] sm:$0xff] %vm387, %v497
        %544 = vst.msk [vmem:[%s526 + $0xc9] sm:$0xff] %vm387, %v498
        %545 = vst.msk [vmem:[%s526 + $0xd9] sm:$0xff] %vm387, %v499
        %546 = vst.msk [vmem:[%s526 + $0xe1] sm:$0xff] %vm387, %v500
        %547 = vst.msk [vmem:[%s526 + $0xf1] sm:$0xff] %vm387, %v501
        %548 = vst.msk [vmem:[%s526 + $0xf9] sm:$0xff] %vm387, %v502
        %549 = vst.msk [vmem:[%s526 + $0x109] sm:$0xff] %vm387, %v503
        %550 = vst.msk [vmem:[%s526 + $0x111] sm:$0xff] %vm387, %v504
        %551 = vst.msk [vmem:[%s526 + $0x121] sm:$0xff] %vm387, %v505
        %552 = vst.msk [vmem:[%s526 + $0x129] sm:$0xff] %vm387, %v506
        %553 = vst.msk [vmem:[%s526 + $0x139] sm:$0xff] %vm387, %v507
        %554 = vst.msk [vmem:[%s526 + $0x141] sm:$0xff] %vm387, %v508
        %555 = vst.msk [vmem:[%s526 + $0x151] sm:$0xff] %vm387, %v509
        %556 = vst.msk [vmem:[%s526 + $0x159] sm:$0xff] %vm387, %v510
        %557 = vst.msk [vmem:[%s526 + $0x169] sm:$0xff] %vm387, %v511
        %558 = vst.msk [vmem:[%s526 + $0x171] sm:$0xff] %vm387, %v512
        %v559 = vld [vmem:[#allocation2] sm:$0xff]
        %v560 = vld [vmem:[#allocation2 + $0x8] sm:$0xff]
        %v561 = vld [vmem:[#allocation2 + $0x10] sm:$0x3]
        %v562 = vld [vmem:[#allocation2 + $0x18] sm:$0xff]
        %v563 = vld [vmem:[#allocation2 + $0x20] sm:$0xff]
        %v564 = vld [vmem:[#allocation2 + $0x28] sm:$0x3]
        %v565 = vld [vmem:[#allocation2 + $0x30] sm:$0xff]
        %v566 = vld [vmem:[#allocation2 + $0x38] sm:$0xff]
        %v567 = vld [vmem:[#allocation2 + $0x40] sm:$0x3]
        %v568 = vld [vmem:[#allocation2 + $0x48] sm:$0xff]
        %v569 = vld [vmem:[#allocation2 + $0x50] sm:$0xff]
        %v570 = vld [vmem:[#allocation2 + $0x58] sm:$0x3]
        %v571 = vld [vmem:[#allocation2 + $0x60] sm:$0xff]
        %v572 = vld [vmem:[#allocation2 + $0x68] sm:$0xff]
        %v573 = vld [vmem:[#allocation2 + $0x70] sm:$0x3]
        %v574 = vld [vmem:[#allocation2 + $0x78] sm:$0xff]
        %v575 = vld [vmem:[#allocation2 + $0x80] sm:$0xff]
        %v576 = vld [vmem:[#allocation2 + $0x88] sm:$0x3]
        %v577 = vld [vmem:[#allocation2 + $0x90] sm:$0xff]
        %v578 = vld [vmem:[#allocation2 + $0x98] sm:$0xff]
        %v579 = vld [vmem:[#allocation2 + $0xa0] sm:$0x3]
        %v580 = vld [vmem:[#allocation2 + $0xa8] sm:$0xff]
        %v581 = vld [vmem:[#allocation2 + $0xb0] sm:$0xff]
        %v582 = vld [vmem:[#allocation2 + $0xb8] sm:$0x3]
        %v583 = vld [vmem:[#allocation2 + $0xc0] sm:$0xff]
        %v584 = vld [vmem:[#allocation2 + $0xc8] sm:$0xff]
        %v585 = vld [vmem:[#allocation2 + $0xd0] sm:$0x3]
        %v586 = vld [vmem:[#allocation2 + $0xd8] sm:$0xff]
        %v587 = vld [vmem:[#allocation2 + $0xe0] sm:$0xff]
        %v588 = vld [vmem:[#allocation2 + $0xe8] sm:$0x3]
        %v589 = vld [vmem:[#allocation2 + $0xf0] sm:$0xff]
        %v590 = vld [vmem:[#allocation2 + $0xf8] sm:$0xff]
        %v591 = vld [vmem:[#allocation2 + $0x100] sm:$0x3]
        %v592 = vld [vmem:[#allocation2 + $0x108] sm:$0xff]
        %v593 = vld [vmem:[#allocation2 + $0x110] sm:$0xff]
        %v594 = vld [vmem:[#allocation2 + $0x118] sm:$0x3]
        %v595 = vld [vmem:[#allocation2 + $0x120] sm:$0xff]
        %v596 = vld [vmem:[#allocation2 + $0x128] sm:$0xff]
        %v597 = vld [vmem:[#allocation2 + $0x130] sm:$0x3]
        %v598 = vld [vmem:[#allocation2 + $0x138] sm:$0xff]
        %v599 = vld [vmem:[#allocation2 + $0x140] sm:$0xff]
        %v600 = vld [vmem:[#allocation2 + $0x148] sm:$0x3]
        %v601 = vld [vmem:[#allocation2 + $0x150] sm:$0xff]
        %v602 = vld [vmem:[#allocation2 + $0x158] sm:$0xff]
        %v603 = vld [vmem:[#allocation2 + $0x160] sm:$0x3]
        %v604 = vld [vmem:[#allocation2 + $0x168] sm:$0xff]
        %v605 = vld [vmem:[#allocation2 + $0x170] sm:$0xff]
        %v606 = vld [vmem:[#allocation2 + $0x178] sm:$0x3]
        %v607 = vld [vmem:[#allocation2 + $0x180] sm:$0xff]
        %v608 = vld [vmem:[#allocation2 + $0x188] sm:$0xff]
        %v609 = vld [vmem:[#allocation2 + $0x190] sm:$0x3]
        %v610 = vld [vmem:[#allocation2 + $0x198] sm:$0xff]
        %v611 = vld [vmem:[#allocation2 + $0x1a0] sm:$0xff]
        %v612 = vld [vmem:[#allocation2 + $0x1a8] sm:$0x3]
        %vm661 = vcmask 1046528
        %v662 = vrot.slane %v559, 1
        %v663 = vrot.slane %v560, 1
        %v664 = vsel %vm661, %v662, %v663
        %v665 = vrot.slane %v561, 1
        %v666 = vsel %vm661, %v663, %v665
        %v667 = vrot.slane %v562, 1
        %v668 = vrot.slane %v563, 1
        %v669 = vsel %vm661, %v667, %v668
        %v670 = vrot.slane %v564, 1
        %v671 = vsel %vm661, %v668, %v670
        %v672 = vrot.slane %v565, 1
        %v673 = vrot.slane %v566, 1
        %v674 = vsel %vm661, %v672, %v673
        %v675 = vrot.slane %v567, 1
        %v676 = vsel %vm661, %v673, %v675
        %v677 = vrot.slane %v568, 1
        %v678 = vrot.slane %v569, 1
        %v679 = vsel %vm661, %v677, %v678
        %v680 = vrot.slane %v570, 1
        %v681 = vsel %vm661, %v678, %v680
        %v682 = vrot.slane %v571, 1
        %v683 = vrot.slane %v572, 1
        %v684 = vsel %vm661, %v682, %v683
        %v685 = vrot.slane %v573, 1
        %v686 = vsel %vm661, %v683, %v685
        %v687 = vrot.slane %v574, 1
        %v688 = vrot.slane %v575, 1
        %v689 = vsel %vm661, %v687, %v688
        %v690 = vrot.slane %v576, 1
        %v691 = vsel %vm661, %v688, %v690
        %v692 = vrot.slane %v577, 1
        %v693 = vrot.slane %v578, 1
        %v694 = vsel %vm661, %v692, %v693
        %v695 = vrot.slane %v579, 1
        %v696 = vsel %vm661, %v693, %v695
        %v697 = vrot.slane %v580, 1
        %v698 = vrot.slane %v581, 1
        %v699 = vsel %vm661, %v697, %v698
        %v700 = vrot.slane %v582, 1
        %v701 = vsel %vm661, %v698, %v700
        %v702 = vrot.slane %v583, 1
        %v703 = vrot.slane %v584, 1
        %v704 = vsel %vm661, %v702, %v703
        %v705 = vrot.slane %v585, 1
        %v706 = vsel %vm661, %v703, %v705
        %v707 = vrot.slane %v586, 1
        %v708 = vrot.slane %v587, 1
        %v709 = vsel %vm661, %v707, %v708
        %v710 = vrot.slane %v588, 1
        %v711 = vsel %vm661, %v708, %v710
        %v712 = vrot.slane %v589, 1
        %v713 = vrot.slane %v590, 1
        %v714 = vsel %vm661, %v712, %v713
        %v715 = vrot.slane %v591, 1
        %v716 = vsel %vm661, %v713, %v715
        %v717 = vrot.slane %v592, 1
        %v718 = vrot.slane %v593, 1
        %v719 = vsel %vm661, %v717, %v718
        %v720 = vrot.slane %v594, 1
        %v721 = vsel %vm661, %v718, %v720
        %v722 = vrot.slane %v595, 1
        %v723 = vrot.slane %v596, 1
        %v724 = vsel %vm661, %v722, %v723
        %v725 = vrot.slane %v597, 1
        %v726 = vsel %vm661, %v723, %v725
        %v727 = vrot.slane %v598, 1
        %v728 = vrot.slane %v599, 1
        %v729 = vsel %vm661, %v727, %v728
        %v730 = vrot.slane %v600, 1
        %v731 = vsel %vm661, %v728, %v730
        %v732 = vrot.slane %v601, 1
        %v733 = vrot.slane %v602, 1
        %v734 = vsel %vm661, %v732, %v733
        %v735 = vrot.slane %v603, 1
        %v736 = vsel %vm661, %v733, %v735
        %v737 = vrot.slane %v604, 1
        %v738 = vrot.slane %v605, 1
        %v739 = vsel %vm661, %v737, %v738
        %v740 = vrot.slane %v606, 1
        %v741 = vsel %vm661, %v738, %v740
        %v742 = vsel %vm387, %v664, 0
        %v744 = vsel %vm387, %v666, 0
        %v746 = vsel %vm387, %v669, 0
        %v748 = vsel %vm387, %v671, 0
        %v750 = vsel %vm387, %v674, 0
        %v752 = vsel %vm387, %v676, 0
        %v754 = vsel %vm387, %v679, 0
        %v756 = vsel %vm387, %v681, 0
        %v758 = vsel %vm387, %v684, 0
        %v760 = vsel %vm387, %v686, 0
        %v762 = vsel %vm387, %v689, 0
        %v764 = vsel %vm387, %v691, 0
        %v766 = vsel %vm387, %v694, 0
        %v768 = vsel %vm387, %v696, 0
        %v770 = vsel %vm387, %v699, 0
        %v772 = vsel %vm387, %v701, 0
        %v774 = vsel %vm387, %v704, 0
        %v776 = vsel %vm387, %v706, 0
        %v778 = vsel %vm387, %v709, 0
        %v780 = vsel %vm387, %v711, 0
        %v782 = vsel %vm387, %v714, 0
        %v784 = vsel %vm387, %v716, 0
        %v786 = vsel %vm387, %v719, 0
        %v788 = vsel %vm387, %v721, 0
        %v790 = vsel %vm387, %v724, 0
        %v792 = vsel %vm387, %v726, 0
        %v794 = vsel %vm387, %v729, 0
        %v796 = vsel %vm387, %v731, 0
        %v798 = vsel %vm387, %v734, 0
        %v800 = vsel %vm387, %v736, 0
        %v802 = vsel %vm387, %v739, 0
        %v804 = vsel %vm387, %v741, 0
        %vm806 = vcmask 1043456
        %v808 = vsel %vm806, %v516, 0
        %810 = vmatprep.subr.mxu0 0.0
        %811 = vmatpush1.msra.mxu0 0.0
        %812 = vmatprep.subr.mxu0 0.0
        %813 = vmatpush1.msra.mxu0 0.0
        %814 = vmatprep.subr.mxu0 0.0
        %815 = vmatpush1.msra.mxu0 0.0
        %816 = vmatprep.subr.mxu0 0.0
        %817 = vmatpush1.msra.mxu0 0.0
        %818 = vmatprep.subr.mxu0 0.0
        %819 = vmatpush1.msra.mxu0 0.0
        %820 = vmatprep.subr.mxu0 0.0
        %821 = vmatpush1.msra.mxu0 0.0
        %822 = vmatprep.subr.mxu0 0.0
        %823 = vmatpush1.msra.mxu0 0.0
        %824 = vmatprep.subr.mxu0 0.0
        %825 = vmatpush1.msra.mxu0 0.0
        %826 = vmatprep.subr.mxu0 0.0
        %827 = vmatpush1.msra.mxu0 0.0
        %828 = vmatprep.subr.mxu0 0.0
        %829 = vmatpush1.msra.mxu0 0.0
        %830 = vmatprep.subr.mxu0 0.0
        %831 = vmatpush1.msra.mxu0 0.0
        %832 = vmatprep.subr.mxu0 0.0
        %833 = vmatpush1.msra.mxu0 0.0
        %834 = vmatprep.subr.mxu0 0.0
        %835 = vmatpush1.msra.mxu0 0.0
        %836 = vmatprep.subr.mxu0 0.0
        %837 = vmatpush1.msra.mxu0 0.0
        %838 = vmatprep.subr.mxu0 0.0
        %839 = vmatpush1.msra.mxu0 0.0
        %840 = vmatprep.subr.mxu0 0.0
        %841 = vmatpush1.msra.mxu0 %v808
        %842 = vmatprep.subr.mxu0 0.0
        %843 = vmatpush2.msra.mxu0 0.0
        %844 = vmatprep.subr.mxu0 0.0
        %845 = vmatpush2.msra.mxu0 0.0
        %846 = vmatprep.subr.mxu0 0.0
        %847 = vmatpush2.msra.mxu0 0.0
        %848 = vmatprep.subr.mxu0 0.0
        %849 = vmatpush2.msra.mxu0 0.0
        %850 = vmatprep.subr.mxu0 0.0
        %851 = vmatpush2.msra.mxu0 0.0
        %852 = vmatprep.subr.mxu0 0.0
        %853 = vmatpush2.msra.mxu0 0.0
        %854 = vmatprep.subr.mxu0 0.0
        %855 = vmatpush2.msra.mxu0 0.0
        %856 = vmatprep.subr.mxu0 0.0
        %857 = vmatpush2.msra.mxu0 0.0
        %858 = vmatprep.subr.mxu0 0.0
        %859 = vmatpush2.msra.mxu0 0.0
        %860 = vmatprep.subr.mxu0 0.0
        %861 = vmatpush2.msra.mxu0 0.0
        %862 = vmatprep.subr.mxu0 0.0
        %863 = vmatpush2.msra.mxu0 0.0
        %864 = vmatprep.subr.mxu0 0.0
        %865 = vmatpush2.msra.mxu0 0.0
        %866 = vmatprep.subr.mxu0 0.0
        %867 = vmatpush2.msra.mxu0 0.0
        %868 = vmatprep.subr.mxu0 0.0
        %869 = vmatpush2.msra.mxu0 0.0
        %870 = vmatprep.subr.mxu0 0.0
        %871 = vmatpush2.msra.mxu0 0.0
        %872 = vmatprep.subr.mxu0 0.0
        %873 = vmatpush2.msra.mxu0 0.0
        %874 = vmatprep.mubr.f32.mxu0 0.0
        %875 = vmatmul.mubr.f32.gmra.mxu0 %v742
        %v876 = vpop.f32.mrf.mxu0
        %v877 = vadd.f32 0.0, %v876
        %v878 = vpop.f32.mrf.mxu0
        %879 = vmatprep.mubr.f32.mxu0 0.0
        %880 = vmatmul.mubr.f32.gmra.mxu0 %v744
        %v881 = vpop.f32.mrf.mxu0
        %v882 = vadd.f32 0.0, %v881
        %v883 = vpop.f32.mrf.mxu0
        %884 = vmatprep.mubr.f32.mxu0 0.0
        %885 = vmatmul.mubr.f32.gmra.mxu0 %v746
        %v886 = vpop.f32.mrf.mxu0
        %v887 = vadd.f32 0.0, %v886
        %v888 = vpop.f32.mrf.mxu0
        %889 = vmatprep.mubr.f32.mxu0 0.0
        %890 = vmatmul.mubr.f32.gmra.mxu0 %v748
        %v891 = vpop.f32.mrf.mxu0
        %v892 = vadd.f32 0.0, %v891
        %v893 = vpop.f32.mrf.mxu0
        %894 = vmatprep.mubr.f32.mxu0 0.0
        %895 = vmatmul.mubr.f32.gmra.mxu0 %v750
        %v896 = vpop.f32.mrf.mxu0
        %v897 = vadd.f32 0.0, %v896
        %v898 = vpop.f32.mrf.mxu0
        %899 = vmatprep.mubr.f32.mxu0 0.0
        %900 = vmatmul.mubr.f32.gmra.mxu0 %v752
        %v901 = vpop.f32.mrf.mxu0
        %v902 = vadd.f32 0.0, %v901
        %v903 = vpop.f32.mrf.mxu0
        %904 = vmatprep.mubr.f32.mxu0 0.0
        %905 = vmatmul.mubr.f32.gmra.mxu0 %v754
        %v906 = vpop.f32.mrf.mxu0
        %v907 = vadd.f32 0.0, %v906
        %v908 = vpop.f32.mrf.mxu0
        %909 = vmatprep.mubr.f32.mxu0 0.0
        %910 = vmatmul.mubr.f32.gmra.mxu0 %v756
        %v911 = vpop.f32.mrf.mxu0
        %v912 = vadd.f32 0.0, %v911
        %v913 = vpop.f32.mrf.mxu0
        %914 = vmatprep.mubr.f32.mxu0 0.0
        %915 = vmatmul.mubr.f32.gmra.mxu0 %v758
        %v916 = vpop.f32.mrf.mxu0
        %v917 = vadd.f32 0.0, %v916
        %v918 = vpop.f32.mrf.mxu0
        %919 = vmatprep.mubr.f32.mxu0 0.0
        %920 = vmatmul.mubr.f32.gmra.mxu0 %v760
        %v921 = vpop.f32.mrf.mxu0
        %v922 = vadd.f32 0.0, %v921
        %v923 = vpop.f32.mrf.mxu0
        %924 = vmatprep.mubr.f32.mxu0 0.0
        %925 = vmatmul.mubr.f32.gmra.mxu0 %v762
        %v926 = vpop.f32.mrf.mxu0
        %v927 = vadd.f32 0.0, %v926
        %v928 = vpop.f32.mrf.mxu0
        %929 = vmatprep.mubr.f32.mxu0 0.0
        %930 = vmatmul.mubr.f32.gmra.mxu0 %v764
        %v931 = vpop.f32.mrf.mxu0
        %v932 = vadd.f32 0.0, %v931
        %v933 = vpop.f32.mrf.mxu0
        %934 = vmatprep.mubr.f32.mxu0 0.0
        %935 = vmatmul.mubr.f32.gmra.mxu0 %v766
        %v936 = vpop.f32.mrf.mxu0
        %v937 = vadd.f32 0.0, %v936
        %v938 = vpop.f32.mrf.mxu0
        %939 = vmatprep.mubr.f32.mxu0 0.0
        %940 = vmatmul.mubr.f32.gmra.mxu0 %v768
        %v941 = vpop.f32.mrf.mxu0
        %v942 = vadd.f32 0.0, %v941
        %v943 = vpop.f32.mrf.mxu0
        %944 = vmatprep.mubr.f32.mxu0 0.0
        %945 = vmatmul.mubr.f32.gmra.mxu0 %v770
        %v946 = vpop.f32.mrf.mxu0
        %v947 = vadd.f32 0.0, %v946
        %v948 = vpop.f32.mrf.mxu0
        %949 = vmatprep.mubr.f32.mxu0 0.0
        %950 = vmatmul.mubr.f32.gmra.mxu0 %v772
        %v951 = vpop.f32.mrf.mxu0
        %v952 = vadd.f32 0.0, %v951
        %v953 = vpop.f32.mrf.mxu0
        %954 = vmatprep.mubr.f32.mxu0 0.0
        %955 = vmatmul.mubr.f32.gmra.mxu0 %v774
        %v956 = vpop.f32.mrf.mxu0
        %v957 = vadd.f32 0.0, %v956
        %v958 = vpop.f32.mrf.mxu0
        %959 = vmatprep.mubr.f32.mxu0 0.0
        %960 = vmatmul.mubr.f32.gmra.mxu0 %v776
        %v961 = vpop.f32.mrf.mxu0
        %v962 = vadd.f32 0.0, %v961
        %v963 = vpop.f32.mrf.mxu0
        %964 = vmatprep.mubr.f32.mxu0 0.0
        %965 = vmatmul.mubr.f32.gmra.mxu0 %v778
        %v966 = vpop.f32.mrf.mxu0
        %v967 = vadd.f32 0.0, %v966
        %v968 = vpop.f32.mrf.mxu0
        %969 = vmatprep.mubr.f32.mxu0 0.0
        %970 = vmatmul.mubr.f32.gmra.mxu0 %v780
        %v971 = vpop.f32.mrf.mxu0
        %v972 = vadd.f32 0.0, %v971
        %v973 = vpop.f32.mrf.mxu0
        %974 = vmatprep.mubr.f32.mxu0 0.0
        %975 = vmatmul.mubr.f32.gmra.mxu0 %v782
        %v976 = vpop.f32.mrf.mxu0
        %v977 = vadd.f32 0.0, %v976
        %v978 = vpop.f32.mrf.mxu0
        %979 = vmatprep.mubr.f32.mxu0 0.0
        %980 = vmatmul.mubr.f32.gmra.mxu0 %v784
        %v981 = vpop.f32.mrf.mxu0
        %v982 = vadd.f32 0.0, %v981
        %v983 = vpop.f32.mrf.mxu0
        %984 = vmatprep.mubr.f32.mxu0 0.0
        %985 = vmatmul.mubr.f32.gmra.mxu0 %v786
        %v986 = vpop.f32.mrf.mxu0
        %v987 = vadd.f32 0.0, %v986
        %v988 = vpop.f32.mrf.mxu0
        %989 = vmatprep.mubr.f32.mxu0 0.0
        %990 = vmatmul.mubr.f32.gmra.mxu0 %v788
        %v991 = vpop.f32.mrf.mxu0
        %v992 = vadd.f32 0.0, %v991
        %v993 = vpop.f32.mrf.mxu0
        %994 = vmatprep.mubr.f32.mxu0 0.0
        %995 = vmatmul.mubr.f32.gmra.mxu0 %v790
        %v996 = vpop.f32.mrf.mxu0
        %v997 = vadd.f32 0.0, %v996
        %v998 = vpop.f32.mrf.mxu0
        %999 = vmatprep.mubr.f32.mxu0 0.0
        %1000 = vmatmul.mubr.f32.gmra.mxu0 %v792
        %v1001 = vpop.f32.mrf.mxu0
        %v1002 = vadd.f32 0.0, %v1001
        %v1003 = vpop.f32.mrf.mxu0
        %1004 = vmatprep.mubr.f32.mxu0 0.0
        %1005 = vmatmul.mubr.f32.gmra.mxu0 %v794
        %v1006 = vpop.f32.mrf.mxu0
        %v1007 = vadd.f32 0.0, %v1006
        %v1008 = vpop.f32.mrf.mxu0
        %1009 = vmatprep.mubr.f32.mxu0 0.0
        %1010 = vmatmul.mubr.f32.gmra.mxu0 %v796
        %v1011 = vpop.f32.mrf.mxu0
        %v1012 = vadd.f32 0.0, %v1011
        %v1013 = vpop.f32.mrf.mxu0
        %1014 = vmatprep.mubr.f32.mxu0 0.0
        %1015 = vmatmul.mubr.f32.gmra.mxu0 %v798
        %v1016 = vpop.f32.mrf.mxu0
        %v1017 = vadd.f32 0.0, %v1016
        %v1018 = vpop.f32.mrf.mxu0
        %1019 = vmatprep.mubr.f32.mxu0 0.0
        %1020 = vmatmul.mubr.f32.gmra.mxu0 %v800
        %v1021 = vpop.f32.mrf.mxu0
        %v1022 = vadd.f32 0.0, %v1021
        %v1023 = vpop.f32.mrf.mxu0
        %1024 = vmatprep.mubr.f32.mxu0 0.0
        %1025 = vmatmul.mubr.f32.gmra.mxu0 %v802
        %v1026 = vpop.f32.mrf.mxu0
        %v1027 = vadd.f32 0.0, %v1026
        %v1028 = vpop.f32.mrf.mxu0
        %1029 = vmatprep.mubr.f32.mxu0 0.0
        %1030 = vmatmul.mubr.f32.gmra.mxu0 %v804
        %v1031 = vpop.f32.mrf.mxu0
        %v1032 = vadd.f32 0.0, %v1031
        %v1033 = vpop.f32.mrf.mxu0
        %1034 = vdwg.mxu0
        %v1035 = vsel %vm387, %v559, 0
        %v1037 = vsel %vm387, %v560, 0
        %v1039 = vsel %vm387, %v562, 0
        %v1041 = vsel %vm387, %v563, 0
        %v1043 = vsel %vm387, %v565, 0
        %v1045 = vsel %vm387, %v566, 0
        %v1047 = vsel %vm387, %v568, 0
        %v1049 = vsel %vm387, %v569, 0
        %v1051 = vsel %vm387, %v571, 0
        %v1053 = vsel %vm387, %v572, 0
        %v1055 = vsel %vm387, %v574, 0
        %v1057 = vsel %vm387, %v575, 0
        %v1059 = vsel %vm387, %v577, 0
        %v1061 = vsel %vm387, %v578, 0
        %v1063 = vsel %vm387, %v580, 0
        %v1065 = vsel %vm387, %v581, 0
        %v1067 = vsel %vm387, %v583, 0
        %v1069 = vsel %vm387, %v584, 0
        %v1071 = vsel %vm387, %v586, 0
        %v1073 = vsel %vm387, %v587, 0
        %v1075 = vsel %vm387, %v589, 0
        %v1077 = vsel %vm387, %v590, 0
        %v1079 = vsel %vm387, %v592, 0
        %v1081 = vsel %vm387, %v593, 0
        %v1083 = vsel %vm387, %v595, 0
        %v1085 = vsel %vm387, %v596, 0
        %v1087 = vsel %vm387, %v598, 0
        %v1089 = vsel %vm387, %v599, 0
        %v1091 = vsel %vm387, %v601, 0
        %v1093 = vsel %vm387, %v602, 0
        %v1095 = vsel %vm387, %v604, 0
        %v1097 = vsel %vm387, %v605, 0
        %v1100 = vsel %vm806, %v515, 0
        %1102 = vmatprep.subr.mxu0 0.0
        %1103 = vmatpush1.msra.mxu0 0.0
        %1104 = vmatprep.subr.mxu0 0.0
        %1105 = vmatpush1.msra.mxu0 0.0
        %1106 = vmatprep.subr.mxu0 0.0
        %1107 = vmatpush1.msra.mxu0 0.0
        %1108 = vmatprep.subr.mxu0 0.0
        %1109 = vmatpush1.msra.mxu0 0.0
        %1110 = vmatprep.subr.mxu0 0.0
        %1111 = vmatpush1.msra.mxu0 0.0
        %1112 = vmatprep.subr.mxu0 0.0
        %1113 = vmatpush1.msra.mxu0 0.0
        %1114 = vmatprep.subr.mxu0 0.0
        %1115 = vmatpush1.msra.mxu0 0.0
        %1116 = vmatprep.subr.mxu0 0.0
        %1117 = vmatpush1.msra.mxu0 0.0
        %1118 = vmatprep.subr.mxu0 0.0
        %1119 = vmatpush1.msra.mxu0 0.0
        %1120 = vmatprep.subr.mxu0 0.0
        %1121 = vmatpush1.msra.mxu0 0.0
        %1122 = vmatprep.subr.mxu0 0.0
        %1123 = vmatpush1.msra.mxu0 0.0
        %1124 = vmatprep.subr.mxu0 0.0
        %1125 = vmatpush1.msra.mxu0 0.0
        %1126 = vmatprep.subr.mxu0 0.0
        %1127 = vmatpush1.msra.mxu0 0.0
        %1128 = vmatprep.subr.mxu0 0.0
        %1129 = vmatpush1.msra.mxu0 0.0
        %1130 = vmatprep.subr.mxu0 0.0
        %1131 = vmatpush1.msra.mxu0 0.0
        %1132 = vmatprep.subr.mxu0 0.0
        %1133 = vmatpush1.msra.mxu0 %v1100
        %1134 = vmatprep.subr.mxu0 0.0
        %1135 = vmatpush2.msra.mxu0 0.0
        %1136 = vmatprep.subr.mxu0 0.0
        %1137 = vmatpush2.msra.mxu0 0.0
        %1138 = vmatprep.subr.mxu0 0.0
        %1139 = vmatpush2.msra.mxu0 0.0
        %1140 = vmatprep.subr.mxu0 0.0
        %1141 = vmatpush2.msra.mxu0 0.0
        %1142 = vmatprep.subr.mxu0 0.0
        %1143 = vmatpush2.msra.mxu0 0.0
        %1144 = vmatprep.subr.mxu0 0.0
        %1145 = vmatpush2.msra.mxu0 0.0
        %1146 = vmatprep.subr.mxu0 0.0
        %1147 = vmatpush2.msra.mxu0 0.0
        %1148 = vmatprep.subr.mxu0 0.0
        %1149 = vmatpush2.msra.mxu0 0.0
        %1150 = vmatprep.subr.mxu0 0.0
        %1151 = vmatpush2.msra.mxu0 0.0
        %1152 = vmatprep.subr.mxu0 0.0
        %1153 = vmatpush2.msra.mxu0 0.0
        %1154 = vmatprep.subr.mxu0 0.0
        %1155 = vmatpush2.msra.mxu0 0.0
        %1156 = vmatprep.subr.mxu0 0.0
        %1157 = vmatpush2.msra.mxu0 0.0
        %1158 = vmatprep.subr.mxu0 0.0
        %1159 = vmatpush2.msra.mxu0 0.0
        %1160 = vmatprep.subr.mxu0 0.0
        %1161 = vmatpush2.msra.mxu0 0.0
        %1162 = vmatprep.subr.mxu0 0.0
        %1163 = vmatpush2.msra.mxu0 0.0
        %1164 = vmatprep.subr.mxu0 0.0
        %1165 = vmatpush2.msra.mxu0 0.0
        %1166 = vmatprep.mubr.f32.mxu0 0.0
        %1167 = vmatmul.mubr.f32.gmra.mxu0 %v1035
        %v1168 = vpop.f32.mrf.mxu0
        %v1169 = vadd.f32 %v877, %v1168
        %v1170 = vpop.f32.mrf.mxu0
        %1171 = vmatprep.mubr.f32.mxu0 0.0
        %1172 = vmatmul.mubr.f32.gmra.mxu0 %v1037
        %v1173 = vpop.f32.mrf.mxu0
        %v1174 = vadd.f32 %v882, %v1173
        %v1175 = vpop.f32.mrf.mxu0
        %1176 = vmatprep.mubr.f32.mxu0 0.0
        %1177 = vmatmul.mubr.f32.gmra.mxu0 %v1039
        %v1178 = vpop.f32.mrf.mxu0
        %v1179 = vadd.f32 %v887, %v1178
        %v1180 = vpop.f32.mrf.mxu0
        %1181 = vmatprep.mubr.f32.mxu0 0.0
        %1182 = vmatmul.mubr.f32.gmra.mxu0 %v1041
        %v1183 = vpop.f32.mrf.mxu0
        %v1184 = vadd.f32 %v892, %v1183
        %v1185 = vpop.f32.mrf.mxu0
        %1186 = vmatprep.mubr.f32.mxu0 0.0
        %1187 = vmatmul.mubr.f32.gmra.mxu0 %v1043
        %v1188 = vpop.f32.mrf.mxu0
        %v1189 = vadd.f32 %v897, %v1188
        %v1190 = vpop.f32.mrf.mxu0
        %1191 = vmatprep.mubr.f32.mxu0 0.0
        %1192 = vmatmul.mubr.f32.gmra.mxu0 %v1045
        %v1193 = vpop.f32.mrf.mxu0
        %v1194 = vadd.f32 %v902, %v1193
        %v1195 = vpop.f32.mrf.mxu0
        %1196 = vmatprep.mubr.f32.mxu0 0.0
        %1197 = vmatmul.mubr.f32.gmra.mxu0 %v1047
        %v1198 = vpop.f32.mrf.mxu0
        %v1199 = vadd.f32 %v907, %v1198
        %v1200 = vpop.f32.mrf.mxu0
        %1201 = vmatprep.mubr.f32.mxu0 0.0
        %1202 = vmatmul.mubr.f32.gmra.mxu0 %v1049
        %v1203 = vpop.f32.mrf.mxu0
        %v1204 = vadd.f32 %v912, %v1203
        %v1205 = vpop.f32.mrf.mxu0
        %1206 = vmatprep.mubr.f32.mxu0 0.0
        %1207 = vmatmul.mubr.f32.gmra.mxu0 %v1051
        %v1208 = vpop.f32.mrf.mxu0
        %v1209 = vadd.f32 %v917, %v1208
        %v1210 = vpop.f32.mrf.mxu0
        %1211 = vmatprep.mubr.f32.mxu0 0.0
        %1212 = vmatmul.mubr.f32.gmra.mxu0 %v1053
        %v1213 = vpop.f32.mrf.mxu0
        %v1214 = vadd.f32 %v922, %v1213
        %v1215 = vpop.f32.mrf.mxu0
        %1216 = vmatprep.mubr.f32.mxu0 0.0
        %1217 = vmatmul.mubr.f32.gmra.mxu0 %v1055
        %v1218 = vpop.f32.mrf.mxu0
        %v1219 = vadd.f32 %v927, %v1218
        %v1220 = vpop.f32.mrf.mxu0
        %1221 = vmatprep.mubr.f32.mxu0 0.0
        %1222 = vmatmul.mubr.f32.gmra.mxu0 %v1057
        %v1223 = vpop.f32.mrf.mxu0
        %v1224 = vadd.f32 %v932, %v1223
        %v1225 = vpop.f32.mrf.mxu0
        %1226 = vmatprep.mubr.f32.mxu0 0.0
        %1227 = vmatmul.mubr.f32.gmra.mxu0 %v1059
        %v1228 = vpop.f32.mrf.mxu0
        %v1229 = vadd.f32 %v937, %v1228
        %v1230 = vpop.f32.mrf.mxu0
        %1231 = vmatprep.mubr.f32.mxu0 0.0
        %1232 = vmatmul.mubr.f32.gmra.mxu0 %v1061
        %v1233 = vpop.f32.mrf.mxu0
        %v1234 = vadd.f32 %v942, %v1233
        %v1235 = vpop.f32.mrf.mxu0
        %1236 = vmatprep.mubr.f32.mxu0 0.0
        %1237 = vmatmul.mubr.f32.gmra.mxu0 %v1063
        %v1238 = vpop.f32.mrf.mxu0
        %v1239 = vadd.f32 %v947, %v1238
        %v1240 = vpop.f32.mrf.mxu0
        %1241 = vmatprep.mubr.f32.mxu0 0.0
        %1242 = vmatmul.mubr.f32.gmra.mxu0 %v1065
        %v1243 = vpop.f32.mrf.mxu0
        %v1244 = vadd.f32 %v952, %v1243
        %v1245 = vpop.f32.mrf.mxu0
        %1246 = vmatprep.mubr.f32.mxu0 0.0
        %1247 = vmatmul.mubr.f32.gmra.mxu0 %v1067
        %v1248 = vpop.f32.mrf.mxu0
        %v1249 = vadd.f32 %v957, %v1248
        %v1250 = vpop.f32.mrf.mxu0
        %1251 = vmatprep.mubr.f32.mxu0 0.0
        %1252 = vmatmul.mubr.f32.gmra.mxu0 %v1069
        %v1253 = vpop.f32.mrf.mxu0
        %v1254 = vadd.f32 %v962, %v1253
        %v1255 = vpop.f32.mrf.mxu0
        %1256 = vmatprep.mubr.f32.mxu0 0.0
        %1257 = vmatmul.mubr.f32.gmra.mxu0 %v1071
        %v1258 = vpop.f32.mrf.mxu0
        %v1259 = vadd.f32 %v967, %v1258
        %v1260 = vpop.f32.mrf.mxu0
        %1261 = vmatprep.mubr.f32.mxu0 0.0
        %1262 = vmatmul.mubr.f32.gmra.mxu0 %v1073
        %v1263 = vpop.f32.mrf.mxu0
        %v1264 = vadd.f32 %v972, %v1263
        %v1265 = vpop.f32.mrf.mxu0
        %1266 = vmatprep.mubr.f32.mxu0 0.0
        %1267 = vmatmul.mubr.f32.gmra.mxu0 %v1075
        %v1268 = vpop.f32.mrf.mxu0
        %v1269 = vadd.f32 %v977, %v1268
        %v1270 = vpop.f32.mrf.mxu0
        %1271 = vmatprep.mubr.f32.mxu0 0.0
        %1272 = vmatmul.mubr.f32.gmra.mxu0 %v1077
        %v1273 = vpop.f32.mrf.mxu0
        %v1274 = vadd.f32 %v982, %v1273
        %v1275 = vpop.f32.mrf.mxu0
        %1276 = vmatprep.mubr.f32.mxu0 0.0
        %1277 = vmatmul.mubr.f32.gmra.mxu0 %v1079
        %v1278 = vpop.f32.mrf.mxu0
        %v1279 = vadd.f32 %v987, %v1278
        %v1280 = vpop.f32.mrf.mxu0
        %1281 = vmatprep.mubr.f32.mxu0 0.0
        %1282 = vmatmul.mubr.f32.gmra.mxu0 %v1081
        %v1283 = vpop.f32.mrf.mxu0
        %v1284 = vadd.f32 %v992, %v1283
        %v1285 = vpop.f32.mrf.mxu0
        %1286 = vmatprep.mubr.f32.mxu0 0.0
        %1287 = vmatmul.mubr.f32.gmra.mxu0 %v1083
        %v1288 = vpop.f32.mrf.mxu0
        %v1289 = vadd.f32 %v997, %v1288
        %v1290 = vpop.f32.mrf.mxu0
        %1291 = vmatprep.mubr.f32.mxu0 0.0
        %1292 = vmatmul.mubr.f32.gmra.mxu0 %v1085
        %v1293 = vpop.f32.mrf.mxu0
        %v1294 = vadd.f32 %v1002, %v1293
        %v1295 = vpop.f32.mrf.mxu0
        %1296 = vmatprep.mubr.f32.mxu0 0.0
        %1297 = vmatmul.mubr.f32.gmra.mxu0 %v1087
        %v1298 = vpop.f32.mrf.mxu0
        %v1299 = vadd.f32 %v1007, %v1298
        %v1300 = vpop.f32.mrf.mxu0
        %1301 = vmatprep.mubr.f32.mxu0 0.0
        %1302 = vmatmul.mubr.f32.gmra.mxu0 %v1089
        %v1303 = vpop.f32.mrf.mxu0
        %v1304 = vadd.f32 %v1012, %v1303
        %v1305 = vpop.f32.mrf.mxu0
        %1306 = vmatprep.mubr.f32.mxu0 0.0
        %1307 = vmatmul.mubr.f32.gmra.mxu0 %v1091
        %v1308 = vpop.f32.mrf.mxu0
        %v1309 = vadd.f32 %v1017, %v1308
        %v1310 = vpop.f32.mrf.mxu0
        %1311 = vmatprep.mubr.f32.mxu0 0.0
        %1312 = vmatmul.mubr.f32.gmra.mxu0 %v1093
        %v1313 = vpop.f32.mrf.mxu0
        %v1314 = vadd.f32 %v1022, %v1313
        %v1315 = vpop.f32.mrf.mxu0
        %1316 = vmatprep.mubr.f32.mxu0 0.0
        %1317 = vmatmul.mubr.f32.gmra.mxu0 %v1095
        %v1318 = vpop.f32.mrf.mxu0
        %v1319 = vadd.f32 %v1027, %v1318
        %v1320 = vpop.f32.mrf.mxu0
        %1321 = vmatprep.mubr.f32.mxu0 0.0
        %1322 = vmatmul.mubr.f32.gmra.mxu0 %v1097
        %v1323 = vpop.f32.mrf.mxu0
        %v1324 = vadd.f32 %v1032, %v1323
        %v1325 = vpop.f32.mrf.mxu0
        %1326 = vdwg.mxu0
        %vm1327 = vcmask 1045504
        %v1328 = vrot.slane %v559, 2
        %v1329 = vrot.slane %v560, 2
        %v1330 = vsel %vm1327, %v1328, %v1329
        %v1331 = vrot.slane %v561, 2
        %v1332 = vsel %vm1327, %v1329, %v1331
        %v1333 = vrot.slane %v562, 2
        %v1334 = vrot.slane %v563, 2
        %v1335 = vsel %vm1327, %v1333, %v1334
        %v1336 = vrot.slane %v564, 2
        %v1337 = vsel %vm1327, %v1334, %v1336
        %v1338 = vrot.slane %v565, 2
        %v1339 = vrot.slane %v566, 2
        %v1340 = vsel %vm1327, %v1338, %v1339
        %v1341 = vrot.slane %v567, 2
        %v1342 = vsel %vm1327, %v1339, %v1341
        %v1343 = vrot.slane %v568, 2
        %v1344 = vrot.slane %v569, 2
        %v1345 = vsel %vm1327, %v1343, %v1344
        %v1346 = vrot.slane %v570, 2
        %v1347 = vsel %vm1327, %v1344, %v1346
        %v1348 = vrot.slane %v571, 2
        %v1349 = vrot.slane %v572, 2
        %v1350 = vsel %vm1327, %v1348, %v1349
        %v1351 = vrot.slane %v573, 2
        %v1352 = vsel %vm1327, %v1349, %v1351
        %v1353 = vrot.slane %v574, 2
        %v1354 = vrot.slane %v575, 2
        %v1355 = vsel %vm1327, %v1353, %v1354
        %v1356 = vrot.slane %v576, 2
        %v1357 = vsel %vm1327, %v1354, %v1356
        %v1358 = vrot.slane %v577, 2
        %v1359 = vrot.slane %v578, 2
        %v1360 = vsel %vm1327, %v1358, %v1359
        %v1361 = vrot.slane %v579, 2
        %v1362 = vsel %vm1327, %v1359, %v1361
        %v1363 = vrot.slane %v580, 2
        %v1364 = vrot.slane %v581, 2
        %v1365 = vsel %vm1327, %v1363, %v1364
        %v1366 = vrot.slane %v582, 2
        %v1367 = vsel %vm1327, %v1364, %v1366
        %v1368 = vrot.slane %v583, 2
        %v1369 = vrot.slane %v584, 2
        %v1370 = vsel %vm1327, %v1368, %v1369
        %v1371 = vrot.slane %v585, 2
        %v1372 = vsel %vm1327, %v1369, %v1371
        %v1373 = vrot.slane %v586, 2
        %v1374 = vrot.slane %v587, 2
        %v1375 = vsel %vm1327, %v1373, %v1374
        %v1376 = vrot.slane %v588, 2
        %v1377 = vsel %vm1327, %v1374, %v1376
        %v1378 = vrot.slane %v589, 2
        %v1379 = vrot.slane %v590, 2
        %v1380 = vsel %vm1327, %v1378, %v1379
        %v1381 = vrot.slane %v591, 2
        %v1382 = vsel %vm1327, %v1379, %v1381
        %v1383 = vrot.slane %v592, 2
        %v1384 = vrot.slane %v593, 2
        %v1385 = vsel %vm1327, %v1383, %v1384
        %v1386 = vrot.slane %v594, 2
        %v1387 = vsel %vm1327, %v1384, %v1386
        %v1388 = vrot.slane %v595, 2
        %v1389 = vrot.slane %v596, 2
        %v1390 = vsel %vm1327, %v1388, %v1389
        %v1391 = vrot.slane %v597, 2
        %v1392 = vsel %vm1327, %v1389, %v1391
        %v1393 = vrot.slane %v598, 2
        %v1394 = vrot.slane %v599, 2
        %v1395 = vsel %vm1327, %v1393, %v1394
        %v1396 = vrot.slane %v600, 2
        %v1397 = vsel %vm1327, %v1394, %v1396
        %v1398 = vrot.slane %v601, 2
        %v1399 = vrot.slane %v602, 2
        %v1400 = vsel %vm1327, %v1398, %v1399
        %v1401 = vrot.slane %v603, 2
        %v1402 = vsel %vm1327, %v1399, %v1401
        %v1403 = vrot.slane %v604, 2
        %v1404 = vrot.slane %v605, 2
        %v1405 = vsel %vm1327, %v1403, %v1404
        %v1406 = vrot.slane %v606, 2
        %v1407 = vsel %vm1327, %v1404, %v1406
        %v1408 = vsel %vm387, %v1330, 0
        %v1410 = vsel %vm387, %v1332, 0
        %v1412 = vsel %vm387, %v1335, 0
        %v1414 = vsel %vm387, %v1337, 0
        %v1416 = vsel %vm387, %v1340, 0
        %v1418 = vsel %vm387, %v1342, 0
        %v1420 = vsel %vm387, %v1345, 0
        %v1422 = vsel %vm387, %v1347, 0
        %v1424 = vsel %vm387, %v1350, 0
        %v1426 = vsel %vm387, %v1352, 0
        %v1428 = vsel %vm387, %v1355, 0
        %v1430 = vsel %vm387, %v1357, 0
        %v1432 = vsel %vm387, %v1360, 0
        %v1434 = vsel %vm387, %v1362, 0
        %v1436 = vsel %vm387, %v1365, 0
        %v1438 = vsel %vm387, %v1367, 0
        %v1440 = vsel %vm387, %v1370, 0
        %v1442 = vsel %vm387, %v1372, 0
        %v1444 = vsel %vm387, %v1375, 0
        %v1446 = vsel %vm387, %v1377, 0
        %v1448 = vsel %vm387, %v1380, 0
        %v1450 = vsel %vm387, %v1382, 0
        %v1452 = vsel %vm387, %v1385, 0
        %v1454 = vsel %vm387, %v1387, 0
        %v1456 = vsel %vm387, %v1390, 0
        %v1458 = vsel %vm387, %v1392, 0
        %v1460 = vsel %vm387, %v1395, 0
        %v1462 = vsel %vm387, %v1397, 0
        %v1464 = vsel %vm387, %v1400, 0
        %v1466 = vsel %vm387, %v1402, 0
        %v1468 = vsel %vm387, %v1405, 0
        %v1470 = vsel %vm387, %v1407, 0
        %v1473 = vsel %vm806, %v517, 0
        %1475 = vmatprep.subr.mxu0 0.0
        %1476 = vmatpush1.msra.mxu0 0.0
        %1477 = vmatprep.subr.mxu0 0.0
        %1478 = vmatpush1.msra.mxu0 0.0
        %1479 = vmatprep.subr.mxu0 0.0
        %1480 = vmatpush1.msra.mxu0 0.0
        %1481 = vmatprep.subr.mxu0 0.0
        %1482 = vmatpush1.msra.mxu0 0.0
        %1483 = vmatprep.subr.mxu0 0.0
        %1484 = vmatpush1.msra.mxu0 0.0
        %1485 = vmatprep.subr.mxu0 0.0
        %1486 = vmatpush1.msra.mxu0 0.0
        %1487 = vmatprep.subr.mxu0 0.0
        %1488 = vmatpush1.msra.mxu0 0.0
        %1489 = vmatprep.subr.mxu0 0.0
        %1490 = vmatpush1.msra.mxu0 0.0
        %1491 = vmatprep.subr.mxu0 0.0
        %1492 = vmatpush1.msra.mxu0 0.0
        %1493 = vmatprep.subr.mxu0 0.0
        %1494 = vmatpush1.msra.mxu0 0.0
        %1495 = vmatprep.subr.mxu0 0.0
        %1496 = vmatpush1.msra.mxu0 0.0
        %1497 = vmatprep.subr.mxu0 0.0
        %1498 = vmatpush1.msra.mxu0 0.0
        %1499 = vmatprep.subr.mxu0 0.0
        %1500 = vmatpush1.msra.mxu0 0.0
        %1501 = vmatprep.subr.mxu0 0.0
        %1502 = vmatpush1.msra.mxu0 0.0
        %1503 = vmatprep.subr.mxu0 0.0
        %1504 = vmatpush1.msra.mxu0 0.0
        %1505 = vmatprep.subr.mxu0 0.0
        %1506 = vmatpush1.msra.mxu0 %v1473
        %1507 = vmatprep.subr.mxu0 0.0
        %1508 = vmatpush2.msra.mxu0 0.0
        %1509 = vmatprep.subr.mxu0 0.0
        %1510 = vmatpush2.msra.mxu0 0.0
        %1511 = vmatprep.subr.mxu0 0.0
        %1512 = vmatpush2.msra.mxu0 0.0
        %1513 = vmatprep.subr.mxu0 0.0
        %1514 = vmatpush2.msra.mxu0 0.0
        %1515 = vmatprep.subr.mxu0 0.0
        %1516 = vmatpush2.msra.mxu0 0.0
        %1517 = vmatprep.subr.mxu0 0.0
        %1518 = vmatpush2.msra.mxu0 0.0
        %1519 = vmatprep.subr.mxu0 0.0
        %1520 = vmatpush2.msra.mxu0 0.0
        %1521 = vmatprep.subr.mxu0 0.0
        %1522 = vmatpush2.msra.mxu0 0.0
        %1523 = vmatprep.subr.mxu0 0.0
        %1524 = vmatpush2.msra.mxu0 0.0
        %1525 = vmatprep.subr.mxu0 0.0
        %1526 = vmatpush2.msra.mxu0 0.0
        %1527 = vmatprep.subr.mxu0 0.0
        %1528 = vmatpush2.msra.mxu0 0.0
        %1529 = vmatprep.subr.mxu0 0.0
        %1530 = vmatpush2.msra.mxu0 0.0
        %1531 = vmatprep.subr.mxu0 0.0
        %1532 = vmatpush2.msra.mxu0 0.0
        %1533 = vmatprep.subr.mxu0 0.0
        %1534 = vmatpush2.msra.mxu0 0.0
        %1535 = vmatprep.subr.mxu0 0.0
        %1536 = vmatpush2.msra.mxu0 0.0
        %1537 = vmatprep.subr.mxu0 0.0
        %1538 = vmatpush2.msra.mxu0 0.0
        %1539 = vmatprep.mubr.f32.mxu0 0.0
        %1540 = vmatmul.mubr.f32.gmra.mxu0 %v1408
        %v1541 = vpop.f32.mrf.mxu0
        %v1542 = vadd.f32 0.0, %v1541
        %v1543 = vpop.f32.mrf.mxu0
        %1544 = vmatprep.mubr.f32.mxu0 0.0
        %1545 = vmatmul.mubr.f32.gmra.mxu0 %v1410
        %v1546 = vpop.f32.mrf.mxu0
        %v1547 = vadd.f32 0.0, %v1546
        %v1548 = vpop.f32.mrf.mxu0
        %1549 = vmatprep.mubr.f32.mxu0 0.0
        %1550 = vmatmul.mubr.f32.gmra.mxu0 %v1412
        %v1551 = vpop.f32.mrf.mxu0
        %v1552 = vadd.f32 0.0, %v1551
        %v1553 = vpop.f32.mrf.mxu0
        %1554 = vmatprep.mubr.f32.mxu0 0.0
        %1555 = vmatmul.mubr.f32.gmra.mxu0 %v1414
        %v1556 = vpop.f32.mrf.mxu0
        %v1557 = vadd.f32 0.0, %v1556
        %v1558 = vpop.f32.mrf.mxu0
        %1559 = vmatprep.mubr.f32.mxu0 0.0
        %1560 = vmatmul.mubr.f32.gmra.mxu0 %v1416
        %v1561 = vpop.f32.mrf.mxu0
        %v1562 = vadd.f32 0.0, %v1561
        %v1563 = vpop.f32.mrf.mxu0
        %1564 = vmatprep.mubr.f32.mxu0 0.0
        %1565 = vmatmul.mubr.f32.gmra.mxu0 %v1418
        %v1566 = vpop.f32.mrf.mxu0
        %v1567 = vadd.f32 0.0, %v1566
        %v1568 = vpop.f32.mrf.mxu0
        %1569 = vmatprep.mubr.f32.mxu0 0.0
        %1570 = vmatmul.mubr.f32.gmra.mxu0 %v1420
        %v1571 = vpop.f32.mrf.mxu0
        %v1572 = vadd.f32 0.0, %v1571
        %v1573 = vpop.f32.mrf.mxu0
        %1574 = vmatprep.mubr.f32.mxu0 0.0
        %1575 = vmatmul.mubr.f32.gmra.mxu0 %v1422
        %v1576 = vpop.f32.mrf.mxu0
        %v1577 = vadd.f32 0.0, %v1576
        %v1578 = vpop.f32.mrf.mxu0
        %1579 = vmatprep.mubr.f32.mxu0 0.0
        %1580 = vmatmul.mubr.f32.gmra.mxu0 %v1424
        %v1581 = vpop.f32.mrf.mxu0
        %v1582 = vadd.f32 0.0, %v1581
        %v1583 = vpop.f32.mrf.mxu0
        %1584 = vmatprep.mubr.f32.mxu0 0.0
        %1585 = vmatmul.mubr.f32.gmra.mxu0 %v1426
        %v1586 = vpop.f32.mrf.mxu0
        %v1587 = vadd.f32 0.0, %v1586
        %v1588 = vpop.f32.mrf.mxu0
        %1589 = vmatprep.mubr.f32.mxu0 0.0
        %1590 = vmatmul.mubr.f32.gmra.mxu0 %v1428
        %v1591 = vpop.f32.mrf.mxu0
        %v1592 = vadd.f32 0.0, %v1591
        %v1593 = vpop.f32.mrf.mxu0
        %1594 = vmatprep.mubr.f32.mxu0 0.0
        %1595 = vmatmul.mubr.f32.gmra.mxu0 %v1430
        %v1596 = vpop.f32.mrf.mxu0
        %v1597 = vadd.f32 0.0, %v1596
        %v1598 = vpop.f32.mrf.mxu0
        %1599 = vmatprep.mubr.f32.mxu0 0.0
        %1600 = vmatmul.mubr.f32.gmra.mxu0 %v1432
        %v1601 = vpop.f32.mrf.mxu0
        %v1602 = vadd.f32 0.0, %v1601
        %v1603 = vpop.f32.mrf.mxu0
        %1604 = vmatprep.mubr.f32.mxu0 0.0
        %1605 = vmatmul.mubr.f32.gmra.mxu0 %v1434
        %v1606 = vpop.f32.mrf.mxu0
        %v1607 = vadd.f32 0.0, %v1606
        %v1608 = vpop.f32.mrf.mxu0
        %1609 = vmatprep.mubr.f32.mxu0 0.0
        %1610 = vmatmul.mubr.f32.gmra.mxu0 %v1436
        %v1611 = vpop.f32.mrf.mxu0
        %v1612 = vadd.f32 0.0, %v1611
        %v1613 = vpop.f32.mrf.mxu0
        %1614 = vmatprep.mubr.f32.mxu0 0.0
        %1615 = vmatmul.mubr.f32.gmra.mxu0 %v1438
        %v1616 = vpop.f32.mrf.mxu0
        %v1617 = vadd.f32 0.0, %v1616
        %v1618 = vpop.f32.mrf.mxu0
        %1619 = vmatprep.mubr.f32.mxu0 0.0
        %1620 = vmatmul.mubr.f32.gmra.mxu0 %v1440
        %v1621 = vpop.f32.mrf.mxu0
        %v1622 = vadd.f32 0.0, %v1621
        %v1623 = vpop.f32.mrf.mxu0
        %1624 = vmatprep.mubr.f32.mxu0 0.0
        %1625 = vmatmul.mubr.f32.gmra.mxu0 %v1442
        %v1626 = vpop.f32.mrf.mxu0
        %v1627 = vadd.f32 0.0, %v1626
        %v1628 = vpop.f32.mrf.mxu0
        %1629 = vmatprep.mubr.f32.mxu0 0.0
        %1630 = vmatmul.mubr.f32.gmra.mxu0 %v1444
        %v1631 = vpop.f32.mrf.mxu0
        %v1632 = vadd.f32 0.0, %v1631
        %v1633 = vpop.f32.mrf.mxu0
        %1634 = vmatprep.mubr.f32.mxu0 0.0
        %1635 = vmatmul.mubr.f32.gmra.mxu0 %v1446
        %v1636 = vpop.f32.mrf.mxu0
        %v1637 = vadd.f32 0.0, %v1636
        %v1638 = vpop.f32.mrf.mxu0
        %1639 = vmatprep.mubr.f32.mxu0 0.0
        %1640 = vmatmul.mubr.f32.gmra.mxu0 %v1448
        %v1641 = vpop.f32.mrf.mxu0
        %v1642 = vadd.f32 0.0, %v1641
        %v1643 = vpop.f32.mrf.mxu0
        %1644 = vmatprep.mubr.f32.mxu0 0.0
        %1645 = vmatmul.mubr.f32.gmra.mxu0 %v1450
        %v1646 = vpop.f32.mrf.mxu0
        %v1647 = vadd.f32 0.0, %v1646
        %v1648 = vpop.f32.mrf.mxu0
        %1649 = vmatprep.mubr.f32.mxu0 0.0
        %1650 = vmatmul.mubr.f32.gmra.mxu0 %v1452
        %v1651 = vpop.f32.mrf.mxu0
        %v1652 = vadd.f32 0.0, %v1651
        %v1653 = vpop.f32.mrf.mxu0
        %1654 = vmatprep.mubr.f32.mxu0 0.0
        %1655 = vmatmul.mubr.f32.gmra.mxu0 %v1454
        %v1656 = vpop.f32.mrf.mxu0
        %v1657 = vadd.f32 0.0, %v1656
        %v1658 = vpop.f32.mrf.mxu0
        %1659 = vmatprep.mubr.f32.mxu0 0.0
        %1660 = vmatmul.mubr.f32.gmra.mxu0 %v1456
        %v1661 = vpop.f32.mrf.mxu0
        %v1662 = vadd.f32 0.0, %v1661
        %v1663 = vpop.f32.mrf.mxu0
        %1664 = vmatprep.mubr.f32.mxu0 0.0
        %1665 = vmatmul.mubr.f32.gmra.mxu0 %v1458
        %v1666 = vpop.f32.mrf.mxu0
        %v1667 = vadd.f32 0.0, %v1666
        %v1668 = vpop.f32.mrf.mxu0
        %1669 = vmatprep.mubr.f32.mxu0 0.0
        %1670 = vmatmul.mubr.f32.gmra.mxu0 %v1460
        %v1671 = vpop.f32.mrf.mxu0
        %v1672 = vadd.f32 0.0, %v1671
        %v1673 = vpop.f32.mrf.mxu0
        %1674 = vmatprep.mubr.f32.mxu0 0.0
        %1675 = vmatmul.mubr.f32.gmra.mxu0 %v1462
        %v1676 = vpop.f32.mrf.mxu0
        %v1677 = vadd.f32 0.0, %v1676
        %v1678 = vpop.f32.mrf.mxu0
        %1679 = vmatprep.mubr.f32.mxu0 0.0
        %1680 = vmatmul.mubr.f32.gmra.mxu0 %v1464
        %v1681 = vpop.f32.mrf.mxu0
        %v1682 = vadd.f32 0.0, %v1681
        %v1683 = vpop.f32.mrf.mxu0
        %1684 = vmatprep.mubr.f32.mxu0 0.0
        %1685 = vmatmul.mubr.f32.gmra.mxu0 %v1466
        %v1686 = vpop.f32.mrf.mxu0
        %v1687 = vadd.f32 0.0, %v1686
        %v1688 = vpop.f32.mrf.mxu0
        %1689 = vmatprep.mubr.f32.mxu0 0.0
        %1690 = vmatmul.mubr.f32.gmra.mxu0 %v1468
        %v1691 = vpop.f32.mrf.mxu0
        %v1692 = vadd.f32 0.0, %v1691
        %v1693 = vpop.f32.mrf.mxu0
        %1694 = vmatprep.mubr.f32.mxu0 0.0
        %1695 = vmatmul.mubr.f32.gmra.mxu0 %v1470
        %v1696 = vpop.f32.mrf.mxu0
        %v1697 = vadd.f32 0.0, %v1696
        %v1698 = vpop.f32.mrf.mxu0
        %1699 = vdwg.mxu0
        %v1700 = vadd.f32 %v1169, %v1542
        %v1701 = vadd.f32 %v1174, %v1547
        %v1702 = vadd.f32 %v1179, %v1552
        %v1703 = vadd.f32 %v1184, %v1557
        %v1704 = vadd.f32 %v1189, %v1562
        %v1705 = vadd.f32 %v1194, %v1567
        %v1706 = vadd.f32 %v1199, %v1572
        %v1707 = vadd.f32 %v1204, %v1577
        %v1708 = vadd.f32 %v1209, %v1582
        %v1709 = vadd.f32 %v1214, %v1587
        %v1710 = vadd.f32 %v1219, %v1592
        %v1711 = vadd.f32 %v1224, %v1597
        %v1712 = vadd.f32 %v1229, %v1602
        %v1713 = vadd.f32 %v1234, %v1607
        %v1714 = vadd.f32 %v1239, %v1612
        %v1715 = vadd.f32 %v1244, %v1617
        %v1716 = vadd.f32 %v1249, %v1622
        %v1717 = vadd.f32 %v1254, %v1627
        %v1718 = vadd.f32 %v1259, %v1632
        %v1719 = vadd.f32 %v1264, %v1637
        %v1720 = vadd.f32 %v1269, %v1642
        %v1721 = vadd.f32 %v1274, %v1647
        %v1722 = vadd.f32 %v1279, %v1652
        %v1723 = vadd.f32 %v1284, %v1657
        %v1724 = vadd.f32 %v1289, %v1662
        %v1725 = vadd.f32 %v1294, %v1667
        %v1726 = vadd.f32 %v1299, %v1672
        %v1727 = vadd.f32 %v1304, %v1677
        %v1728 = vadd.f32 %v1309, %v1682
        %v1729 = vadd.f32 %v1314, %v1687
        %v1730 = vadd.f32 %v1319, %v1692
        %v1731 = vadd.f32 %v1324, %v1697
        %v1733 = vsel %vm387, %v607, 0
        %v1736 = vsel %vm387, %v608, 0
        %v1739 = vsel %vm806, %v518, 0
        %1741 = vmatprep.subr.mxu0 0.0
        %1742 = vmatpush1.msra.mxu0 0.0
        %1743 = vmatprep.subr.mxu0 0.0
        %1744 = vmatpush1.msra.mxu0 0.0
        %1745 = vmatprep.subr.mxu0 0.0
        %1746 = vmatpush1.msra.mxu0 0.0
        %1747 = vmatprep.subr.mxu0 0.0
        %1748 = vmatpush1.msra.mxu0 0.0
        %1749 = vmatprep.subr.mxu0 0.0
        %1750 = vmatpush1.msra.mxu0 0.0
        %1751 = vmatprep.subr.mxu0 0.0
        %1752 = vmatpush1.msra.mxu0 0.0
        %1753 = vmatprep.subr.mxu0 0.0
        %1754 = vmatpush1.msra.mxu0 0.0
        %1755 = vmatprep.subr.mxu0 0.0
        %1756 = vmatpush1.msra.mxu0 0.0
        %1757 = vmatprep.subr.mxu0 0.0
        %1758 = vmatpush1.msra.mxu0 0.0
        %1759 = vmatprep.subr.mxu0 0.0
        %1760 = vmatpush1.msra.mxu0 0.0
        %1761 = vmatprep.subr.mxu0 0.0
        %1762 = vmatpush1.msra.mxu0 0.0
        %1763 = vmatprep.subr.mxu0 0.0
        %1764 = vmatpush1.msra.mxu0 0.0
        %1765 = vmatprep.subr.mxu0 0.0
        %1766 = vmatpush1.msra.mxu0 0.0
        %1767 = vmatprep.subr.mxu0 0.0
        %1768 = vmatpush1.msra.mxu0 0.0
        %1769 = vmatprep.subr.mxu0 0.0
        %1770 = vmatpush1.msra.mxu0 0.0
        %1771 = vmatprep.subr.mxu0 0.0
        %1772 = vmatpush1.msra.mxu0 %v1739
        %1773 = vmatprep.subr.mxu0 0.0
        %1774 = vmatpush2.msra.mxu0 0.0
        %1775 = vmatprep.subr.mxu0 0.0
        %1776 = vmatpush2.msra.mxu0 0.0
        %1777 = vmatprep.subr.mxu0 0.0
        %1778 = vmatpush2.msra.mxu0 0.0
        %1779 = vmatprep.subr.mxu0 0.0
        %1780 = vmatpush2.msra.mxu0 0.0
        %1781 = vmatprep.subr.mxu0 0.0
        %1782 = vmatpush2.msra.mxu0 0.0
        %1783 = vmatprep.subr.mxu0 0.0
        %1784 = vmatpush2.msra.mxu0 0.0
        %1785 = vmatprep.subr.mxu0 0.0
        %1786 = vmatpush2.msra.mxu0 0.0
        %1787 = vmatprep.subr.mxu0 0.0
        %1788 = vmatpush2.msra.mxu0 0.0
        %1789 = vmatprep.subr.mxu0 0.0
        %1790 = vmatpush2.msra.mxu0 0.0
        %1791 = vmatprep.subr.mxu0 0.0
        %1792 = vmatpush2.msra.mxu0 0.0
        %1793 = vmatprep.subr.mxu0 0.0
        %1794 = vmatpush2.msra.mxu0 0.0
        %1795 = vmatprep.subr.mxu0 0.0
        %1796 = vmatpush2.msra.mxu0 0.0
        %1797 = vmatprep.subr.mxu0 0.0
        %1798 = vmatpush2.msra.mxu0 0.0
        %1799 = vmatprep.subr.mxu0 0.0
        %1800 = vmatpush2.msra.mxu0 0.0
        %1801 = vmatprep.subr.mxu0 0.0
        %1802 = vmatpush2.msra.mxu0 0.0
        %1803 = vmatprep.subr.mxu0 0.0
        %1804 = vmatpush2.msra.mxu0 0.0
        %1805 = vmatprep.mubr.f32.mxu0 0.0
        %1806 = vmatmul.mubr.f32.gmra.mxu0 %v1039
        %v1807 = vpop.f32.mrf.mxu0
        %v1808 = vadd.f32 0.0, %v1807
        %v1809 = vpop.f32.mrf.mxu0
        %1810 = vmatprep.mubr.f32.mxu0 0.0
        %1811 = vmatmul.mubr.f32.gmra.mxu0 %v1041
        %v1812 = vpop.f32.mrf.mxu0
        %v1813 = vadd.f32 0.0, %v1812
        %v1814 = vpop.f32.mrf.mxu0
        %1815 = vmatprep.mubr.f32.mxu0 0.0
        %1816 = vmatmul.mubr.f32.gmra.mxu0 %v1043
        %v1817 = vpop.f32.mrf.mxu0
        %v1818 = vadd.f32 0.0, %v1817
        %v1819 = vpop.f32.mrf.mxu0
        %1820 = vmatprep.mubr.f32.mxu0 0.0
        %1821 = vmatmul.mubr.f32.gmra.mxu0 %v1045
        %v1822 = vpop.f32.mrf.mxu0
        %v1823 = vadd.f32 0.0, %v1822
        %v1824 = vpop.f32.mrf.mxu0
        %1825 = vmatprep.mubr.f32.mxu0 0.0
        %1826 = vmatmul.mubr.f32.gmra.mxu0 %v1047
        %v1827 = vpop.f32.mrf.mxu0
        %v1828 = vadd.f32 0.0, %v1827
        %v1829 = vpop.f32.mrf.mxu0
        %1830 = vmatprep.mubr.f32.mxu0 0.0
        %1831 = vmatmul.mubr.f32.gmra.mxu0 %v1049
        %v1832 = vpop.f32.mrf.mxu0
        %v1833 = vadd.f32 0.0, %v1832
        %v1834 = vpop.f32.mrf.mxu0
        %1835 = vmatprep.mubr.f32.mxu0 0.0
        %1836 = vmatmul.mubr.f32.gmra.mxu0 %v1051
        %v1837 = vpop.f32.mrf.mxu0
        %v1838 = vadd.f32 0.0, %v1837
        %v1839 = vpop.f32.mrf.mxu0
        %1840 = vmatprep.mubr.f32.mxu0 0.0
        %1841 = vmatmul.mubr.f32.gmra.mxu0 %v1053
        %v1842 = vpop.f32.mrf.mxu0
        %v1843 = vadd.f32 0.0, %v1842
        %v1844 = vpop.f32.mrf.mxu0
        %1845 = vmatprep.mubr.f32.mxu0 0.0
        %1846 = vmatmul.mubr.f32.gmra.mxu0 %v1055
        %v1847 = vpop.f32.mrf.mxu0
        %v1848 = vadd.f32 0.0, %v1847
        %v1849 = vpop.f32.mrf.mxu0
        %1850 = vmatprep.mubr.f32.mxu0 0.0
        %1851 = vmatmul.mubr.f32.gmra.mxu0 %v1057
        %v1852 = vpop.f32.mrf.mxu0
        %v1853 = vadd.f32 0.0, %v1852
        %v1854 = vpop.f32.mrf.mxu0
        %1855 = vmatprep.mubr.f32.mxu0 0.0
        %1856 = vmatmul.mubr.f32.gmra.mxu0 %v1059
        %v1857 = vpop.f32.mrf.mxu0
        %v1858 = vadd.f32 0.0, %v1857
        %v1859 = vpop.f32.mrf.mxu0
        %1860 = vmatprep.mubr.f32.mxu0 0.0
        %1861 = vmatmul.mubr.f32.gmra.mxu0 %v1061
        %v1862 = vpop.f32.mrf.mxu0
        %v1863 = vadd.f32 0.0, %v1862
        %v1864 = vpop.f32.mrf.mxu0
        %1865 = vmatprep.mubr.f32.mxu0 0.0
        %1866 = vmatmul.mubr.f32.gmra.mxu0 %v1063
        %v1867 = vpop.f32.mrf.mxu0
        %v1868 = vadd.f32 0.0, %v1867
        %v1869 = vpop.f32.mrf.mxu0
        %1870 = vmatprep.mubr.f32.mxu0 0.0
        %1871 = vmatmul.mubr.f32.gmra.mxu0 %v1065
        %v1872 = vpop.f32.mrf.mxu0
        %v1873 = vadd.f32 0.0, %v1872
        %v1874 = vpop.f32.mrf.mxu0
        %1875 = vmatprep.mubr.f32.mxu0 0.0
        %1876 = vmatmul.mubr.f32.gmra.mxu0 %v1067
        %v1877 = vpop.f32.mrf.mxu0
        %v1878 = vadd.f32 0.0, %v1877
        %v1879 = vpop.f32.mrf.mxu0
        %1880 = vmatprep.mubr.f32.mxu0 0.0
        %1881 = vmatmul.mubr.f32.gmra.mxu0 %v1069
        %v1882 = vpop.f32.mrf.mxu0
        %v1883 = vadd.f32 0.0, %v1882
        %v1884 = vpop.f32.mrf.mxu0
        %1885 = vmatprep.mubr.f32.mxu0 0.0
        %1886 = vmatmul.mubr.f32.gmra.mxu0 %v1071
        %v1887 = vpop.f32.mrf.mxu0
        %v1888 = vadd.f32 0.0, %v1887
        %v1889 = vpop.f32.mrf.mxu0
        %1890 = vmatprep.mubr.f32.mxu0 0.0
        %1891 = vmatmul.mubr.f32.gmra.mxu0 %v1073
        %v1892 = vpop.f32.mrf.mxu0
        %v1893 = vadd.f32 0.0, %v1892
        %v1894 = vpop.f32.mrf.mxu0
        %1895 = vmatprep.mubr.f32.mxu0 0.0
        %1896 = vmatmul.mubr.f32.gmra.mxu0 %v1075
        %v1897 = vpop.f32.mrf.mxu0
        %v1898 = vadd.f32 0.0, %v1897
        %v1899 = vpop.f32.mrf.mxu0
        %1900 = vmatprep.mubr.f32.mxu0 0.0
        %1901 = vmatmul.mubr.f32.gmra.mxu0 %v1077
        %v1902 = vpop.f32.mrf.mxu0
        %v1903 = vadd.f32 0.0, %v1902
        %v1904 = vpop.f32.mrf.mxu0
        %1905 = vmatprep.mubr.f32.mxu0 0.0
        %1906 = vmatmul.mubr.f32.gmra.mxu0 %v1079
        %v1907 = vpop.f32.mrf.mxu0
        %v1908 = vadd.f32 0.0, %v1907
        %v1909 = vpop.f32.mrf.mxu0
        %1910 = vmatprep.mubr.f32.mxu0 0.0
        %1911 = vmatmul.mubr.f32.gmra.mxu0 %v1081
        %v1912 = vpop.f32.mrf.mxu0
        %v1913 = vadd.f32 0.0, %v1912
        %v1914 = vpop.f32.mrf.mxu0
        %1915 = vmatprep.mubr.f32.mxu0 0.0
        %1916 = vmatmul.mubr.f32.gmra.mxu0 %v1083
        %v1917 = vpop.f32.mrf.mxu0
        %v1918 = vadd.f32 0.0, %v1917
        %v1919 = vpop.f32.mrf.mxu0
        %1920 = vmatprep.mubr.f32.mxu0 0.0
        %1921 = vmatmul.mubr.f32.gmra.mxu0 %v1085
        %v1922 = vpop.f32.mrf.mxu0
        %v1923 = vadd.f32 0.0, %v1922
        %v1924 = vpop.f32.mrf.mxu0
        %1925 = vmatprep.mubr.f32.mxu0 0.0
        %1926 = vmatmul.mubr.f32.gmra.mxu0 %v1087
        %v1927 = vpop.f32.mrf.mxu0
        %v1928 = vadd.f32 0.0, %v1927
        %v1929 = vpop.f32.mrf.mxu0
        %1930 = vmatprep.mubr.f32.mxu0 0.0
        %1931 = vmatmul.mubr.f32.gmra.mxu0 %v1089
        %v1932 = vpop.f32.mrf.mxu0
        %v1933 = vadd.f32 0.0, %v1932
        %v1934 = vpop.f32.mrf.mxu0
        %1935 = vmatprep.mubr.f32.mxu0 0.0
        %1936 = vmatmul.mubr.f32.gmra.mxu0 %v1091
        %v1937 = vpop.f32.mrf.mxu0
        %v1938 = vadd.f32 0.0, %v1937
        %v1939 = vpop.f32.mrf.mxu0
        %1940 = vmatprep.mubr.f32.mxu0 0.0
        %1941 = vmatmul.mubr.f32.gmra.mxu0 %v1093
        %v1942 = vpop.f32.mrf.mxu0
        %v1943 = vadd.f32 0.0, %v1942
        %v1944 = vpop.f32.mrf.mxu0
        %1945 = vmatprep.mubr.f32.mxu0 0.0
        %1946 = vmatmul.mubr.f32.gmra.mxu0 %v1095
        %v1947 = vpop.f32.mrf.mxu0
        %v1948 = vadd.f32 0.0, %v1947
        %v1949 = vpop.f32.mrf.mxu0
        %1950 = vmatprep.mubr.f32.mxu0 0.0
        %1951 = vmatmul.mubr.f32.gmra.mxu0 %v1097
        %v1952 = vpop.f32.mrf.mxu0
        %v1953 = vadd.f32 0.0, %v1952
        %v1954 = vpop.f32.mrf.mxu0
        %1955 = vmatprep.mubr.f32.mxu0 0.0
        %1956 = vmatmul.mubr.f32.gmra.mxu0 %v1733
        %v1957 = vpop.f32.mrf.mxu0
        %v1958 = vadd.f32 0.0, %v1957
        %v1959 = vpop.f32.mrf.mxu0
        %1960 = vmatprep.mubr.f32.mxu0 0.0
        %1961 = vmatmul.mubr.f32.gmra.mxu0 %v1736
        %v1962 = vpop.f32.mrf.mxu0
        %v1963 = vadd.f32 0.0, %v1962
        %v1964 = vpop.f32.mrf.mxu0
        %1965 = vdwg.mxu0
        %v1966 = vadd.f32 %v1700, %v1808
        %v1967 = vadd.f32 %v1701, %v1813
        %v1968 = vadd.f32 %v1702, %v1818
        %v1969 = vadd.f32 %v1703, %v1823
        %v1970 = vadd.f32 %v1704, %v1828
        %v1971 = vadd.f32 %v1705, %v1833
        %v1972 = vadd.f32 %v1706, %v1838
        %v1973 = vadd.f32 %v1707, %v1843
        %v1974 = vadd.f32 %v1708, %v1848
        %v1975 = vadd.f32 %v1709, %v1853
        %v1976 = vadd.f32 %v1710, %v1858
        %v1977 = vadd.f32 %v1711, %v1863
        %v1978 = vadd.f32 %v1712, %v1868
        %v1979 = vadd.f32 %v1713, %v1873
        %v1980 = vadd.f32 %v1714, %v1878
        %v1981 = vadd.f32 %v1715, %v1883
        %v1982 = vadd.f32 %v1716, %v1888
        %v1983 = vadd.f32 %v1717, %v1893
        %v1984 = vadd.f32 %v1718, %v1898
        %v1985 = vadd.f32 %v1719, %v1903
        %v1986 = vadd.f32 %v1720, %v1908
        %v1987 = vadd.f32 %v1721, %v1913
        %v1988 = vadd.f32 %v1722, %v1918
        %v1989 = vadd.f32 %v1723, %v1923
        %v1990 = vadd.f32 %v1724, %v1928
        %v1991 = vadd.f32 %v1725, %v1933
        %v1992 = vadd.f32 %v1726, %v1938
        %v1993 = vadd.f32 %v1727, %v1943
        %v1994 = vadd.f32 %v1728, %v1948
        %v1995 = vadd.f32 %v1729, %v1953
        %v1996 = vadd.f32 %v1730, %v1958
        %v1997 = vadd.f32 %v1731, %v1963
        %v1999 = vrot.slane %v607, 1
        %v2000 = vrot.slane %v608, 1
        %v2001 = vsel %vm661, %v1999, %v2000
        %v2002 = vrot.slane %v609, 1
        %v2003 = vsel %vm661, %v2000, %v2002
        %v2004 = vsel %vm387, %v2001, 0
        %v2006 = vsel %vm387, %v2003, 0
        %v2009 = vsel %vm806, %v519, 0
        %2011 = vmatprep.subr.mxu0 0.0
        %2012 = vmatpush1.msra.mxu0 0.0
        %2013 = vmatprep.subr.mxu0 0.0
        %2014 = vmatpush1.msra.mxu0 0.0
        %2015 = vmatprep.subr.mxu0 0.0
        %2016 = vmatpush1.msra.mxu0 0.0
        %2017 = vmatprep.subr.mxu0 0.0
        %2018 = vmatpush1.msra.mxu0 0.0
        %2019 = vmatprep.subr.mxu0 0.0
        %2020 = vmatpush1.msra.mxu0 0.0
        %2021 = vmatprep.subr.mxu0 0.0
        %2022 = vmatpush1.msra.mxu0 0.0
        %2023 = vmatprep.subr.mxu0 0.0
        %2024 = vmatpush1.msra.mxu0 0.0
        %2025 = vmatprep.subr.mxu0 0.0
        %2026 = vmatpush1.msra.mxu0 0.0
        %2027 = vmatprep.subr.mxu0 0.0
        %2028 = vmatpush1.msra.mxu0 0.0
        %2029 = vmatprep.subr.mxu0 0.0
        %2030 = vmatpush1.msra.mxu0 0.0
        %2031 = vmatprep.subr.mxu0 0.0
        %2032 = vmatpush1.msra.mxu0 0.0
        %2033 = vmatprep.subr.mxu0 0.0
        %2034 = vmatpush1.msra.mxu0 0.0
        %2035 = vmatprep.subr.mxu0 0.0
        %2036 = vmatpush1.msra.mxu0 0.0
        %2037 = vmatprep.subr.mxu0 0.0
        %2038 = vmatpush1.msra.mxu0 0.0
        %2039 = vmatprep.subr.mxu0 0.0
        %2040 = vmatpush1.msra.mxu0 0.0
        %2041 = vmatprep.subr.mxu0 0.0
        %2042 = vmatpush1.msra.mxu0 %v2009
        %2043 = vmatprep.subr.mxu0 0.0
        %2044 = vmatpush2.msra.mxu0 0.0
        %2045 = vmatprep.subr.mxu0 0.0
        %2046 = vmatpush2.msra.mxu0 0.0
        %2047 = vmatprep.subr.mxu0 0.0
        %2048 = vmatpush2.msra.mxu0 0.0
        %2049 = vmatprep.subr.mxu0 0.0
        %2050 = vmatpush2.msra.mxu0 0.0
        %2051 = vmatprep.subr.mxu0 0.0
        %2052 = vmatpush2.msra.mxu0 0.0
        %2053 = vmatprep.subr.mxu0 0.0
        %2054 = vmatpush2.msra.mxu0 0.0
        %2055 = vmatprep.subr.mxu0 0.0
        %2056 = vmatpush2.msra.mxu0 0.0
        %2057 = vmatprep.subr.mxu0 0.0
        %2058 = vmatpush2.msra.mxu0 0.0
        %2059 = vmatprep.subr.mxu0 0.0
        %2060 = vmatpush2.msra.mxu0 0.0
        %2061 = vmatprep.subr.mxu0 0.0
        %2062 = vmatpush2.msra.mxu0 0.0
        %2063 = vmatprep.subr.mxu0 0.0
        %2064 = vmatpush2.msra.mxu0 0.0
        %2065 = vmatprep.subr.mxu0 0.0
        %2066 = vmatpush2.msra.mxu0 0.0
        %2067 = vmatprep.subr.mxu0 0.0
        %2068 = vmatpush2.msra.mxu0 0.0
        %2069 = vmatprep.subr.mxu0 0.0
        %2070 = vmatpush2.msra.mxu0 0.0
        %2071 = vmatprep.subr.mxu0 0.0
        %2072 = vmatpush2.msra.mxu0 0.0
        %2073 = vmatprep.subr.mxu0 0.0
        %2074 = vmatpush2.msra.mxu0 0.0
        %2075 = vmatprep.mubr.f32.mxu0 0.0
        %2076 = vmatmul.mubr.f32.gmra.mxu0 %v746
        %v2077 = vpop.f32.mrf.mxu0
        %v2078 = vadd.f32 0.0, %v2077
        %v2079 = vpop.f32.mrf.mxu0
        %2080 = vmatprep.mubr.f32.mxu0 0.0
        %2081 = vmatmul.mubr.f32.gmra.mxu0 %v748
        %v2082 = vpop.f32.mrf.mxu0
        %v2083 = vadd.f32 0.0, %v2082
        %v2084 = vpop.f32.mrf.mxu0
        %2085 = vmatprep.mubr.f32.mxu0 0.0
        %2086 = vmatmul.mubr.f32.gmra.mxu0 %v750
        %v2087 = vpop.f32.mrf.mxu0
        %v2088 = vadd.f32 0.0, %v2087
        %v2089 = vpop.f32.mrf.mxu0
        %2090 = vmatprep.mubr.f32.mxu0 0.0
        %2091 = vmatmul.mubr.f32.gmra.mxu0 %v752
        %v2092 = vpop.f32.mrf.mxu0
        %v2093 = vadd.f32 0.0, %v2092
        %v2094 = vpop.f32.mrf.mxu0
        %2095 = vmatprep.mubr.f32.mxu0 0.0
        %2096 = vmatmul.mubr.f32.gmra.mxu0 %v754
        %v2097 = vpop.f32.mrf.mxu0
        %v2098 = vadd.f32 0.0, %v2097
        %v2099 = vpop.f32.mrf.mxu0
        %2100 = vmatprep.mubr.f32.mxu0 0.0
        %2101 = vmatmul.mubr.f32.gmra.mxu0 %v756
        %v2102 = vpop.f32.mrf.mxu0
        %v2103 = vadd.f32 0.0, %v2102
        %v2104 = vpop.f32.mrf.mxu0
        %2105 = vmatprep.mubr.f32.mxu0 0.0
        %2106 = vmatmul.mubr.f32.gmra.mxu0 %v758
        %v2107 = vpop.f32.mrf.mxu0
        %v2108 = vadd.f32 0.0, %v2107
        %v2109 = vpop.f32.mrf.mxu0
        %2110 = vmatprep.mubr.f32.mxu0 0.0
        %2111 = vmatmul.mubr.f32.gmra.mxu0 %v760
        %v2112 = vpop.f32.mrf.mxu0
        %v2113 = vadd.f32 0.0, %v2112
        %v2114 = vpop.f32.mrf.mxu0
        %2115 = vmatprep.mubr.f32.mxu0 0.0
        %2116 = vmatmul.mubr.f32.gmra.mxu0 %v762
        %v2117 = vpop.f32.mrf.mxu0
        %v2118 = vadd.f32 0.0, %v2117
        %v2119 = vpop.f32.mrf.mxu0
        %2120 = vmatprep.mubr.f32.mxu0 0.0
        %2121 = vmatmul.mubr.f32.gmra.mxu0 %v764
        %v2122 = vpop.f32.mrf.mxu0
        %v2123 = vadd.f32 0.0, %v2122
        %v2124 = vpop.f32.mrf.mxu0
        %2125 = vmatprep.mubr.f32.mxu0 0.0
        %2126 = vmatmul.mubr.f32.gmra.mxu0 %v766
        %v2127 = vpop.f32.mrf.mxu0
        %v2128 = vadd.f32 0.0, %v2127
        %v2129 = vpop.f32.mrf.mxu0
        %2130 = vmatprep.mubr.f32.mxu0 0.0
        %2131 = vmatmul.mubr.f32.gmra.mxu0 %v768
        %v2132 = vpop.f32.mrf.mxu0
        %v2133 = vadd.f32 0.0, %v2132
        %v2134 = vpop.f32.mrf.mxu0
        %2135 = vmatprep.mubr.f32.mxu0 0.0
        %2136 = vmatmul.mubr.f32.gmra.mxu0 %v770
        %v2137 = vpop.f32.mrf.mxu0
        %v2138 = vadd.f32 0.0, %v2137
        %v2139 = vpop.f32.mrf.mxu0
        %2140 = vmatprep.mubr.f32.mxu0 0.0
        %2141 = vmatmul.mubr.f32.gmra.mxu0 %v772
        %v2142 = vpop.f32.mrf.mxu0
        %v2143 = vadd.f32 0.0, %v2142
        %v2144 = vpop.f32.mrf.mxu0
        %2145 = vmatprep.mubr.f32.mxu0 0.0
        %2146 = vmatmul.mubr.f32.gmra.mxu0 %v774
        %v2147 = vpop.f32.mrf.mxu0
        %v2148 = vadd.f32 0.0, %v2147
        %v2149 = vpop.f32.mrf.mxu0
        %2150 = vmatprep.mubr.f32.mxu0 0.0
        %2151 = vmatmul.mubr.f32.gmra.mxu0 %v776
        %v2152 = vpop.f32.mrf.mxu0
        %v2153 = vadd.f32 0.0, %v2152
        %v2154 = vpop.f32.mrf.mxu0
        %2155 = vmatprep.mubr.f32.mxu0 0.0
        %2156 = vmatmul.mubr.f32.gmra.mxu0 %v778
        %v2157 = vpop.f32.mrf.mxu0
        %v2158 = vadd.f32 0.0, %v2157
        %v2159 = vpop.f32.mrf.mxu0
        %2160 = vmatprep.mubr.f32.mxu0 0.0
        %2161 = vmatmul.mubr.f32.gmra.mxu0 %v780
        %v2162 = vpop.f32.mrf.mxu0
        %v2163 = vadd.f32 0.0, %v2162
        %v2164 = vpop.f32.mrf.mxu0
        %2165 = vmatprep.mubr.f32.mxu0 0.0
        %2166 = vmatmul.mubr.f32.gmra.mxu0 %v782
        %v2167 = vpop.f32.mrf.mxu0
        %v2168 = vadd.f32 0.0, %v2167
        %v2169 = vpop.f32.mrf.mxu0
        %2170 = vmatprep.mubr.f32.mxu0 0.0
        %2171 = vmatmul.mubr.f32.gmra.mxu0 %v784
        %v2172 = vpop.f32.mrf.mxu0
        %v2173 = vadd.f32 0.0, %v2172
        %v2174 = vpop.f32.mrf.mxu0
        %2175 = vmatprep.mubr.f32.mxu0 0.0
        %2176 = vmatmul.mubr.f32.gmra.mxu0 %v786
        %v2177 = vpop.f32.mrf.mxu0
        %v2178 = vadd.f32 0.0, %v2177
        %v2179 = vpop.f32.mrf.mxu0
        %2180 = vmatprep.mubr.f32.mxu0 0.0
        %2181 = vmatmul.mubr.f32.gmra.mxu0 %v788
        %v2182 = vpop.f32.mrf.mxu0
        %v2183 = vadd.f32 0.0, %v2182
        %v2184 = vpop.f32.mrf.mxu0
        %2185 = vmatprep.mubr.f32.mxu0 0.0
        %2186 = vmatmul.mubr.f32.gmra.mxu0 %v790
        %v2187 = vpop.f32.mrf.mxu0
        %v2188 = vadd.f32 0.0, %v2187
        %v2189 = vpop.f32.mrf.mxu0
        %2190 = vmatprep.mubr.f32.mxu0 0.0
        %2191 = vmatmul.mubr.f32.gmra.mxu0 %v792
        %v2192 = vpop.f32.mrf.mxu0
        %v2193 = vadd.f32 0.0, %v2192
        %v2194 = vpop.f32.mrf.mxu0
        %2195 = vmatprep.mubr.f32.mxu0 0.0
        %2196 = vmatmul.mubr.f32.gmra.mxu0 %v794
        %v2197 = vpop.f32.mrf.mxu0
        %v2198 = vadd.f32 0.0, %v2197
        %v2199 = vpop.f32.mrf.mxu0
        %2200 = vmatprep.mubr.f32.mxu0 0.0
        %2201 = vmatmul.mubr.f32.gmra.mxu0 %v796
        %v2202 = vpop.f32.mrf.mxu0
        %v2203 = vadd.f32 0.0, %v2202
        %v2204 = vpop.f32.mrf.mxu0
        %2205 = vmatprep.mubr.f32.mxu0 0.0
        %2206 = vmatmul.mubr.f32.gmra.mxu0 %v798
        %v2207 = vpop.f32.mrf.mxu0
        %v2208 = vadd.f32 0.0, %v2207
        %v2209 = vpop.f32.mrf.mxu0
        %2210 = vmatprep.mubr.f32.mxu0 0.0
        %2211 = vmatmul.mubr.f32.gmra.mxu0 %v800
        %v2212 = vpop.f32.mrf.mxu0
        %v2213 = vadd.f32 0.0, %v2212
        %v2214 = vpop.f32.mrf.mxu0
        %2215 = vmatprep.mubr.f32.mxu0 0.0
        %2216 = vmatmul.mubr.f32.gmra.mxu0 %v802
        %v2217 = vpop.f32.mrf.mxu0
        %v2218 = vadd.f32 0.0, %v2217
        %v2219 = vpop.f32.mrf.mxu0
        %2220 = vmatprep.mubr.f32.mxu0 0.0
        %2221 = vmatmul.mubr.f32.gmra.mxu0 %v804
        %v2222 = vpop.f32.mrf.mxu0
        %v2223 = vadd.f32 0.0, %v2222
        %v2224 = vpop.f32.mrf.mxu0
        %2225 = vmatprep.mubr.f32.mxu0 0.0
        %2226 = vmatmul.mubr.f32.gmra.mxu0 %v2004
        %v2227 = vpop.f32.mrf.mxu0
        %v2228 = vadd.f32 0.0, %v2227
        %v2229 = vpop.f32.mrf.mxu0
        %2230 = vmatprep.mubr.f32.mxu0 0.0
        %2231 = vmatmul.mubr.f32.gmra.mxu0 %v2006
        %v2232 = vpop.f32.mrf.mxu0
        %v2233 = vadd.f32 0.0, %v2232
        %v2234 = vpop.f32.mrf.mxu0
        %2235 = vdwg.mxu0
        %v2236 = vadd.f32 %v1966, %v2078
        %v2237 = vadd.f32 %v1967, %v2083
        %v2238 = vadd.f32 %v1968, %v2088
        %v2239 = vadd.f32 %v1969, %v2093
        %v2240 = vadd.f32 %v1970, %v2098
        %v2241 = vadd.f32 %v1971, %v2103
        %v2242 = vadd.f32 %v1972, %v2108
        %v2243 = vadd.f32 %v1973, %v2113
        %v2244 = vadd.f32 %v1974, %v2118
        %v2245 = vadd.f32 %v1975, %v2123
        %v2246 = vadd.f32 %v1976, %v2128
        %v2247 = vadd.f32 %v1977, %v2133
        %v2248 = vadd.f32 %v1978, %v2138
        %v2249 = vadd.f32 %v1979, %v2143
        %v2250 = vadd.f32 %v1980, %v2148
        %v2251 = vadd.f32 %v1981, %v2153
        %v2252 = vadd.f32 %v1982, %v2158
        %v2253 = vadd.f32 %v1983, %v2163
        %v2254 = vadd.f32 %v1984, %v2168
        %v2255 = vadd.f32 %v1985, %v2173
        %v2256 = vadd.f32 %v1986, %v2178
        %v2257 = vadd.f32 %v1987, %v2183
        %v2258 = vadd.f32 %v1988, %v2188
        %v2259 = vadd.f32 %v1989, %v2193
        %v2260 = vadd.f32 %v1990, %v2198
        %v2261 = vadd.f32 %v1991, %v2203
        %v2262 = vadd.f32 %v1992, %v2208
        %v2263 = vadd.f32 %v1993, %v2213
        %v2264 = vadd.f32 %v1994, %v2218
        %v2265 = vadd.f32 %v1995, %v2223
        %v2266 = vadd.f32 %v1996, %v2228
        %v2267 = vadd.f32 %v1997, %v2233
        %v2268 = vrot.slane %v607, 2
        %v2269 = vrot.slane %v608, 2
        %v2270 = vsel %vm1327, %v2268, %v2269
        %v2271 = vrot.slane %v609, 2
        %v2272 = vsel %vm1327, %v2269, %v2271
        %v2273 = vsel %vm387, %v2270, 0
        %v2275 = vsel %vm387, %v2272, 0
        %v2278 = vsel %vm806, %v520, 0
        %2280 = vmatprep.subr.mxu0 0.0
        %2281 = vmatpush1.msra.mxu0 0.0
        %2282 = vmatprep.subr.mxu0 0.0
        %2283 = vmatpush1.msra.mxu0 0.0
        %2284 = vmatprep.subr.mxu0 0.0
        %2285 = vmatpush1.msra.mxu0 0.0
        %2286 = vmatprep.subr.mxu0 0.0
        %2287 = vmatpush1.msra.mxu0 0.0
        %2288 = vmatprep.subr.mxu0 0.0
        %2289 = vmatpush1.msra.mxu0 0.0
        %2290 = vmatprep.subr.mxu0 0.0
        %2291 = vmatpush1.msra.mxu0 0.0
        %2292 = vmatprep.subr.mxu0 0.0
        %2293 = vmatpush1.msra.mxu0 0.0
        %2294 = vmatprep.subr.mxu0 0.0
        %2295 = vmatpush1.msra.mxu0 0.0
        %2296 = vmatprep.subr.mxu0 0.0
        %2297 = vmatpush1.msra.mxu0 0.0
        %2298 = vmatprep.subr.mxu0 0.0
        %2299 = vmatpush1.msra.mxu0 0.0
        %2300 = vmatprep.subr.mxu0 0.0
        %2301 = vmatpush1.msra.mxu0 0.0
        %2302 = vmatprep.subr.mxu0 0.0
        %2303 = vmatpush1.msra.mxu0 0.0
        %2304 = vmatprep.subr.mxu0 0.0
        %2305 = vmatpush1.msra.mxu0 0.0
        %2306 = vmatprep.subr.mxu0 0.0
        %2307 = vmatpush1.msra.mxu0 0.0
        %2308 = vmatprep.subr.mxu0 0.0
        %2309 = vmatpush1.msra.mxu0 0.0
        %2310 = vmatprep.subr.mxu0 0.0
        %2311 = vmatpush1.msra.mxu0 %v2278
        %2312 = vmatprep.subr.mxu0 0.0
        %2313 = vmatpush2.msra.mxu0 0.0
        %2314 = vmatprep.subr.mxu0 0.0
        %2315 = vmatpush2.msra.mxu0 0.0
        %2316 = vmatprep.subr.mxu0 0.0
        %2317 = vmatpush2.msra.mxu0 0.0
        %2318 = vmatprep.subr.mxu0 0.0
        %2319 = vmatpush2.msra.mxu0 0.0
        %2320 = vmatprep.subr.mxu0 0.0
        %2321 = vmatpush2.msra.mxu0 0.0
        %2322 = vmatprep.subr.mxu0 0.0
        %2323 = vmatpush2.msra.mxu0 0.0
        %2324 = vmatprep.subr.mxu0 0.0
        %2325 = vmatpush2.msra.mxu0 0.0
        %2326 = vmatprep.subr.mxu0 0.0
        %2327 = vmatpush2.msra.mxu0 0.0
        %2328 = vmatprep.subr.mxu0 0.0
        %2329 = vmatpush2.msra.mxu0 0.0
        %2330 = vmatprep.subr.mxu0 0.0
        %2331 = vmatpush2.msra.mxu0 0.0
        %2332 = vmatprep.subr.mxu0 0.0
        %2333 = vmatpush2.msra.mxu0 0.0
        %2334 = vmatprep.subr.mxu0 0.0
        %2335 = vmatpush2.msra.mxu0 0.0
        %2336 = vmatprep.subr.mxu0 0.0
        %2337 = vmatpush2.msra.mxu0 0.0
        %2338 = vmatprep.subr.mxu0 0.0
        %2339 = vmatpush2.msra.mxu0 0.0
        %2340 = vmatprep.subr.mxu0 0.0
        %2341 = vmatpush2.msra.mxu0 0.0
        %2342 = vmatprep.subr.mxu0 0.0
        %2343 = vmatpush2.msra.mxu0 0.0
        %2344 = vmatprep.mubr.f32.mxu0 0.0
        %2345 = vmatmul.mubr.f32.gmra.mxu0 %v1412
        %v2346 = vpop.f32.mrf.mxu0
        %v2347 = vadd.f32 0.0, %v2346
        %v2348 = vpop.f32.mrf.mxu0
        %2349 = vmatprep.mubr.f32.mxu0 0.0
        %2350 = vmatmul.mubr.f32.gmra.mxu0 %v1414
        %v2351 = vpop.f32.mrf.mxu0
        %v2352 = vadd.f32 0.0, %v2351
        %v2353 = vpop.f32.mrf.mxu0
        %2354 = vmatprep.mubr.f32.mxu0 0.0
        %2355 = vmatmul.mubr.f32.gmra.mxu0 %v1416
        %v2356 = vpop.f32.mrf.mxu0
        %v2357 = vadd.f32 0.0, %v2356
        %v2358 = vpop.f32.mrf.mxu0
        %2359 = vmatprep.mubr.f32.mxu0 0.0
        %2360 = vmatmul.mubr.f32.gmra.mxu0 %v1418
        %v2361 = vpop.f32.mrf.mxu0
        %v2362 = vadd.f32 0.0, %v2361
        %v2363 = vpop.f32.mrf.mxu0
        %2364 = vmatprep.mubr.f32.mxu0 0.0
        %2365 = vmatmul.mubr.f32.gmra.mxu0 %v1420
        %v2366 = vpop.f32.mrf.mxu0
        %v2367 = vadd.f32 0.0, %v2366
        %v2368 = vpop.f32.mrf.mxu0
        %2369 = vmatprep.mubr.f32.mxu0 0.0
        %2370 = vmatmul.mubr.f32.gmra.mxu0 %v1422
        %v2371 = vpop.f32.mrf.mxu0
        %v2372 = vadd.f32 0.0, %v2371
        %v2373 = vpop.f32.mrf.mxu0
        %2374 = vmatprep.mubr.f32.mxu0 0.0
        %2375 = vmatmul.mubr.f32.gmra.mxu0 %v1424
        %v2376 = vpop.f32.mrf.mxu0
        %v2377 = vadd.f32 0.0, %v2376
        %v2378 = vpop.f32.mrf.mxu0
        %2379 = vmatprep.mubr.f32.mxu0 0.0
        %2380 = vmatmul.mubr.f32.gmra.mxu0 %v1426
        %v2381 = vpop.f32.mrf.mxu0
        %v2382 = vadd.f32 0.0, %v2381
        %v2383 = vpop.f32.mrf.mxu0
        %2384 = vmatprep.mubr.f32.mxu0 0.0
        %2385 = vmatmul.mubr.f32.gmra.mxu0 %v1428
        %v2386 = vpop.f32.mrf.mxu0
        %v2387 = vadd.f32 0.0, %v2386
        %v2388 = vpop.f32.mrf.mxu0
        %2389 = vmatprep.mubr.f32.mxu0 0.0
        %2390 = vmatmul.mubr.f32.gmra.mxu0 %v1430
        %v2391 = vpop.f32.mrf.mxu0
        %v2392 = vadd.f32 0.0, %v2391
        %v2393 = vpop.f32.mrf.mxu0
        %2394 = vmatprep.mubr.f32.mxu0 0.0
        %2395 = vmatmul.mubr.f32.gmra.mxu0 %v1432
        %v2396 = vpop.f32.mrf.mxu0
        %v2397 = vadd.f32 0.0, %v2396
        %v2398 = vpop.f32.mrf.mxu0
        %2399 = vmatprep.mubr.f32.mxu0 0.0
        %2400 = vmatmul.mubr.f32.gmra.mxu0 %v1434
        %v2401 = vpop.f32.mrf.mxu0
        %v2402 = vadd.f32 0.0, %v2401
        %v2403 = vpop.f32.mrf.mxu0
        %2404 = vmatprep.mubr.f32.mxu0 0.0
        %2405 = vmatmul.mubr.f32.gmra.mxu0 %v1436
        %v2406 = vpop.f32.mrf.mxu0
        %v2407 = vadd.f32 0.0, %v2406
        %v2408 = vpop.f32.mrf.mxu0
        %2409 = vmatprep.mubr.f32.mxu0 0.0
        %2410 = vmatmul.mubr.f32.gmra.mxu0 %v1438
        %v2411 = vpop.f32.mrf.mxu0
        %v2412 = vadd.f32 0.0, %v2411
        %v2413 = vpop.f32.mrf.mxu0
        %2414 = vmatprep.mubr.f32.mxu0 0.0
        %2415 = vmatmul.mubr.f32.gmra.mxu0 %v1440
        %v2416 = vpop.f32.mrf.mxu0
        %v2417 = vadd.f32 0.0, %v2416
        %v2418 = vpop.f32.mrf.mxu0
        %2419 = vmatprep.mubr.f32.mxu0 0.0
        %2420 = vmatmul.mubr.f32.gmra.mxu0 %v1442
        %v2421 = vpop.f32.mrf.mxu0
        %v2422 = vadd.f32 0.0, %v2421
        %v2423 = vpop.f32.mrf.mxu0
        %2424 = vmatprep.mubr.f32.mxu0 0.0
        %2425 = vmatmul.mubr.f32.gmra.mxu0 %v1444
        %v2426 = vpop.f32.mrf.mxu0
        %v2427 = vadd.f32 0.0, %v2426
        %v2428 = vpop.f32.mrf.mxu0
        %2429 = vmatprep.mubr.f32.mxu0 0.0
        %2430 = vmatmul.mubr.f32.gmra.mxu0 %v1446
        %v2431 = vpop.f32.mrf.mxu0
        %v2432 = vadd.f32 0.0, %v2431
        %v2433 = vpop.f32.mrf.mxu0
        %2434 = vmatprep.mubr.f32.mxu0 0.0
        %2435 = vmatmul.mubr.f32.gmra.mxu0 %v1448
        %v2436 = vpop.f32.mrf.mxu0
        %v2437 = vadd.f32 0.0, %v2436
        %v2438 = vpop.f32.mrf.mxu0
        %2439 = vmatprep.mubr.f32.mxu0 0.0
        %2440 = vmatmul.mubr.f32.gmra.mxu0 %v1450
        %v2441 = vpop.f32.mrf.mxu0
        %v2442 = vadd.f32 0.0, %v2441
        %v2443 = vpop.f32.mrf.mxu0
        %2444 = vmatprep.mubr.f32.mxu0 0.0
        %2445 = vmatmul.mubr.f32.gmra.mxu0 %v1452
        %v2446 = vpop.f32.mrf.mxu0
        %v2447 = vadd.f32 0.0, %v2446
        %v2448 = vpop.f32.mrf.mxu0
        %2449 = vmatprep.mubr.f32.mxu0 0.0
        %2450 = vmatmul.mubr.f32.gmra.mxu0 %v1454
        %v2451 = vpop.f32.mrf.mxu0
        %v2452 = vadd.f32 0.0, %v2451
        %v2453 = vpop.f32.mrf.mxu0
        %2454 = vmatprep.mubr.f32.mxu0 0.0
        %2455 = vmatmul.mubr.f32.gmra.mxu0 %v1456
        %v2456 = vpop.f32.mrf.mxu0
        %v2457 = vadd.f32 0.0, %v2456
        %v2458 = vpop.f32.mrf.mxu0
        %2459 = vmatprep.mubr.f32.mxu0 0.0
        %2460 = vmatmul.mubr.f32.gmra.mxu0 %v1458
        %v2461 = vpop.f32.mrf.mxu0
        %v2462 = vadd.f32 0.0, %v2461
        %v2463 = vpop.f32.mrf.mxu0
        %2464 = vmatprep.mubr.f32.mxu0 0.0
        %2465 = vmatmul.mubr.f32.gmra.mxu0 %v1460
        %v2466 = vpop.f32.mrf.mxu0
        %v2467 = vadd.f32 0.0, %v2466
        %v2468 = vpop.f32.mrf.mxu0
        %2469 = vmatprep.mubr.f32.mxu0 0.0
        %2470 = vmatmul.mubr.f32.gmra.mxu0 %v1462
        %v2471 = vpop.f32.mrf.mxu0
        %v2472 = vadd.f32 0.0, %v2471
        %v2473 = vpop.f32.mrf.mxu0
        %2474 = vmatprep.mubr.f32.mxu0 0.0
        %2475 = vmatmul.mubr.f32.gmra.mxu0 %v1464
        %v2476 = vpop.f32.mrf.mxu0
        %v2477 = vadd.f32 0.0, %v2476
        %v2478 = vpop.f32.mrf.mxu0
        %2479 = vmatprep.mubr.f32.mxu0 0.0
        %2480 = vmatmul.mubr.f32.gmra.mxu0 %v1466
        %v2481 = vpop.f32.mrf.mxu0
        %v2482 = vadd.f32 0.0, %v2481
        %v2483 = vpop.f32.mrf.mxu0
        %2484 = vmatprep.mubr.f32.mxu0 0.0
        %2485 = vmatmul.mubr.f32.gmra.mxu0 %v1468
        %v2486 = vpop.f32.mrf.mxu0
        %v2487 = vadd.f32 0.0, %v2486
        %v2488 = vpop.f32.mrf.mxu0
        %2489 = vmatprep.mubr.f32.mxu0 0.0
        %2490 = vmatmul.mubr.f32.gmra.mxu0 %v1470
        %v2491 = vpop.f32.mrf.mxu0
        %v2492 = vadd.f32 0.0, %v2491
        %v2493 = vpop.f32.mrf.mxu0
        %2494 = vmatprep.mubr.f32.mxu0 0.0
        %2495 = vmatmul.mubr.f32.gmra.mxu0 %v2273
        %v2496 = vpop.f32.mrf.mxu0
        %v2497 = vadd.f32 0.0, %v2496
        %v2498 = vpop.f32.mrf.mxu0
        %2499 = vmatprep.mubr.f32.mxu0 0.0
        %2500 = vmatmul.mubr.f32.gmra.mxu0 %v2275
        %v2501 = vpop.f32.mrf.mxu0
        %v2502 = vadd.f32 0.0, %v2501
        %v2503 = vpop.f32.mrf.mxu0
        %2504 = vdwg.mxu0
        %v2505 = vadd.f32 %v2236, %v2347
        %v2506 = vadd.f32 %v2237, %v2352
        %v2507 = vadd.f32 %v2238, %v2357
        %v2508 = vadd.f32 %v2239, %v2362
        %v2509 = vadd.f32 %v2240, %v2367
        %v2510 = vadd.f32 %v2241, %v2372
        %v2511 = vadd.f32 %v2242, %v2377
        %v2512 = vadd.f32 %v2243, %v2382
        %v2513 = vadd.f32 %v2244, %v2387
        %v2514 = vadd.f32 %v2245, %v2392
        %v2515 = vadd.f32 %v2246, %v2397
        %v2516 = vadd.f32 %v2247, %v2402
        %v2517 = vadd.f32 %v2248, %v2407
        %v2518 = vadd.f32 %v2249, %v2412
        %v2519 = vadd.f32 %v2250, %v2417
        %v2520 = vadd.f32 %v2251, %v2422
        %v2521 = vadd.f32 %v2252, %v2427
        %v2522 = vadd.f32 %v2253, %v2432
        %v2523 = vadd.f32 %v2254, %v2437
        %v2524 = vadd.f32 %v2255, %v2442
        %v2525 = vadd.f32 %v2256, %v2447
        %v2526 = vadd.f32 %v2257, %v2452
        %v2527 = vadd.f32 %v2258, %v2457
        %v2528 = vadd.f32 %v2259, %v2462
        %v2529 = vadd.f32 %v2260, %v2467
        %v2530 = vadd.f32 %v2261, %v2472
        %v2531 = vadd.f32 %v2262, %v2477
        %v2532 = vadd.f32 %v2263, %v2482
        %v2533 = vadd.f32 %v2264, %v2487
        %v2534 = vadd.f32 %v2265, %v2492
        %v2535 = vadd.f32 %v2266, %v2497
        %v2536 = vadd.f32 %v2267, %v2502
        %v2538 = vsel %vm387, %v610, 0
        %v2541 = vsel %vm387, %v611, 0
        %v2544 = vsel %vm806, %v521, 0
        %2546 = vmatprep.subr.mxu0 0.0
        %2547 = vmatpush1.msra.mxu0 0.0
        %2548 = vmatprep.subr.mxu0 0.0
        %2549 = vmatpush1.msra.mxu0 0.0
        %2550 = vmatprep.subr.mxu0 0.0
        %2551 = vmatpush1.msra.mxu0 0.0
        %2552 = vmatprep.subr.mxu0 0.0
        %2553 = vmatpush1.msra.mxu0 0.0
        %2554 = vmatprep.subr.mxu0 0.0
        %2555 = vmatpush1.msra.mxu0 0.0
        %2556 = vmatprep.subr.mxu0 0.0
        %2557 = vmatpush1.msra.mxu0 0.0
        %2558 = vmatprep.subr.mxu0 0.0
        %2559 = vmatpush1.msra.mxu0 0.0
        %2560 = vmatprep.subr.mxu0 0.0
        %2561 = vmatpush1.msra.mxu0 0.0
        %2562 = vmatprep.subr.mxu0 0.0
        %2563 = vmatpush1.msra.mxu0 0.0
        %2564 = vmatprep.subr.mxu0 0.0
        %2565 = vmatpush1.msra.mxu0 0.0
        %2566 = vmatprep.subr.mxu0 0.0
        %2567 = vmatpush1.msra.mxu0 0.0
        %2568 = vmatprep.subr.mxu0 0.0
        %2569 = vmatpush1.msra.mxu0 0.0
        %2570 = vmatprep.subr.mxu0 0.0
        %2571 = vmatpush1.msra.mxu0 0.0
        %2572 = vmatprep.subr.mxu0 0.0
        %2573 = vmatpush1.msra.mxu0 0.0
        %2574 = vmatprep.subr.mxu0 0.0
        %2575 = vmatpush1.msra.mxu0 0.0
        %2576 = vmatprep.subr.mxu0 0.0
        %2577 = vmatpush1.msra.mxu0 %v2544
        %2578 = vmatprep.subr.mxu0 0.0
        %2579 = vmatpush2.msra.mxu0 0.0
        %2580 = vmatprep.subr.mxu0 0.0
        %2581 = vmatpush2.msra.mxu0 0.0
        %2582 = vmatprep.subr.mxu0 0.0
        %2583 = vmatpush2.msra.mxu0 0.0
        %2584 = vmatprep.subr.mxu0 0.0
        %2585 = vmatpush2.msra.mxu0 0.0
        %2586 = vmatprep.subr.mxu0 0.0
        %2587 = vmatpush2.msra.mxu0 0.0
        %2588 = vmatprep.subr.mxu0 0.0
        %2589 = vmatpush2.msra.mxu0 0.0
        %2590 = vmatprep.subr.mxu0 0.0
        %2591 = vmatpush2.msra.mxu0 0.0
        %2592 = vmatprep.subr.mxu0 0.0
        %2593 = vmatpush2.msra.mxu0 0.0
        %2594 = vmatprep.subr.mxu0 0.0
        %2595 = vmatpush2.msra.mxu0 0.0
        %2596 = vmatprep.subr.mxu0 0.0
        %2597 = vmatpush2.msra.mxu0 0.0
        %2598 = vmatprep.subr.mxu0 0.0
        %2599 = vmatpush2.msra.mxu0 0.0
        %2600 = vmatprep.subr.mxu0 0.0
        %2601 = vmatpush2.msra.mxu0 0.0
        %2602 = vmatprep.subr.mxu0 0.0
        %2603 = vmatpush2.msra.mxu0 0.0
        %2604 = vmatprep.subr.mxu0 0.0
        %2605 = vmatpush2.msra.mxu0 0.0
        %2606 = vmatprep.subr.mxu0 0.0
        %2607 = vmatpush2.msra.mxu0 0.0
        %2608 = vmatprep.subr.mxu0 0.0
        %2609 = vmatpush2.msra.mxu0 0.0
        %2610 = vmatprep.mubr.f32.mxu0 0.0
        %2611 = vmatmul.mubr.f32.gmra.mxu0 %v1043
        %v2612 = vpop.f32.mrf.mxu0
        %v2613 = vadd.f32 0.0, %v2612
        %v2614 = vpop.f32.mrf.mxu0
        %2615 = vmatprep.mubr.f32.mxu0 0.0
        %2616 = vmatmul.mubr.f32.gmra.mxu0 %v1045
        %v2617 = vpop.f32.mrf.mxu0
        %v2618 = vadd.f32 0.0, %v2617
        %v2619 = vpop.f32.mrf.mxu0
        %2620 = vmatprep.mubr.f32.mxu0 0.0
        %2621 = vmatmul.mubr.f32.gmra.mxu0 %v1047
        %v2622 = vpop.f32.mrf.mxu0
        %v2623 = vadd.f32 0.0, %v2622
        %v2624 = vpop.f32.mrf.mxu0
        %2625 = vmatprep.mubr.f32.mxu0 0.0
        %2626 = vmatmul.mubr.f32.gmra.mxu0 %v1049
        %v2627 = vpop.f32.mrf.mxu0
        %v2628 = vadd.f32 0.0, %v2627
        %v2629 = vpop.f32.mrf.mxu0
        %2630 = vmatprep.mubr.f32.mxu0 0.0
        %2631 = vmatmul.mubr.f32.gmra.mxu0 %v1051
        %v2632 = vpop.f32.mrf.mxu0
        %v2633 = vadd.f32 0.0, %v2632
        %v2634 = vpop.f32.mrf.mxu0
        %2635 = vmatprep.mubr.f32.mxu0 0.0
        %2636 = vmatmul.mubr.f32.gmra.mxu0 %v1053
        %v2637 = vpop.f32.mrf.mxu0
        %v2638 = vadd.f32 0.0, %v2637
        %v2639 = vpop.f32.mrf.mxu0
        %2640 = vmatprep.mubr.f32.mxu0 0.0
        %2641 = vmatmul.mubr.f32.gmra.mxu0 %v1055
        %v2642 = vpop.f32.mrf.mxu0
        %v2643 = vadd.f32 0.0, %v2642
        %v2644 = vpop.f32.mrf.mxu0
        %2645 = vmatprep.mubr.f32.mxu0 0.0
        %2646 = vmatmul.mubr.f32.gmra.mxu0 %v1057
        %v2647 = vpop.f32.mrf.mxu0
        %v2648 = vadd.f32 0.0, %v2647
        %v2649 = vpop.f32.mrf.mxu0
        %2650 = vmatprep.mubr.f32.mxu0 0.0
        %2651 = vmatmul.mubr.f32.gmra.mxu0 %v1059
        %v2652 = vpop.f32.mrf.mxu0
        %v2653 = vadd.f32 0.0, %v2652
        %v2654 = vpop.f32.mrf.mxu0
        %2655 = vmatprep.mubr.f32.mxu0 0.0
        %2656 = vmatmul.mubr.f32.gmra.mxu0 %v1061
        %v2657 = vpop.f32.mrf.mxu0
        %v2658 = vadd.f32 0.0, %v2657
        %v2659 = vpop.f32.mrf.mxu0
        %2660 = vmatprep.mubr.f32.mxu0 0.0
        %2661 = vmatmul.mubr.f32.gmra.mxu0 %v1063
        %v2662 = vpop.f32.mrf.mxu0
        %v2663 = vadd.f32 0.0, %v2662
        %v2664 = vpop.f32.mrf.mxu0
        %2665 = vmatprep.mubr.f32.mxu0 0.0
        %2666 = vmatmul.mubr.f32.gmra.mxu0 %v1065
        %v2667 = vpop.f32.mrf.mxu0
        %v2668 = vadd.f32 0.0, %v2667
        %v2669 = vpop.f32.mrf.mxu0
        %2670 = vmatprep.mubr.f32.mxu0 0.0
        %2671 = vmatmul.mubr.f32.gmra.mxu0 %v1067
        %v2672 = vpop.f32.mrf.mxu0
        %v2673 = vadd.f32 0.0, %v2672
        %v2674 = vpop.f32.mrf.mxu0
        %2675 = vmatprep.mubr.f32.mxu0 0.0
        %2676 = vmatmul.mubr.f32.gmra.mxu0 %v1069
        %v2677 = vpop.f32.mrf.mxu0
        %v2678 = vadd.f32 0.0, %v2677
        %v2679 = vpop.f32.mrf.mxu0
        %2680 = vmatprep.mubr.f32.mxu0 0.0
        %2681 = vmatmul.mubr.f32.gmra.mxu0 %v1071
        %v2682 = vpop.f32.mrf.mxu0
        %v2683 = vadd.f32 0.0, %v2682
        %v2684 = vpop.f32.mrf.mxu0
        %2685 = vmatprep.mubr.f32.mxu0 0.0
        %2686 = vmatmul.mubr.f32.gmra.mxu0 %v1073
        %v2687 = vpop.f32.mrf.mxu0
        %v2688 = vadd.f32 0.0, %v2687
        %v2689 = vpop.f32.mrf.mxu0
        %2690 = vmatprep.mubr.f32.mxu0 0.0
        %2691 = vmatmul.mubr.f32.gmra.mxu0 %v1075
        %v2692 = vpop.f32.mrf.mxu0
        %v2693 = vadd.f32 0.0, %v2692
        %v2694 = vpop.f32.mrf.mxu0
        %2695 = vmatprep.mubr.f32.mxu0 0.0
        %2696 = vmatmul.mubr.f32.gmra.mxu0 %v1077
        %v2697 = vpop.f32.mrf.mxu0
        %v2698 = vadd.f32 0.0, %v2697
        %v2699 = vpop.f32.mrf.mxu0
        %2700 = vmatprep.mubr.f32.mxu0 0.0
        %2701 = vmatmul.mubr.f32.gmra.mxu0 %v1079
        %v2702 = vpop.f32.mrf.mxu0
        %v2703 = vadd.f32 0.0, %v2702
        %v2704 = vpop.f32.mrf.mxu0
        %2705 = vmatprep.mubr.f32.mxu0 0.0
        %2706 = vmatmul.mubr.f32.gmra.mxu0 %v1081
        %v2707 = vpop.f32.mrf.mxu0
        %v2708 = vadd.f32 0.0, %v2707
        %v2709 = vpop.f32.mrf.mxu0
        %2710 = vmatprep.mubr.f32.mxu0 0.0
        %2711 = vmatmul.mubr.f32.gmra.mxu0 %v1083
        %v2712 = vpop.f32.mrf.mxu0
        %v2713 = vadd.f32 0.0, %v2712
        %v2714 = vpop.f32.mrf.mxu0
        %2715 = vmatprep.mubr.f32.mxu0 0.0
        %2716 = vmatmul.mubr.f32.gmra.mxu0 %v1085
        %v2717 = vpop.f32.mrf.mxu0
        %v2718 = vadd.f32 0.0, %v2717
        %v2719 = vpop.f32.mrf.mxu0
        %2720 = vmatprep.mubr.f32.mxu0 0.0
        %2721 = vmatmul.mubr.f32.gmra.mxu0 %v1087
        %v2722 = vpop.f32.mrf.mxu0
        %v2723 = vadd.f32 0.0, %v2722
        %v2724 = vpop.f32.mrf.mxu0
        %2725 = vmatprep.mubr.f32.mxu0 0.0
        %2726 = vmatmul.mubr.f32.gmra.mxu0 %v1089
        %v2727 = vpop.f32.mrf.mxu0
        %v2728 = vadd.f32 0.0, %v2727
        %v2729 = vpop.f32.mrf.mxu0
        %2730 = vmatprep.mubr.f32.mxu0 0.0
        %2731 = vmatmul.mubr.f32.gmra.mxu0 %v1091
        %v2732 = vpop.f32.mrf.mxu0
        %v2733 = vadd.f32 0.0, %v2732
        %v2734 = vpop.f32.mrf.mxu0
        %2735 = vmatprep.mubr.f32.mxu0 0.0
        %2736 = vmatmul.mubr.f32.gmra.mxu0 %v1093
        %v2737 = vpop.f32.mrf.mxu0
        %v2738 = vadd.f32 0.0, %v2737
        %v2739 = vpop.f32.mrf.mxu0
        %2740 = vmatprep.mubr.f32.mxu0 0.0
        %2741 = vmatmul.mubr.f32.gmra.mxu0 %v1095
        %v2742 = vpop.f32.mrf.mxu0
        %v2743 = vadd.f32 0.0, %v2742
        %v2744 = vpop.f32.mrf.mxu0
        %2745 = vmatprep.mubr.f32.mxu0 0.0
        %2746 = vmatmul.mubr.f32.gmra.mxu0 %v1097
        %v2747 = vpop.f32.mrf.mxu0
        %v2748 = vadd.f32 0.0, %v2747
        %v2749 = vpop.f32.mrf.mxu0
        %2750 = vmatprep.mubr.f32.mxu0 0.0
        %2751 = vmatmul.mubr.f32.gmra.mxu0 %v1733
        %v2752 = vpop.f32.mrf.mxu0
        %v2753 = vadd.f32 0.0, %v2752
        %v2754 = vpop.f32.mrf.mxu0
        %2755 = vmatprep.mubr.f32.mxu0 0.0
        %2756 = vmatmul.mubr.f32.gmra.mxu0 %v1736
        %v2757 = vpop.f32.mrf.mxu0
        %v2758 = vadd.f32 0.0, %v2757
        %v2759 = vpop.f32.mrf.mxu0
        %2760 = vmatprep.mubr.f32.mxu0 0.0
        %2761 = vmatmul.mubr.f32.gmra.mxu0 %v2538
        %v2762 = vpop.f32.mrf.mxu0
        %v2763 = vadd.f32 0.0, %v2762
        %v2764 = vpop.f32.mrf.mxu0
        %2765 = vmatprep.mubr.f32.mxu0 0.0
        %2766 = vmatmul.mubr.f32.gmra.mxu0 %v2541
        %v2767 = vpop.f32.mrf.mxu0
        %v2768 = vadd.f32 0.0, %v2767
        %v2769 = vpop.f32.mrf.mxu0
        %2770 = vdwg.mxu0
        %v2771 = vadd.f32 %v2505, %v2613
        %v2772 = vadd.f32 %v2506, %v2618
        %v2773 = vadd.f32 %v2507, %v2623
        %v2774 = vadd.f32 %v2508, %v2628
        %v2775 = vadd.f32 %v2509, %v2633
        %v2776 = vadd.f32 %v2510, %v2638
        %v2777 = vadd.f32 %v2511, %v2643
        %v2778 = vadd.f32 %v2512, %v2648
        %v2779 = vadd.f32 %v2513, %v2653
        %v2780 = vadd.f32 %v2514, %v2658
        %v2781 = vadd.f32 %v2515, %v2663
        %v2782 = vadd.f32 %v2516, %v2668
        %v2783 = vadd.f32 %v2517, %v2673
        %v2784 = vadd.f32 %v2518, %v2678
        %v2785 = vadd.f32 %v2519, %v2683
        %v2786 = vadd.f32 %v2520, %v2688
        %v2787 = vadd.f32 %v2521, %v2693
        %v2788 = vadd.f32 %v2522, %v2698
        %v2789 = vadd.f32 %v2523, %v2703
        %v2790 = vadd.f32 %v2524, %v2708
        %v2791 = vadd.f32 %v2525, %v2713
        %v2792 = vadd.f32 %v2526, %v2718
        %v2793 = vadd.f32 %v2527, %v2723
        %v2794 = vadd.f32 %v2528, %v2728
        %v2795 = vadd.f32 %v2529, %v2733
        %v2796 = vadd.f32 %v2530, %v2738
        %v2797 = vadd.f32 %v2531, %v2743
        %v2798 = vadd.f32 %v2532, %v2748
        %v2799 = vadd.f32 %v2533, %v2753
        %v2800 = vadd.f32 %v2534, %v2758
        %v2801 = vadd.f32 %v2535, %v2763
        %v2802 = vadd.f32 %v2536, %v2768
        %v2804 = vrot.slane %v610, 1
        %v2805 = vrot.slane %v611, 1
        %v2806 = vsel %vm661, %v2804, %v2805
        %v2807 = vrot.slane %v612, 1
        %v2808 = vsel %vm661, %v2805, %v2807
        %v2809 = vsel %vm387, %v2806, 0
        %v2811 = vsel %vm387, %v2808, 0
        %v2814 = vsel %vm806, %v522, 0
        %2816 = vmatprep.subr.mxu0 0.0
        %2817 = vmatpush1.msra.mxu0 0.0
        %2818 = vmatprep.subr.mxu0 0.0
        %2819 = vmatpush1.msra.mxu0 0.0
        %2820 = vmatprep.subr.mxu0 0.0
        %2821 = vmatpush1.msra.mxu0 0.0
        %2822 = vmatprep.subr.mxu0 0.0
        %2823 = vmatpush1.msra.mxu0 0.0
        %2824 = vmatprep.subr.mxu0 0.0
        %2825 = vmatpush1.msra.mxu0 0.0
        %2826 = vmatprep.subr.mxu0 0.0
        %2827 = vmatpush1.msra.mxu0 0.0
        %2828 = vmatprep.subr.mxu0 0.0
        %2829 = vmatpush1.msra.mxu0 0.0
        %2830 = vmatprep.subr.mxu0 0.0
        %2831 = vmatpush1.msra.mxu0 0.0
        %2832 = vmatprep.subr.mxu0 0.0
        %2833 = vmatpush1.msra.mxu0 0.0
        %2834 = vmatprep.subr.mxu0 0.0
        %2835 = vmatpush1.msra.mxu0 0.0
        %2836 = vmatprep.subr.mxu0 0.0
        %2837 = vmatpush1.msra.mxu0 0.0
        %2838 = vmatprep.subr.mxu0 0.0
        %2839 = vmatpush1.msra.mxu0 0.0
        %2840 = vmatprep.subr.mxu0 0.0
        %2841 = vmatpush1.msra.mxu0 0.0
        %2842 = vmatprep.subr.mxu0 0.0
        %2843 = vmatpush1.msra.mxu0 0.0
        %2844 = vmatprep.subr.mxu0 0.0
        %2845 = vmatpush1.msra.mxu0 0.0
        %2846 = vmatprep.subr.mxu0 0.0
        %2847 = vmatpush1.msra.mxu0 %v2814
        %2848 = vmatprep.subr.mxu0 0.0
        %2849 = vmatpush2.msra.mxu0 0.0
        %2850 = vmatprep.subr.mxu0 0.0
        %2851 = vmatpush2.msra.mxu0 0.0
        %2852 = vmatprep.subr.mxu0 0.0
        %2853 = vmatpush2.msra.mxu0 0.0
        %2854 = vmatprep.subr.mxu0 0.0
        %2855 = vmatpush2.msra.mxu0 0.0
        %2856 = vmatprep.subr.mxu0 0.0
        %2857 = vmatpush2.msra.mxu0 0.0
        %2858 = vmatprep.subr.mxu0 0.0
        %2859 = vmatpush2.msra.mxu0 0.0
        %2860 = vmatprep.subr.mxu0 0.0
        %2861 = vmatpush2.msra.mxu0 0.0
        %2862 = vmatprep.subr.mxu0 0.0
        %2863 = vmatpush2.msra.mxu0 0.0
        %2864 = vmatprep.subr.mxu0 0.0
        %2865 = vmatpush2.msra.mxu0 0.0
        %2866 = vmatprep.subr.mxu0 0.0
        %2867 = vmatpush2.msra.mxu0 0.0
        %2868 = vmatprep.subr.mxu0 0.0
        %2869 = vmatpush2.msra.mxu0 0.0
        %2870 = vmatprep.subr.mxu0 0.0
        %2871 = vmatpush2.msra.mxu0 0.0
        %2872 = vmatprep.subr.mxu0 0.0
        %2873 = vmatpush2.msra.mxu0 0.0
        %2874 = vmatprep.subr.mxu0 0.0
        %2875 = vmatpush2.msra.mxu0 0.0
        %2876 = vmatprep.subr.mxu0 0.0
        %2877 = vmatpush2.msra.mxu0 0.0
        %2878 = vmatprep.subr.mxu0 0.0
        %2879 = vmatpush2.msra.mxu0 0.0
        %2880 = vmatprep.mubr.f32.mxu0 0.0
        %2881 = vmatmul.mubr.f32.gmra.mxu0 %v750
        %v2882 = vpop.f32.mrf.mxu0
        %v2883 = vadd.f32 0.0, %v2882
        %v2884 = vpop.f32.mrf.mxu0
        %2885 = vmatprep.mubr.f32.mxu0 0.0
        %2886 = vmatmul.mubr.f32.gmra.mxu0 %v752
        %v2887 = vpop.f32.mrf.mxu0
        %v2888 = vadd.f32 0.0, %v2887
        %v2889 = vpop.f32.mrf.mxu0
        %2890 = vmatprep.mubr.f32.mxu0 0.0
        %2891 = vmatmul.mubr.f32.gmra.mxu0 %v754
        %v2892 = vpop.f32.mrf.mxu0
        %v2893 = vadd.f32 0.0, %v2892
        %v2894 = vpop.f32.mrf.mxu0
        %2895 = vmatprep.mubr.f32.mxu0 0.0
        %2896 = vmatmul.mubr.f32.gmra.mxu0 %v756
        %v2897 = vpop.f32.mrf.mxu0
        %v2898 = vadd.f32 0.0, %v2897
        %v2899 = vpop.f32.mrf.mxu0
        %2900 = vmatprep.mubr.f32.mxu0 0.0
        %2901 = vmatmul.mubr.f32.gmra.mxu0 %v758
        %v2902 = vpop.f32.mrf.mxu0
        %v2903 = vadd.f32 0.0, %v2902
        %v2904 = vpop.f32.mrf.mxu0
        %2905 = vmatprep.mubr.f32.mxu0 0.0
        %2906 = vmatmul.mubr.f32.gmra.mxu0 %v760
        %v2907 = vpop.f32.mrf.mxu0
        %v2908 = vadd.f32 0.0, %v2907
        %v2909 = vpop.f32.mrf.mxu0
        %2910 = vmatprep.mubr.f32.mxu0 0.0
        %2911 = vmatmul.mubr.f32.gmra.mxu0 %v762
        %v2912 = vpop.f32.mrf.mxu0
        %v2913 = vadd.f32 0.0, %v2912
        %v2914 = vpop.f32.mrf.mxu0
        %2915 = vmatprep.mubr.f32.mxu0 0.0
        %2916 = vmatmul.mubr.f32.gmra.mxu0 %v764
        %v2917 = vpop.f32.mrf.mxu0
        %v2918 = vadd.f32 0.0, %v2917
        %v2919 = vpop.f32.mrf.mxu0
        %2920 = vmatprep.mubr.f32.mxu0 0.0
        %2921 = vmatmul.mubr.f32.gmra.mxu0 %v766
        %v2922 = vpop.f32.mrf.mxu0
        %v2923 = vadd.f32 0.0, %v2922
        %v2924 = vpop.f32.mrf.mxu0
        %2925 = vmatprep.mubr.f32.mxu0 0.0
        %2926 = vmatmul.mubr.f32.gmra.mxu0 %v768
        %v2927 = vpop.f32.mrf.mxu0
        %v2928 = vadd.f32 0.0, %v2927
        %v2929 = vpop.f32.mrf.mxu0
        %2930 = vmatprep.mubr.f32.mxu0 0.0
        %2931 = vmatmul.mubr.f32.gmra.mxu0 %v770
        %v2932 = vpop.f32.mrf.mxu0
        %v2933 = vadd.f32 0.0, %v2932
        %v2934 = vpop.f32.mrf.mxu0
        %2935 = vmatprep.mubr.f32.mxu0 0.0
        %2936 = vmatmul.mubr.f32.gmra.mxu0 %v772
        %v2937 = vpop.f32.mrf.mxu0
        %v2938 = vadd.f32 0.0, %v2937
        %v2939 = vpop.f32.mrf.mxu0
        %2940 = vmatprep.mubr.f32.mxu0 0.0
        %2941 = vmatmul.mubr.f32.gmra.mxu0 %v774
        %v2942 = vpop.f32.mrf.mxu0
        %v2943 = vadd.f32 0.0, %v2942
        %v2944 = vpop.f32.mrf.mxu0
        %2945 = vmatprep.mubr.f32.mxu0 0.0
        %2946 = vmatmul.mubr.f32.gmra.mxu0 %v776
        %v2947 = vpop.f32.mrf.mxu0
        %v2948 = vadd.f32 0.0, %v2947
        %v2949 = vpop.f32.mrf.mxu0
        %2950 = vmatprep.mubr.f32.mxu0 0.0
        %2951 = vmatmul.mubr.f32.gmra.mxu0 %v778
        %v2952 = vpop.f32.mrf.mxu0
        %v2953 = vadd.f32 0.0, %v2952
        %v2954 = vpop.f32.mrf.mxu0
        %2955 = vmatprep.mubr.f32.mxu0 0.0
        %2956 = vmatmul.mubr.f32.gmra.mxu0 %v780
        %v2957 = vpop.f32.mrf.mxu0
        %v2958 = vadd.f32 0.0, %v2957
        %v2959 = vpop.f32.mrf.mxu0
        %2960 = vmatprep.mubr.f32.mxu0 0.0
        %2961 = vmatmul.mubr.f32.gmra.mxu0 %v782
        %v2962 = vpop.f32.mrf.mxu0
        %v2963 = vadd.f32 0.0, %v2962
        %v2964 = vpop.f32.mrf.mxu0
        %2965 = vmatprep.mubr.f32.mxu0 0.0
        %2966 = vmatmul.mubr.f32.gmra.mxu0 %v784
        %v2967 = vpop.f32.mrf.mxu0
        %v2968 = vadd.f32 0.0, %v2967
        %v2969 = vpop.f32.mrf.mxu0
        %2970 = vmatprep.mubr.f32.mxu0 0.0
        %2971 = vmatmul.mubr.f32.gmra.mxu0 %v786
        %v2972 = vpop.f32.mrf.mxu0
        %v2973 = vadd.f32 0.0, %v2972
        %v2974 = vpop.f32.mrf.mxu0
        %2975 = vmatprep.mubr.f32.mxu0 0.0
        %2976 = vmatmul.mubr.f32.gmra.mxu0 %v788
        %v2977 = vpop.f32.mrf.mxu0
        %v2978 = vadd.f32 0.0, %v2977
        %v2979 = vpop.f32.mrf.mxu0
        %2980 = vmatprep.mubr.f32.mxu0 0.0
        %2981 = vmatmul.mubr.f32.gmra.mxu0 %v790
        %v2982 = vpop.f32.mrf.mxu0
        %v2983 = vadd.f32 0.0, %v2982
        %v2984 = vpop.f32.mrf.mxu0
        %2985 = vmatprep.mubr.f32.mxu0 0.0
        %2986 = vmatmul.mubr.f32.gmra.mxu0 %v792
        %v2987 = vpop.f32.mrf.mxu0
        %v2988 = vadd.f32 0.0, %v2987
        %v2989 = vpop.f32.mrf.mxu0
        %2990 = vmatprep.mubr.f32.mxu0 0.0
        %2991 = vmatmul.mubr.f32.gmra.mxu0 %v794
        %v2992 = vpop.f32.mrf.mxu0
        %v2993 = vadd.f32 0.0, %v2992
        %v2994 = vpop.f32.mrf.mxu0
        %2995 = vmatprep.mubr.f32.mxu0 0.0
        %2996 = vmatmul.mubr.f32.gmra.mxu0 %v796
        %v2997 = vpop.f32.mrf.mxu0
        %v2998 = vadd.f32 0.0, %v2997
        %v2999 = vpop.f32.mrf.mxu0
        %3000 = vmatprep.mubr.f32.mxu0 0.0
        %3001 = vmatmul.mubr.f32.gmra.mxu0 %v798
        %v3002 = vpop.f32.mrf.mxu0
        %v3003 = vadd.f32 0.0, %v3002
        %v3004 = vpop.f32.mrf.mxu0
        %3005 = vmatprep.mubr.f32.mxu0 0.0
        %3006 = vmatmul.mubr.f32.gmra.mxu0 %v800
        %v3007 = vpop.f32.mrf.mxu0
        %v3008 = vadd.f32 0.0, %v3007
        %v3009 = vpop.f32.mrf.mxu0
        %3010 = vmatprep.mubr.f32.mxu0 0.0
        %3011 = vmatmul.mubr.f32.gmra.mxu0 %v802
        %v3012 = vpop.f32.mrf.mxu0
        %v3013 = vadd.f32 0.0, %v3012
        %v3014 = vpop.f32.mrf.mxu0
        %3015 = vmatprep.mubr.f32.mxu0 0.0
        %3016 = vmatmul.mubr.f32.gmra.mxu0 %v804
        %v3017 = vpop.f32.mrf.mxu0
        %v3018 = vadd.f32 0.0, %v3017
        %v3019 = vpop.f32.mrf.mxu0
        %3020 = vmatprep.mubr.f32.mxu0 0.0
        %3021 = vmatmul.mubr.f32.gmra.mxu0 %v2004
        %v3022 = vpop.f32.mrf.mxu0
        %v3023 = vadd.f32 0.0, %v3022
        %v3024 = vpop.f32.mrf.mxu0
        %3025 = vmatprep.mubr.f32.mxu0 0.0
        %3026 = vmatmul.mubr.f32.gmra.mxu0 %v2006
        %v3027 = vpop.f32.mrf.mxu0
        %v3028 = vadd.f32 0.0, %v3027
        %v3029 = vpop.f32.mrf.mxu0
        %3030 = vmatprep.mubr.f32.mxu0 0.0
        %3031 = vmatmul.mubr.f32.gmra.mxu0 %v2809
        %v3032 = vpop.f32.mrf.mxu0
        %v3033 = vadd.f32 0.0, %v3032
        %v3034 = vpop.f32.mrf.mxu0
        %3035 = vmatprep.mubr.f32.mxu0 0.0
        %3036 = vmatmul.mubr.f32.gmra.mxu0 %v2811
        %v3037 = vpop.f32.mrf.mxu0
        %v3038 = vadd.f32 0.0, %v3037
        %v3039 = vpop.f32.mrf.mxu0
        %3040 = vdwg.mxu0
        %v3041 = vadd.f32 %v2771, %v2883
        %v3042 = vadd.f32 %v2772, %v2888
        %v3043 = vadd.f32 %v2773, %v2893
        %v3044 = vadd.f32 %v2774, %v2898
        %v3045 = vadd.f32 %v2775, %v2903
        %v3046 = vadd.f32 %v2776, %v2908
        %v3047 = vadd.f32 %v2777, %v2913
        %v3048 = vadd.f32 %v2778, %v2918
        %v3049 = vadd.f32 %v2779, %v2923
        %v3050 = vadd.f32 %v2780, %v2928
        %v3051 = vadd.f32 %v2781, %v2933
        %v3052 = vadd.f32 %v2782, %v2938
        %v3053 = vadd.f32 %v2783, %v2943
        %v3054 = vadd.f32 %v2784, %v2948
        %v3055 = vadd.f32 %v2785, %v2953
        %v3056 = vadd.f32 %v2786, %v2958
        %v3057 = vadd.f32 %v2787, %v2963
        %v3058 = vadd.f32 %v2788, %v2968
        %v3059 = vadd.f32 %v2789, %v2973
        %v3060 = vadd.f32 %v2790, %v2978
        %v3061 = vadd.f32 %v2791, %v2983
        %v3062 = vadd.f32 %v2792, %v2988
        %v3063 = vadd.f32 %v2793, %v2993
        %v3064 = vadd.f32 %v2794, %v2998
        %v3065 = vadd.f32 %v2795, %v3003
        %v3066 = vadd.f32 %v2796, %v3008
        %v3067 = vadd.f32 %v2797, %v3013
        %v3068 = vadd.f32 %v2798, %v3018
        %v3069 = vadd.f32 %v2799, %v3023
        %v3070 = vadd.f32 %v2800, %v3028
        %v3071 = vadd.f32 %v2801, %v3033
        %v3072 = vadd.f32 %v2802, %v3038
        %v3073 = vrot.slane %v610, 2
        %v3074 = vrot.slane %v611, 2
        %v3075 = vsel %vm1327, %v3073, %v3074
        %v3076 = vrot.slane %v612, 2
        %v3077 = vsel %vm1327, %v3074, %v3076
        %v3078 = vsel %vm387, %v3075, 0
        %v3080 = vsel %vm387, %v3077, 0
        %v3083 = vsel %vm806, %v523, 0
        %3085 = vmatprep.subr.mxu0 0.0
        %3086 = vmatpush1.msra.mxu0 0.0
        %3087 = vmatprep.subr.mxu0 0.0
        %3088 = vmatpush1.msra.mxu0 0.0
        %3089 = vmatprep.subr.mxu0 0.0
        %3090 = vmatpush1.msra.mxu0 0.0
        %3091 = vmatprep.subr.mxu0 0.0
        %3092 = vmatpush1.msra.mxu0 0.0
        %3093 = vmatprep.subr.mxu0 0.0
        %3094 = vmatpush1.msra.mxu0 0.0
        %3095 = vmatprep.subr.mxu0 0.0
        %3096 = vmatpush1.msra.mxu0 0.0
        %3097 = vmatprep.subr.mxu0 0.0
        %3098 = vmatpush1.msra.mxu0 0.0
        %3099 = vmatprep.subr.mxu0 0.0
        %3100 = vmatpush1.msra.mxu0 0.0
        %3101 = vmatprep.subr.mxu0 0.0
        %3102 = vmatpush1.msra.mxu0 0.0
        %3103 = vmatprep.subr.mxu0 0.0
        %3104 = vmatpush1.msra.mxu0 0.0
        %3105 = vmatprep.subr.mxu0 0.0
        %3106 = vmatpush1.msra.mxu0 0.0
        %3107 = vmatprep.subr.mxu0 0.0
        %3108 = vmatpush1.msra.mxu0 0.0
        %3109 = vmatprep.subr.mxu0 0.0
        %3110 = vmatpush1.msra.mxu0 0.0
        %3111 = vmatprep.subr.mxu0 0.0
        %3112 = vmatpush1.msra.mxu0 0.0
        %3113 = vmatprep.subr.mxu0 0.0
        %3114 = vmatpush1.msra.mxu0 0.0
        %3115 = vmatprep.subr.mxu0 0.0
        %3116 = vmatpush1.msra.mxu0 %v3083
        %3117 = vmatprep.subr.mxu0 0.0
        %3118 = vmatpush2.msra.mxu0 0.0
        %3119 = vmatprep.subr.mxu0 0.0
        %3120 = vmatpush2.msra.mxu0 0.0
        %3121 = vmatprep.subr.mxu0 0.0
        %3122 = vmatpush2.msra.mxu0 0.0
        %3123 = vmatprep.subr.mxu0 0.0
        %3124 = vmatpush2.msra.mxu0 0.0
        %3125 = vmatprep.subr.mxu0 0.0
        %3126 = vmatpush2.msra.mxu0 0.0
        %3127 = vmatprep.subr.mxu0 0.0
        %3128 = vmatpush2.msra.mxu0 0.0
        %3129 = vmatprep.subr.mxu0 0.0
        %3130 = vmatpush2.msra.mxu0 0.0
        %3131 = vmatprep.subr.mxu0 0.0
        %3132 = vmatpush2.msra.mxu0 0.0
        %3133 = vmatprep.subr.mxu0 0.0
        %3134 = vmatpush2.msra.mxu0 0.0
        %3135 = vmatprep.subr.mxu0 0.0
        %3136 = vmatpush2.msra.mxu0 0.0
        %3137 = vmatprep.subr.mxu0 0.0
        %3138 = vmatpush2.msra.mxu0 0.0
        %3139 = vmatprep.subr.mxu0 0.0
        %3140 = vmatpush2.msra.mxu0 0.0
        %3141 = vmatprep.subr.mxu0 0.0
        %3142 = vmatpush2.msra.mxu0 0.0
        %3143 = vmatprep.subr.mxu0 0.0
        %3144 = vmatpush2.msra.mxu0 0.0
        %3145 = vmatprep.subr.mxu0 0.0
        %3146 = vmatpush2.msra.mxu0 0.0
        %3147 = vmatprep.subr.mxu0 0.0
        %3148 = vmatpush2.msra.mxu0 0.0
        %3149 = vmatprep.mubr.f32.mxu0 0.0
        %3150 = vmatmul.mubr.f32.gmra.mxu0 %v1416
        %v3151 = vpop.f32.mrf.mxu0
        %v3152 = vadd.f32 0.0, %v3151
        %v3153 = vpop.f32.mrf.mxu0
        %3154 = vmatprep.mubr.f32.mxu0 0.0
        %3155 = vmatmul.mubr.f32.gmra.mxu0 %v1418
        %v3156 = vpop.f32.mrf.mxu0
        %v3157 = vadd.f32 0.0, %v3156
        %v3158 = vpop.f32.mrf.mxu0
        %3159 = vmatprep.mubr.f32.mxu0 0.0
        %3160 = vmatmul.mubr.f32.gmra.mxu0 %v1420
        %v3161 = vpop.f32.mrf.mxu0
        %v3162 = vadd.f32 0.0, %v3161
        %v3163 = vpop.f32.mrf.mxu0
        %3164 = vmatprep.mubr.f32.mxu0 0.0
        %3165 = vmatmul.mubr.f32.gmra.mxu0 %v1422
        %v3166 = vpop.f32.mrf.mxu0
        %v3167 = vadd.f32 0.0, %v3166
        %v3168 = vpop.f32.mrf.mxu0
        %3169 = vmatprep.mubr.f32.mxu0 0.0
        %3170 = vmatmul.mubr.f32.gmra.mxu0 %v1424
        %v3171 = vpop.f32.mrf.mxu0
        %v3172 = vadd.f32 0.0, %v3171
        %v3173 = vpop.f32.mrf.mxu0
        %3174 = vmatprep.mubr.f32.mxu0 0.0
        %3175 = vmatmul.mubr.f32.gmra.mxu0 %v1426
        %v3176 = vpop.f32.mrf.mxu0
        %v3177 = vadd.f32 0.0, %v3176
        %v3178 = vpop.f32.mrf.mxu0
        %3179 = vmatprep.mubr.f32.mxu0 0.0
        %3180 = vmatmul.mubr.f32.gmra.mxu0 %v1428
        %v3181 = vpop.f32.mrf.mxu0
        %v3182 = vadd.f32 0.0, %v3181
        %v3183 = vpop.f32.mrf.mxu0
        %3184 = vmatprep.mubr.f32.mxu0 0.0
        %3185 = vmatmul.mubr.f32.gmra.mxu0 %v1430
        %v3186 = vpop.f32.mrf.mxu0
        %v3187 = vadd.f32 0.0, %v3186
        %v3188 = vpop.f32.mrf.mxu0
        %3189 = vmatprep.mubr.f32.mxu0 0.0
        %3190 = vmatmul.mubr.f32.gmra.mxu0 %v1432
        %v3191 = vpop.f32.mrf.mxu0
        %v3192 = vadd.f32 0.0, %v3191
        %v3193 = vpop.f32.mrf.mxu0
        %3194 = vmatprep.mubr.f32.mxu0 0.0
        %3195 = vmatmul.mubr.f32.gmra.mxu0 %v1434
        %v3196 = vpop.f32.mrf.mxu0
        %v3197 = vadd.f32 0.0, %v3196
        %v3198 = vpop.f32.mrf.mxu0
        %3199 = vmatprep.mubr.f32.mxu0 0.0
        %3200 = vmatmul.mubr.f32.gmra.mxu0 %v1436
        %v3201 = vpop.f32.mrf.mxu0
        %v3202 = vadd.f32 0.0, %v3201
        %v3203 = vpop.f32.mrf.mxu0
        %3204 = vmatprep.mubr.f32.mxu0 0.0
        %3205 = vmatmul.mubr.f32.gmra.mxu0 %v1438
        %v3206 = vpop.f32.mrf.mxu0
        %v3207 = vadd.f32 0.0, %v3206
        %v3208 = vpop.f32.mrf.mxu0
        %3209 = vmatprep.mubr.f32.mxu0 0.0
        %3210 = vmatmul.mubr.f32.gmra.mxu0 %v1440
        %v3211 = vpop.f32.mrf.mxu0
        %v3212 = vadd.f32 0.0, %v3211
        %v3213 = vpop.f32.mrf.mxu0
        %3214 = vmatprep.mubr.f32.mxu0 0.0
        %3215 = vmatmul.mubr.f32.gmra.mxu0 %v1442
        %v3216 = vpop.f32.mrf.mxu0
        %v3217 = vadd.f32 0.0, %v3216
        %v3218 = vpop.f32.mrf.mxu0
        %3219 = vmatprep.mubr.f32.mxu0 0.0
        %3220 = vmatmul.mubr.f32.gmra.mxu0 %v1444
        %v3221 = vpop.f32.mrf.mxu0
        %v3222 = vadd.f32 0.0, %v3221
        %v3223 = vpop.f32.mrf.mxu0
        %3224 = vmatprep.mubr.f32.mxu0 0.0
        %3225 = vmatmul.mubr.f32.gmra.mxu0 %v1446
        %v3226 = vpop.f32.mrf.mxu0
        %v3227 = vadd.f32 0.0, %v3226
        %v3228 = vpop.f32.mrf.mxu0
        %3229 = vmatprep.mubr.f32.mxu0 0.0
        %3230 = vmatmul.mubr.f32.gmra.mxu0 %v1448
        %v3231 = vpop.f32.mrf.mxu0
        %v3232 = vadd.f32 0.0, %v3231
        %v3233 = vpop.f32.mrf.mxu0
        %3234 = vmatprep.mubr.f32.mxu0 0.0
        %3235 = vmatmul.mubr.f32.gmra.mxu0 %v1450
        %v3236 = vpop.f32.mrf.mxu0
        %v3237 = vadd.f32 0.0, %v3236
        %v3238 = vpop.f32.mrf.mxu0
        %3239 = vmatprep.mubr.f32.mxu0 0.0
        %3240 = vmatmul.mubr.f32.gmra.mxu0 %v1452
        %v3241 = vpop.f32.mrf.mxu0
        %v3242 = vadd.f32 0.0, %v3241
        %v3243 = vpop.f32.mrf.mxu0
        %3244 = vmatprep.mubr.f32.mxu0 0.0
        %3245 = vmatmul.mubr.f32.gmra.mxu0 %v1454
        %v3246 = vpop.f32.mrf.mxu0
        %v3247 = vadd.f32 0.0, %v3246
        %v3248 = vpop.f32.mrf.mxu0
        %3249 = vmatprep.mubr.f32.mxu0 0.0
        %3250 = vmatmul.mubr.f32.gmra.mxu0 %v1456
        %v3251 = vpop.f32.mrf.mxu0
        %v3252 = vadd.f32 0.0, %v3251
        %v3253 = vpop.f32.mrf.mxu0
        %3254 = vmatprep.mubr.f32.mxu0 0.0
        %3255 = vmatmul.mubr.f32.gmra.mxu0 %v1458
        %v3256 = vpop.f32.mrf.mxu0
        %v3257 = vadd.f32 0.0, %v3256
        %v3258 = vpop.f32.mrf.mxu0
        %3259 = vmatprep.mubr.f32.mxu0 0.0
        %3260 = vmatmul.mubr.f32.gmra.mxu0 %v1460
        %v3261 = vpop.f32.mrf.mxu0
        %v3262 = vadd.f32 0.0, %v3261
        %v3263 = vpop.f32.mrf.mxu0
        %3264 = vmatprep.mubr.f32.mxu0 0.0
        %3265 = vmatmul.mubr.f32.gmra.mxu0 %v1462
        %v3266 = vpop.f32.mrf.mxu0
        %v3267 = vadd.f32 0.0, %v3266
        %v3268 = vpop.f32.mrf.mxu0
        %3269 = vmatprep.mubr.f32.mxu0 0.0
        %3270 = vmatmul.mubr.f32.gmra.mxu0 %v1464
        %v3271 = vpop.f32.mrf.mxu0
        %v3272 = vadd.f32 0.0, %v3271
        %v3273 = vpop.f32.mrf.mxu0
        %3274 = vmatprep.mubr.f32.mxu0 0.0
        %3275 = vmatmul.mubr.f32.gmra.mxu0 %v1466
        %v3276 = vpop.f32.mrf.mxu0
        %v3277 = vadd.f32 0.0, %v3276
        %v3278 = vpop.f32.mrf.mxu0
        %3279 = vmatprep.mubr.f32.mxu0 0.0
        %3280 = vmatmul.mubr.f32.gmra.mxu0 %v1468
        %v3281 = vpop.f32.mrf.mxu0
        %v3282 = vadd.f32 0.0, %v3281
        %v3283 = vpop.f32.mrf.mxu0
        %3284 = vmatprep.mubr.f32.mxu0 0.0
        %3285 = vmatmul.mubr.f32.gmra.mxu0 %v1470
        %v3286 = vpop.f32.mrf.mxu0
        %v3287 = vadd.f32 0.0, %v3286
        %v3288 = vpop.f32.mrf.mxu0
        %3289 = vmatprep.mubr.f32.mxu0 0.0
        %3290 = vmatmul.mubr.f32.gmra.mxu0 %v2273
        %v3291 = vpop.f32.mrf.mxu0
        %v3292 = vadd.f32 0.0, %v3291
        %v3293 = vpop.f32.mrf.mxu0
        %3294 = vmatprep.mubr.f32.mxu0 0.0
        %3295 = vmatmul.mubr.f32.gmra.mxu0 %v2275
        %v3296 = vpop.f32.mrf.mxu0
        %v3297 = vadd.f32 0.0, %v3296
        %v3298 = vpop.f32.mrf.mxu0
        %3299 = vmatprep.mubr.f32.mxu0 0.0
        %3300 = vmatmul.mubr.f32.gmra.mxu0 %v3078
        %v3301 = vpop.f32.mrf.mxu0
        %v3302 = vadd.f32 0.0, %v3301
        %v3303 = vpop.f32.mrf.mxu0
        %3304 = vmatprep.mubr.f32.mxu0 0.0
        %3305 = vmatmul.mubr.f32.gmra.mxu0 %v3080
        %v3306 = vpop.f32.mrf.mxu0
        %v3307 = vadd.f32 0.0, %v3306
        %v3308 = vpop.f32.mrf.mxu0
        %3309 = vdwg.mxu0
        %v3310 = vadd.f32 %v3041, %v3152
        %v3311 = vadd.f32 %v3042, %v3157
        %v3312 = vadd.f32 %v3043, %v3162
        %v3313 = vadd.f32 %v3044, %v3167
        %v3314 = vadd.f32 %v3045, %v3172
        %v3315 = vadd.f32 %v3046, %v3177
        %v3316 = vadd.f32 %v3047, %v3182
        %v3317 = vadd.f32 %v3048, %v3187
        %v3318 = vadd.f32 %v3049, %v3192
        %v3319 = vadd.f32 %v3050, %v3197
        %v3320 = vadd.f32 %v3051, %v3202
        %v3321 = vadd.f32 %v3052, %v3207
        %v3322 = vadd.f32 %v3053, %v3212
        %v3323 = vadd.f32 %v3054, %v3217
        %v3324 = vadd.f32 %v3055, %v3222
        %v3325 = vadd.f32 %v3056, %v3227
        %v3326 = vadd.f32 %v3057, %v3232
        %v3327 = vadd.f32 %v3058, %v3237
        %v3328 = vadd.f32 %v3059, %v3242
        %v3329 = vadd.f32 %v3060, %v3247
        %v3330 = vadd.f32 %v3061, %v3252
        %v3331 = vadd.f32 %v3062, %v3257
        %v3332 = vadd.f32 %v3063, %v3262
        %v3333 = vadd.f32 %v3064, %v3267
        %v3334 = vadd.f32 %v3065, %v3272
        %v3335 = vadd.f32 %v3066, %v3277
        %v3336 = vadd.f32 %v3067, %v3282
        %v3337 = vadd.f32 %v3068, %v3287
        %v3338 = vadd.f32 %v3069, %v3292
        %v3339 = vadd.f32 %v3070, %v3297
        %v3340 = vadd.f32 %v3071, %v3302
        %v3341 = vadd.f32 %v3072, %v3307
        %v3343 = vlaneseq
        %v3344 = vshrl.u32 %v3343, 7
        %v3345 = vsub.s32 0, %v3344
        %v3346 = vrot.slane %v525, %v3345
        %v3348 = vadd.f32 %v3310, %v3346
        %v3349 = vadd.f32 %v3311, %v3346
        %v3350 = vadd.f32 %v3312, %v3346
        %v3351 = vadd.f32 %v3313, %v3346
        %v3352 = vadd.f32 %v3314, %v3346
        %v3353 = vadd.f32 %v3315, %v3346
        %v3354 = vadd.f32 %v3316, %v3346
        %v3355 = vadd.f32 %v3317, %v3346
        %v3356 = vadd.f32 %v3318, %v3346
        %v3357 = vadd.f32 %v3319, %v3346
        %v3358 = vadd.f32 %v3320, %v3346
        %v3359 = vadd.f32 %v3321, %v3346
        %v3360 = vadd.f32 %v3322, %v3346
        %v3361 = vadd.f32 %v3323, %v3346
        %v3362 = vadd.f32 %v3324, %v3346
        %v3363 = vadd.f32 %v3325, %v3346
        %v3364 = vadd.f32 %v3326, %v3346
        %v3365 = vadd.f32 %v3327, %v3346
        %v3366 = vadd.f32 %v3328, %v3346
        %v3367 = vadd.f32 %v3329, %v3346
        %v3368 = vadd.f32 %v3330, %v3346
        %v3369 = vadd.f32 %v3331, %v3346
        %v3370 = vadd.f32 %v3332, %v3346
        %v3371 = vadd.f32 %v3333, %v3346
        %v3372 = vadd.f32 %v3334, %v3346
        %v3373 = vadd.f32 %v3335, %v3346
        %v3374 = vadd.f32 %v3336, %v3346
        %v3375 = vadd.f32 %v3337, %v3346
        %v3376 = vadd.f32 %v3338, %v3346
        %v3377 = vadd.f32 %v3339, %v3346
        %v3378 = vadd.f32 %v3340, %v3346
        %v3379 = vadd.f32 %v3341, %v3346
        %v3380 = vmax.f32 %v3348, 0.0
        %v3381 = vmax.f32 %v3349, 0.0
        %v3382 = vmax.f32 %v3350, 0.0
        %v3383 = vmax.f32 %v3351, 0.0
        %v3384 = vmax.f32 %v3352, 0.0
        %v3385 = vmax.f32 %v3353, 0.0
        %v3386 = vmax.f32 %v3354, 0.0
        %v3387 = vmax.f32 %v3355, 0.0
        %v3388 = vmax.f32 %v3356, 0.0
        %v3389 = vmax.f32 %v3357, 0.0
        %v3390 = vmax.f32 %v3358, 0.0
        %v3391 = vmax.f32 %v3359, 0.0
        %v3392 = vmax.f32 %v3360, 0.0
        %v3393 = vmax.f32 %v3361, 0.0
        %v3394 = vmax.f32 %v3362, 0.0
        %v3395 = vmax.f32 %v3363, 0.0
        %v3396 = vmax.f32 %v3364, 0.0
        %v3397 = vmax.f32 %v3365, 0.0
        %v3398 = vmax.f32 %v3366, 0.0
        %v3399 = vmax.f32 %v3367, 0.0
        %v3400 = vmax.f32 %v3368, 0.0
        %v3401 = vmax.f32 %v3369, 0.0
        %v3402 = vmax.f32 %v3370, 0.0
        %v3403 = vmax.f32 %v3371, 0.0
        %v3404 = vmax.f32 %v3372, 0.0
        %v3405 = vmax.f32 %v3373, 0.0
        %v3406 = vmax.f32 %v3374, 0.0
        %v3407 = vmax.f32 %v3375, 0.0
        %v3408 = vmax.f32 %v3376, 0.0
        %v3409 = vmax.f32 %v3377, 0.0
        %v3410 = vmax.f32 %v3378, 0.0
        %v3411 = vmax.f32 %v3379, 0.0
        %s3412 = scalar_lea.vmem %s3, %s513
        %v3413 = vld [vmem:[%s3412] sm:$0xf]
        %v3414 = vld [vmem:[%s3412 + $0x4] sm:$0xf]
        %v3415 = vld [vmem:[%s3412 + $0x8] sm:$0xf]
        %v3416 = vld [vmem:[%s3412 + $0xc] sm:$0xf]
        %v3417 = vld [vmem:[%s3412 + $0x10] sm:$0xf]
        %v3418 = vld [vmem:[%s3412 + $0x14] sm:$0xf]
        %v3419 = vld [vmem:[%s3412 + $0x18] sm:$0xf]
        %v3420 = vld [vmem:[%s3412 + $0x1c] sm:$0xf]
        %v3421 = vld [vmem:[%s3412 + $0x20] sm:$0xf]
        %s3422 = scalar_lea.vmem %s4, %s476
        %v3423 = vld [vmem:[%s3422] sm:$0x1]
        %3424 = vst.msk [vmem:[%s526 + $0x1] sm:$0xff] %vm387, %v3380
        %3425 = vst.msk [vmem:[%s526 + $0x9] sm:$0xff] %vm387, %v3381
        %3426 = vst.msk [vmem:[%s526 + $0x19] sm:$0xff] %vm387, %v3382
        %3427 = vst.msk [vmem:[%s526 + $0x21] sm:$0xff] %vm387, %v3383
        %3428 = vst.msk [vmem:[%s526 + $0x31] sm:$0xff] %vm387, %v3384
        %3429 = vst.msk [vmem:[%s526 + $0x39] sm:$0xff] %vm387, %v3385
        %3430 = vst.msk [vmem:[%s526 + $0x49] sm:$0xff] %vm387, %v3386
        %3431 = vst.msk [vmem:[%s526 + $0x51] sm:$0xff] %vm387, %v3387
        %3432 = vst.msk [vmem:[%s526 + $0x61] sm:$0xff] %vm387, %v3388
        %3433 = vst.msk [vmem:[%s526 + $0x69] sm:$0xff] %vm387, %v3389
        %3434 = vst.msk [vmem:[%s526 + $0x79] sm:$0xff] %vm387, %v3390
        %3435 = vst.msk [vmem:[%s526 + $0x81] sm:$0xff] %vm387, %v3391
        %3436 = vst.msk [vmem:[%s526 + $0x91] sm:$0xff] %vm387, %v3392
        %3437 = vst.msk [vmem:[%s526 + $0x99] sm:$0xff] %vm387, %v3393
        %3438 = vst.msk [vmem:[%s526 + $0xa9] sm:$0xff] %vm387, %v3394
        %3439 = vst.msk [vmem:[%s526 + $0xb1] sm:$0xff] %vm387, %v3395
        %3440 = vst.msk [vmem:[%s526 + $0xc1] sm:$0xff] %vm387, %v3396
        %3441 = vst.msk [vmem:[%s526 + $0xc9] sm:$0xff] %vm387, %v3397
        %3442 = vst.msk [vmem:[%s526 + $0xd9] sm:$0xff] %vm387, %v3398
        %3443 = vst.msk [vmem:[%s526 + $0xe1] sm:$0xff] %vm387, %v3399
        %3444 = vst.msk [vmem:[%s526 + $0xf1] sm:$0xff] %vm387, %v3400
        %3445 = vst.msk [vmem:[%s526 + $0xf9] sm:$0xff] %vm387, %v3401
        %3446 = vst.msk [vmem:[%s526 + $0x109] sm:$0xff] %vm387, %v3402
        %3447 = vst.msk [vmem:[%s526 + $0x111] sm:$0xff] %vm387, %v3403
        %3448 = vst.msk [vmem:[%s526 + $0x121] sm:$0xff] %vm387, %v3404
        %3449 = vst.msk [vmem:[%s526 + $0x129] sm:$0xff] %vm387, %v3405
        %3450 = vst.msk [vmem:[%s526 + $0x139] sm:$0xff] %vm387, %v3406
        %3451 = vst.msk [vmem:[%s526 + $0x141] sm:$0xff] %vm387, %v3407
        %3452 = vst.msk [vmem:[%s526 + $0x151] sm:$0xff] %vm387, %v3408
        %3453 = vst.msk [vmem:[%s526 + $0x159] sm:$0xff] %vm387, %v3409
        %3454 = vst.msk [vmem:[%s526 + $0x169] sm:$0xff] %vm387, %v3410
        %3455 = vst.msk [vmem:[%s526 + $0x171] sm:$0xff] %vm387, %v3411
        %v3456 = vld [vmem:[#allocation2] sm:$0xff]
        %v3457 = vld [vmem:[#allocation2 + $0x8] sm:$0xff]
        %v3458 = vld [vmem:[#allocation2 + $0x10] sm:$0x3]
        %v3459 = vld [vmem:[#allocation2 + $0x18] sm:$0xff]
        %v3460 = vld [vmem:[#allocation2 + $0x20] sm:$0xff]
        %v3461 = vld [vmem:[#allocation2 + $0x28] sm:$0x3]
        %v3462 = vld [vmem:[#allocation2 + $0x30] sm:$0xff]
        %v3463 = vld [vmem:[#allocation2 + $0x38] sm:$0xff]
        %v3464 = vld [vmem:[#allocation2 + $0x40] sm:$0x3]
        %v3465 = vld [vmem:[#allocation2 + $0x48] sm:$0xff]
        %v3466 = vld [vmem:[#allocation2 + $0x50] sm:$0xff]
        %v3467 = vld [vmem:[#allocation2 + $0x58] sm:$0x3]
        %v3468 = vld [vmem:[#allocation2 + $0x60] sm:$0xff]
        %v3469 = vld [vmem:[#allocation2 + $0x68] sm:$0xff]
        %v3470 = vld [vmem:[#allocation2 + $0x70] sm:$0x3]
        %v3471 = vld [vmem:[#allocation2 + $0x78] sm:$0xff]
        %v3472 = vld [vmem:[#allocation2 + $0x80] sm:$0xff]
        %v3473 = vld [vmem:[#allocation2 + $0x88] sm:$0x3]
        %v3474 = vld [vmem:[#allocation2 + $0x90] sm:$0xff]
        %v3475 = vld [vmem:[#allocation2 + $0x98] sm:$0xff]
        %v3476 = vld [vmem:[#allocation2 + $0xa0] sm:$0x3]
        %v3477 = vld [vmem:[#allocation2 + $0xa8] sm:$0xff]
        %v3478 = vld [vmem:[#allocation2 + $0xb0] sm:$0xff]
        %v3479 = vld [vmem:[#allocation2 + $0xb8] sm:$0x3]
        %v3480 = vld [vmem:[#allocation2 + $0xc0] sm:$0xff]
        %v3481 = vld [vmem:[#allocation2 + $0xc8] sm:$0xff]
        %v3482 = vld [vmem:[#allocation2 + $0xd0] sm:$0x3]
        %v3483 = vld [vmem:[#allocation2 + $0xd8] sm:$0xff]
        %v3484 = vld [vmem:[#allocation2 + $0xe0] sm:$0xff]
        %v3485 = vld [vmem:[#allocation2 + $0xe8] sm:$0x3]
        %v3486 = vld [vmem:[#allocation2 + $0xf0] sm:$0xff]
        %v3487 = vld [vmem:[#allocation2 + $0xf8] sm:$0xff]
        %v3488 = vld [vmem:[#allocation2 + $0x100] sm:$0x3]
        %v3489 = vld [vmem:[#allocation2 + $0x108] sm:$0xff]
        %v3490 = vld [vmem:[#allocation2 + $0x110] sm:$0xff]
        %v3491 = vld [vmem:[#allocation2 + $0x118] sm:$0x3]
        %v3492 = vld [vmem:[#allocation2 + $0x120] sm:$0xff]
        %v3493 = vld [vmem:[#allocation2 + $0x128] sm:$0xff]
        %v3494 = vld [vmem:[#allocation2 + $0x130] sm:$0x3]
        %v3495 = vld [vmem:[#allocation2 + $0x138] sm:$0xff]
        %v3496 = vld [vmem:[#allocation2 + $0x140] sm:$0xff]
        %v3497 = vld [vmem:[#allocation2 + $0x148] sm:$0x3]
        %v3498 = vld [vmem:[#allocation2 + $0x150] sm:$0xff]
        %v3499 = vld [vmem:[#allocation2 + $0x158] sm:$0xff]
        %v3500 = vld [vmem:[#allocation2 + $0x160] sm:$0x3]
        %v3501 = vld [vmem:[#allocation2 + $0x168] sm:$0xff]
        %v3502 = vld [vmem:[#allocation2 + $0x170] sm:$0xff]
        %v3503 = vld [vmem:[#allocation2 + $0x178] sm:$0x3]
        %v3504 = vld [vmem:[#allocation2 + $0x180] sm:$0xff]
        %v3505 = vld [vmem:[#allocation2 + $0x188] sm:$0xff]
        %v3506 = vld [vmem:[#allocation2 + $0x190] sm:$0x3]
        %v3507 = vld [vmem:[#allocation2 + $0x198] sm:$0xff]
        %v3508 = vld [vmem:[#allocation2 + $0x1a0] sm:$0xff]
        %v3509 = vld [vmem:[#allocation2 + $0x1a8] sm:$0x3]
        %v3558 = vrot.slane %v3456, 1
        %v3559 = vrot.slane %v3457, 1
        %v3560 = vsel %vm661, %v3558, %v3559
        %v3561 = vrot.slane %v3458, 1
        %v3562 = vsel %vm661, %v3559, %v3561
        %v3563 = vrot.slane %v3459, 1
        %v3564 = vrot.slane %v3460, 1
        %v3565 = vsel %vm661, %v3563, %v3564
        %v3566 = vrot.slane %v3461, 1
        %v3567 = vsel %vm661, %v3564, %v3566
        %v3568 = vrot.slane %v3462, 1
        %v3569 = vrot.slane %v3463, 1
        %v3570 = vsel %vm661, %v3568, %v3569
        %v3571 = vrot.slane %v3464, 1
        %v3572 = vsel %vm661, %v3569, %v3571
        %v3573 = vrot.slane %v3465, 1
        %v3574 = vrot.slane %v3466, 1
        %v3575 = vsel %vm661, %v3573, %v3574
        %v3576 = vrot.slane %v3467, 1
        %v3577 = vsel %vm661, %v3574, %v3576
        %v3578 = vrot.slane %v3468, 1
        %v3579 = vrot.slane %v3469, 1
        %v3580 = vsel %vm661, %v3578, %v3579
        %v3581 = vrot.slane %v3470, 1
        %v3582 = vsel %vm661, %v3579, %v3581
        %v3583 = vrot.slane %v3471, 1
        %v3584 = vrot.slane %v3472, 1
        %v3585 = vsel %vm661, %v3583, %v3584
        %v3586 = vrot.slane %v3473, 1
        %v3587 = vsel %vm661, %v3584, %v3586
        %v3588 = vrot.slane %v3474, 1
        %v3589 = vrot.slane %v3475, 1
        %v3590 = vsel %vm661, %v3588, %v3589
        %v3591 = vrot.slane %v3476, 1
        %v3592 = vsel %vm661, %v3589, %v3591
        %v3593 = vrot.slane %v3477, 1
        %v3594 = vrot.slane %v3478, 1
        %v3595 = vsel %vm661, %v3593, %v3594
        %v3596 = vrot.slane %v3479, 1
        %v3597 = vsel %vm661, %v3594, %v3596
        %v3598 = vrot.slane %v3480, 1
        %v3599 = vrot.slane %v3481, 1
        %v3600 = vsel %vm661, %v3598, %v3599
        %v3601 = vrot.slane %v3482, 1
        %v3602 = vsel %vm661, %v3599, %v3601
        %v3603 = vrot.slane %v3483, 1
        %v3604 = vrot.slane %v3484, 1
        %v3605 = vsel %vm661, %v3603, %v3604
        %v3606 = vrot.slane %v3485, 1
        %v3607 = vsel %vm661, %v3604, %v3606
        %v3608 = vrot.slane %v3486, 1
        %v3609 = vrot.slane %v3487, 1
        %v3610 = vsel %vm661, %v3608, %v3609
        %v3611 = vrot.slane %v3488, 1
        %v3612 = vsel %vm661, %v3609, %v3611
        %v3613 = vrot.slane %v3489, 1
        %v3614 = vrot.slane %v3490, 1
        %v3615 = vsel %vm661, %v3613, %v3614
        %v3616 = vrot.slane %v3491, 1
        %v3617 = vsel %vm661, %v3614, %v3616
        %v3618 = vrot.slane %v3492, 1
        %v3619 = vrot.slane %v3493, 1
        %v3620 = vsel %vm661, %v3618, %v3619
        %v3621 = vrot.slane %v3494, 1
        %v3622 = vsel %vm661, %v3619, %v3621
        %v3623 = vrot.slane %v3495, 1
        %v3624 = vrot.slane %v3496, 1
        %v3625 = vsel %vm661, %v3623, %v3624
        %v3626 = vrot.slane %v3497, 1
        %v3627 = vsel %vm661, %v3624, %v3626
        %v3628 = vrot.slane %v3498, 1
        %v3629 = vrot.slane %v3499, 1
        %v3630 = vsel %vm661, %v3628, %v3629
        %v3631 = vrot.slane %v3500, 1
        %v3632 = vsel %vm661, %v3629, %v3631
        %v3633 = vrot.slane %v3501, 1
        %v3634 = vrot.slane %v3502, 1
        %v3635 = vsel %vm661, %v3633, %v3634
        %v3636 = vrot.slane %v3503, 1
        %v3637 = vsel %vm661, %v3634, %v3636
        %v3638 = vsel %vm387, %v3560, 0
        %v3640 = vsel %vm387, %v3562, 0
        %v3642 = vsel %vm387, %v3565, 0
        %v3644 = vsel %vm387, %v3567, 0
        %v3646 = vsel %vm387, %v3570, 0
        %v3648 = vsel %vm387, %v3572, 0
        %v3650 = vsel %vm387, %v3575, 0
        %v3652 = vsel %vm387, %v3577, 0
        %v3654 = vsel %vm387, %v3580, 0
        %v3656 = vsel %vm387, %v3582, 0
        %v3658 = vsel %vm387, %v3585, 0
        %v3660 = vsel %vm387, %v3587, 0
        %v3662 = vsel %vm387, %v3590, 0
        %v3664 = vsel %vm387, %v3592, 0
        %v3666 = vsel %vm387, %v3595, 0
        %v3668 = vsel %vm387, %v3597, 0
        %v3670 = vsel %vm387, %v3600, 0
        %v3672 = vsel %vm387, %v3602, 0
        %v3674 = vsel %vm387, %v3605, 0
        %v3676 = vsel %vm387, %v3607, 0
        %v3678 = vsel %vm387, %v3610, 0
        %v3680 = vsel %vm387, %v3612, 0
        %v3682 = vsel %vm387, %v3615, 0
        %v3684 = vsel %vm387, %v3617, 0
        %v3686 = vsel %vm387, %v3620, 0
        %v3688 = vsel %vm387, %v3622, 0
        %v3690 = vsel %vm387, %v3625, 0
        %v3692 = vsel %vm387, %v3627, 0
        %v3694 = vsel %vm387, %v3630, 0
        %v3696 = vsel %vm387, %v3632, 0
        %v3698 = vsel %vm387, %v3635, 0
        %v3700 = vsel %vm387, %v3637, 0
        %v3703 = vsel %vm806, %v3414, 0
        %3705 = vmatprep.subr.mxu0 0.0
        %3706 = vmatpush1.msra.mxu0 0.0
        %3707 = vmatprep.subr.mxu0 0.0
        %3708 = vmatpush1.msra.mxu0 0.0
        %3709 = vmatprep.subr.mxu0 0.0
        %3710 = vmatpush1.msra.mxu0 0.0
        %3711 = vmatprep.subr.mxu0 0.0
        %3712 = vmatpush1.msra.mxu0 0.0
        %3713 = vmatprep.subr.mxu0 0.0
        %3714 = vmatpush1.msra.mxu0 0.0
        %3715 = vmatprep.subr.mxu0 0.0
        %3716 = vmatpush1.msra.mxu0 0.0
        %3717 = vmatprep.subr.mxu0 0.0
        %3718 = vmatpush1.msra.mxu0 0.0
        %3719 = vmatprep.subr.mxu0 0.0
        %3720 = vmatpush1.msra.mxu0 0.0
        %3721 = vmatprep.subr.mxu0 0.0
        %3722 = vmatpush1.msra.mxu0 0.0
        %3723 = vmatprep.subr.mxu0 0.0
        %3724 = vmatpush1.msra.mxu0 0.0
        %3725 = vmatprep.subr.mxu0 0.0
        %3726 = vmatpush1.msra.mxu0 0.0
        %3727 = vmatprep.subr.mxu0 0.0
        %3728 = vmatpush1.msra.mxu0 0.0
        %3729 = vmatprep.subr.mxu0 0.0
        %3730 = vmatpush1.msra.mxu0 0.0
        %3731 = vmatprep.subr.mxu0 0.0
        %3732 = vmatpush1.msra.mxu0 0.0
        %3733 = vmatprep.subr.mxu0 0.0
        %3734 = vmatpush1.msra.mxu0 0.0
        %3735 = vmatprep.subr.mxu0 0.0
        %3736 = vmatpush1.msra.mxu0 %v3703
        %3737 = vmatprep.subr.mxu0 0.0
        %3738 = vmatpush2.msra.mxu0 0.0
        %3739 = vmatprep.subr.mxu0 0.0
        %3740 = vmatpush2.msra.mxu0 0.0
        %3741 = vmatprep.subr.mxu0 0.0
        %3742 = vmatpush2.msra.mxu0 0.0
        %3743 = vmatprep.subr.mxu0 0.0
        %3744 = vmatpush2.msra.mxu0 0.0
        %3745 = vmatprep.subr.mxu0 0.0
        %3746 = vmatpush2.msra.mxu0 0.0
        %3747 = vmatprep.subr.mxu0 0.0
        %3748 = vmatpush2.msra.mxu0 0.0
        %3749 = vmatprep.subr.mxu0 0.0
        %3750 = vmatpush2.msra.mxu0 0.0
        %3751 = vmatprep.subr.mxu0 0.0
        %3752 = vmatpush2.msra.mxu0 0.0
        %3753 = vmatprep.subr.mxu0 0.0
        %3754 = vmatpush2.msra.mxu0 0.0
        %3755 = vmatprep.subr.mxu0 0.0
        %3756 = vmatpush2.msra.mxu0 0.0
        %3757 = vmatprep.subr.mxu0 0.0
        %3758 = vmatpush2.msra.mxu0 0.0
        %3759 = vmatprep.subr.mxu0 0.0
        %3760 = vmatpush2.msra.mxu0 0.0
        %3761 = vmatprep.subr.mxu0 0.0
        %3762 = vmatpush2.msra.mxu0 0.0
        %3763 = vmatprep.subr.mxu0 0.0
        %3764 = vmatpush2.msra.mxu0 0.0
        %3765 = vmatprep.subr.mxu0 0.0
        %3766 = vmatpush2.msra.mxu0 0.0
        %3767 = vmatprep.subr.mxu0 0.0
        %3768 = vmatpush2.msra.mxu0 0.0
        %3769 = vmatprep.mubr.f32.mxu0 0.0
        %3770 = vmatmul.mubr.f32.gmra.mxu0 %v3638
        %v3771 = vpop.f32.mrf.mxu0
        %v3772 = vadd.f32 0.0, %v3771
        %v3773 = vpop.f32.mrf.mxu0
        %3774 = vmatprep.mubr.f32.mxu0 0.0
        %3775 = vmatmul.mubr.f32.gmra.mxu0 %v3640
        %v3776 = vpop.f32.mrf.mxu0
        %v3777 = vadd.f32 0.0, %v3776
        %v3778 = vpop.f32.mrf.mxu0
        %3779 = vmatprep.mubr.f32.mxu0 0.0
        %3780 = vmatmul.mubr.f32.gmra.mxu0 %v3642
        %v3781 = vpop.f32.mrf.mxu0
        %v3782 = vadd.f32 0.0, %v3781
        %v3783 = vpop.f32.mrf.mxu0
        %3784 = vmatprep.mubr.f32.mxu0 0.0
        %3785 = vmatmul.mubr.f32.gmra.mxu0 %v3644
        %v3786 = vpop.f32.mrf.mxu0
        %v3787 = vadd.f32 0.0, %v3786
        %v3788 = vpop.f32.mrf.mxu0
        %3789 = vmatprep.mubr.f32.mxu0 0.0
        %3790 = vmatmul.mubr.f32.gmra.mxu0 %v3646
        %v3791 = vpop.f32.mrf.mxu0
        %v3792 = vadd.f32 0.0, %v3791
        %v3793 = vpop.f32.mrf.mxu0
        %3794 = vmatprep.mubr.f32.mxu0 0.0
        %3795 = vmatmul.mubr.f32.gmra.mxu0 %v3648
        %v3796 = vpop.f32.mrf.mxu0
        %v3797 = vadd.f32 0.0, %v3796
        %v3798 = vpop.f32.mrf.mxu0
        %3799 = vmatprep.mubr.f32.mxu0 0.0
        %3800 = vmatmul.mubr.f32.gmra.mxu0 %v3650
        %v3801 = vpop.f32.mrf.mxu0
        %v3802 = vadd.f32 0.0, %v3801
        %v3803 = vpop.f32.mrf.mxu0
        %3804 = vmatprep.mubr.f32.mxu0 0.0
        %3805 = vmatmul.mubr.f32.gmra.mxu0 %v3652
        %v3806 = vpop.f32.mrf.mxu0
        %v3807 = vadd.f32 0.0, %v3806
        %v3808 = vpop.f32.mrf.mxu0
        %3809 = vmatprep.mubr.f32.mxu0 0.0
        %3810 = vmatmul.mubr.f32.gmra.mxu0 %v3654
        %v3811 = vpop.f32.mrf.mxu0
        %v3812 = vadd.f32 0.0, %v3811
        %v3813 = vpop.f32.mrf.mxu0
        %3814 = vmatprep.mubr.f32.mxu0 0.0
        %3815 = vmatmul.mubr.f32.gmra.mxu0 %v3656
        %v3816 = vpop.f32.mrf.mxu0
        %v3817 = vadd.f32 0.0, %v3816
        %v3818 = vpop.f32.mrf.mxu0
        %3819 = vmatprep.mubr.f32.mxu0 0.0
        %3820 = vmatmul.mubr.f32.gmra.mxu0 %v3658
        %v3821 = vpop.f32.mrf.mxu0
        %v3822 = vadd.f32 0.0, %v3821
        %v3823 = vpop.f32.mrf.mxu0
        %3824 = vmatprep.mubr.f32.mxu0 0.0
        %3825 = vmatmul.mubr.f32.gmra.mxu0 %v3660
        %v3826 = vpop.f32.mrf.mxu0
        %v3827 = vadd.f32 0.0, %v3826
        %v3828 = vpop.f32.mrf.mxu0
        %3829 = vmatprep.mubr.f32.mxu0 0.0
        %3830 = vmatmul.mubr.f32.gmra.mxu0 %v3662
        %v3831 = vpop.f32.mrf.mxu0
        %v3832 = vadd.f32 0.0, %v3831
        %v3833 = vpop.f32.mrf.mxu0
        %3834 = vmatprep.mubr.f32.mxu0 0.0
        %3835 = vmatmul.mubr.f32.gmra.mxu0 %v3664
        %v3836 = vpop.f32.mrf.mxu0
        %v3837 = vadd.f32 0.0, %v3836
        %v3838 = vpop.f32.mrf.mxu0
        %3839 = vmatprep.mubr.f32.mxu0 0.0
        %3840 = vmatmul.mubr.f32.gmra.mxu0 %v3666
        %v3841 = vpop.f32.mrf.mxu0
        %v3842 = vadd.f32 0.0, %v3841
        %v3843 = vpop.f32.mrf.mxu0
        %3844 = vmatprep.mubr.f32.mxu0 0.0
        %3845 = vmatmul.mubr.f32.gmra.mxu0 %v3668
        %v3846 = vpop.f32.mrf.mxu0
        %v3847 = vadd.f32 0.0, %v3846
        %v3848 = vpop.f32.mrf.mxu0
        %3849 = vmatprep.mubr.f32.mxu0 0.0
        %3850 = vmatmul.mubr.f32.gmra.mxu0 %v3670
        %v3851 = vpop.f32.mrf.mxu0
        %v3852 = vadd.f32 0.0, %v3851
        %v3853 = vpop.f32.mrf.mxu0
        %3854 = vmatprep.mubr.f32.mxu0 0.0
        %3855 = vmatmul.mubr.f32.gmra.mxu0 %v3672
        %v3856 = vpop.f32.mrf.mxu0
        %v3857 = vadd.f32 0.0, %v3856
        %v3858 = vpop.f32.mrf.mxu0
        %3859 = vmatprep.mubr.f32.mxu0 0.0
        %3860 = vmatmul.mubr.f32.gmra.mxu0 %v3674
        %v3861 = vpop.f32.mrf.mxu0
        %v3862 = vadd.f32 0.0, %v3861
        %v3863 = vpop.f32.mrf.mxu0
        %3864 = vmatprep.mubr.f32.mxu0 0.0
        %3865 = vmatmul.mubr.f32.gmra.mxu0 %v3676
        %v3866 = vpop.f32.mrf.mxu0
        %v3867 = vadd.f32 0.0, %v3866
        %v3868 = vpop.f32.mrf.mxu0
        %3869 = vmatprep.mubr.f32.mxu0 0.0
        %3870 = vmatmul.mubr.f32.gmra.mxu0 %v3678
        %v3871 = vpop.f32.mrf.mxu0
        %v3872 = vadd.f32 0.0, %v3871
        %v3873 = vpop.f32.mrf.mxu0
        %3874 = vmatprep.mubr.f32.mxu0 0.0
        %3875 = vmatmul.mubr.f32.gmra.mxu0 %v3680
        %v3876 = vpop.f32.mrf.mxu0
        %v3877 = vadd.f32 0.0, %v3876
        %v3878 = vpop.f32.mrf.mxu0
        %3879 = vmatprep.mubr.f32.mxu0 0.0
        %3880 = vmatmul.mubr.f32.gmra.mxu0 %v3682
        %v3881 = vpop.f32.mrf.mxu0
        %v3882 = vadd.f32 0.0, %v3881
        %v3883 = vpop.f32.mrf.mxu0
        %3884 = vmatprep.mubr.f32.mxu0 0.0
        %3885 = vmatmul.mubr.f32.gmra.mxu0 %v3684
        %v3886 = vpop.f32.mrf.mxu0
        %v3887 = vadd.f32 0.0, %v3886
        %v3888 = vpop.f32.mrf.mxu0
        %3889 = vmatprep.mubr.f32.mxu0 0.0
        %3890 = vmatmul.mubr.f32.gmra.mxu0 %v3686
        %v3891 = vpop.f32.mrf.mxu0
        %v3892 = vadd.f32 0.0, %v3891
        %v3893 = vpop.f32.mrf.mxu0
        %3894 = vmatprep.mubr.f32.mxu0 0.0
        %3895 = vmatmul.mubr.f32.gmra.mxu0 %v3688
        %v3896 = vpop.f32.mrf.mxu0
        %v3897 = vadd.f32 0.0, %v3896
        %v3898 = vpop.f32.mrf.mxu0
        %3899 = vmatprep.mubr.f32.mxu0 0.0
        %3900 = vmatmul.mubr.f32.gmra.mxu0 %v3690
        %v3901 = vpop.f32.mrf.mxu0
        %v3902 = vadd.f32 0.0, %v3901
        %v3903 = vpop.f32.mrf.mxu0
        %3904 = vmatprep.mubr.f32.mxu0 0.0
        %3905 = vmatmul.mubr.f32.gmra.mxu0 %v3692
        %v3906 = vpop.f32.mrf.mxu0
        %v3907 = vadd.f32 0.0, %v3906
        %v3908 = vpop.f32.mrf.mxu0
        %3909 = vmatprep.mubr.f32.mxu0 0.0
        %3910 = vmatmul.mubr.f32.gmra.mxu0 %v3694
        %v3911 = vpop.f32.mrf.mxu0
        %v3912 = vadd.f32 0.0, %v3911
        %v3913 = vpop.f32.mrf.mxu0
        %3914 = vmatprep.mubr.f32.mxu0 0.0
        %3915 = vmatmul.mubr.f32.gmra.mxu0 %v3696
        %v3916 = vpop.f32.mrf.mxu0
        %v3917 = vadd.f32 0.0, %v3916
        %v3918 = vpop.f32.mrf.mxu0
        %3919 = vmatprep.mubr.f32.mxu0 0.0
        %3920 = vmatmul.mubr.f32.gmra.mxu0 %v3698
        %v3921 = vpop.f32.mrf.mxu0
        %v3922 = vadd.f32 0.0, %v3921
        %v3923 = vpop.f32.mrf.mxu0
        %3924 = vmatprep.mubr.f32.mxu0 0.0
        %3925 = vmatmul.mubr.f32.gmra.mxu0 %v3700
        %v3926 = vpop.f32.mrf.mxu0
        %v3927 = vadd.f32 0.0, %v3926
        %v3928 = vpop.f32.mrf.mxu0
        %3929 = vdwg.mxu0
        %v3930 = vsel %vm387, %v3456, 0
        %v3932 = vsel %vm387, %v3457, 0
        %v3934 = vsel %vm387, %v3459, 0
        %v3936 = vsel %vm387, %v3460, 0
        %v3938 = vsel %vm387, %v3462, 0
        %v3940 = vsel %vm387, %v3463, 0
        %v3942 = vsel %vm387, %v3465, 0
        %v3944 = vsel %vm387, %v3466, 0
        %v3946 = vsel %vm387, %v3468, 0
        %v3948 = vsel %vm387, %v3469, 0
        %v3950 = vsel %vm387, %v3471, 0
        %v3952 = vsel %vm387, %v3472, 0
        %v3954 = vsel %vm387, %v3474, 0
        %v3956 = vsel %vm387, %v3475, 0
        %v3958 = vsel %vm387, %v3477, 0
        %v3960 = vsel %vm387, %v3478, 0
        %v3962 = vsel %vm387, %v3480, 0
        %v3964 = vsel %vm387, %v3481, 0
        %v3966 = vsel %vm387, %v3483, 0
        %v3968 = vsel %vm387, %v3484, 0
        %v3970 = vsel %vm387, %v3486, 0
        %v3972 = vsel %vm387, %v3487, 0
        %v3974 = vsel %vm387, %v3489, 0
        %v3976 = vsel %vm387, %v3490, 0
        %v3978 = vsel %vm387, %v3492, 0
        %v3980 = vsel %vm387, %v3493, 0
        %v3982 = vsel %vm387, %v3495, 0
        %v3984 = vsel %vm387, %v3496, 0
        %v3986 = vsel %vm387, %v3498, 0
        %v3988 = vsel %vm387, %v3499, 0
        %v3990 = vsel %vm387, %v3501, 0
        %v3992 = vsel %vm387, %v3502, 0
        %v3995 = vsel %vm806, %v3413, 0
        %3997 = vmatprep.subr.mxu0 0.0
        %3998 = vmatpush1.msra.mxu0 0.0
        %3999 = vmatprep.subr.mxu0 0.0
        %4000 = vmatpush1.msra.mxu0 0.0
        %4001 = vmatprep.subr.mxu0 0.0
        %4002 = vmatpush1.msra.mxu0 0.0
        %4003 = vmatprep.subr.mxu0 0.0
        %4004 = vmatpush1.msra.mxu0 0.0
        %4005 = vmatprep.subr.mxu0 0.0
        %4006 = vmatpush1.msra.mxu0 0.0
        %4007 = vmatprep.subr.mxu0 0.0
        %4008 = vmatpush1.msra.mxu0 0.0
        %4009 = vmatprep.subr.mxu0 0.0
        %4010 = vmatpush1.msra.mxu0 0.0
        %4011 = vmatprep.subr.mxu0 0.0
        %4012 = vmatpush1.msra.mxu0 0.0
        %4013 = vmatprep.subr.mxu0 0.0
        %4014 = vmatpush1.msra.mxu0 0.0
        %4015 = vmatprep.subr.mxu0 0.0
        %4016 = vmatpush1.msra.mxu0 0.0
        %4017 = vmatprep.subr.mxu0 0.0
        %4018 = vmatpush1.msra.mxu0 0.0
        %4019 = vmatprep.subr.mxu0 0.0
        %4020 = vmatpush1.msra.mxu0 0.0
        %4021 = vmatprep.subr.mxu0 0.0
        %4022 = vmatpush1.msra.mxu0 0.0
        %4023 = vmatprep.subr.mxu0 0.0
        %4024 = vmatpush1.msra.mxu0 0.0
        %4025 = vmatprep.subr.mxu0 0.0
        %4026 = vmatpush1.msra.mxu0 0.0
        %4027 = vmatprep.subr.mxu0 0.0
        %4028 = vmatpush1.msra.mxu0 %v3995
        %4029 = vmatprep.subr.mxu0 0.0
        %4030 = vmatpush2.msra.mxu0 0.0
        %4031 = vmatprep.subr.mxu0 0.0
        %4032 = vmatpush2.msra.mxu0 0.0
        %4033 = vmatprep.subr.mxu0 0.0
        %4034 = vmatpush2.msra.mxu0 0.0
        %4035 = vmatprep.subr.mxu0 0.0
        %4036 = vmatpush2.msra.mxu0 0.0
        %4037 = vmatprep.subr.mxu0 0.0
        %4038 = vmatpush2.msra.mxu0 0.0
        %4039 = vmatprep.subr.mxu0 0.0
        %4040 = vmatpush2.msra.mxu0 0.0
        %4041 = vmatprep.subr.mxu0 0.0
        %4042 = vmatpush2.msra.mxu0 0.0
        %4043 = vmatprep.subr.mxu0 0.0
        %4044 = vmatpush2.msra.mxu0 0.0
        %4045 = vmatprep.subr.mxu0 0.0
        %4046 = vmatpush2.msra.mxu0 0.0
        %4047 = vmatprep.subr.mxu0 0.0
        %4048 = vmatpush2.msra.mxu0 0.0
        %4049 = vmatprep.subr.mxu0 0.0
        %4050 = vmatpush2.msra.mxu0 0.0
        %4051 = vmatprep.subr.mxu0 0.0
        %4052 = vmatpush2.msra.mxu0 0.0
        %4053 = vmatprep.subr.mxu0 0.0
        %4054 = vmatpush2.msra.mxu0 0.0
        %4055 = vmatprep.subr.mxu0 0.0
        %4056 = vmatpush2.msra.mxu0 0.0
        %4057 = vmatprep.subr.mxu0 0.0
        %4058 = vmatpush2.msra.mxu0 0.0
        %4059 = vmatprep.subr.mxu0 0.0
        %4060 = vmatpush2.msra.mxu0 0.0
        %4061 = vmatprep.mubr.f32.mxu0 0.0
        %4062 = vmatmul.mubr.f32.gmra.mxu0 %v3930
        %v4063 = vpop.f32.mrf.mxu0
        %v4064 = vadd.f32 %v3772, %v4063
        %v4065 = vpop.f32.mrf.mxu0
        %4066 = vmatprep.mubr.f32.mxu0 0.0
        %4067 = vmatmul.mubr.f32.gmra.mxu0 %v3932
        %v4068 = vpop.f32.mrf.mxu0
        %v4069 = vadd.f32 %v3777, %v4068
        %v4070 = vpop.f32.mrf.mxu0
        %4071 = vmatprep.mubr.f32.mxu0 0.0
        %4072 = vmatmul.mubr.f32.gmra.mxu0 %v3934
        %v4073 = vpop.f32.mrf.mxu0
        %v4074 = vadd.f32 %v3782, %v4073
        %v4075 = vpop.f32.mrf.mxu0
        %4076 = vmatprep.mubr.f32.mxu0 0.0
        %4077 = vmatmul.mubr.f32.gmra.mxu0 %v3936
        %v4078 = vpop.f32.mrf.mxu0
        %v4079 = vadd.f32 %v3787, %v4078
        %v4080 = vpop.f32.mrf.mxu0
        %4081 = vmatprep.mubr.f32.mxu0 0.0
        %4082 = vmatmul.mubr.f32.gmra.mxu0 %v3938
        %v4083 = vpop.f32.mrf.mxu0
        %v4084 = vadd.f32 %v3792, %v4083
        %v4085 = vpop.f32.mrf.mxu0
        %4086 = vmatprep.mubr.f32.mxu0 0.0
        %4087 = vmatmul.mubr.f32.gmra.mxu0 %v3940
        %v4088 = vpop.f32.mrf.mxu0
        %v4089 = vadd.f32 %v3797, %v4088
        %v4090 = vpop.f32.mrf.mxu0
        %4091 = vmatprep.mubr.f32.mxu0 0.0
        %4092 = vmatmul.mubr.f32.gmra.mxu0 %v3942
        %v4093 = vpop.f32.mrf.mxu0
        %v4094 = vadd.f32 %v3802, %v4093
        %v4095 = vpop.f32.mrf.mxu0
        %4096 = vmatprep.mubr.f32.mxu0 0.0
        %4097 = vmatmul.mubr.f32.gmra.mxu0 %v3944
        %v4098 = vpop.f32.mrf.mxu0
        %v4099 = vadd.f32 %v3807, %v4098
        %v4100 = vpop.f32.mrf.mxu0
        %4101 = vmatprep.mubr.f32.mxu0 0.0
        %4102 = vmatmul.mubr.f32.gmra.mxu0 %v3946
        %v4103 = vpop.f32.mrf.mxu0
        %v4104 = vadd.f32 %v3812, %v4103
        %v4105 = vpop.f32.mrf.mxu0
        %4106 = vmatprep.mubr.f32.mxu0 0.0
        %4107 = vmatmul.mubr.f32.gmra.mxu0 %v3948
        %v4108 = vpop.f32.mrf.mxu0
        %v4109 = vadd.f32 %v3817, %v4108
        %v4110 = vpop.f32.mrf.mxu0
        %4111 = vmatprep.mubr.f32.mxu0 0.0
        %4112 = vmatmul.mubr.f32.gmra.mxu0 %v3950
        %v4113 = vpop.f32.mrf.mxu0
        %v4114 = vadd.f32 %v3822, %v4113
        %v4115 = vpop.f32.mrf.mxu0
        %4116 = vmatprep.mubr.f32.mxu0 0.0
        %4117 = vmatmul.mubr.f32.gmra.mxu0 %v3952
        %v4118 = vpop.f32.mrf.mxu0
        %v4119 = vadd.f32 %v3827, %v4118
        %v4120 = vpop.f32.mrf.mxu0
        %4121 = vmatprep.mubr.f32.mxu0 0.0
        %4122 = vmatmul.mubr.f32.gmra.mxu0 %v3954
        %v4123 = vpop.f32.mrf.mxu0
        %v4124 = vadd.f32 %v3832, %v4123
        %v4125 = vpop.f32.mrf.mxu0
        %4126 = vmatprep.mubr.f32.mxu0 0.0
        %4127 = vmatmul.mubr.f32.gmra.mxu0 %v3956
        %v4128 = vpop.f32.mrf.mxu0
        %v4129 = vadd.f32 %v3837, %v4128
        %v4130 = vpop.f32.mrf.mxu0
        %4131 = vmatprep.mubr.f32.mxu0 0.0
        %4132 = vmatmul.mubr.f32.gmra.mxu0 %v3958
        %v4133 = vpop.f32.mrf.mxu0
        %v4134 = vadd.f32 %v3842, %v4133
        %v4135 = vpop.f32.mrf.mxu0
        %4136 = vmatprep.mubr.f32.mxu0 0.0
        %4137 = vmatmul.mubr.f32.gmra.mxu0 %v3960
        %v4138 = vpop.f32.mrf.mxu0
        %v4139 = vadd.f32 %v3847, %v4138
        %v4140 = vpop.f32.mrf.mxu0
        %4141 = vmatprep.mubr.f32.mxu0 0.0
        %4142 = vmatmul.mubr.f32.gmra.mxu0 %v3962
        %v4143 = vpop.f32.mrf.mxu0
        %v4144 = vadd.f32 %v3852, %v4143
        %v4145 = vpop.f32.mrf.mxu0
        %4146 = vmatprep.mubr.f32.mxu0 0.0
        %4147 = vmatmul.mubr.f32.gmra.mxu0 %v3964
        %v4148 = vpop.f32.mrf.mxu0
        %v4149 = vadd.f32 %v3857, %v4148
        %v4150 = vpop.f32.mrf.mxu0
        %4151 = vmatprep.mubr.f32.mxu0 0.0
        %4152 = vmatmul.mubr.f32.gmra.mxu0 %v3966
        %v4153 = vpop.f32.mrf.mxu0
        %v4154 = vadd.f32 %v3862, %v4153
        %v4155 = vpop.f32.mrf.mxu0
        %4156 = vmatprep.mubr.f32.mxu0 0.0
        %4157 = vmatmul.mubr.f32.gmra.mxu0 %v3968
        %v4158 = vpop.f32.mrf.mxu0
        %v4159 = vadd.f32 %v3867, %v4158
        %v4160 = vpop.f32.mrf.mxu0
        %4161 = vmatprep.mubr.f32.mxu0 0.0
        %4162 = vmatmul.mubr.f32.gmra.mxu0 %v3970
        %v4163 = vpop.f32.mrf.mxu0
        %v4164 = vadd.f32 %v3872, %v4163
        %v4165 = vpop.f32.mrf.mxu0
        %4166 = vmatprep.mubr.f32.mxu0 0.0
        %4167 = vmatmul.mubr.f32.gmra.mxu0 %v3972
        %v4168 = vpop.f32.mrf.mxu0
        %v4169 = vadd.f32 %v3877, %v4168
        %v4170 = vpop.f32.mrf.mxu0
        %4171 = vmatprep.mubr.f32.mxu0 0.0
        %4172 = vmatmul.mubr.f32.gmra.mxu0 %v3974
        %v4173 = vpop.f32.mrf.mxu0
        %v4174 = vadd.f32 %v3882, %v4173
        %v4175 = vpop.f32.mrf.mxu0
        %4176 = vmatprep.mubr.f32.mxu0 0.0
        %4177 = vmatmul.mubr.f32.gmra.mxu0 %v3976
        %v4178 = vpop.f32.mrf.mxu0
        %v4179 = vadd.f32 %v3887, %v4178
        %v4180 = vpop.f32.mrf.mxu0
        %4181 = vmatprep.mubr.f32.mxu0 0.0
        %4182 = vmatmul.mubr.f32.gmra.mxu0 %v3978
        %v4183 = vpop.f32.mrf.mxu0
        %v4184 = vadd.f32 %v3892, %v4183
        %v4185 = vpop.f32.mrf.mxu0
        %4186 = vmatprep.mubr.f32.mxu0 0.0
        %4187 = vmatmul.mubr.f32.gmra.mxu0 %v3980
        %v4188 = vpop.f32.mrf.mxu0
        %v4189 = vadd.f32 %v3897, %v4188
        %v4190 = vpop.f32.mrf.mxu0
        %4191 = vmatprep.mubr.f32.mxu0 0.0
        %4192 = vmatmul.mubr.f32.gmra.mxu0 %v3982
        %v4193 = vpop.f32.mrf.mxu0
        %v4194 = vadd.f32 %v3902, %v4193
        %v4195 = vpop.f32.mrf.mxu0
        %4196 = vmatprep.mubr.f32.mxu0 0.0
        %4197 = vmatmul.mubr.f32.gmra.mxu0 %v3984
        %v4198 = vpop.f32.mrf.mxu0
        %v4199 = vadd.f32 %v3907, %v4198
        %v4200 = vpop.f32.mrf.mxu0
        %4201 = vmatprep.mubr.f32.mxu0 0.0
        %4202 = vmatmul.mubr.f32.gmra.mxu0 %v3986
        %v4203 = vpop.f32.mrf.mxu0
        %v4204 = vadd.f32 %v3912, %v4203
        %v4205 = vpop.f32.mrf.mxu0
        %4206 = vmatprep.mubr.f32.mxu0 0.0
        %4207 = vmatmul.mubr.f32.gmra.mxu0 %v3988
        %v4208 = vpop.f32.mrf.mxu0
        %v4209 = vadd.f32 %v3917, %v4208
        %v4210 = vpop.f32.mrf.mxu0
        %4211 = vmatprep.mubr.f32.mxu0 0.0
        %4212 = vmatmul.mubr.f32.gmra.mxu0 %v3990
        %v4213 = vpop.f32.mrf.mxu0
        %v4214 = vadd.f32 %v3922, %v4213
        %v4215 = vpop.f32.mrf.mxu0
        %4216 = vmatprep.mubr.f32.mxu0 0.0
        %4217 = vmatmul.mubr.f32.gmra.mxu0 %v3992
        %v4218 = vpop.f32.mrf.mxu0
        %v4219 = vadd.f32 %v3927, %v4218
        %v4220 = vpop.f32.mrf.mxu0
        %4221 = vdwg.mxu0
        %v4222 = vrot.slane %v3456, 2
        %v4223 = vrot.slane %v3457, 2
        %v4224 = vsel %vm1327, %v4222, %v4223
        %v4225 = vrot.slane %v3458, 2
        %v4226 = vsel %vm1327, %v4223, %v4225
        %v4227 = vrot.slane %v3459, 2
        %v4228 = vrot.slane %v3460, 2
        %v4229 = vsel %vm1327, %v4227, %v4228
        %v4230 = vrot.slane %v3461, 2
        %v4231 = vsel %vm1327, %v4228, %v4230
        %v4232 = vrot.slane %v3462, 2
        %v4233 = vrot.slane %v3463, 2
        %v4234 = vsel %vm1327, %v4232, %v4233
        %v4235 = vrot.slane %v3464, 2
        %v4236 = vsel %vm1327, %v4233, %v4235
        %v4237 = vrot.slane %v3465, 2
        %v4238 = vrot.slane %v3466, 2
        %v4239 = vsel %vm1327, %v4237, %v4238
        %v4240 = vrot.slane %v3467, 2
        %v4241 = vsel %vm1327, %v4238, %v4240
        %v4242 = vrot.slane %v3468, 2
        %v4243 = vrot.slane %v3469, 2
        %v4244 = vsel %vm1327, %v4242, %v4243
        %v4245 = vrot.slane %v3470, 2
        %v4246 = vsel %vm1327, %v4243, %v4245
        %v4247 = vrot.slane %v3471, 2
        %v4248 = vrot.slane %v3472, 2
        %v4249 = vsel %vm1327, %v4247, %v4248
        %v4250 = vrot.slane %v3473, 2
        %v4251 = vsel %vm1327, %v4248, %v4250
        %v4252 = vrot.slane %v3474, 2
        %v4253 = vrot.slane %v3475, 2
        %v4254 = vsel %vm1327, %v4252, %v4253
        %v4255 = vrot.slane %v3476, 2
        %v4256 = vsel %vm1327, %v4253, %v4255
        %v4257 = vrot.slane %v3477, 2
        %v4258 = vrot.slane %v3478, 2
        %v4259 = vsel %vm1327, %v4257, %v4258
        %v4260 = vrot.slane %v3479, 2
        %v4261 = vsel %vm1327, %v4258, %v4260
        %v4262 = vrot.slane %v3480, 2
        %v4263 = vrot.slane %v3481, 2
        %v4264 = vsel %vm1327, %v4262, %v4263
        %v4265 = vrot.slane %v3482, 2
        %v4266 = vsel %vm1327, %v4263, %v4265
        %v4267 = vrot.slane %v3483, 2
        %v4268 = vrot.slane %v3484, 2
        %v4269 = vsel %vm1327, %v4267, %v4268
        %v4270 = vrot.slane %v3485, 2
        %v4271 = vsel %vm1327, %v4268, %v4270
        %v4272 = vrot.slane %v3486, 2
        %v4273 = vrot.slane %v3487, 2
        %v4274 = vsel %vm1327, %v4272, %v4273
        %v4275 = vrot.slane %v3488, 2
        %v4276 = vsel %vm1327, %v4273, %v4275
        %v4277 = vrot.slane %v3489, 2
        %v4278 = vrot.slane %v3490, 2
        %v4279 = vsel %vm1327, %v4277, %v4278
        %v4280 = vrot.slane %v3491, 2
        %v4281 = vsel %vm1327, %v4278, %v4280
        %v4282 = vrot.slane %v3492, 2
        %v4283 = vrot.slane %v3493, 2
        %v4284 = vsel %vm1327, %v4282, %v4283
        %v4285 = vrot.slane %v3494, 2
        %v4286 = vsel %vm1327, %v4283, %v4285
        %v4287 = vrot.slane %v3495, 2
        %v4288 = vrot.slane %v3496, 2
        %v4289 = vsel %vm1327, %v4287, %v4288
        %v4290 = vrot.slane %v3497, 2
        %v4291 = vsel %vm1327, %v4288, %v4290
        %v4292 = vrot.slane %v3498, 2
        %v4293 = vrot.slane %v3499, 2
        %v4294 = vsel %vm1327, %v4292, %v4293
        %v4295 = vrot.slane %v3500, 2
        %v4296 = vsel %vm1327, %v4293, %v4295
        %v4297 = vrot.slane %v3501, 2
        %v4298 = vrot.slane %v3502, 2
        %v4299 = vsel %vm1327, %v4297, %v4298
        %v4300 = vrot.slane %v3503, 2
        %v4301 = vsel %vm1327, %v4298, %v4300
        %v4302 = vsel %vm387, %v4224, 0
        %v4304 = vsel %vm387, %v4226, 0
        %v4306 = vsel %vm387, %v4229, 0
        %v4308 = vsel %vm387, %v4231, 0
        %v4310 = vsel %vm387, %v4234, 0
        %v4312 = vsel %vm387, %v4236, 0
        %v4314 = vsel %vm387, %v4239, 0
        %v4316 = vsel %vm387, %v4241, 0
        %v4318 = vsel %vm387, %v4244, 0
        %v4320 = vsel %vm387, %v4246, 0
        %v4322 = vsel %vm387, %v4249, 0
        %v4324 = vsel %vm387, %v4251, 0
        %v4326 = vsel %vm387, %v4254, 0
        %v4328 = vsel %vm387, %v4256, 0
        %v4330 = vsel %vm387, %v4259, 0
        %v4332 = vsel %vm387, %v4261, 0
        %v4334 = vsel %vm387, %v4264, 0
        %v4336 = vsel %vm387, %v4266, 0
        %v4338 = vsel %vm387, %v4269, 0
        %v4340 = vsel %vm387, %v4271, 0
        %v4342 = vsel %vm387, %v4274, 0
        %v4344 = vsel %vm387, %v4276, 0
        %v4346 = vsel %vm387, %v4279, 0
        %v4348 = vsel %vm387, %v4281, 0
        %v4350 = vsel %vm387, %v4284, 0
        %v4352 = vsel %vm387, %v4286, 0
        %v4354 = vsel %vm387, %v4289, 0
        %v4356 = vsel %vm387, %v4291, 0
        %v4358 = vsel %vm387, %v4294, 0
        %v4360 = vsel %vm387, %v4296, 0
        %v4362 = vsel %vm387, %v4299, 0
        %v4364 = vsel %vm387, %v4301, 0
        %v4367 = vsel %vm806, %v3415, 0
        %4369 = vmatprep.subr.mxu0 0.0
        %4370 = vmatpush1.msra.mxu0 0.0
        %4371 = vmatprep.subr.mxu0 0.0
        %4372 = vmatpush1.msra.mxu0 0.0
        %4373 = vmatprep.subr.mxu0 0.0
        %4374 = vmatpush1.msra.mxu0 0.0
        %4375 = vmatprep.subr.mxu0 0.0
        %4376 = vmatpush1.msra.mxu0 0.0
        %4377 = vmatprep.subr.mxu0 0.0
        %4378 = vmatpush1.msra.mxu0 0.0
        %4379 = vmatprep.subr.mxu0 0.0
        %4380 = vmatpush1.msra.mxu0 0.0
        %4381 = vmatprep.subr.mxu0 0.0
        %4382 = vmatpush1.msra.mxu0 0.0
        %4383 = vmatprep.subr.mxu0 0.0
        %4384 = vmatpush1.msra.mxu0 0.0
        %4385 = vmatprep.subr.mxu0 0.0
        %4386 = vmatpush1.msra.mxu0 0.0
        %4387 = vmatprep.subr.mxu0 0.0
        %4388 = vmatpush1.msra.mxu0 0.0
        %4389 = vmatprep.subr.mxu0 0.0
        %4390 = vmatpush1.msra.mxu0 0.0
        %4391 = vmatprep.subr.mxu0 0.0
        %4392 = vmatpush1.msra.mxu0 0.0
        %4393 = vmatprep.subr.mxu0 0.0
        %4394 = vmatpush1.msra.mxu0 0.0
        %4395 = vmatprep.subr.mxu0 0.0
        %4396 = vmatpush1.msra.mxu0 0.0
        %4397 = vmatprep.subr.mxu0 0.0
        %4398 = vmatpush1.msra.mxu0 0.0
        %4399 = vmatprep.subr.mxu0 0.0
        %4400 = vmatpush1.msra.mxu0 %v4367
        %4401 = vmatprep.subr.mxu0 0.0
        %4402 = vmatpush2.msra.mxu0 0.0
        %4403 = vmatprep.subr.mxu0 0.0
        %4404 = vmatpush2.msra.mxu0 0.0
        %4405 = vmatprep.subr.mxu0 0.0
        %4406 = vmatpush2.msra.mxu0 0.0
        %4407 = vmatprep.subr.mxu0 0.0
        %4408 = vmatpush2.msra.mxu0 0.0
        %4409 = vmatprep.subr.mxu0 0.0
        %4410 = vmatpush2.msra.mxu0 0.0
        %4411 = vmatprep.subr.mxu0 0.0
        %4412 = vmatpush2.msra.mxu0 0.0
        %4413 = vmatprep.subr.mxu0 0.0
        %4414 = vmatpush2.msra.mxu0 0.0
        %4415 = vmatprep.subr.mxu0 0.0
        %4416 = vmatpush2.msra.mxu0 0.0
        %4417 = vmatprep.subr.mxu0 0.0
        %4418 = vmatpush2.msra.mxu0 0.0
        %4419 = vmatprep.subr.mxu0 0.0
        %4420 = vmatpush2.msra.mxu0 0.0
        %4421 = vmatprep.subr.mxu0 0.0
        %4422 = vmatpush2.msra.mxu0 0.0
        %4423 = vmatprep.subr.mxu0 0.0
        %4424 = vmatpush2.msra.mxu0 0.0
        %4425 = vmatprep.subr.mxu0 0.0
        %4426 = vmatpush2.msra.mxu0 0.0
        %4427 = vmatprep.subr.mxu0 0.0
        %4428 = vmatpush2.msra.mxu0 0.0
        %4429 = vmatprep.subr.mxu0 0.0
        %4430 = vmatpush2.msra.mxu0 0.0
        %4431 = vmatprep.subr.mxu0 0.0
        %4432 = vmatpush2.msra.mxu0 0.0
        %4433 = vmatprep.mubr.f32.mxu0 0.0
        %4434 = vmatmul.mubr.f32.gmra.mxu0 %v4302
        %v4435 = vpop.f32.mrf.mxu0
        %v4436 = vadd.f32 0.0, %v4435
        %v4437 = vpop.f32.mrf.mxu0
        %4438 = vmatprep.mubr.f32.mxu0 0.0
        %4439 = vmatmul.mubr.f32.gmra.mxu0 %v4304
        %v4440 = vpop.f32.mrf.mxu0
        %v4441 = vadd.f32 0.0, %v4440
        %v4442 = vpop.f32.mrf.mxu0
        %4443 = vmatprep.mubr.f32.mxu0 0.0
        %4444 = vmatmul.mubr.f32.gmra.mxu0 %v4306
        %v4445 = vpop.f32.mrf.mxu0
        %v4446 = vadd.f32 0.0, %v4445
        %v4447 = vpop.f32.mrf.mxu0
        %4448 = vmatprep.mubr.f32.mxu0 0.0
        %4449 = vmatmul.mubr.f32.gmra.mxu0 %v4308
        %v4450 = vpop.f32.mrf.mxu0
        %v4451 = vadd.f32 0.0, %v4450
        %v4452 = vpop.f32.mrf.mxu0
        %4453 = vmatprep.mubr.f32.mxu0 0.0
        %4454 = vmatmul.mubr.f32.gmra.mxu0 %v4310
        %v4455 = vpop.f32.mrf.mxu0
        %v4456 = vadd.f32 0.0, %v4455
        %v4457 = vpop.f32.mrf.mxu0
        %4458 = vmatprep.mubr.f32.mxu0 0.0
        %4459 = vmatmul.mubr.f32.gmra.mxu0 %v4312
        %v4460 = vpop.f32.mrf.mxu0
        %v4461 = vadd.f32 0.0, %v4460
        %v4462 = vpop.f32.mrf.mxu0
        %4463 = vmatprep.mubr.f32.mxu0 0.0
        %4464 = vmatmul.mubr.f32.gmra.mxu0 %v4314
        %v4465 = vpop.f32.mrf.mxu0
        %v4466 = vadd.f32 0.0, %v4465
        %v4467 = vpop.f32.mrf.mxu0
        %4468 = vmatprep.mubr.f32.mxu0 0.0
        %4469 = vmatmul.mubr.f32.gmra.mxu0 %v4316
        %v4470 = vpop.f32.mrf.mxu0
        %v4471 = vadd.f32 0.0, %v4470
        %v4472 = vpop.f32.mrf.mxu0
        %4473 = vmatprep.mubr.f32.mxu0 0.0
        %4474 = vmatmul.mubr.f32.gmra.mxu0 %v4318
        %v4475 = vpop.f32.mrf.mxu0
        %v4476 = vadd.f32 0.0, %v4475
        %v4477 = vpop.f32.mrf.mxu0
        %4478 = vmatprep.mubr.f32.mxu0 0.0
        %4479 = vmatmul.mubr.f32.gmra.mxu0 %v4320
        %v4480 = vpop.f32.mrf.mxu0
        %v4481 = vadd.f32 0.0, %v4480
        %v4482 = vpop.f32.mrf.mxu0
        %4483 = vmatprep.mubr.f32.mxu0 0.0
        %4484 = vmatmul.mubr.f32.gmra.mxu0 %v4322
        %v4485 = vpop.f32.mrf.mxu0
        %v4486 = vadd.f32 0.0, %v4485
        %v4487 = vpop.f32.mrf.mxu0
        %4488 = vmatprep.mubr.f32.mxu0 0.0
        %4489 = vmatmul.mubr.f32.gmra.mxu0 %v4324
        %v4490 = vpop.f32.mrf.mxu0
        %v4491 = vadd.f32 0.0, %v4490
        %v4492 = vpop.f32.mrf.mxu0
        %4493 = vmatprep.mubr.f32.mxu0 0.0
        %4494 = vmatmul.mubr.f32.gmra.mxu0 %v4326
        %v4495 = vpop.f32.mrf.mxu0
        %v4496 = vadd.f32 0.0, %v4495
        %v4497 = vpop.f32.mrf.mxu0
        %4498 = vmatprep.mubr.f32.mxu0 0.0
        %4499 = vmatmul.mubr.f32.gmra.mxu0 %v4328
        %v4500 = vpop.f32.mrf.mxu0
        %v4501 = vadd.f32 0.0, %v4500
        %v4502 = vpop.f32.mrf.mxu0
        %4503 = vmatprep.mubr.f32.mxu0 0.0
        %4504 = vmatmul.mubr.f32.gmra.mxu0 %v4330
        %v4505 = vpop.f32.mrf.mxu0
        %v4506 = vadd.f32 0.0, %v4505
        %v4507 = vpop.f32.mrf.mxu0
        %4508 = vmatprep.mubr.f32.mxu0 0.0
        %4509 = vmatmul.mubr.f32.gmra.mxu0 %v4332
        %v4510 = vpop.f32.mrf.mxu0
        %v4511 = vadd.f32 0.0, %v4510
        %v4512 = vpop.f32.mrf.mxu0
        %4513 = vmatprep.mubr.f32.mxu0 0.0
        %4514 = vmatmul.mubr.f32.gmra.mxu0 %v4334
        %v4515 = vpop.f32.mrf.mxu0
        %v4516 = vadd.f32 0.0, %v4515
        %v4517 = vpop.f32.mrf.mxu0
        %4518 = vmatprep.mubr.f32.mxu0 0.0
        %4519 = vmatmul.mubr.f32.gmra.mxu0 %v4336
        %v4520 = vpop.f32.mrf.mxu0
        %v4521 = vadd.f32 0.0, %v4520
        %v4522 = vpop.f32.mrf.mxu0
        %4523 = vmatprep.mubr.f32.mxu0 0.0
        %4524 = vmatmul.mubr.f32.gmra.mxu0 %v4338
        %v4525 = vpop.f32.mrf.mxu0
        %v4526 = vadd.f32 0.0, %v4525
        %v4527 = vpop.f32.mrf.mxu0
        %4528 = vmatprep.mubr.f32.mxu0 0.0
        %4529 = vmatmul.mubr.f32.gmra.mxu0 %v4340
        %v4530 = vpop.f32.mrf.mxu0
        %v4531 = vadd.f32 0.0, %v4530
        %v4532 = vpop.f32.mrf.mxu0
        %4533 = vmatprep.mubr.f32.mxu0 0.0
        %4534 = vmatmul.mubr.f32.gmra.mxu0 %v4342
        %v4535 = vpop.f32.mrf.mxu0
        %v4536 = vadd.f32 0.0, %v4535
        %v4537 = vpop.f32.mrf.mxu0
        %4538 = vmatprep.mubr.f32.mxu0 0.0
        %4539 = vmatmul.mubr.f32.gmra.mxu0 %v4344
        %v4540 = vpop.f32.mrf.mxu0
        %v4541 = vadd.f32 0.0, %v4540
        %v4542 = vpop.f32.mrf.mxu0
        %4543 = vmatprep.mubr.f32.mxu0 0.0
        %4544 = vmatmul.mubr.f32.gmra.mxu0 %v4346
        %v4545 = vpop.f32.mrf.mxu0
        %v4546 = vadd.f32 0.0, %v4545
        %v4547 = vpop.f32.mrf.mxu0
        %4548 = vmatprep.mubr.f32.mxu0 0.0
        %4549 = vmatmul.mubr.f32.gmra.mxu0 %v4348
        %v4550 = vpop.f32.mrf.mxu0
        %v4551 = vadd.f32 0.0, %v4550
        %v4552 = vpop.f32.mrf.mxu0
        %4553 = vmatprep.mubr.f32.mxu0 0.0
        %4554 = vmatmul.mubr.f32.gmra.mxu0 %v4350
        %v4555 = vpop.f32.mrf.mxu0
        %v4556 = vadd.f32 0.0, %v4555
        %v4557 = vpop.f32.mrf.mxu0
        %4558 = vmatprep.mubr.f32.mxu0 0.0
        %4559 = vmatmul.mubr.f32.gmra.mxu0 %v4352
        %v4560 = vpop.f32.mrf.mxu0
        %v4561 = vadd.f32 0.0, %v4560
        %v4562 = vpop.f32.mrf.mxu0
        %4563 = vmatprep.mubr.f32.mxu0 0.0
        %4564 = vmatmul.mubr.f32.gmra.mxu0 %v4354
        %v4565 = vpop.f32.mrf.mxu0
        %v4566 = vadd.f32 0.0, %v4565
        %v4567 = vpop.f32.mrf.mxu0
        %4568 = vmatprep.mubr.f32.mxu0 0.0
        %4569 = vmatmul.mubr.f32.gmra.mxu0 %v4356
        %v4570 = vpop.f32.mrf.mxu0
        %v4571 = vadd.f32 0.0, %v4570
        %v4572 = vpop.f32.mrf.mxu0
        %4573 = vmatprep.mubr.f32.mxu0 0.0
        %4574 = vmatmul.mubr.f32.gmra.mxu0 %v4358
        %v4575 = vpop.f32.mrf.mxu0
        %v4576 = vadd.f32 0.0, %v4575
        %v4577 = vpop.f32.mrf.mxu0
        %4578 = vmatprep.mubr.f32.mxu0 0.0
        %4579 = vmatmul.mubr.f32.gmra.mxu0 %v4360
        %v4580 = vpop.f32.mrf.mxu0
        %v4581 = vadd.f32 0.0, %v4580
        %v4582 = vpop.f32.mrf.mxu0
        %4583 = vmatprep.mubr.f32.mxu0 0.0
        %4584 = vmatmul.mubr.f32.gmra.mxu0 %v4362
        %v4585 = vpop.f32.mrf.mxu0
        %v4586 = vadd.f32 0.0, %v4585
        %v4587 = vpop.f32.mrf.mxu0
        %4588 = vmatprep.mubr.f32.mxu0 0.0
        %4589 = vmatmul.mubr.f32.gmra.mxu0 %v4364
        %v4590 = vpop.f32.mrf.mxu0
        %v4591 = vadd.f32 0.0, %v4590
        %v4592 = vpop.f32.mrf.mxu0
        %4593 = vdwg.mxu0
        %v4594 = vadd.f32 %v4064, %v4436
        %v4595 = vadd.f32 %v4069, %v4441
        %v4596 = vadd.f32 %v4074, %v4446
        %v4597 = vadd.f32 %v4079, %v4451
        %v4598 = vadd.f32 %v4084, %v4456
        %v4599 = vadd.f32 %v4089, %v4461
        %v4600 = vadd.f32 %v4094, %v4466
        %v4601 = vadd.f32 %v4099, %v4471
        %v4602 = vadd.f32 %v4104, %v4476
        %v4603 = vadd.f32 %v4109, %v4481
        %v4604 = vadd.f32 %v4114, %v4486
        %v4605 = vadd.f32 %v4119, %v4491
        %v4606 = vadd.f32 %v4124, %v4496
        %v4607 = vadd.f32 %v4129, %v4501
        %v4608 = vadd.f32 %v4134, %v4506
        %v4609 = vadd.f32 %v4139, %v4511
        %v4610 = vadd.f32 %v4144, %v4516
        %v4611 = vadd.f32 %v4149, %v4521
        %v4612 = vadd.f32 %v4154, %v4526
        %v4613 = vadd.f32 %v4159, %v4531
        %v4614 = vadd.f32 %v4164, %v4536
        %v4615 = vadd.f32 %v4169, %v4541
        %v4616 = vadd.f32 %v4174, %v4546
        %v4617 = vadd.f32 %v4179, %v4551
        %v4618 = vadd.f32 %v4184, %v4556
        %v4619 = vadd.f32 %v4189, %v4561
        %v4620 = vadd.f32 %v4194, %v4566
        %v4621 = vadd.f32 %v4199, %v4571
        %v4622 = vadd.f32 %v4204, %v4576
        %v4623 = vadd.f32 %v4209, %v4581
        %v4624 = vadd.f32 %v4214, %v4586
        %v4625 = vadd.f32 %v4219, %v4591
        %v4627 = vsel %vm387, %v3504, 0
        %v4630 = vsel %vm387, %v3505, 0
        %v4633 = vsel %vm806, %v3416, 0
        %4635 = vmatprep.subr.mxu0 0.0
        %4636 = vmatpush1.msra.mxu0 0.0
        %4637 = vmatprep.subr.mxu0 0.0
        %4638 = vmatpush1.msra.mxu0 0.0
        %4639 = vmatprep.subr.mxu0 0.0
        %4640 = vmatpush1.msra.mxu0 0.0
        %4641 = vmatprep.subr.mxu0 0.0
        %4642 = vmatpush1.msra.mxu0 0.0
        %4643 = vmatprep.subr.mxu0 0.0
        %4644 = vmatpush1.msra.mxu0 0.0
        %4645 = vmatprep.subr.mxu0 0.0
        %4646 = vmatpush1.msra.mxu0 0.0
        %4647 = vmatprep.subr.mxu0 0.0
        %4648 = vmatpush1.msra.mxu0 0.0
        %4649 = vmatprep.subr.mxu0 0.0
        %4650 = vmatpush1.msra.mxu0 0.0
        %4651 = vmatprep.subr.mxu0 0.0
        %4652 = vmatpush1.msra.mxu0 0.0
        %4653 = vmatprep.subr.mxu0 0.0
        %4654 = vmatpush1.msra.mxu0 0.0
        %4655 = vmatprep.subr.mxu0 0.0
        %4656 = vmatpush1.msra.mxu0 0.0
        %4657 = vmatprep.subr.mxu0 0.0
        %4658 = vmatpush1.msra.mxu0 0.0
        %4659 = vmatprep.subr.mxu0 0.0
        %4660 = vmatpush1.msra.mxu0 0.0
        %4661 = vmatprep.subr.mxu0 0.0
        %4662 = vmatpush1.msra.mxu0 0.0
        %4663 = vmatprep.subr.mxu0 0.0
        %4664 = vmatpush1.msra.mxu0 0.0
        %4665 = vmatprep.subr.mxu0 0.0
        %4666 = vmatpush1.msra.mxu0 %v4633
        %4667 = vmatprep.subr.mxu0 0.0
        %4668 = vmatpush2.msra.mxu0 0.0
        %4669 = vmatprep.subr.mxu0 0.0
        %4670 = vmatpush2.msra.mxu0 0.0
        %4671 = vmatprep.subr.mxu0 0.0
        %4672 = vmatpush2.msra.mxu0 0.0
        %4673 = vmatprep.subr.mxu0 0.0
        %4674 = vmatpush2.msra.mxu0 0.0
        %4675 = vmatprep.subr.mxu0 0.0
        %4676 = vmatpush2.msra.mxu0 0.0
        %4677 = vmatprep.subr.mxu0 0.0
        %4678 = vmatpush2.msra.mxu0 0.0
        %4679 = vmatprep.subr.mxu0 0.0
        %4680 = vmatpush2.msra.mxu0 0.0
        %4681 = vmatprep.subr.mxu0 0.0
        %4682 = vmatpush2.msra.mxu0 0.0
        %4683 = vmatprep.subr.mxu0 0.0
        %4684 = vmatpush2.msra.mxu0 0.0
        %4685 = vmatprep.subr.mxu0 0.0
        %4686 = vmatpush2.msra.mxu0 0.0
        %4687 = vmatprep.subr.mxu0 0.0
        %4688 = vmatpush2.msra.mxu0 0.0
        %4689 = vmatprep.subr.mxu0 0.0
        %4690 = vmatpush2.msra.mxu0 0.0
        %4691 = vmatprep.subr.mxu0 0.0
        %4692 = vmatpush2.msra.mxu0 0.0
        %4693 = vmatprep.subr.mxu0 0.0
        %4694 = vmatpush2.msra.mxu0 0.0
        %4695 = vmatprep.subr.mxu0 0.0
        %4696 = vmatpush2.msra.mxu0 0.0
        %4697 = vmatprep.subr.mxu0 0.0
        %4698 = vmatpush2.msra.mxu0 0.0
        %4699 = vmatprep.mubr.f32.mxu0 0.0
        %4700 = vmatmul.mubr.f32.gmra.mxu0 %v3934
        %v4701 = vpop.f32.mrf.mxu0
        %v4702 = vadd.f32 0.0, %v4701
        %v4703 = vpop.f32.mrf.mxu0
        %4704 = vmatprep.mubr.f32.mxu0 0.0
        %4705 = vmatmul.mubr.f32.gmra.mxu0 %v3936
        %v4706 = vpop.f32.mrf.mxu0
        %v4707 = vadd.f32 0.0, %v4706
        %v4708 = vpop.f32.mrf.mxu0
        %4709 = vmatprep.mubr.f32.mxu0 0.0
        %4710 = vmatmul.mubr.f32.gmra.mxu0 %v3938
        %v4711 = vpop.f32.mrf.mxu0
        %v4712 = vadd.f32 0.0, %v4711
        %v4713 = vpop.f32.mrf.mxu0
        %4714 = vmatprep.mubr.f32.mxu0 0.0
        %4715 = vmatmul.mubr.f32.gmra.mxu0 %v3940
        %v4716 = vpop.f32.mrf.mxu0
        %v4717 = vadd.f32 0.0, %v4716
        %v4718 = vpop.f32.mrf.mxu0
        %4719 = vmatprep.mubr.f32.mxu0 0.0
        %4720 = vmatmul.mubr.f32.gmra.mxu0 %v3942
        %v4721 = vpop.f32.mrf.mxu0
        %v4722 = vadd.f32 0.0, %v4721
        %v4723 = vpop.f32.mrf.mxu0
        %4724 = vmatprep.mubr.f32.mxu0 0.0
        %4725 = vmatmul.mubr.f32.gmra.mxu0 %v3944
        %v4726 = vpop.f32.mrf.mxu0
        %v4727 = vadd.f32 0.0, %v4726
        %v4728 = vpop.f32.mrf.mxu0
        %4729 = vmatprep.mubr.f32.mxu0 0.0
        %4730 = vmatmul.mubr.f32.gmra.mxu0 %v3946
        %v4731 = vpop.f32.mrf.mxu0
        %v4732 = vadd.f32 0.0, %v4731
        %v4733 = vpop.f32.mrf.mxu0
        %4734 = vmatprep.mubr.f32.mxu0 0.0
        %4735 = vmatmul.mubr.f32.gmra.mxu0 %v3948
        %v4736 = vpop.f32.mrf.mxu0
        %v4737 = vadd.f32 0.0, %v4736
        %v4738 = vpop.f32.mrf.mxu0
        %4739 = vmatprep.mubr.f32.mxu0 0.0
        %4740 = vmatmul.mubr.f32.gmra.mxu0 %v3950
        %v4741 = vpop.f32.mrf.mxu0
        %v4742 = vadd.f32 0.0, %v4741
        %v4743 = vpop.f32.mrf.mxu0
        %4744 = vmatprep.mubr.f32.mxu0 0.0
        %4745 = vmatmul.mubr.f32.gmra.mxu0 %v3952
        %v4746 = vpop.f32.mrf.mxu0
        %v4747 = vadd.f32 0.0, %v4746
        %v4748 = vpop.f32.mrf.mxu0
        %4749 = vmatprep.mubr.f32.mxu0 0.0
        %4750 = vmatmul.mubr.f32.gmra.mxu0 %v3954
        %v4751 = vpop.f32.mrf.mxu0
        %v4752 = vadd.f32 0.0, %v4751
        %v4753 = vpop.f32.mrf.mxu0
        %4754 = vmatprep.mubr.f32.mxu0 0.0
        %4755 = vmatmul.mubr.f32.gmra.mxu0 %v3956
        %v4756 = vpop.f32.mrf.mxu0
        %v4757 = vadd.f32 0.0, %v4756
        %v4758 = vpop.f32.mrf.mxu0
        %4759 = vmatprep.mubr.f32.mxu0 0.0
        %4760 = vmatmul.mubr.f32.gmra.mxu0 %v3958
        %v4761 = vpop.f32.mrf.mxu0
        %v4762 = vadd.f32 0.0, %v4761
        %v4763 = vpop.f32.mrf.mxu0
        %4764 = vmatprep.mubr.f32.mxu0 0.0
        %4765 = vmatmul.mubr.f32.gmra.mxu0 %v3960
        %v4766 = vpop.f32.mrf.mxu0
        %v4767 = vadd.f32 0.0, %v4766
        %v4768 = vpop.f32.mrf.mxu0
        %4769 = vmatprep.mubr.f32.mxu0 0.0
        %4770 = vmatmul.mubr.f32.gmra.mxu0 %v3962
        %v4771 = vpop.f32.mrf.mxu0
        %v4772 = vadd.f32 0.0, %v4771
        %v4773 = vpop.f32.mrf.mxu0
        %4774 = vmatprep.mubr.f32.mxu0 0.0
        %4775 = vmatmul.mubr.f32.gmra.mxu0 %v3964
        %v4776 = vpop.f32.mrf.mxu0
        %v4777 = vadd.f32 0.0, %v4776
        %v4778 = vpop.f32.mrf.mxu0
        %4779 = vmatprep.mubr.f32.mxu0 0.0
        %4780 = vmatmul.mubr.f32.gmra.mxu0 %v3966
        %v4781 = vpop.f32.mrf.mxu0
        %v4782 = vadd.f32 0.0, %v4781
        %v4783 = vpop.f32.mrf.mxu0
        %4784 = vmatprep.mubr.f32.mxu0 0.0
        %4785 = vmatmul.mubr.f32.gmra.mxu0 %v3968
        %v4786 = vpop.f32.mrf.mxu0
        %v4787 = vadd.f32 0.0, %v4786
        %v4788 = vpop.f32.mrf.mxu0
        %4789 = vmatprep.mubr.f32.mxu0 0.0
        %4790 = vmatmul.mubr.f32.gmra.mxu0 %v3970
        %v4791 = vpop.f32.mrf.mxu0
        %v4792 = vadd.f32 0.0, %v4791
        %v4793 = vpop.f32.mrf.mxu0
        %4794 = vmatprep.mubr.f32.mxu0 0.0
        %4795 = vmatmul.mubr.f32.gmra.mxu0 %v3972
        %v4796 = vpop.f32.mrf.mxu0
        %v4797 = vadd.f32 0.0, %v4796
        %v4798 = vpop.f32.mrf.mxu0
        %4799 = vmatprep.mubr.f32.mxu0 0.0
        %4800 = vmatmul.mubr.f32.gmra.mxu0 %v3974
        %v4801 = vpop.f32.mrf.mxu0
        %v4802 = vadd.f32 0.0, %v4801
        %v4803 = vpop.f32.mrf.mxu0
        %4804 = vmatprep.mubr.f32.mxu0 0.0
        %4805 = vmatmul.mubr.f32.gmra.mxu0 %v3976
        %v4806 = vpop.f32.mrf.mxu0
        %v4807 = vadd.f32 0.0, %v4806
        %v4808 = vpop.f32.mrf.mxu0
        %4809 = vmatprep.mubr.f32.mxu0 0.0
        %4810 = vmatmul.mubr.f32.gmra.mxu0 %v3978
        %v4811 = vpop.f32.mrf.mxu0
        %v4812 = vadd.f32 0.0, %v4811
        %v4813 = vpop.f32.mrf.mxu0
        %4814 = vmatprep.mubr.f32.mxu0 0.0
        %4815 = vmatmul.mubr.f32.gmra.mxu0 %v3980
        %v4816 = vpop.f32.mrf.mxu0
        %v4817 = vadd.f32 0.0, %v4816
        %v4818 = vpop.f32.mrf.mxu0
        %4819 = vmatprep.mubr.f32.mxu0 0.0
        %4820 = vmatmul.mubr.f32.gmra.mxu0 %v3982
        %v4821 = vpop.f32.mrf.mxu0
        %v4822 = vadd.f32 0.0, %v4821
        %v4823 = vpop.f32.mrf.mxu0
        %4824 = vmatprep.mubr.f32.mxu0 0.0
        %4825 = vmatmul.mubr.f32.gmra.mxu0 %v3984
        %v4826 = vpop.f32.mrf.mxu0
        %v4827 = vadd.f32 0.0, %v4826
        %v4828 = vpop.f32.mrf.mxu0
        %4829 = vmatprep.mubr.f32.mxu0 0.0
        %4830 = vmatmul.mubr.f32.gmra.mxu0 %v3986
        %v4831 = vpop.f32.mrf.mxu0
        %v4832 = vadd.f32 0.0, %v4831
        %v4833 = vpop.f32.mrf.mxu0
        %4834 = vmatprep.mubr.f32.mxu0 0.0
        %4835 = vmatmul.mubr.f32.gmra.mxu0 %v3988
        %v4836 = vpop.f32.mrf.mxu0
        %v4837 = vadd.f32 0.0, %v4836
        %v4838 = vpop.f32.mrf.mxu0
        %4839 = vmatprep.mubr.f32.mxu0 0.0
        %4840 = vmatmul.mubr.f32.gmra.mxu0 %v3990
        %v4841 = vpop.f32.mrf.mxu0
        %v4842 = vadd.f32 0.0, %v4841
        %v4843 = vpop.f32.mrf.mxu0
        %4844 = vmatprep.mubr.f32.mxu0 0.0
        %4845 = vmatmul.mubr.f32.gmra.mxu0 %v3992
        %v4846 = vpop.f32.mrf.mxu0
        %v4847 = vadd.f32 0.0, %v4846
        %v4848 = vpop.f32.mrf.mxu0
        %4849 = vmatprep.mubr.f32.mxu0 0.0
        %4850 = vmatmul.mubr.f32.gmra.mxu0 %v4627
        %v4851 = vpop.f32.mrf.mxu0
        %v4852 = vadd.f32 0.0, %v4851
        %v4853 = vpop.f32.mrf.mxu0
        %4854 = vmatprep.mubr.f32.mxu0 0.0
        %4855 = vmatmul.mubr.f32.gmra.mxu0 %v4630
        %v4856 = vpop.f32.mrf.mxu0
        %v4857 = vadd.f32 0.0, %v4856
        %v4858 = vpop.f32.mrf.mxu0
        %4859 = vdwg.mxu0
        %v4860 = vadd.f32 %v4594, %v4702
        %v4861 = vadd.f32 %v4595, %v4707
        %v4862 = vadd.f32 %v4596, %v4712
        %v4863 = vadd.f32 %v4597, %v4717
        %v4864 = vadd.f32 %v4598, %v4722
        %v4865 = vadd.f32 %v4599, %v4727
        %v4866 = vadd.f32 %v4600, %v4732
        %v4867 = vadd.f32 %v4601, %v4737
        %v4868 = vadd.f32 %v4602, %v4742
        %v4869 = vadd.f32 %v4603, %v4747
        %v4870 = vadd.f32 %v4604, %v4752
        %v4871 = vadd.f32 %v4605, %v4757
        %v4872 = vadd.f32 %v4606, %v4762
        %v4873 = vadd.f32 %v4607, %v4767
        %v4874 = vadd.f32 %v4608, %v4772
        %v4875 = vadd.f32 %v4609, %v4777
        %v4876 = vadd.f32 %v4610, %v4782
        %v4877 = vadd.f32 %v4611, %v4787
        %v4878 = vadd.f32 %v4612, %v4792
        %v4879 = vadd.f32 %v4613, %v4797
        %v4880 = vadd.f32 %v4614, %v4802
        %v4881 = vadd.f32 %v4615, %v4807
        %v4882 = vadd.f32 %v4616, %v4812
        %v4883 = vadd.f32 %v4617, %v4817
        %v4884 = vadd.f32 %v4618, %v4822
        %v4885 = vadd.f32 %v4619, %v4827
        %v4886 = vadd.f32 %v4620, %v4832
        %v4887 = vadd.f32 %v4621, %v4837
        %v4888 = vadd.f32 %v4622, %v4842
        %v4889 = vadd.f32 %v4623, %v4847
        %v4890 = vadd.f32 %v4624, %v4852
        %v4891 = vadd.f32 %v4625, %v4857
        %v4893 = vrot.slane %v3504, 1
        %v4894 = vrot.slane %v3505, 1
        %v4895 = vsel %vm661, %v4893, %v4894
        %v4896 = vrot.slane %v3506, 1
        %v4897 = vsel %vm661, %v4894, %v4896
        %v4898 = vsel %vm387, %v4895, 0
        %v4900 = vsel %vm387, %v4897, 0
        %v4903 = vsel %vm806, %v3417, 0
        %4905 = vmatprep.subr.mxu0 0.0
        %4906 = vmatpush1.msra.mxu0 0.0
        %4907 = vmatprep.subr.mxu0 0.0
        %4908 = vmatpush1.msra.mxu0 0.0
        %4909 = vmatprep.subr.mxu0 0.0
        %4910 = vmatpush1.msra.mxu0 0.0
        %4911 = vmatprep.subr.mxu0 0.0
        %4912 = vmatpush1.msra.mxu0 0.0
        %4913 = vmatprep.subr.mxu0 0.0
        %4914 = vmatpush1.msra.mxu0 0.0
        %4915 = vmatprep.subr.mxu0 0.0
        %4916 = vmatpush1.msra.mxu0 0.0
        %4917 = vmatprep.subr.mxu0 0.0
        %4918 = vmatpush1.msra.mxu0 0.0
        %4919 = vmatprep.subr.mxu0 0.0
        %4920 = vmatpush1.msra.mxu0 0.0
        %4921 = vmatprep.subr.mxu0 0.0
        %4922 = vmatpush1.msra.mxu0 0.0
        %4923 = vmatprep.subr.mxu0 0.0
        %4924 = vmatpush1.msra.mxu0 0.0
        %4925 = vmatprep.subr.mxu0 0.0
        %4926 = vmatpush1.msra.mxu0 0.0
        %4927 = vmatprep.subr.mxu0 0.0
        %4928 = vmatpush1.msra.mxu0 0.0
        %4929 = vmatprep.subr.mxu0 0.0
        %4930 = vmatpush1.msra.mxu0 0.0
        %4931 = vmatprep.subr.mxu0 0.0
        %4932 = vmatpush1.msra.mxu0 0.0
        %4933 = vmatprep.subr.mxu0 0.0
        %4934 = vmatpush1.msra.mxu0 0.0
        %4935 = vmatprep.subr.mxu0 0.0
        %4936 = vmatpush1.msra.mxu0 %v4903
        %4937 = vmatprep.subr.mxu0 0.0
        %4938 = vmatpush2.msra.mxu0 0.0
        %4939 = vmatprep.subr.mxu0 0.0
        %4940 = vmatpush2.msra.mxu0 0.0
        %4941 = vmatprep.subr.mxu0 0.0
        %4942 = vmatpush2.msra.mxu0 0.0
        %4943 = vmatprep.subr.mxu0 0.0
        %4944 = vmatpush2.msra.mxu0 0.0
        %4945 = vmatprep.subr.mxu0 0.0
        %4946 = vmatpush2.msra.mxu0 0.0
        %4947 = vmatprep.subr.mxu0 0.0
        %4948 = vmatpush2.msra.mxu0 0.0
        %4949 = vmatprep.subr.mxu0 0.0
        %4950 = vmatpush2.msra.mxu0 0.0
        %4951 = vmatprep.subr.mxu0 0.0
        %4952 = vmatpush2.msra.mxu0 0.0
        %4953 = vmatprep.subr.mxu0 0.0
        %4954 = vmatpush2.msra.mxu0 0.0
        %4955 = vmatprep.subr.mxu0 0.0
        %4956 = vmatpush2.msra.mxu0 0.0
        %4957 = vmatprep.subr.mxu0 0.0
        %4958 = vmatpush2.msra.mxu0 0.0
        %4959 = vmatprep.subr.mxu0 0.0
        %4960 = vmatpush2.msra.mxu0 0.0
        %4961 = vmatprep.subr.mxu0 0.0
        %4962 = vmatpush2.msra.mxu0 0.0
        %4963 = vmatprep.subr.mxu0 0.0
        %4964 = vmatpush2.msra.mxu0 0.0
        %4965 = vmatprep.subr.mxu0 0.0
        %4966 = vmatpush2.msra.mxu0 0.0
        %4967 = vmatprep.subr.mxu0 0.0
        %4968 = vmatpush2.msra.mxu0 0.0
        %4969 = vmatprep.mubr.f32.mxu0 0.0
        %4970 = vmatmul.mubr.f32.gmra.mxu0 %v3642
        %v4971 = vpop.f32.mrf.mxu0
        %v4972 = vadd.f32 0.0, %v4971
        %v4973 = vpop.f32.mrf.mxu0
        %4974 = vmatprep.mubr.f32.mxu0 0.0
        %4975 = vmatmul.mubr.f32.gmra.mxu0 %v3644
        %v4976 = vpop.f32.mrf.mxu0
        %v4977 = vadd.f32 0.0, %v4976
        %v4978 = vpop.f32.mrf.mxu0
        %4979 = vmatprep.mubr.f32.mxu0 0.0
        %4980 = vmatmul.mubr.f32.gmra.mxu0 %v3646
        %v4981 = vpop.f32.mrf.mxu0
        %v4982 = vadd.f32 0.0, %v4981
        %v4983 = vpop.f32.mrf.mxu0
        %4984 = vmatprep.mubr.f32.mxu0 0.0
        %4985 = vmatmul.mubr.f32.gmra.mxu0 %v3648
        %v4986 = vpop.f32.mrf.mxu0
        %v4987 = vadd.f32 0.0, %v4986
        %v4988 = vpop.f32.mrf.mxu0
        %4989 = vmatprep.mubr.f32.mxu0 0.0
        %4990 = vmatmul.mubr.f32.gmra.mxu0 %v3650
        %v4991 = vpop.f32.mrf.mxu0
        %v4992 = vadd.f32 0.0, %v4991
        %v4993 = vpop.f32.mrf.mxu0
        %4994 = vmatprep.mubr.f32.mxu0 0.0
        %4995 = vmatmul.mubr.f32.gmra.mxu0 %v3652
        %v4996 = vpop.f32.mrf.mxu0
        %v4997 = vadd.f32 0.0, %v4996
        %v4998 = vpop.f32.mrf.mxu0
        %4999 = vmatprep.mubr.f32.mxu0 0.0
        %5000 = vmatmul.mubr.f32.gmra.mxu0 %v3654
        %v5001 = vpop.f32.mrf.mxu0
        %v5002 = vadd.f32 0.0, %v5001
        %v5003 = vpop.f32.mrf.mxu0
        %5004 = vmatprep.mubr.f32.mxu0 0.0
        %5005 = vmatmul.mubr.f32.gmra.mxu0 %v3656
        %v5006 = vpop.f32.mrf.mxu0
        %v5007 = vadd.f32 0.0, %v5006
        %v5008 = vpop.f32.mrf.mxu0
        %5009 = vmatprep.mubr.f32.mxu0 0.0
        %5010 = vmatmul.mubr.f32.gmra.mxu0 %v3658
        %v5011 = vpop.f32.mrf.mxu0
        %v5012 = vadd.f32 0.0, %v5011
        %v5013 = vpop.f32.mrf.mxu0
        %5014 = vmatprep.mubr.f32.mxu0 0.0
        %5015 = vmatmul.mubr.f32.gmra.mxu0 %v3660
        %v5016 = vpop.f32.mrf.mxu0
        %v5017 = vadd.f32 0.0, %v5016
        %v5018 = vpop.f32.mrf.mxu0
        %5019 = vmatprep.mubr.f32.mxu0 0.0
        %5020 = vmatmul.mubr.f32.gmra.mxu0 %v3662
        %v5021 = vpop.f32.mrf.mxu0
        %v5022 = vadd.f32 0.0, %v5021
        %v5023 = vpop.f32.mrf.mxu0
        %5024 = vmatprep.mubr.f32.mxu0 0.0
        %5025 = vmatmul.mubr.f32.gmra.mxu0 %v3664
        %v5026 = vpop.f32.mrf.mxu0
        %v5027 = vadd.f32 0.0, %v5026
        %v5028 = vpop.f32.mrf.mxu0
        %5029 = vmatprep.mubr.f32.mxu0 0.0
        %5030 = vmatmul.mubr.f32.gmra.mxu0 %v3666
        %v5031 = vpop.f32.mrf.mxu0
        %v5032 = vadd.f32 0.0, %v5031
        %v5033 = vpop.f32.mrf.mxu0
        %5034 = vmatprep.mubr.f32.mxu0 0.0
        %5035 = vmatmul.mubr.f32.gmra.mxu0 %v3668
        %v5036 = vpop.f32.mrf.mxu0
        %v5037 = vadd.f32 0.0, %v5036
        %v5038 = vpop.f32.mrf.mxu0
        %5039 = vmatprep.mubr.f32.mxu0 0.0
        %5040 = vmatmul.mubr.f32.gmra.mxu0 %v3670
        %v5041 = vpop.f32.mrf.mxu0
        %v5042 = vadd.f32 0.0, %v5041
        %v5043 = vpop.f32.mrf.mxu0
        %5044 = vmatprep.mubr.f32.mxu0 0.0
        %5045 = vmatmul.mubr.f32.gmra.mxu0 %v3672
        %v5046 = vpop.f32.mrf.mxu0
        %v5047 = vadd.f32 0.0, %v5046
        %v5048 = vpop.f32.mrf.mxu0
        %5049 = vmatprep.mubr.f32.mxu0 0.0
        %5050 = vmatmul.mubr.f32.gmra.mxu0 %v3674
        %v5051 = vpop.f32.mrf.mxu0
        %v5052 = vadd.f32 0.0, %v5051
        %v5053 = vpop.f32.mrf.mxu0
        %5054 = vmatprep.mubr.f32.mxu0 0.0
        %5055 = vmatmul.mubr.f32.gmra.mxu0 %v3676
        %v5056 = vpop.f32.mrf.mxu0
        %v5057 = vadd.f32 0.0, %v5056
        %v5058 = vpop.f32.mrf.mxu0
        %5059 = vmatprep.mubr.f32.mxu0 0.0
        %5060 = vmatmul.mubr.f32.gmra.mxu0 %v3678
        %v5061 = vpop.f32.mrf.mxu0
        %v5062 = vadd.f32 0.0, %v5061
        %v5063 = vpop.f32.mrf.mxu0
        %5064 = vmatprep.mubr.f32.mxu0 0.0
        %5065 = vmatmul.mubr.f32.gmra.mxu0 %v3680
        %v5066 = vpop.f32.mrf.mxu0
        %v5067 = vadd.f32 0.0, %v5066
        %v5068 = vpop.f32.mrf.mxu0
        %5069 = vmatprep.mubr.f32.mxu0 0.0
        %5070 = vmatmul.mubr.f32.gmra.mxu0 %v3682
        %v5071 = vpop.f32.mrf.mxu0
        %v5072 = vadd.f32 0.0, %v5071
        %v5073 = vpop.f32.mrf.mxu0
        %5074 = vmatprep.mubr.f32.mxu0 0.0
        %5075 = vmatmul.mubr.f32.gmra.mxu0 %v3684
        %v5076 = vpop.f32.mrf.mxu0
        %v5077 = vadd.f32 0.0, %v5076
        %v5078 = vpop.f32.mrf.mxu0
        %5079 = vmatprep.mubr.f32.mxu0 0.0
        %5080 = vmatmul.mubr.f32.gmra.mxu0 %v3686
        %v5081 = vpop.f32.mrf.mxu0
        %v5082 = vadd.f32 0.0, %v5081
        %v5083 = vpop.f32.mrf.mxu0
        %5084 = vmatprep.mubr.f32.mxu0 0.0
        %5085 = vmatmul.mubr.f32.gmra.mxu0 %v3688
        %v5086 = vpop.f32.mrf.mxu0
        %v5087 = vadd.f32 0.0, %v5086
        %v5088 = vpop.f32.mrf.mxu0
        %5089 = vmatprep.mubr.f32.mxu0 0.0
        %5090 = vmatmul.mubr.f32.gmra.mxu0 %v3690
        %v5091 = vpop.f32.mrf.mxu0
        %v5092 = vadd.f32 0.0, %v5091
        %v5093 = vpop.f32.mrf.mxu0
        %5094 = vmatprep.mubr.f32.mxu0 0.0
        %5095 = vmatmul.mubr.f32.gmra.mxu0 %v3692
        %v5096 = vpop.f32.mrf.mxu0
        %v5097 = vadd.f32 0.0, %v5096
        %v5098 = vpop.f32.mrf.mxu0
        %5099 = vmatprep.mubr.f32.mxu0 0.0
        %5100 = vmatmul.mubr.f32.gmra.mxu0 %v3694
        %v5101 = vpop.f32.mrf.mxu0
        %v5102 = vadd.f32 0.0, %v5101
        %v5103 = vpop.f32.mrf.mxu0
        %5104 = vmatprep.mubr.f32.mxu0 0.0
        %5105 = vmatmul.mubr.f32.gmra.mxu0 %v3696
        %v5106 = vpop.f32.mrf.mxu0
        %v5107 = vadd.f32 0.0, %v5106
        %v5108 = vpop.f32.mrf.mxu0
        %5109 = vmatprep.mubr.f32.mxu0 0.0
        %5110 = vmatmul.mubr.f32.gmra.mxu0 %v3698
        %v5111 = vpop.f32.mrf.mxu0
        %v5112 = vadd.f32 0.0, %v5111
        %v5113 = vpop.f32.mrf.mxu0
        %5114 = vmatprep.mubr.f32.mxu0 0.0
        %5115 = vmatmul.mubr.f32.gmra.mxu0 %v3700
        %v5116 = vpop.f32.mrf.mxu0
        %v5117 = vadd.f32 0.0, %v5116
        %v5118 = vpop.f32.mrf.mxu0
        %5119 = vmatprep.mubr.f32.mxu0 0.0
        %5120 = vmatmul.mubr.f32.gmra.mxu0 %v4898
        %v5121 = vpop.f32.mrf.mxu0
        %v5122 = vadd.f32 0.0, %v5121
        %v5123 = vpop.f32.mrf.mxu0
        %5124 = vmatprep.mubr.f32.mxu0 0.0
        %5125 = vmatmul.mubr.f32.gmra.mxu0 %v4900
        %v5126 = vpop.f32.mrf.mxu0
        %v5127 = vadd.f32 0.0, %v5126
        %v5128 = vpop.f32.mrf.mxu0
        %5129 = vdwg.mxu0
        %v5130 = vadd.f32 %v4860, %v4972
        %v5131 = vadd.f32 %v4861, %v4977
        %v5132 = vadd.f32 %v4862, %v4982
        %v5133 = vadd.f32 %v4863, %v4987
        %v5134 = vadd.f32 %v4864, %v4992
        %v5135 = vadd.f32 %v4865, %v4997
        %v5136 = vadd.f32 %v4866, %v5002
        %v5137 = vadd.f32 %v4867, %v5007
        %v5138 = vadd.f32 %v4868, %v5012
        %v5139 = vadd.f32 %v4869, %v5017
        %v5140 = vadd.f32 %v4870, %v5022
        %v5141 = vadd.f32 %v4871, %v5027
        %v5142 = vadd.f32 %v4872, %v5032
        %v5143 = vadd.f32 %v4873, %v5037
        %v5144 = vadd.f32 %v4874, %v5042
        %v5145 = vadd.f32 %v4875, %v5047
        %v5146 = vadd.f32 %v4876, %v5052
        %v5147 = vadd.f32 %v4877, %v5057
        %v5148 = vadd.f32 %v4878, %v5062
        %v5149 = vadd.f32 %v4879, %v5067
        %v5150 = vadd.f32 %v4880, %v5072
        %v5151 = vadd.f32 %v4881, %v5077
        %v5152 = vadd.f32 %v4882, %v5082
        %v5153 = vadd.f32 %v4883, %v5087
        %v5154 = vadd.f32 %v4884, %v5092
        %v5155 = vadd.f32 %v4885, %v5097
        %v5156 = vadd.f32 %v4886, %v5102
        %v5157 = vadd.f32 %v4887, %v5107
        %v5158 = vadd.f32 %v4888, %v5112
        %v5159 = vadd.f32 %v4889, %v5117
        %v5160 = vadd.f32 %v4890, %v5122
        %v5161 = vadd.f32 %v4891, %v5127
        %v5162 = vrot.slane %v3504, 2
        %v5163 = vrot.slane %v3505, 2
        %v5164 = vsel %vm1327, %v5162, %v5163
        %v5165 = vrot.slane %v3506, 2
        %v5166 = vsel %vm1327, %v5163, %v5165
        %v5167 = vsel %vm387, %v5164, 0
        %v5169 = vsel %vm387, %v5166, 0
        %v5172 = vsel %vm806, %v3418, 0
        %5174 = vmatprep.subr.mxu0 0.0
        %5175 = vmatpush1.msra.mxu0 0.0
        %5176 = vmatprep.subr.mxu0 0.0
        %5177 = vmatpush1.msra.mxu0 0.0
        %5178 = vmatprep.subr.mxu0 0.0
        %5179 = vmatpush1.msra.mxu0 0.0
        %5180 = vmatprep.subr.mxu0 0.0
        %5181 = vmatpush1.msra.mxu0 0.0
        %5182 = vmatprep.subr.mxu0 0.0
        %5183 = vmatpush1.msra.mxu0 0.0
        %5184 = vmatprep.subr.mxu0 0.0
        %5185 = vmatpush1.msra.mxu0 0.0
        %5186 = vmatprep.subr.mxu0 0.0
        %5187 = vmatpush1.msra.mxu0 0.0
        %5188 = vmatprep.subr.mxu0 0.0
        %5189 = vmatpush1.msra.mxu0 0.0
        %5190 = vmatprep.subr.mxu0 0.0
        %5191 = vmatpush1.msra.mxu0 0.0
        %5192 = vmatprep.subr.mxu0 0.0
        %5193 = vmatpush1.msra.mxu0 0.0
        %5194 = vmatprep.subr.mxu0 0.0
        %5195 = vmatpush1.msra.mxu0 0.0
        %5196 = vmatprep.subr.mxu0 0.0
        %5197 = vmatpush1.msra.mxu0 0.0
        %5198 = vmatprep.subr.mxu0 0.0
        %5199 = vmatpush1.msra.mxu0 0.0
        %5200 = vmatprep.subr.mxu0 0.0
        %5201 = vmatpush1.msra.mxu0 0.0
        %5202 = vmatprep.subr.mxu0 0.0
        %5203 = vmatpush1.msra.mxu0 0.0
        %5204 = vmatprep.subr.mxu0 0.0
        %5205 = vmatpush1.msra.mxu0 %v5172
        %5206 = vmatprep.subr.mxu0 0.0
        %5207 = vmatpush2.msra.mxu0 0.0
        %5208 = vmatprep.subr.mxu0 0.0
        %5209 = vmatpush2.msra.mxu0 0.0
        %5210 = vmatprep.subr.mxu0 0.0
        %5211 = vmatpush2.msra.mxu0 0.0
        %5212 = vmatprep.subr.mxu0 0.0
        %5213 = vmatpush2.msra.mxu0 0.0
        %5214 = vmatprep.subr.mxu0 0.0
        %5215 = vmatpush2.msra.mxu0 0.0
        %5216 = vmatprep.subr.mxu0 0.0
        %5217 = vmatpush2.msra.mxu0 0.0
        %5218 = vmatprep.subr.mxu0 0.0
        %5219 = vmatpush2.msra.mxu0 0.0
        %5220 = vmatprep.subr.mxu0 0.0
        %5221 = vmatpush2.msra.mxu0 0.0
        %5222 = vmatprep.subr.mxu0 0.0
        %5223 = vmatpush2.msra.mxu0 0.0
        %5224 = vmatprep.subr.mxu0 0.0
        %5225 = vmatpush2.msra.mxu0 0.0
        %5226 = vmatprep.subr.mxu0 0.0
        %5227 = vmatpush2.msra.mxu0 0.0
        %5228 = vmatprep.subr.mxu0 0.0
        %5229 = vmatpush2.msra.mxu0 0.0
        %5230 = vmatprep.subr.mxu0 0.0
        %5231 = vmatpush2.msra.mxu0 0.0
        %5232 = vmatprep.subr.mxu0 0.0
        %5233 = vmatpush2.msra.mxu0 0.0
        %5234 = vmatprep.subr.mxu0 0.0
        %5235 = vmatpush2.msra.mxu0 0.0
        %5236 = vmatprep.subr.mxu0 0.0
        %5237 = vmatpush2.msra.mxu0 0.0
        %5238 = vmatprep.mubr.f32.mxu0 0.0
        %5239 = vmatmul.mubr.f32.gmra.mxu0 %v4306
        %v5240 = vpop.f32.mrf.mxu0
        %v5241 = vadd.f32 0.0, %v5240
        %v5242 = vpop.f32.mrf.mxu0
        %5243 = vmatprep.mubr.f32.mxu0 0.0
        %5244 = vmatmul.mubr.f32.gmra.mxu0 %v4308
        %v5245 = vpop.f32.mrf.mxu0
        %v5246 = vadd.f32 0.0, %v5245
        %v5247 = vpop.f32.mrf.mxu0
        %5248 = vmatprep.mubr.f32.mxu0 0.0
        %5249 = vmatmul.mubr.f32.gmra.mxu0 %v4310
        %v5250 = vpop.f32.mrf.mxu0
        %v5251 = vadd.f32 0.0, %v5250
        %v5252 = vpop.f32.mrf.mxu0
        %5253 = vmatprep.mubr.f32.mxu0 0.0
        %5254 = vmatmul.mubr.f32.gmra.mxu0 %v4312
        %v5255 = vpop.f32.mrf.mxu0
        %v5256 = vadd.f32 0.0, %v5255
        %v5257 = vpop.f32.mrf.mxu0
        %5258 = vmatprep.mubr.f32.mxu0 0.0
        %5259 = vmatmul.mubr.f32.gmra.mxu0 %v4314
        %v5260 = vpop.f32.mrf.mxu0
        %v5261 = vadd.f32 0.0, %v5260
        %v5262 = vpop.f32.mrf.mxu0
        %5263 = vmatprep.mubr.f32.mxu0 0.0
        %5264 = vmatmul.mubr.f32.gmra.mxu0 %v4316
        %v5265 = vpop.f32.mrf.mxu0
        %v5266 = vadd.f32 0.0, %v5265
        %v5267 = vpop.f32.mrf.mxu0
        %5268 = vmatprep.mubr.f32.mxu0 0.0
        %5269 = vmatmul.mubr.f32.gmra.mxu0 %v4318
        %v5270 = vpop.f32.mrf.mxu0
        %v5271 = vadd.f32 0.0, %v5270
        %v5272 = vpop.f32.mrf.mxu0
        %5273 = vmatprep.mubr.f32.mxu0 0.0
        %5274 = vmatmul.mubr.f32.gmra.mxu0 %v4320
        %v5275 = vpop.f32.mrf.mxu0
        %v5276 = vadd.f32 0.0, %v5275
        %v5277 = vpop.f32.mrf.mxu0
        %5278 = vmatprep.mubr.f32.mxu0 0.0
        %5279 = vmatmul.mubr.f32.gmra.mxu0 %v4322
        %v5280 = vpop.f32.mrf.mxu0
        %v5281 = vadd.f32 0.0, %v5280
        %v5282 = vpop.f32.mrf.mxu0
        %5283 = vmatprep.mubr.f32.mxu0 0.0
        %5284 = vmatmul.mubr.f32.gmra.mxu0 %v4324
        %v5285 = vpop.f32.mrf.mxu0
        %v5286 = vadd.f32 0.0, %v5285
        %v5287 = vpop.f32.mrf.mxu0
        %5288 = vmatprep.mubr.f32.mxu0 0.0
        %5289 = vmatmul.mubr.f32.gmra.mxu0 %v4326
        %v5290 = vpop.f32.mrf.mxu0
        %v5291 = vadd.f32 0.0, %v5290
        %v5292 = vpop.f32.mrf.mxu0
        %5293 = vmatprep.mubr.f32.mxu0 0.0
        %5294 = vmatmul.mubr.f32.gmra.mxu0 %v4328
        %v5295 = vpop.f32.mrf.mxu0
        %v5296 = vadd.f32 0.0, %v5295
        %v5297 = vpop.f32.mrf.mxu0
        %5298 = vmatprep.mubr.f32.mxu0 0.0
        %5299 = vmatmul.mubr.f32.gmra.mxu0 %v4330
        %v5300 = vpop.f32.mrf.mxu0
        %v5301 = vadd.f32 0.0, %v5300
        %v5302 = vpop.f32.mrf.mxu0
        %5303 = vmatprep.mubr.f32.mxu0 0.0
        %5304 = vmatmul.mubr.f32.gmra.mxu0 %v4332
        %v5305 = vpop.f32.mrf.mxu0
        %v5306 = vadd.f32 0.0, %v5305
        %v5307 = vpop.f32.mrf.mxu0
        %5308 = vmatprep.mubr.f32.mxu0 0.0
        %5309 = vmatmul.mubr.f32.gmra.mxu0 %v4334
        %v5310 = vpop.f32.mrf.mxu0
        %v5311 = vadd.f32 0.0, %v5310
        %v5312 = vpop.f32.mrf.mxu0
        %5313 = vmatprep.mubr.f32.mxu0 0.0
        %5314 = vmatmul.mubr.f32.gmra.mxu0 %v4336
        %v5315 = vpop.f32.mrf.mxu0
        %v5316 = vadd.f32 0.0, %v5315
        %v5317 = vpop.f32.mrf.mxu0
        %5318 = vmatprep.mubr.f32.mxu0 0.0
        %5319 = vmatmul.mubr.f32.gmra.mxu0 %v4338
        %v5320 = vpop.f32.mrf.mxu0
        %v5321 = vadd.f32 0.0, %v5320
        %v5322 = vpop.f32.mrf.mxu0
        %5323 = vmatprep.mubr.f32.mxu0 0.0
        %5324 = vmatmul.mubr.f32.gmra.mxu0 %v4340
        %v5325 = vpop.f32.mrf.mxu0
        %v5326 = vadd.f32 0.0, %v5325
        %v5327 = vpop.f32.mrf.mxu0
        %5328 = vmatprep.mubr.f32.mxu0 0.0
        %5329 = vmatmul.mubr.f32.gmra.mxu0 %v4342
        %v5330 = vpop.f32.mrf.mxu0
        %v5331 = vadd.f32 0.0, %v5330
        %v5332 = vpop.f32.mrf.mxu0
        %5333 = vmatprep.mubr.f32.mxu0 0.0
        %5334 = vmatmul.mubr.f32.gmra.mxu0 %v4344
        %v5335 = vpop.f32.mrf.mxu0
        %v5336 = vadd.f32 0.0, %v5335
        %v5337 = vpop.f32.mrf.mxu0
        %5338 = vmatprep.mubr.f32.mxu0 0.0
        %5339 = vmatmul.mubr.f32.gmra.mxu0 %v4346
        %v5340 = vpop.f32.mrf.mxu0
        %v5341 = vadd.f32 0.0, %v5340
        %v5342 = vpop.f32.mrf.mxu0
        %5343 = vmatprep.mubr.f32.mxu0 0.0
        %5344 = vmatmul.mubr.f32.gmra.mxu0 %v4348
        %v5345 = vpop.f32.mrf.mxu0
        %v5346 = vadd.f32 0.0, %v5345
        %v5347 = vpop.f32.mrf.mxu0
        %5348 = vmatprep.mubr.f32.mxu0 0.0
        %5349 = vmatmul.mubr.f32.gmra.mxu0 %v4350
        %v5350 = vpop.f32.mrf.mxu0
        %v5351 = vadd.f32 0.0, %v5350
        %v5352 = vpop.f32.mrf.mxu0
        %5353 = vmatprep.mubr.f32.mxu0 0.0
        %5354 = vmatmul.mubr.f32.gmra.mxu0 %v4352
        %v5355 = vpop.f32.mrf.mxu0
        %v5356 = vadd.f32 0.0, %v5355
        %v5357 = vpop.f32.mrf.mxu0
        %5358 = vmatprep.mubr.f32.mxu0 0.0
        %5359 = vmatmul.mubr.f32.gmra.mxu0 %v4354
        %v5360 = vpop.f32.mrf.mxu0
        %v5361 = vadd.f32 0.0, %v5360
        %v5362 = vpop.f32.mrf.mxu0
        %5363 = vmatprep.mubr.f32.mxu0 0.0
        %5364 = vmatmul.mubr.f32.gmra.mxu0 %v4356
        %v5365 = vpop.f32.mrf.mxu0
        %v5366 = vadd.f32 0.0, %v5365
        %v5367 = vpop.f32.mrf.mxu0
        %5368 = vmatprep.mubr.f32.mxu0 0.0
        %5369 = vmatmul.mubr.f32.gmra.mxu0 %v4358
        %v5370 = vpop.f32.mrf.mxu0
        %v5371 = vadd.f32 0.0, %v5370
        %v5372 = vpop.f32.mrf.mxu0
        %5373 = vmatprep.mubr.f32.mxu0 0.0
        %5374 = vmatmul.mubr.f32.gmra.mxu0 %v4360
        %v5375 = vpop.f32.mrf.mxu0
        %v5376 = vadd.f32 0.0, %v5375
        %v5377 = vpop.f32.mrf.mxu0
        %5378 = vmatprep.mubr.f32.mxu0 0.0
        %5379 = vmatmul.mubr.f32.gmra.mxu0 %v4362
        %v5380 = vpop.f32.mrf.mxu0
        %v5381 = vadd.f32 0.0, %v5380
        %v5382 = vpop.f32.mrf.mxu0
        %5383 = vmatprep.mubr.f32.mxu0 0.0
        %5384 = vmatmul.mubr.f32.gmra.mxu0 %v4364
        %v5385 = vpop.f32.mrf.mxu0
        %v5386 = vadd.f32 0.0, %v5385
        %v5387 = vpop.f32.mrf.mxu0
        %5388 = vmatprep.mubr.f32.mxu0 0.0
        %5389 = vmatmul.mubr.f32.gmra.mxu0 %v5167
        %v5390 = vpop.f32.mrf.mxu0
        %v5391 = vadd.f32 0.0, %v5390
        %v5392 = vpop.f32.mrf.mxu0
        %5393 = vmatprep.mubr.f32.mxu0 0.0
        %5394 = vmatmul.mubr.f32.gmra.mxu0 %v5169
        %v5395 = vpop.f32.mrf.mxu0
        %v5396 = vadd.f32 0.0, %v5395
        %v5397 = vpop.f32.mrf.mxu0
        %5398 = vdwg.mxu0
        %v5399 = vadd.f32 %v5130, %v5241
        %v5400 = vadd.f32 %v5131, %v5246
        %v5401 = vadd.f32 %v5132, %v5251
        %v5402 = vadd.f32 %v5133, %v5256
        %v5403 = vadd.f32 %v5134, %v5261
        %v5404 = vadd.f32 %v5135, %v5266
        %v5405 = vadd.f32 %v5136, %v5271
        %v5406 = vadd.f32 %v5137, %v5276
        %v5407 = vadd.f32 %v5138, %v5281
        %v5408 = vadd.f32 %v5139, %v5286
        %v5409 = vadd.f32 %v5140, %v5291
        %v5410 = vadd.f32 %v5141, %v5296
        %v5411 = vadd.f32 %v5142, %v5301
        %v5412 = vadd.f32 %v5143, %v5306
        %v5413 = vadd.f32 %v5144, %v5311
        %v5414 = vadd.f32 %v5145, %v5316
        %v5415 = vadd.f32 %v5146, %v5321
        %v5416 = vadd.f32 %v5147, %v5326
        %v5417 = vadd.f32 %v5148, %v5331
        %v5418 = vadd.f32 %v5149, %v5336
        %v5419 = vadd.f32 %v5150, %v5341
        %v5420 = vadd.f32 %v5151, %v5346
        %v5421 = vadd.f32 %v5152, %v5351
        %v5422 = vadd.f32 %v5153, %v5356
        %v5423 = vadd.f32 %v5154, %v5361
        %v5424 = vadd.f32 %v5155, %v5366
        %v5425 = vadd.f32 %v5156, %v5371
        %v5426 = vadd.f32 %v5157, %v5376
        %v5427 = vadd.f32 %v5158, %v5381
        %v5428 = vadd.f32 %v5159, %v5386
        %v5429 = vadd.f32 %v5160, %v5391
        %v5430 = vadd.f32 %v5161, %v5396
        %v5432 = vsel %vm387, %v3507, 0
        %v5435 = vsel %vm387, %v3508, 0
        %v5438 = vsel %vm806, %v3419, 0
        %5440 = vmatprep.subr.mxu0 0.0
        %5441 = vmatpush1.msra.mxu0 0.0
        %5442 = vmatprep.subr.mxu0 0.0
        %5443 = vmatpush1.msra.mxu0 0.0
        %5444 = vmatprep.subr.mxu0 0.0
        %5445 = vmatpush1.msra.mxu0 0.0
        %5446 = vmatprep.subr.mxu0 0.0
        %5447 = vmatpush1.msra.mxu0 0.0
        %5448 = vmatprep.subr.mxu0 0.0
        %5449 = vmatpush1.msra.mxu0 0.0
        %5450 = vmatprep.subr.mxu0 0.0
        %5451 = vmatpush1.msra.mxu0 0.0
        %5452 = vmatprep.subr.mxu0 0.0
        %5453 = vmatpush1.msra.mxu0 0.0
        %5454 = vmatprep.subr.mxu0 0.0
        %5455 = vmatpush1.msra.mxu0 0.0
        %5456 = vmatprep.subr.mxu0 0.0
        %5457 = vmatpush1.msra.mxu0 0.0
        %5458 = vmatprep.subr.mxu0 0.0
        %5459 = vmatpush1.msra.mxu0 0.0
        %5460 = vmatprep.subr.mxu0 0.0
        %5461 = vmatpush1.msra.mxu0 0.0
        %5462 = vmatprep.subr.mxu0 0.0
        %5463 = vmatpush1.msra.mxu0 0.0
        %5464 = vmatprep.subr.mxu0 0.0
        %5465 = vmatpush1.msra.mxu0 0.0
        %5466 = vmatprep.subr.mxu0 0.0
        %5467 = vmatpush1.msra.mxu0 0.0
        %5468 = vmatprep.subr.mxu0 0.0
        %5469 = vmatpush1.msra.mxu0 0.0
        %5470 = vmatprep.subr.mxu0 0.0
        %5471 = vmatpush1.msra.mxu0 %v5438
        %5472 = vmatprep.subr.mxu0 0.0
        %5473 = vmatpush2.msra.mxu0 0.0
        %5474 = vmatprep.subr.mxu0 0.0
        %5475 = vmatpush2.msra.mxu0 0.0
        %5476 = vmatprep.subr.mxu0 0.0
        %5477 = vmatpush2.msra.mxu0 0.0
        %5478 = vmatprep.subr.mxu0 0.0
        %5479 = vmatpush2.msra.mxu0 0.0
        %5480 = vmatprep.subr.mxu0 0.0
        %5481 = vmatpush2.msra.mxu0 0.0
        %5482 = vmatprep.subr.mxu0 0.0
        %5483 = vmatpush2.msra.mxu0 0.0
        %5484 = vmatprep.subr.mxu0 0.0
        %5485 = vmatpush2.msra.mxu0 0.0
        %5486 = vmatprep.subr.mxu0 0.0
        %5487 = vmatpush2.msra.mxu0 0.0
        %5488 = vmatprep.subr.mxu0 0.0
        %5489 = vmatpush2.msra.mxu0 0.0
        %5490 = vmatprep.subr.mxu0 0.0
        %5491 = vmatpush2.msra.mxu0 0.0
        %5492 = vmatprep.subr.mxu0 0.0
        %5493 = vmatpush2.msra.mxu0 0.0
        %5494 = vmatprep.subr.mxu0 0.0
        %5495 = vmatpush2.msra.mxu0 0.0
        %5496 = vmatprep.subr.mxu0 0.0
        %5497 = vmatpush2.msra.mxu0 0.0
        %5498 = vmatprep.subr.mxu0 0.0
        %5499 = vmatpush2.msra.mxu0 0.0
        %5500 = vmatprep.subr.mxu0 0.0
        %5501 = vmatpush2.msra.mxu0 0.0
        %5502 = vmatprep.subr.mxu0 0.0
        %5503 = vmatpush2.msra.mxu0 0.0
        %5504 = vmatprep.mubr.f32.mxu0 0.0
        %5505 = vmatmul.mubr.f32.gmra.mxu0 %v3938
        %v5506 = vpop.f32.mrf.mxu0
        %v5507 = vadd.f32 0.0, %v5506
        %v5508 = vpop.f32.mrf.mxu0
        %5509 = vmatprep.mubr.f32.mxu0 0.0
        %5510 = vmatmul.mubr.f32.gmra.mxu0 %v3940
        %v5511 = vpop.f32.mrf.mxu0
        %v5512 = vadd.f32 0.0, %v5511
        %v5513 = vpop.f32.mrf.mxu0
        %5514 = vmatprep.mubr.f32.mxu0 0.0
        %5515 = vmatmul.mubr.f32.gmra.mxu0 %v3942
        %v5516 = vpop.f32.mrf.mxu0
        %v5517 = vadd.f32 0.0, %v5516
        %v5518 = vpop.f32.mrf.mxu0
        %5519 = vmatprep.mubr.f32.mxu0 0.0
        %5520 = vmatmul.mubr.f32.gmra.mxu0 %v3944
        %v5521 = vpop.f32.mrf.mxu0
        %v5522 = vadd.f32 0.0, %v5521
        %v5523 = vpop.f32.mrf.mxu0
        %5524 = vmatprep.mubr.f32.mxu0 0.0
        %5525 = vmatmul.mubr.f32.gmra.mxu0 %v3946
        %v5526 = vpop.f32.mrf.mxu0
        %v5527 = vadd.f32 0.0, %v5526
        %v5528 = vpop.f32.mrf.mxu0
        %5529 = vmatprep.mubr.f32.mxu0 0.0
        %5530 = vmatmul.mubr.f32.gmra.mxu0 %v3948
        %v5531 = vpop.f32.mrf.mxu0
        %v5532 = vadd.f32 0.0, %v5531
        %v5533 = vpop.f32.mrf.mxu0
        %5534 = vmatprep.mubr.f32.mxu0 0.0
        %5535 = vmatmul.mubr.f32.gmra.mxu0 %v3950
        %v5536 = vpop.f32.mrf.mxu0
        %v5537 = vadd.f32 0.0, %v5536
        %v5538 = vpop.f32.mrf.mxu0
        %5539 = vmatprep.mubr.f32.mxu0 0.0
        %5540 = vmatmul.mubr.f32.gmra.mxu0 %v3952
        %v5541 = vpop.f32.mrf.mxu0
        %v5542 = vadd.f32 0.0, %v5541
        %v5543 = vpop.f32.mrf.mxu0
        %5544 = vmatprep.mubr.f32.mxu0 0.0
        %5545 = vmatmul.mubr.f32.gmra.mxu0 %v3954
        %v5546 = vpop.f32.mrf.mxu0
        %v5547 = vadd.f32 0.0, %v5546
        %v5548 = vpop.f32.mrf.mxu0
        %5549 = vmatprep.mubr.f32.mxu0 0.0
        %5550 = vmatmul.mubr.f32.gmra.mxu0 %v3956
        %v5551 = vpop.f32.mrf.mxu0
        %v5552 = vadd.f32 0.0, %v5551
        %v5553 = vpop.f32.mrf.mxu0
        %5554 = vmatprep.mubr.f32.mxu0 0.0
        %5555 = vmatmul.mubr.f32.gmra.mxu0 %v3958
        %v5556 = vpop.f32.mrf.mxu0
        %v5557 = vadd.f32 0.0, %v5556
        %v5558 = vpop.f32.mrf.mxu0
        %5559 = vmatprep.mubr.f32.mxu0 0.0
        %5560 = vmatmul.mubr.f32.gmra.mxu0 %v3960
        %v5561 = vpop.f32.mrf.mxu0
        %v5562 = vadd.f32 0.0, %v5561
        %v5563 = vpop.f32.mrf.mxu0
        %5564 = vmatprep.mubr.f32.mxu0 0.0
        %5565 = vmatmul.mubr.f32.gmra.mxu0 %v3962
        %v5566 = vpop.f32.mrf.mxu0
        %v5567 = vadd.f32 0.0, %v5566
        %v5568 = vpop.f32.mrf.mxu0
        %5569 = vmatprep.mubr.f32.mxu0 0.0
        %5570 = vmatmul.mubr.f32.gmra.mxu0 %v3964
        %v5571 = vpop.f32.mrf.mxu0
        %v5572 = vadd.f32 0.0, %v5571
        %v5573 = vpop.f32.mrf.mxu0
        %5574 = vmatprep.mubr.f32.mxu0 0.0
        %5575 = vmatmul.mubr.f32.gmra.mxu0 %v3966
        %v5576 = vpop.f32.mrf.mxu0
        %v5577 = vadd.f32 0.0, %v5576
        %v5578 = vpop.f32.mrf.mxu0
        %5579 = vmatprep.mubr.f32.mxu0 0.0
        %5580 = vmatmul.mubr.f32.gmra.mxu0 %v3968
        %v5581 = vpop.f32.mrf.mxu0
        %v5582 = vadd.f32 0.0, %v5581
        %v5583 = vpop.f32.mrf.mxu0
        %5584 = vmatprep.mubr.f32.mxu0 0.0
        %5585 = vmatmul.mubr.f32.gmra.mxu0 %v3970
        %v5586 = vpop.f32.mrf.mxu0
        %v5587 = vadd.f32 0.0, %v5586
        %v5588 = vpop.f32.mrf.mxu0
        %5589 = vmatprep.mubr.f32.mxu0 0.0
        %5590 = vmatmul.mubr.f32.gmra.mxu0 %v3972
        %v5591 = vpop.f32.mrf.mxu0
        %v5592 = vadd.f32 0.0, %v5591
        %v5593 = vpop.f32.mrf.mxu0
        %5594 = vmatprep.mubr.f32.mxu0 0.0
        %5595 = vmatmul.mubr.f32.gmra.mxu0 %v3974
        %v5596 = vpop.f32.mrf.mxu0
        %v5597 = vadd.f32 0.0, %v5596
        %v5598 = vpop.f32.mrf.mxu0
        %5599 = vmatprep.mubr.f32.mxu0 0.0
        %5600 = vmatmul.mubr.f32.gmra.mxu0 %v3976
        %v5601 = vpop.f32.mrf.mxu0
        %v5602 = vadd.f32 0.0, %v5601
        %v5603 = vpop.f32.mrf.mxu0
        %5604 = vmatprep.mubr.f32.mxu0 0.0
        %5605 = vmatmul.mubr.f32.gmra.mxu0 %v3978
        %v5606 = vpop.f32.mrf.mxu0
        %v5607 = vadd.f32 0.0, %v5606
        %v5608 = vpop.f32.mrf.mxu0
        %5609 = vmatprep.mubr.f32.mxu0 0.0
        %5610 = vmatmul.mubr.f32.gmra.mxu0 %v3980
        %v5611 = vpop.f32.mrf.mxu0
        %v5612 = vadd.f32 0.0, %v5611
        %v5613 = vpop.f32.mrf.mxu0
        %5614 = vmatprep.mubr.f32.mxu0 0.0
        %5615 = vmatmul.mubr.f32.gmra.mxu0 %v3982
        %v5616 = vpop.f32.mrf.mxu0
        %v5617 = vadd.f32 0.0, %v5616
        %v5618 = vpop.f32.mrf.mxu0
        %5619 = vmatprep.mubr.f32.mxu0 0.0
        %5620 = vmatmul.mubr.f32.gmra.mxu0 %v3984
        %v5621 = vpop.f32.mrf.mxu0
        %v5622 = vadd.f32 0.0, %v5621
        %v5623 = vpop.f32.mrf.mxu0
        %5624 = vmatprep.mubr.f32.mxu0 0.0
        %5625 = vmatmul.mubr.f32.gmra.mxu0 %v3986
        %v5626 = vpop.f32.mrf.mxu0
        %v5627 = vadd.f32 0.0, %v5626
        %v5628 = vpop.f32.mrf.mxu0
        %5629 = vmatprep.mubr.f32.mxu0 0.0
        %5630 = vmatmul.mubr.f32.gmra.mxu0 %v3988
        %v5631 = vpop.f32.mrf.mxu0
        %v5632 = vadd.f32 0.0, %v5631
        %v5633 = vpop.f32.mrf.mxu0
        %5634 = vmatprep.mubr.f32.mxu0 0.0
        %5635 = vmatmul.mubr.f32.gmra.mxu0 %v3990
        %v5636 = vpop.f32.mrf.mxu0
        %v5637 = vadd.f32 0.0, %v5636
        %v5638 = vpop.f32.mrf.mxu0
        %5639 = vmatprep.mubr.f32.mxu0 0.0
        %5640 = vmatmul.mubr.f32.gmra.mxu0 %v3992
        %v5641 = vpop.f32.mrf.mxu0
        %v5642 = vadd.f32 0.0, %v5641
        %v5643 = vpop.f32.mrf.mxu0
        %5644 = vmatprep.mubr.f32.mxu0 0.0
        %5645 = vmatmul.mubr.f32.gmra.mxu0 %v4627
        %v5646 = vpop.f32.mrf.mxu0
        %v5647 = vadd.f32 0.0, %v5646
        %v5648 = vpop.f32.mrf.mxu0
        %5649 = vmatprep.mubr.f32.mxu0 0.0
        %5650 = vmatmul.mubr.f32.gmra.mxu0 %v4630
        %v5651 = vpop.f32.mrf.mxu0
        %v5652 = vadd.f32 0.0, %v5651
        %v5653 = vpop.f32.mrf.mxu0
        %5654 = vmatprep.mubr.f32.mxu0 0.0
        %5655 = vmatmul.mubr.f32.gmra.mxu0 %v5432
        %v5656 = vpop.f32.mrf.mxu0
        %v5657 = vadd.f32 0.0, %v5656
        %v5658 = vpop.f32.mrf.mxu0
        %5659 = vmatprep.mubr.f32.mxu0 0.0
        %5660 = vmatmul.mubr.f32.gmra.mxu0 %v5435
        %v5661 = vpop.f32.mrf.mxu0
        %v5662 = vadd.f32 0.0, %v5661
        %v5663 = vpop.f32.mrf.mxu0
        %5664 = vdwg.mxu0
        %v5665 = vadd.f32 %v5399, %v5507
        %v5666 = vadd.f32 %v5400, %v5512
        %v5667 = vadd.f32 %v5401, %v5517
        %v5668 = vadd.f32 %v5402, %v5522
        %v5669 = vadd.f32 %v5403, %v5527
        %v5670 = vadd.f32 %v5404, %v5532
        %v5671 = vadd.f32 %v5405, %v5537
        %v5672 = vadd.f32 %v5406, %v5542
        %v5673 = vadd.f32 %v5407, %v5547
        %v5674 = vadd.f32 %v5408, %v5552
        %v5675 = vadd.f32 %v5409, %v5557
        %v5676 = vadd.f32 %v5410, %v5562
        %v5677 = vadd.f32 %v5411, %v5567
        %v5678 = vadd.f32 %v5412, %v5572
        %v5679 = vadd.f32 %v5413, %v5577
        %v5680 = vadd.f32 %v5414, %v5582
        %v5681 = vadd.f32 %v5415, %v5587
        %v5682 = vadd.f32 %v5416, %v5592
        %v5683 = vadd.f32 %v5417, %v5597
        %v5684 = vadd.f32 %v5418, %v5602
        %v5685 = vadd.f32 %v5419, %v5607
        %v5686 = vadd.f32 %v5420, %v5612
        %v5687 = vadd.f32 %v5421, %v5617
        %v5688 = vadd.f32 %v5422, %v5622
        %v5689 = vadd.f32 %v5423, %v5627
        %v5690 = vadd.f32 %v5424, %v5632
        %v5691 = vadd.f32 %v5425, %v5637
        %v5692 = vadd.f32 %v5426, %v5642
        %v5693 = vadd.f32 %v5427, %v5647
        %v5694 = vadd.f32 %v5428, %v5652
        %v5695 = vadd.f32 %v5429, %v5657
        %v5696 = vadd.f32 %v5430, %v5662
        %v5698 = vrot.slane %v3507, 1
        %v5699 = vrot.slane %v3508, 1
        %v5700 = vsel %vm661, %v5698, %v5699
        %v5701 = vrot.slane %v3509, 1
        %v5702 = vsel %vm661, %v5699, %v5701
        %v5703 = vsel %vm387, %v5700, 0
        %v5705 = vsel %vm387, %v5702, 0
        %v5708 = vsel %vm806, %v3420, 0
        %5710 = vmatprep.subr.mxu0 0.0
        %5711 = vmatpush1.msra.mxu0 0.0
        %5712 = vmatprep.subr.mxu0 0.0
        %5713 = vmatpush1.msra.mxu0 0.0
        %5714 = vmatprep.subr.mxu0 0.0
        %5715 = vmatpush1.msra.mxu0 0.0
        %5716 = vmatprep.subr.mxu0 0.0
        %5717 = vmatpush1.msra.mxu0 0.0
        %5718 = vmatprep.subr.mxu0 0.0
        %5719 = vmatpush1.msra.mxu0 0.0
        %5720 = vmatprep.subr.mxu0 0.0
        %5721 = vmatpush1.msra.mxu0 0.0
        %5722 = vmatprep.subr.mxu0 0.0
        %5723 = vmatpush1.msra.mxu0 0.0
        %5724 = vmatprep.subr.mxu0 0.0
        %5725 = vmatpush1.msra.mxu0 0.0
        %5726 = vmatprep.subr.mxu0 0.0
        %5727 = vmatpush1.msra.mxu0 0.0
        %5728 = vmatprep.subr.mxu0 0.0
        %5729 = vmatpush1.msra.mxu0 0.0
        %5730 = vmatprep.subr.mxu0 0.0
        %5731 = vmatpush1.msra.mxu0 0.0
        %5732 = vmatprep.subr.mxu0 0.0
        %5733 = vmatpush1.msra.mxu0 0.0
        %5734 = vmatprep.subr.mxu0 0.0
        %5735 = vmatpush1.msra.mxu0 0.0
        %5736 = vmatprep.subr.mxu0 0.0
        %5737 = vmatpush1.msra.mxu0 0.0
        %5738 = vmatprep.subr.mxu0 0.0
        %5739 = vmatpush1.msra.mxu0 0.0
        %5740 = vmatprep.subr.mxu0 0.0
        %5741 = vmatpush1.msra.mxu0 %v5708
        %5742 = vmatprep.subr.mxu0 0.0
        %5743 = vmatpush2.msra.mxu0 0.0
        %5744 = vmatprep.subr.mxu0 0.0
        %5745 = vmatpush2.msra.mxu0 0.0
        %5746 = vmatprep.subr.mxu0 0.0
        %5747 = vmatpush2.msra.mxu0 0.0
        %5748 = vmatprep.subr.mxu0 0.0
        %5749 = vmatpush2.msra.mxu0 0.0
        %5750 = vmatprep.subr.mxu0 0.0
        %5751 = vmatpush2.msra.mxu0 0.0
        %5752 = vmatprep.subr.mxu0 0.0
        %5753 = vmatpush2.msra.mxu0 0.0
        %5754 = vmatprep.subr.mxu0 0.0
        %5755 = vmatpush2.msra.mxu0 0.0
        %5756 = vmatprep.subr.mxu0 0.0
        %5757 = vmatpush2.msra.mxu0 0.0
        %5758 = vmatprep.subr.mxu0 0.0
        %5759 = vmatpush2.msra.mxu0 0.0
        %5760 = vmatprep.subr.mxu0 0.0
        %5761 = vmatpush2.msra.mxu0 0.0
        %5762 = vmatprep.subr.mxu0 0.0
        %5763 = vmatpush2.msra.mxu0 0.0
        %5764 = vmatprep.subr.mxu0 0.0
        %5765 = vmatpush2.msra.mxu0 0.0
        %5766 = vmatprep.subr.mxu0 0.0
        %5767 = vmatpush2.msra.mxu0 0.0
        %5768 = vmatprep.subr.mxu0 0.0
        %5769 = vmatpush2.msra.mxu0 0.0
        %5770 = vmatprep.subr.mxu0 0.0
        %5771 = vmatpush2.msra.mxu0 0.0
        %5772 = vmatprep.subr.mxu0 0.0
        %5773 = vmatpush2.msra.mxu0 0.0
        %5774 = vmatprep.mubr.f32.mxu0 0.0
        %5775 = vmatmul.mubr.f32.gmra.mxu0 %v3646
        %v5776 = vpop.f32.mrf.mxu0
        %v5777 = vadd.f32 0.0, %v5776
        %v5778 = vpop.f32.mrf.mxu0
        %5779 = vmatprep.mubr.f32.mxu0 0.0
        %5780 = vmatmul.mubr.f32.gmra.mxu0 %v3648
        %v5781 = vpop.f32.mrf.mxu0
        %v5782 = vadd.f32 0.0, %v5781
        %v5783 = vpop.f32.mrf.mxu0
        %5784 = vmatprep.mubr.f32.mxu0 0.0
        %5785 = vmatmul.mubr.f32.gmra.mxu0 %v3650
        %v5786 = vpop.f32.mrf.mxu0
        %v5787 = vadd.f32 0.0, %v5786
        %v5788 = vpop.f32.mrf.mxu0
        %5789 = vmatprep.mubr.f32.mxu0 0.0
        %5790 = vmatmul.mubr.f32.gmra.mxu0 %v3652
        %v5791 = vpop.f32.mrf.mxu0
        %v5792 = vadd.f32 0.0, %v5791
        %v5793 = vpop.f32.mrf.mxu0
        %5794 = vmatprep.mubr.f32.mxu0 0.0
        %5795 = vmatmul.mubr.f32.gmra.mxu0 %v3654
        %v5796 = vpop.f32.mrf.mxu0
        %v5797 = vadd.f32 0.0, %v5796
        %v5798 = vpop.f32.mrf.mxu0
        %5799 = vmatprep.mubr.f32.mxu0 0.0
        %5800 = vmatmul.mubr.f32.gmra.mxu0 %v3656
        %v5801 = vpop.f32.mrf.mxu0
        %v5802 = vadd.f32 0.0, %v5801
        %v5803 = vpop.f32.mrf.mxu0
        %5804 = vmatprep.mubr.f32.mxu0 0.0
        %5805 = vmatmul.mubr.f32.gmra.mxu0 %v3658
        %v5806 = vpop.f32.mrf.mxu0
        %v5807 = vadd.f32 0.0, %v5806
        %v5808 = vpop.f32.mrf.mxu0
        %5809 = vmatprep.mubr.f32.mxu0 0.0
        %5810 = vmatmul.mubr.f32.gmra.mxu0 %v3660
        %v5811 = vpop.f32.mrf.mxu0
        %v5812 = vadd.f32 0.0, %v5811
        %v5813 = vpop.f32.mrf.mxu0
        %5814 = vmatprep.mubr.f32.mxu0 0.0
        %5815 = vmatmul.mubr.f32.gmra.mxu0 %v3662
        %v5816 = vpop.f32.mrf.mxu0
        %v5817 = vadd.f32 0.0, %v5816
        %v5818 = vpop.f32.mrf.mxu0
        %5819 = vmatprep.mubr.f32.mxu0 0.0
        %5820 = vmatmul.mubr.f32.gmra.mxu0 %v3664
        %v5821 = vpop.f32.mrf.mxu0
        %v5822 = vadd.f32 0.0, %v5821
        %v5823 = vpop.f32.mrf.mxu0
        %5824 = vmatprep.mubr.f32.mxu0 0.0
        %5825 = vmatmul.mubr.f32.gmra.mxu0 %v3666
        %v5826 = vpop.f32.mrf.mxu0
        %v5827 = vadd.f32 0.0, %v5826
        %v5828 = vpop.f32.mrf.mxu0
        %5829 = vmatprep.mubr.f32.mxu0 0.0
        %5830 = vmatmul.mubr.f32.gmra.mxu0 %v3668
        %v5831 = vpop.f32.mrf.mxu0
        %v5832 = vadd.f32 0.0, %v5831
        %v5833 = vpop.f32.mrf.mxu0
        %5834 = vmatprep.mubr.f32.mxu0 0.0
        %5835 = vmatmul.mubr.f32.gmra.mxu0 %v3670
        %v5836 = vpop.f32.mrf.mxu0
        %v5837 = vadd.f32 0.0, %v5836
        %v5838 = vpop.f32.mrf.mxu0
        %5839 = vmatprep.mubr.f32.mxu0 0.0
        %5840 = vmatmul.mubr.f32.gmra.mxu0 %v3672
        %v5841 = vpop.f32.mrf.mxu0
        %v5842 = vadd.f32 0.0, %v5841
        %v5843 = vpop.f32.mrf.mxu0
        %5844 = vmatprep.mubr.f32.mxu0 0.0
        %5845 = vmatmul.mubr.f32.gmra.mxu0 %v3674
        %v5846 = vpop.f32.mrf.mxu0
        %v5847 = vadd.f32 0.0, %v5846
        %v5848 = vpop.f32.mrf.mxu0
        %5849 = vmatprep.mubr.f32.mxu0 0.0
        %5850 = vmatmul.mubr.f32.gmra.mxu0 %v3676
        %v5851 = vpop.f32.mrf.mxu0
        %v5852 = vadd.f32 0.0, %v5851
        %v5853 = vpop.f32.mrf.mxu0
        %5854 = vmatprep.mubr.f32.mxu0 0.0
        %5855 = vmatmul.mubr.f32.gmra.mxu0 %v3678
        %v5856 = vpop.f32.mrf.mxu0
        %v5857 = vadd.f32 0.0, %v5856
        %v5858 = vpop.f32.mrf.mxu0
        %5859 = vmatprep.mubr.f32.mxu0 0.0
        %5860 = vmatmul.mubr.f32.gmra.mxu0 %v3680
        %v5861 = vpop.f32.mrf.mxu0
        %v5862 = vadd.f32 0.0, %v5861
        %v5863 = vpop.f32.mrf.mxu0
        %5864 = vmatprep.mubr.f32.mxu0 0.0
        %5865 = vmatmul.mubr.f32.gmra.mxu0 %v3682
        %v5866 = vpop.f32.mrf.mxu0
        %v5867 = vadd.f32 0.0, %v5866
        %v5868 = vpop.f32.mrf.mxu0
        %5869 = vmatprep.mubr.f32.mxu0 0.0
        %5870 = vmatmul.mubr.f32.gmra.mxu0 %v3684
        %v5871 = vpop.f32.mrf.mxu0
        %v5872 = vadd.f32 0.0, %v5871
        %v5873 = vpop.f32.mrf.mxu0
        %5874 = vmatprep.mubr.f32.mxu0 0.0
        %5875 = vmatmul.mubr.f32.gmra.mxu0 %v3686
        %v5876 = vpop.f32.mrf.mxu0
        %v5877 = vadd.f32 0.0, %v5876
        %v5878 = vpop.f32.mrf.mxu0
        %5879 = vmatprep.mubr.f32.mxu0 0.0
        %5880 = vmatmul.mubr.f32.gmra.mxu0 %v3688
        %v5881 = vpop.f32.mrf.mxu0
        %v5882 = vadd.f32 0.0, %v5881
        %v5883 = vpop.f32.mrf.mxu0
        %5884 = vmatprep.mubr.f32.mxu0 0.0
        %5885 = vmatmul.mubr.f32.gmra.mxu0 %v3690
        %v5886 = vpop.f32.mrf.mxu0
        %v5887 = vadd.f32 0.0, %v5886
        %v5888 = vpop.f32.mrf.mxu0
        %5889 = vmatprep.mubr.f32.mxu0 0.0
        %5890 = vmatmul.mubr.f32.gmra.mxu0 %v3692
        %v5891 = vpop.f32.mrf.mxu0
        %v5892 = vadd.f32 0.0, %v5891
        %v5893 = vpop.f32.mrf.mxu0
        %5894 = vmatprep.mubr.f32.mxu0 0.0
        %5895 = vmatmul.mubr.f32.gmra.mxu0 %v3694
        %v5896 = vpop.f32.mrf.mxu0
        %v5897 = vadd.f32 0.0, %v5896
        %v5898 = vpop.f32.mrf.mxu0
        %5899 = vmatprep.mubr.f32.mxu0 0.0
        %5900 = vmatmul.mubr.f32.gmra.mxu0 %v3696
        %v5901 = vpop.f32.mrf.mxu0
        %v5902 = vadd.f32 0.0, %v5901
        %v5903 = vpop.f32.mrf.mxu0
        %5904 = vmatprep.mubr.f32.mxu0 0.0
        %5905 = vmatmul.mubr.f32.gmra.mxu0 %v3698
        %v5906 = vpop.f32.mrf.mxu0
        %v5907 = vadd.f32 0.0, %v5906
        %v5908 = vpop.f32.mrf.mxu0
        %5909 = vmatprep.mubr.f32.mxu0 0.0
        %5910 = vmatmul.mubr.f32.gmra.mxu0 %v3700
        %v5911 = vpop.f32.mrf.mxu0
        %v5912 = vadd.f32 0.0, %v5911
        %v5913 = vpop.f32.mrf.mxu0
        %5914 = vmatprep.mubr.f32.mxu0 0.0
        %5915 = vmatmul.mubr.f32.gmra.mxu0 %v4898
        %v5916 = vpop.f32.mrf.mxu0
        %v5917 = vadd.f32 0.0, %v5916
        %v5918 = vpop.f32.mrf.mxu0
        %5919 = vmatprep.mubr.f32.mxu0 0.0
        %5920 = vmatmul.mubr.f32.gmra.mxu0 %v4900
        %v5921 = vpop.f32.mrf.mxu0
        %v5922 = vadd.f32 0.0, %v5921
        %v5923 = vpop.f32.mrf.mxu0
        %5924 = vmatprep.mubr.f32.mxu0 0.0
        %5925 = vmatmul.mubr.f32.gmra.mxu0 %v5703
        %v5926 = vpop.f32.mrf.mxu0
        %v5927 = vadd.f32 0.0, %v5926
        %v5928 = vpop.f32.mrf.mxu0
        %5929 = vmatprep.mubr.f32.mxu0 0.0
        %5930 = vmatmul.mubr.f32.gmra.mxu0 %v5705
        %v5931 = vpop.f32.mrf.mxu0
        %v5932 = vadd.f32 0.0, %v5931
        %v5933 = vpop.f32.mrf.mxu0
        %5934 = vdwg.mxu0
        %v5935 = vadd.f32 %v5665, %v5777
        %v5936 = vadd.f32 %v5666, %v5782
        %v5937 = vadd.f32 %v5667, %v5787
        %v5938 = vadd.f32 %v5668, %v5792
        %v5939 = vadd.f32 %v5669, %v5797
        %v5940 = vadd.f32 %v5670, %v5802
        %v5941 = vadd.f32 %v5671, %v5807
        %v5942 = vadd.f32 %v5672, %v5812
        %v5943 = vadd.f32 %v5673, %v5817
        %v5944 = vadd.f32 %v5674, %v5822
        %v5945 = vadd.f32 %v5675, %v5827
        %v5946 = vadd.f32 %v5676, %v5832
        %v5947 = vadd.f32 %v5677, %v5837
        %v5948 = vadd.f32 %v5678, %v5842
        %v5949 = vadd.f32 %v5679, %v5847
        %v5950 = vadd.f32 %v5680, %v5852
        %v5951 = vadd.f32 %v5681, %v5857
        %v5952 = vadd.f32 %v5682, %v5862
        %v5953 = vadd.f32 %v5683, %v5867
        %v5954 = vadd.f32 %v5684, %v5872
        %v5955 = vadd.f32 %v5685, %v5877
        %v5956 = vadd.f32 %v5686, %v5882
        %v5957 = vadd.f32 %v5687, %v5887
        %v5958 = vadd.f32 %v5688, %v5892
        %v5959 = vadd.f32 %v5689, %v5897
        %v5960 = vadd.f32 %v5690, %v5902
        %v5961 = vadd.f32 %v5691, %v5907
        %v5962 = vadd.f32 %v5692, %v5912
        %v5963 = vadd.f32 %v5693, %v5917
        %v5964 = vadd.f32 %v5694, %v5922
        %v5965 = vadd.f32 %v5695, %v5927
        %v5966 = vadd.f32 %v5696, %v5932
        %v5967 = vrot.slane %v3507, 2
        %v5968 = vrot.slane %v3508, 2
        %v5969 = vsel %vm1327, %v5967, %v5968
        %v5970 = vrot.slane %v3509, 2
        %v5971 = vsel %vm1327, %v5968, %v5970
        %v5972 = vsel %vm387, %v5969, 0
        %v5974 = vsel %vm387, %v5971, 0
        %v5977 = vsel %vm806, %v3421, 0
        %5979 = vmatprep.subr.mxu0 0.0
        %5980 = vmatpush1.msra.mxu0 0.0
        %5981 = vmatprep.subr.mxu0 0.0
        %5982 = vmatpush1.msra.mxu0 0.0
        %5983 = vmatprep.subr.mxu0 0.0
        %5984 = vmatpush1.msra.mxu0 0.0
        %5985 = vmatprep.subr.mxu0 0.0
        %5986 = vmatpush1.msra.mxu0 0.0
        %5987 = vmatprep.subr.mxu0 0.0
        %5988 = vmatpush1.msra.mxu0 0.0
        %5989 = vmatprep.subr.mxu0 0.0
        %5990 = vmatpush1.msra.mxu0 0.0
        %5991 = vmatprep.subr.mxu0 0.0
        %5992 = vmatpush1.msra.mxu0 0.0
        %5993 = vmatprep.subr.mxu0 0.0
        %5994 = vmatpush1.msra.mxu0 0.0
        %5995 = vmatprep.subr.mxu0 0.0
        %5996 = vmatpush1.msra.mxu0 0.0
        %5997 = vmatprep.subr.mxu0 0.0
        %5998 = vmatpush1.msra.mxu0 0.0
        %5999 = vmatprep.subr.mxu0 0.0
        %6000 = vmatpush1.msra.mxu0 0.0
        %6001 = vmatprep.subr.mxu0 0.0
        %6002 = vmatpush1.msra.mxu0 0.0
        %6003 = vmatprep.subr.mxu0 0.0
        %6004 = vmatpush1.msra.mxu0 0.0
        %6005 = vmatprep.subr.mxu0 0.0
        %6006 = vmatpush1.msra.mxu0 0.0
        %6007 = vmatprep.subr.mxu0 0.0
        %6008 = vmatpush1.msra.mxu0 0.0
        %6009 = vmatprep.subr.mxu0 0.0
        %6010 = vmatpush1.msra.mxu0 %v5977
        %6011 = vmatprep.subr.mxu0 0.0
        %6012 = vmatpush2.msra.mxu0 0.0
        %6013 = vmatprep.subr.mxu0 0.0
        %6014 = vmatpush2.msra.mxu0 0.0
        %6015 = vmatprep.subr.mxu0 0.0
        %6016 = vmatpush2.msra.mxu0 0.0
        %6017 = vmatprep.subr.mxu0 0.0
        %6018 = vmatpush2.msra.mxu0 0.0
        %6019 = vmatprep.subr.mxu0 0.0
        %6020 = vmatpush2.msra.mxu0 0.0
        %6021 = vmatprep.subr.mxu0 0.0
        %6022 = vmatpush2.msra.mxu0 0.0
        %6023 = vmatprep.subr.mxu0 0.0
        %6024 = vmatpush2.msra.mxu0 0.0
        %6025 = vmatprep.subr.mxu0 0.0
        %6026 = vmatpush2.msra.mxu0 0.0
        %6027 = vmatprep.subr.mxu0 0.0
        %6028 = vmatpush2.msra.mxu0 0.0
        %6029 = vmatprep.subr.mxu0 0.0
        %6030 = vmatpush2.msra.mxu0 0.0
        %6031 = vmatprep.subr.mxu0 0.0
        %6032 = vmatpush2.msra.mxu0 0.0
        %6033 = vmatprep.subr.mxu0 0.0
        %6034 = vmatpush2.msra.mxu0 0.0
        %6035 = vmatprep.subr.mxu0 0.0
        %6036 = vmatpush2.msra.mxu0 0.0
        %6037 = vmatprep.subr.mxu0 0.0
        %6038 = vmatpush2.msra.mxu0 0.0
        %6039 = vmatprep.subr.mxu0 0.0
        %6040 = vmatpush2.msra.mxu0 0.0
        %6041 = vmatprep.subr.mxu0 0.0
        %6042 = vmatpush2.msra.mxu0 0.0
        %6043 = vmatprep.mubr.f32.mxu0 0.0
        %6044 = vmatmul.mubr.f32.gmra.mxu0 %v4310
        %v6045 = vpop.f32.mrf.mxu0
        %v6046 = vadd.f32 0.0, %v6045
        %v6047 = vpop.f32.mrf.mxu0
        %6048 = vmatprep.mubr.f32.mxu0 0.0
        %6049 = vmatmul.mubr.f32.gmra.mxu0 %v4312
        %v6050 = vpop.f32.mrf.mxu0
        %v6051 = vadd.f32 0.0, %v6050
        %v6052 = vpop.f32.mrf.mxu0
        %6053 = vmatprep.mubr.f32.mxu0 0.0
        %6054 = vmatmul.mubr.f32.gmra.mxu0 %v4314
        %v6055 = vpop.f32.mrf.mxu0
        %v6056 = vadd.f32 0.0, %v6055
        %v6057 = vpop.f32.mrf.mxu0
        %6058 = vmatprep.mubr.f32.mxu0 0.0
        %6059 = vmatmul.mubr.f32.gmra.mxu0 %v4316
        %v6060 = vpop.f32.mrf.mxu0
        %v6061 = vadd.f32 0.0, %v6060
        %v6062 = vpop.f32.mrf.mxu0
        %6063 = vmatprep.mubr.f32.mxu0 0.0
        %6064 = vmatmul.mubr.f32.gmra.mxu0 %v4318
        %v6065 = vpop.f32.mrf.mxu0
        %v6066 = vadd.f32 0.0, %v6065
        %v6067 = vpop.f32.mrf.mxu0
        %6068 = vmatprep.mubr.f32.mxu0 0.0
        %6069 = vmatmul.mubr.f32.gmra.mxu0 %v4320
        %v6070 = vpop.f32.mrf.mxu0
        %v6071 = vadd.f32 0.0, %v6070
        %v6072 = vpop.f32.mrf.mxu0
        %6073 = vmatprep.mubr.f32.mxu0 0.0
        %6074 = vmatmul.mubr.f32.gmra.mxu0 %v4322
        %v6075 = vpop.f32.mrf.mxu0
        %v6076 = vadd.f32 0.0, %v6075
        %v6077 = vpop.f32.mrf.mxu0
        %6078 = vmatprep.mubr.f32.mxu0 0.0
        %6079 = vmatmul.mubr.f32.gmra.mxu0 %v4324
        %v6080 = vpop.f32.mrf.mxu0
        %v6081 = vadd.f32 0.0, %v6080
        %v6082 = vpop.f32.mrf.mxu0
        %6083 = vmatprep.mubr.f32.mxu0 0.0
        %6084 = vmatmul.mubr.f32.gmra.mxu0 %v4326
        %v6085 = vpop.f32.mrf.mxu0
        %v6086 = vadd.f32 0.0, %v6085
        %v6087 = vpop.f32.mrf.mxu0
        %6088 = vmatprep.mubr.f32.mxu0 0.0
        %6089 = vmatmul.mubr.f32.gmra.mxu0 %v4328
        %v6090 = vpop.f32.mrf.mxu0
        %v6091 = vadd.f32 0.0, %v6090
        %v6092 = vpop.f32.mrf.mxu0
        %6093 = vmatprep.mubr.f32.mxu0 0.0
        %6094 = vmatmul.mubr.f32.gmra.mxu0 %v4330
        %v6095 = vpop.f32.mrf.mxu0
        %v6096 = vadd.f32 0.0, %v6095
        %v6097 = vpop.f32.mrf.mxu0
        %6098 = vmatprep.mubr.f32.mxu0 0.0
        %6099 = vmatmul.mubr.f32.gmra.mxu0 %v4332
        %v6100 = vpop.f32.mrf.mxu0
        %v6101 = vadd.f32 0.0, %v6100
        %v6102 = vpop.f32.mrf.mxu0
        %6103 = vmatprep.mubr.f32.mxu0 0.0
        %6104 = vmatmul.mubr.f32.gmra.mxu0 %v4334
        %v6105 = vpop.f32.mrf.mxu0
        %v6106 = vadd.f32 0.0, %v6105
        %v6107 = vpop.f32.mrf.mxu0
        %6108 = vmatprep.mubr.f32.mxu0 0.0
        %6109 = vmatmul.mubr.f32.gmra.mxu0 %v4336
        %v6110 = vpop.f32.mrf.mxu0
        %v6111 = vadd.f32 0.0, %v6110
        %v6112 = vpop.f32.mrf.mxu0
        %6113 = vmatprep.mubr.f32.mxu0 0.0
        %6114 = vmatmul.mubr.f32.gmra.mxu0 %v4338
        %v6115 = vpop.f32.mrf.mxu0
        %v6116 = vadd.f32 0.0, %v6115
        %v6117 = vpop.f32.mrf.mxu0
        %6118 = vmatprep.mubr.f32.mxu0 0.0
        %6119 = vmatmul.mubr.f32.gmra.mxu0 %v4340
        %v6120 = vpop.f32.mrf.mxu0
        %v6121 = vadd.f32 0.0, %v6120
        %v6122 = vpop.f32.mrf.mxu0
        %6123 = vmatprep.mubr.f32.mxu0 0.0
        %6124 = vmatmul.mubr.f32.gmra.mxu0 %v4342
        %v6125 = vpop.f32.mrf.mxu0
        %v6126 = vadd.f32 0.0, %v6125
        %v6127 = vpop.f32.mrf.mxu0
        %6128 = vmatprep.mubr.f32.mxu0 0.0
        %6129 = vmatmul.mubr.f32.gmra.mxu0 %v4344
        %v6130 = vpop.f32.mrf.mxu0
        %v6131 = vadd.f32 0.0, %v6130
        %v6132 = vpop.f32.mrf.mxu0
        %6133 = vmatprep.mubr.f32.mxu0 0.0
        %6134 = vmatmul.mubr.f32.gmra.mxu0 %v4346
        %v6135 = vpop.f32.mrf.mxu0
        %v6136 = vadd.f32 0.0, %v6135
        %v6137 = vpop.f32.mrf.mxu0
        %6138 = vmatprep.mubr.f32.mxu0 0.0
        %6139 = vmatmul.mubr.f32.gmra.mxu0 %v4348
        %v6140 = vpop.f32.mrf.mxu0
        %v6141 = vadd.f32 0.0, %v6140
        %v6142 = vpop.f32.mrf.mxu0
        %6143 = vmatprep.mubr.f32.mxu0 0.0
        %6144 = vmatmul.mubr.f32.gmra.mxu0 %v4350
        %v6145 = vpop.f32.mrf.mxu0
        %v6146 = vadd.f32 0.0, %v6145
        %v6147 = vpop.f32.mrf.mxu0
        %6148 = vmatprep.mubr.f32.mxu0 0.0
        %6149 = vmatmul.mubr.f32.gmra.mxu0 %v4352
        %v6150 = vpop.f32.mrf.mxu0
        %v6151 = vadd.f32 0.0, %v6150
        %v6152 = vpop.f32.mrf.mxu0
        %6153 = vmatprep.mubr.f32.mxu0 0.0
        %6154 = vmatmul.mubr.f32.gmra.mxu0 %v4354
        %v6155 = vpop.f32.mrf.mxu0
        %v6156 = vadd.f32 0.0, %v6155
        %v6157 = vpop.f32.mrf.mxu0
        %6158 = vmatprep.mubr.f32.mxu0 0.0
        %6159 = vmatmul.mubr.f32.gmra.mxu0 %v4356
        %v6160 = vpop.f32.mrf.mxu0
        %v6161 = vadd.f32 0.0, %v6160
        %v6162 = vpop.f32.mrf.mxu0
        %6163 = vmatprep.mubr.f32.mxu0 0.0
        %6164 = vmatmul.mubr.f32.gmra.mxu0 %v4358
        %v6165 = vpop.f32.mrf.mxu0
        %v6166 = vadd.f32 0.0, %v6165
        %v6167 = vpop.f32.mrf.mxu0
        %6168 = vmatprep.mubr.f32.mxu0 0.0
        %6169 = vmatmul.mubr.f32.gmra.mxu0 %v4360
        %v6170 = vpop.f32.mrf.mxu0
        %v6171 = vadd.f32 0.0, %v6170
        %v6172 = vpop.f32.mrf.mxu0
        %6173 = vmatprep.mubr.f32.mxu0 0.0
        %6174 = vmatmul.mubr.f32.gmra.mxu0 %v4362
        %v6175 = vpop.f32.mrf.mxu0
        %v6176 = vadd.f32 0.0, %v6175
        %v6177 = vpop.f32.mrf.mxu0
        %6178 = vmatprep.mubr.f32.mxu0 0.0
        %6179 = vmatmul.mubr.f32.gmra.mxu0 %v4364
        %v6180 = vpop.f32.mrf.mxu0
        %v6181 = vadd.f32 0.0, %v6180
        %v6182 = vpop.f32.mrf.mxu0
        %6183 = vmatprep.mubr.f32.mxu0 0.0
        %6184 = vmatmul.mubr.f32.gmra.mxu0 %v5167
        %v6185 = vpop.f32.mrf.mxu0
        %v6186 = vadd.f32 0.0, %v6185
        %v6187 = vpop.f32.mrf.mxu0
        %6188 = vmatprep.mubr.f32.mxu0 0.0
        %6189 = vmatmul.mubr.f32.gmra.mxu0 %v5169
        %v6190 = vpop.f32.mrf.mxu0
        %v6191 = vadd.f32 0.0, %v6190
        %v6192 = vpop.f32.mrf.mxu0
        %6193 = vmatprep.mubr.f32.mxu0 0.0
        %6194 = vmatmul.mubr.f32.gmra.mxu0 %v5972
        %v6195 = vpop.f32.mrf.mxu0
        %v6196 = vadd.f32 0.0, %v6195
        %v6197 = vpop.f32.mrf.mxu0
        %6198 = vmatprep.mubr.f32.mxu0 0.0
        %6199 = vmatmul.mubr.f32.gmra.mxu0 %v5974
        %v6200 = vpop.f32.mrf.mxu0
        %v6201 = vadd.f32 0.0, %v6200
        %v6202 = vpop.f32.mrf.mxu0
        %6203 = vdwg.mxu0
        %v6204 = vadd.f32 %v5935, %v6046
        %v6205 = vadd.f32 %v5936, %v6051
        %v6206 = vadd.f32 %v5937, %v6056
        %v6207 = vadd.f32 %v5938, %v6061
        %v6208 = vadd.f32 %v5939, %v6066
        %v6209 = vadd.f32 %v5940, %v6071
        %v6210 = vadd.f32 %v5941, %v6076
        %v6211 = vadd.f32 %v5942, %v6081
        %v6212 = vadd.f32 %v5943, %v6086
        %v6213 = vadd.f32 %v5944, %v6091
        %v6214 = vadd.f32 %v5945, %v6096
        %v6215 = vadd.f32 %v5946, %v6101
        %v6216 = vadd.f32 %v5947, %v6106
        %v6217 = vadd.f32 %v5948, %v6111
        %v6218 = vadd.f32 %v5949, %v6116
        %v6219 = vadd.f32 %v5950, %v6121
        %v6220 = vadd.f32 %v5951, %v6126
        %v6221 = vadd.f32 %v5952, %v6131
        %v6222 = vadd.f32 %v5953, %v6136
        %v6223 = vadd.f32 %v5954, %v6141
        %v6224 = vadd.f32 %v5955, %v6146
        %v6225 = vadd.f32 %v5956, %v6151
        %v6226 = vadd.f32 %v5957, %v6156
        %v6227 = vadd.f32 %v5958, %v6161
        %v6228 = vadd.f32 %v5959, %v6166
        %v6229 = vadd.f32 %v5960, %v6171
        %v6230 = vadd.f32 %v5961, %v6176
        %v6231 = vadd.f32 %v5962, %v6181
        %v6232 = vadd.f32 %v5963, %v6186
        %v6233 = vadd.f32 %v5964, %v6191
        %v6234 = vadd.f32 %v5965, %v6196
        %v6235 = vadd.f32 %v5966, %v6201
        %v6237 = vlaneseq
        %v6238 = vshrl.u32 %v6237, 7
        %v6239 = vsub.s32 0, %v6238
        %v6240 = vrot.slane %v3423, %v6239
        %v6242 = vadd.f32 %v6204, %v6240
        %v6243 = vadd.f32 %v6205, %v6240
        %v6244 = vadd.f32 %v6206, %v6240
        %v6245 = vadd.f32 %v6207, %v6240
        %v6246 = vadd.f32 %v6208, %v6240
        %v6247 = vadd.f32 %v6209, %v6240
        %v6248 = vadd.f32 %v6210, %v6240
        %v6249 = vadd.f32 %v6211, %v6240
        %v6250 = vadd.f32 %v6212, %v6240
        %v6251 = vadd.f32 %v6213, %v6240
        %v6252 = vadd.f32 %v6214, %v6240
        %v6253 = vadd.f32 %v6215, %v6240
        %v6254 = vadd.f32 %v6216, %v6240
        %v6255 = vadd.f32 %v6217, %v6240
        %v6256 = vadd.f32 %v6218, %v6240
        %v6257 = vadd.f32 %v6219, %v6240
        %v6258 = vadd.f32 %v6220, %v6240
        %v6259 = vadd.f32 %v6221, %v6240
        %v6260 = vadd.f32 %v6222, %v6240
        %v6261 = vadd.f32 %v6223, %v6240
        %v6262 = vadd.f32 %v6224, %v6240
        %v6263 = vadd.f32 %v6225, %v6240
        %v6264 = vadd.f32 %v6226, %v6240
        %v6265 = vadd.f32 %v6227, %v6240
        %v6266 = vadd.f32 %v6228, %v6240
        %v6267 = vadd.f32 %v6229, %v6240
        %v6268 = vadd.f32 %v6230, %v6240
        %v6269 = vadd.f32 %v6231, %v6240
        %v6270 = vadd.f32 %v6232, %v6240
        %v6271 = vadd.f32 %v6233, %v6240
        %v6272 = vadd.f32 %v6234, %v6240
        %v6273 = vadd.f32 %v6235, %v6240
        %v6274 = vsel %vm387, %v6242, 0.0
        %v6275 = vsel %vm387, %v6243, 0.0
        %v6276 = vadd.f32 %v6274, %v6275
        %v6277 = vsel %vm387, %v6244, 0.0
        %v6278 = vadd.f32 %v6276, %v6277
        %v6279 = vsel %vm387, %v6245, 0.0
        %v6280 = vadd.f32 %v6278, %v6279
        %v6281 = vsel %vm387, %v6246, 0.0
        %v6282 = vadd.f32 %v6280, %v6281
        %v6283 = vsel %vm387, %v6247, 0.0
        %v6284 = vadd.f32 %v6282, %v6283
        %v6285 = vsel %vm387, %v6248, 0.0
        %v6286 = vadd.f32 %v6284, %v6285
        %v6287 = vsel %vm387, %v6249, 0.0
        %v6288 = vadd.f32 %v6286, %v6287
        %v6289 = vsel %vm387, %v6250, 0.0
        %v6290 = vadd.f32 %v6288, %v6289
        %v6291 = vsel %vm387, %v6251, 0.0
        %v6292 = vadd.f32 %v6290, %v6291
        %v6293 = vsel %vm387, %v6252, 0.0
        %v6294 = vadd.f32 %v6292, %v6293
        %v6295 = vsel %vm387, %v6253, 0.0
        %v6296 = vadd.f32 %v6294, %v6295
        %v6297 = vsel %vm387, %v6254, 0.0
        %v6298 = vadd.f32 %v6296, %v6297
        %v6299 = vsel %vm387, %v6255, 0.0
        %v6300 = vadd.f32 %v6298, %v6299
        %v6301 = vsel %vm387, %v6256, 0.0
        %v6302 = vadd.f32 %v6300, %v6301
        %v6303 = vsel %vm387, %v6257, 0.0
        %v6304 = vadd.f32 %v6302, %v6303
        %v6305 = vsel %vm387, %v6258, 0.0
        %v6306 = vadd.f32 %v6304, %v6305
        %v6307 = vsel %vm387, %v6259, 0.0
        %v6308 = vadd.f32 %v6306, %v6307
        %v6309 = vsel %vm387, %v6260, 0.0
        %v6310 = vadd.f32 %v6308, %v6309
        %v6311 = vsel %vm387, %v6261, 0.0
        %v6312 = vadd.f32 %v6310, %v6311
        %v6313 = vsel %vm387, %v6262, 0.0
        %v6314 = vadd.f32 %v6312, %v6313
        %v6315 = vsel %vm387, %v6263, 0.0
        %v6316 = vadd.f32 %v6314, %v6315
        %v6317 = vsel %vm387, %v6264, 0.0
        %v6318 = vadd.f32 %v6316, %v6317
        %v6319 = vsel %vm387, %v6265, 0.0
        %v6320 = vadd.f32 %v6318, %v6319
        %v6321 = vsel %vm387, %v6266, 0.0
        %v6322 = vadd.f32 %v6320, %v6321
        %v6323 = vsel %vm387, %v6267, 0.0
        %v6324 = vadd.f32 %v6322, %v6323
        %v6325 = vsel %vm387, %v6268, 0.0
        %v6326 = vadd.f32 %v6324, %v6325
        %v6327 = vsel %vm387, %v6269, 0.0
        %v6328 = vadd.f32 %v6326, %v6327
        %v6329 = vsel %vm387, %v6270, 0.0
        %v6330 = vadd.f32 %v6328, %v6329
        %v6331 = vsel %vm387, %v6271, 0.0
        %v6332 = vadd.f32 %v6330, %v6331
        %v6333 = vsel %vm387, %v6272, 0.0
        %v6334 = vadd.f32 %v6332, %v6333
        %v6335 = vsel %vm387, %v6273, 0.0
        %v6336 = vadd.f32 %v6334, %v6335
        %v6337 = vrot.slane %v6336, 4
        %v6338 = vadd.f32 %v6336, %v6337
        %v6339 = vrot.slane %v6338, 2
        %v6340 = vadd.f32 %v6338, %v6339
        %v6341 = vrot.slane %v6340, 1
        %v6342 = vadd.f32 %v6340, %v6341
        %v6343 = vrcp.pop 256.0
        %v6344 = vmul.f32 %v6342, %v6343
        %s6345 = smul.u32 %s476, 4
        %s6346 = scalar_lea.vmem %s5, %s6345
        %v6347 = vld [vmem:[%s6346] sm:$0xf]
        %s6348 = scalar_lea.vmem %s6, %s476
        %v6349 = vld [vmem:[%s6348] sm:$0x1]
        %v6351 = vsel %vm387, %v6344, 0
        %v6354 = vsel %vm806, %v6347, 0
        %6356 = vmatprep.subr.mxu0 0.0
        %6357 = vmatpush1.msra.mxu0 0.0
        %6358 = vmatprep.subr.mxu0 0.0
        %6359 = vmatpush1.msra.mxu0 0.0
        %6360 = vmatprep.subr.mxu0 0.0
        %6361 = vmatpush1.msra.mxu0 0.0
        %6362 = vmatprep.subr.mxu0 0.0
        %6363 = vmatpush1.msra.mxu0 0.0
        %6364 = vmatprep.subr.mxu0 0.0
        %6365 = vmatpush1.msra.mxu0 0.0
        %6366 = vmatprep.subr.mxu0 0.0
        %6367 = vmatpush1.msra.mxu0 0.0
        %6368 = vmatprep.subr.mxu0 0.0
        %6369 = vmatpush1.msra.mxu0 0.0
        %6370 = vmatprep.subr.mxu0 0.0
        %6371 = vmatpush1.msra.mxu0 0.0
        %6372 = vmatprep.subr.mxu0 0.0
        %6373 = vmatpush1.msra.mxu0 0.0
        %6374 = vmatprep.subr.mxu0 0.0
        %6375 = vmatpush1.msra.mxu0 0.0
        %6376 = vmatprep.subr.mxu0 0.0
        %6377 = vmatpush1.msra.mxu0 0.0
        %6378 = vmatprep.subr.mxu0 0.0
        %6379 = vmatpush1.msra.mxu0 0.0
        %6380 = vmatprep.subr.mxu0 0.0
        %6381 = vmatpush1.msra.mxu0 0.0
        %6382 = vmatprep.subr.mxu0 0.0
        %6383 = vmatpush1.msra.mxu0 0.0
        %6384 = vmatprep.subr.mxu0 0.0
        %6385 = vmatpush1.msra.mxu0 0.0
        %6386 = vmatprep.subr.mxu0 0.0
        %6387 = vmatpush1.msra.mxu0 %v6354
        %6388 = vmatprep.subr.mxu0 0.0
        %6389 = vmatpush2.msra.mxu0 0.0
        %6390 = vmatprep.subr.mxu0 0.0
        %6391 = vmatpush2.msra.mxu0 0.0
        %6392 = vmatprep.subr.mxu0 0.0
        %6393 = vmatpush2.msra.mxu0 0.0
        %6394 = vmatprep.subr.mxu0 0.0
        %6395 = vmatpush2.msra.mxu0 0.0
        %6396 = vmatprep.subr.mxu0 0.0
        %6397 = vmatpush2.msra.mxu0 0.0
        %6398 = vmatprep.subr.mxu0 0.0
        %6399 = vmatpush2.msra.mxu0 0.0
        %6400 = vmatprep.subr.mxu0 0.0
        %6401 = vmatpush2.msra.mxu0 0.0
        %6402 = vmatprep.subr.mxu0 0.0
        %6403 = vmatpush2.msra.mxu0 0.0
        %6404 = vmatprep.subr.mxu0 0.0
        %6405 = vmatpush2.msra.mxu0 0.0
        %6406 = vmatprep.subr.mxu0 0.0
        %6407 = vmatpush2.msra.mxu0 0.0
        %6408 = vmatprep.subr.mxu0 0.0
        %6409 = vmatpush2.msra.mxu0 0.0
        %6410 = vmatprep.subr.mxu0 0.0
        %6411 = vmatpush2.msra.mxu0 0.0
        %6412 = vmatprep.subr.mxu0 0.0
        %6413 = vmatpush2.msra.mxu0 0.0
        %6414 = vmatprep.subr.mxu0 0.0
        %6415 = vmatpush2.msra.mxu0 0.0
        %6416 = vmatprep.subr.mxu0 0.0
        %6417 = vmatpush2.msra.mxu0 0.0
        %6418 = vmatprep.subr.mxu0 0.0
        %6419 = vmatpush2.msra.mxu0 0.0
        %6420 = vmatprep.mubr.f32.mxu0 0.0
        %6421 = vmatmul.mubr.f32.gmra.mxu0 %v6351
        %v6422 = vpop.f32.mrf.mxu0
        %v6423 = vadd.f32 %v6349, %v6422
        %v6424 = vpop.f32.mrf.mxu0
        %6425 = vdwg.mxu0
        %v6426 = vxor.u32 %v6423, 2147483648
        %v6427 = vmul.f32 %v6426, 1.442695
        %v6428 = vpow.pop %v6427
        %v6429 = vadd.f32 %v6428, 1.0
        %v6430 = vrcp.pop %v6429
        %v6431 = vmul.f32 1.0, %v6430
        %s6432 = smul.u32 %s476, 2
        %s6433 = scalar_lea.vmem %s7, %s6432
        %v6434 = vld [vmem:[%s6433] sm:$0x3]
        %s6435 = scalar_lea.vmem %s8, %s476
        %v6436 = vld [vmem:[%s6435] sm:$0x1]
        %vm6437 = vcmask 15360
        %v6439 = vsel %vm6437, %v6431, 0
        %vm6441 = vcmask 1041408
        %v6443 = vsel %vm6441, %v6434, 0
        %6445 = vmatprep.subr.mxu0 0.0
        %6446 = vmatpush1.msra.mxu0 0.0
        %6447 = vmatprep.subr.mxu0 0.0
        %6448 = vmatpush1.msra.mxu0 0.0
        %6449 = vmatprep.subr.mxu0 0.0
        %6450 = vmatpush1.msra.mxu0 0.0
        %6451 = vmatprep.subr.mxu0 0.0
        %6452 = vmatpush1.msra.mxu0 0.0
        %6453 = vmatprep.subr.mxu0 0.0
        %6454 = vmatpush1.msra.mxu0 0.0
        %6455 = vmatprep.subr.mxu0 0.0
        %6456 = vmatpush1.msra.mxu0 0.0
        %6457 = vmatprep.subr.mxu0 0.0
        %6458 = vmatpush1.msra.mxu0 0.0
        %6459 = vmatprep.subr.mxu0 0.0
        %6460 = vmatpush1.msra.mxu0 0.0
        %6461 = vmatprep.subr.mxu0 0.0
        %6462 = vmatpush1.msra.mxu0 0.0
        %6463 = vmatprep.subr.mxu0 0.0
        %6464 = vmatpush1.msra.mxu0 0.0
        %6465 = vmatprep.subr.mxu0 0.0
        %6466 = vmatpush1.msra.mxu0 0.0
        %6467 = vmatprep.subr.mxu0 0.0
        %6468 = vmatpush1.msra.mxu0 0.0
        %6469 = vmatprep.subr.mxu0 0.0
        %6470 = vmatpush1.msra.mxu0 0.0
        %6471 = vmatprep.subr.mxu0 0.0
        %6472 = vmatpush1.msra.mxu0 0.0
        %6473 = vmatprep.subr.mxu0 0.0
        %6474 = vmatpush1.msra.mxu0 0.0
        %6475 = vmatprep.subr.mxu0 0.0
        %6476 = vmatpush1.msra.mxu0 %v6443
        %6477 = vmatprep.subr.mxu0 0.0
        %6478 = vmatpush2.msra.mxu0 0.0
        %6479 = vmatprep.subr.mxu0 0.0
        %6480 = vmatpush2.msra.mxu0 0.0
        %6481 = vmatprep.subr.mxu0 0.0
        %6482 = vmatpush2.msra.mxu0 0.0
        %6483 = vmatprep.subr.mxu0 0.0
        %6484 = vmatpush2.msra.mxu0 0.0
        %6485 = vmatprep.subr.mxu0 0.0
        %6486 = vmatpush2.msra.mxu0 0.0
        %6487 = vmatprep.subr.mxu0 0.0
        %6488 = vmatpush2.msra.mxu0 0.0
        %6489 = vmatprep.subr.mxu0 0.0
        %6490 = vmatpush2.msra.mxu0 0.0
        %6491 = vmatprep.subr.mxu0 0.0
        %6492 = vmatpush2.msra.mxu0 0.0
        %6493 = vmatprep.subr.mxu0 0.0
        %6494 = vmatpush2.msra.mxu0 0.0
        %6495 = vmatprep.subr.mxu0 0.0
        %6496 = vmatpush2.msra.mxu0 0.0
        %6497 = vmatprep.subr.mxu0 0.0
        %6498 = vmatpush2.msra.mxu0 0.0
        %6499 = vmatprep.subr.mxu0 0.0
        %6500 = vmatpush2.msra.mxu0 0.0
        %6501 = vmatprep.subr.mxu0 0.0
        %6502 = vmatpush2.msra.mxu0 0.0
        %6503 = vmatprep.subr.mxu0 0.0
        %6504 = vmatpush2.msra.mxu0 0.0
        %6505 = vmatprep.subr.mxu0 0.0
        %6506 = vmatpush2.msra.mxu0 0.0
        %6507 = vmatprep.subr.mxu0 0.0
        %6508 = vmatpush2.msra.mxu0 0.0
        %6509 = vmatprep.mubr.f32.mxu0 0.0
        %6510 = vmatmul.mubr.f32.gmra.mxu0 %v6439
        %v6511 = vpop.f32.mrf.mxu0
        %v6512 = vadd.f32 %v6436, %v6511
        %v6513 = vpop.f32.mrf.mxu0
        %6514 = vdwg.mxu0
        %v6515 = vmax.f32 %v6512, 0.0
        %v6516 = vlaneseq
        %v6517 = vshrl.u32 %v6516, 7
        %v6518 = vsub.s32 0, %v6517
        %v6519 = vrot.slane %v6515, %v6518
        %v6520 = vmul.f32 %v6519, %v6242
        %v6521 = vmul.f32 %v6519, %v6243
        %v6522 = vmul.f32 %v6519, %v6244
        %v6523 = vmul.f32 %v6519, %v6245
        %v6524 = vmul.f32 %v6519, %v6246
        %v6525 = vmul.f32 %v6519, %v6247
        %v6526 = vmul.f32 %v6519, %v6248
        %v6527 = vmul.f32 %v6519, %v6249
        %v6528 = vmul.f32 %v6519, %v6250
        %v6529 = vmul.f32 %v6519, %v6251
        %v6530 = vmul.f32 %v6519, %v6252
        %v6531 = vmul.f32 %v6519, %v6253
        %v6532 = vmul.f32 %v6519, %v6254
        %v6533 = vmul.f32 %v6519, %v6255
        %v6534 = vmul.f32 %v6519, %v6256
        %v6535 = vmul.f32 %v6519, %v6257
        %v6536 = vmul.f32 %v6519, %v6258
        %v6537 = vmul.f32 %v6519, %v6259
        %v6538 = vmul.f32 %v6519, %v6260
        %v6539 = vmul.f32 %v6519, %v6261
        %v6540 = vmul.f32 %v6519, %v6262
        %v6541 = vmul.f32 %v6519, %v6263
        %v6542 = vmul.f32 %v6519, %v6264
        %v6543 = vmul.f32 %v6519, %v6265
        %v6544 = vmul.f32 %v6519, %v6266
        %v6545 = vmul.f32 %v6519, %v6267
        %v6546 = vmul.f32 %v6519, %v6268
        %v6547 = vmul.f32 %v6519, %v6269
        %v6548 = vmul.f32 %v6519, %v6270
        %v6549 = vmul.f32 %v6519, %v6271
        %v6550 = vmul.f32 %v6519, %v6272
        %v6551 = vmul.f32 %v6519, %v6273
      $region69: #{residual_group_forward.1} parent=63 // loop_footer
        %s480 = sadd.s32 1, %s476
      $region70: #{residual_group_forward.1} parent=63 // loop_footer_branch
        %475 = sbr.rel target = $region66
      $region71: #{residual_group_forward.1} parent=63 // loop_exit
        _
      %v6552 = vld [vmem:[%s9] sm:$0xf]
      %v6553 = vld [vmem:[%s9 + $0x4] sm:$0xf]
      %v6554 = vld [vmem:[%s9 + $0x8] sm:$0xf]
      %v6555 = vld [vmem:[%s9 + $0xc] sm:$0xf]
      %v6556 = vld [vmem:[%s9 + $0x10] sm:$0xf]
      %v6557 = vld [vmem:[%s9 + $0x14] sm:$0xf]
      %v6558 = vld [vmem:[%s9 + $0x18] sm:$0xf]
      %v6559 = vld [vmem:[%s9 + $0x1c] sm:$0xf]
      %v6560 = vld [vmem:[%s9 + $0x20] sm:$0xf]
      %v6561 = vld [vmem:[%s10] sm:$0x1]
      %s6562 = scalar_lea.vmem [#allocation2], 24
      %6563 = vst.msk [vmem:[%s6562 + $0x1] sm:$0xff] %vm387, %v481
      %6564 = vst.msk [vmem:[%s6562 + $0x9] sm:$0xff] %vm387, %v482
      %6565 = vst.msk [vmem:[%s6562 + $0x19] sm:$0xff] %vm387, %v483
      %6566 = vst.msk [vmem:[%s6562 + $0x21] sm:$0xff] %vm387, %v484
      %6567 = vst.msk [vmem:[%s6562 + $0x31] sm:$0xff] %vm387, %v485
      %6568 = vst.msk [vmem:[%s6562 + $0x39] sm:$0xff] %vm387, %v486
      %6569 = vst.msk [vmem:[%s6562 + $0x49] sm:$0xff] %vm387, %v487
      %6570 = vst.msk [vmem:[%s6562 + $0x51] sm:$0xff] %vm387, %v488
      %6571 = vst.msk [vmem:[%s6562 + $0x61] sm:$0xff] %vm387, %v489
      %6572 = vst.msk [vmem:[%s6562 + $0x69] sm:$0xff] %vm387, %v490
      %6573 = vst.msk [vmem:[%s6562 + $0x79] sm:$0xff] %vm387, %v491
      %6574 = vst.msk [vmem:[%s6562 + $0x81] sm:$0xff] %vm387, %v492
      %6575 = vst.msk [vmem:[%s6562 + $0x91] sm:$0xff] %vm387, %v493
      %6576 = vst.msk [vmem:[%s6562 + $0x99] sm:$0xff] %vm387, %v494
      %6577 = vst.msk [vmem:[%s6562 + $0xa9] sm:$0xff] %vm387, %v495
      %6578 = vst.msk [vmem:[%s6562 + $0xb1] sm:$0xff] %vm387, %v496
      %6579 = vst.msk [vmem:[%s6562 + $0xc1] sm:$0xff] %vm387, %v497
      %6580 = vst.msk [vmem:[%s6562 + $0xc9] sm:$0xff] %vm387, %v498
      %6581 = vst.msk [vmem:[%s6562 + $0xd9] sm:$0xff] %vm387, %v499
      %6582 = vst.msk [vmem:[%s6562 + $0xe1] sm:$0xff] %vm387, %v500
      %6583 = vst.msk [vmem:[%s6562 + $0xf1] sm:$0xff] %vm387, %v501
      %6584 = vst.msk [vmem:[%s6562 + $0xf9] sm:$0xff] %vm387, %v502
      %6585 = vst.msk [vmem:[%s6562 + $0x109] sm:$0xff] %vm387, %v503
      %6586 = vst.msk [vmem:[%s6562 + $0x111] sm:$0xff] %vm387, %v504
      %6587 = vst.msk [vmem:[%s6562 + $0x121] sm:$0xff] %vm387, %v505
      %6588 = vst.msk [vmem:[%s6562 + $0x129] sm:$0xff] %vm387, %v506
      %6589 = vst.msk [vmem:[%s6562 + $0x139] sm:$0xff] %vm387, %v507
      %6590 = vst.msk [vmem:[%s6562 + $0x141] sm:$0xff] %vm387, %v508
      %6591 = vst.msk [vmem:[%s6562 + $0x151] sm:$0xff] %vm387, %v509
      %6592 = vst.msk [vmem:[%s6562 + $0x159] sm:$0xff] %vm387, %v510
      %6593 = vst.msk [vmem:[%s6562 + $0x169] sm:$0xff] %vm387, %v511
      %6594 = vst.msk [vmem:[%s6562 + $0x171] sm:$0xff] %vm387, %v512
      %v6595 = vld [vmem:[#allocation2] sm:$0xff]
      %v6596 = vld [vmem:[#allocation2 + $0x8] sm:$0xff]
      %v6597 = vld [vmem:[#allocation2 + $0x10] sm:$0x3]
      %v6598 = vld [vmem:[#allocation2 + $0x18] sm:$0xff]
      %v6599 = vld [vmem:[#allocation2 + $0x20] sm:$0xff]
      %v6600 = vld [vmem:[#allocation2 + $0x28] sm:$0x3]
      %v6601 = vld [vmem:[#allocation2 + $0x30] sm:$0xff]
      %v6602 = vld [vmem:[#allocation2 + $0x38] sm:$0xff]
      %v6603 = vld [vmem:[#allocation2 + $0x40] sm:$0x3]
      %v6604 = vld [vmem:[#allocation2 + $0x48] sm:$0xff]
      %v6605 = vld [vmem:[#allocation2 + $0x50] sm:$0xff]
      %v6606 = vld [vmem:[#allocation2 + $0x58] sm:$0x3]
      %v6607 = vld [vmem:[#allocation2 + $0x60] sm:$0xff]
      %v6608 = vld [vmem:[#allocation2 + $0x68] sm:$0xff]
      %v6609 = vld [vmem:[#allocation2 + $0x70] sm:$0x3]
      %v6610 = vld [vmem:[#allocation2 + $0x78] sm:$0xff]
      %v6611 = vld [vmem:[#allocation2 + $0x80] sm:$0xff]
      %v6612 = vld [vmem:[#allocation2 + $0x88] sm:$0x3]
      %v6613 = vld [vmem:[#allocation2 + $0x90] sm:$0xff]
      %v6614 = vld [vmem:[#allocation2 + $0x98] sm:$0xff]
      %v6615 = vld [vmem:[#allocation2 + $0xa0] sm:$0x3]
      %v6616 = vld [vmem:[#allocation2 + $0xa8] sm:$0xff]
      %v6617 = vld [vmem:[#allocation2 + $0xb0] sm:$0xff]
      %v6618 = vld [vmem:[#allocation2 + $0xb8] sm:$0x3]
      %v6619 = vld [vmem:[#allocation2 + $0xc0] sm:$0xff]
      %v6620 = vld [vmem:[#allocation2 + $0xc8] sm:$0xff]
      %v6621 = vld [vmem:[#allocation2 + $0xd0] sm:$0x3]
      %v6622 = vld [vmem:[#allocation2 + $0xd8] sm:$0xff]
      %v6623 = vld [vmem:[#allocation2 + $0xe0] sm:$0xff]
      %v6624 = vld [vmem:[#allocation2 + $0xe8] sm:$0x3]
      %v6625 = vld [vmem:[#allocation2 + $0xf0] sm:$0xff]
      %v6626 = vld [vmem:[#allocation2 + $0xf8] sm:$0xff]
      %v6627 = vld [vmem:[#allocation2 + $0x100] sm:$0x3]
      %v6628 = vld [vmem:[#allocation2 + $0x108] sm:$0xff]
      %v6629 = vld [vmem:[#allocation2 + $0x110] sm:$0xff]
      %v6630 = vld [vmem:[#allocation2 + $0x118] sm:$0x3]
      %v6631 = vld [vmem:[#allocation2 + $0x120] sm:$0xff]
      %v6632 = vld [vmem:[#allocation2 + $0x128] sm:$0xff]
      %v6633 = vld [vmem:[#allocation2 + $0x130] sm:$0x3]
      %v6634 = vld [vmem:[#allocation2 + $0x138] sm:$0xff]
      %v6635 = vld [vmem:[#allocation2 + $0x140] sm:$0xff]
      %v6636 = vld [vmem:[#allocation2 + $0x148] sm:$0x3]
      %v6637 = vld [vmem:[#allocation2 + $0x150] sm:$0xff]
      %v6638 = vld [vmem:[#allocation2 + $0x158] sm:$0xff]
      %v6639 = vld [vmem:[#allocation2 + $0x160] sm:$0x3]
      %v6640 = vld [vmem:[#allocation2 + $0x168] sm:$0xff]
      %v6641 = vld [vmem:[#allocation2 + $0x170] sm:$0xff]
      %v6642 = vld [vmem:[#allocation2 + $0x178] sm:$0x3]
      %v6643 = vld [vmem:[#allocation2 + $0x180] sm:$0xff]
      %v6644 = vld [vmem:[#allocation2 + $0x188] sm:$0xff]
      %v6645 = vld [vmem:[#allocation2 + $0x190] sm:$0x3]
      %v6646 = vld [vmem:[#allocation2 + $0x198] sm:$0xff]
      %v6647 = vld [vmem:[#allocation2 + $0x1a0] sm:$0xff]
      %v6648 = vld [vmem:[#allocation2 + $0x1a8] sm:$0x3]
      %vm6697 = vcmask 1046528
      %v6698 = vrot.slane %v6595, 1
      %v6699 = vrot.slane %v6596, 1
      %v6700 = vsel %vm6697, %v6698, %v6699
      %v6701 = vrot.slane %v6597, 1
      %v6702 = vsel %vm6697, %v6699, %v6701
      %v6703 = vrot.slane %v6598, 1
      %v6704 = vrot.slane %v6599, 1
      %v6705 = vsel %vm6697, %v6703, %v6704
      %v6706 = vrot.slane %v6600, 1
      %v6707 = vsel %vm6697, %v6704, %v6706
      %v6708 = vrot.slane %v6601, 1
      %v6709 = vrot.slane %v6602, 1
      %v6710 = vsel %vm6697, %v6708, %v6709
      %v6711 = vrot.slane %v6603, 1
      %v6712 = vsel %vm6697, %v6709, %v6711
      %v6713 = vrot.slane %v6604, 1
      %v6714 = vrot.slane %v6605, 1
      %v6715 = vsel %vm6697, %v6713, %v6714
      %v6716 = vrot.slane %v6606, 1
      %v6717 = vsel %vm6697, %v6714, %v6716
      %v6718 = vrot.slane %v6607, 1
      %v6719 = vrot.slane %v6608, 1
      %v6720 = vsel %vm6697, %v6718, %v6719
      %v6721 = vrot.slane %v6609, 1
      %v6722 = vsel %vm6697, %v6719, %v6721
      %v6723 = vrot.slane %v6610, 1
      %v6724 = vrot.slane %v6611, 1
      %v6725 = vsel %vm6697, %v6723, %v6724
      %v6726 = vrot.slane %v6612, 1
      %v6727 = vsel %vm6697, %v6724, %v6726
      %v6728 = vrot.slane %v6613, 1
      %v6729 = vrot.slane %v6614, 1
      %v6730 = vsel %vm6697, %v6728, %v6729
      %v6731 = vrot.slane %v6615, 1
      %v6732 = vsel %vm6697, %v6729, %v6731
      %v6733 = vrot.slane %v6616, 1
      %v6734 = vrot.slane %v6617, 1
      %v6735 = vsel %vm6697, %v6733, %v6734
      %v6736 = vrot.slane %v6618, 1
      %v6737 = vsel %vm6697, %v6734, %v6736
      %v6738 = vrot.slane %v6619, 1
      %v6739 = vrot.slane %v6620, 1
      %v6740 = vsel %vm6697, %v6738, %v6739
      %v6741 = vrot.slane %v6621, 1
      %v6742 = vsel %vm6697, %v6739, %v6741
      %v6743 = vrot.slane %v6622, 1
      %v6744 = vrot.slane %v6623, 1
      %v6745 = vsel %vm6697, %v6743, %v6744
      %v6746 = vrot.slane %v6624, 1
      %v6747 = vsel %vm6697, %v6744, %v6746
      %v6748 = vrot.slane %v6625, 1
      %v6749 = vrot.slane %v6626, 1
      %v6750 = vsel %vm6697, %v6748, %v6749
      %v6751 = vrot.slane %v6627, 1
      %v6752 = vsel %vm6697, %v6749, %v6751
      %v6753 = vrot.slane %v6628, 1
      %v6754 = vrot.slane %v6629, 1
      %v6755 = vsel %vm6697, %v6753, %v6754
      %v6756 = vrot.slane %v6630, 1
      %v6757 = vsel %vm6697, %v6754, %v6756
      %v6758 = vrot.slane %v6631, 1
      %v6759 = vrot.slane %v6632, 1
      %v6760 = vsel %vm6697, %v6758, %v6759
      %v6761 = vrot.slane %v6633, 1
      %v6762 = vsel %vm6697, %v6759, %v6761
      %v6763 = vrot.slane %v6634, 1
      %v6764 = vrot.slane %v6635, 1
      %v6765 = vsel %vm6697, %v6763, %v6764
      %v6766 = vrot.slane %v6636, 1
      %v6767 = vsel %vm6697, %v6764, %v6766
      %v6768 = vrot.slane %v6637, 1
      %v6769 = vrot.slane %v6638, 1
      %v6770 = vsel %vm6697, %v6768, %v6769
      %v6771 = vrot.slane %v6639, 1
      %v6772 = vsel %vm6697, %v6769, %v6771
      %v6773 = vrot.slane %v6640, 1
      %v6774 = vrot.slane %v6641, 1
      %v6775 = vsel %vm6697, %v6773, %v6774
      %v6776 = vrot.slane %v6642, 1
      %v6777 = vsel %vm6697, %v6774, %v6776
      %v6778 = vsel %vm387, %v6700, 0
      %v6780 = vsel %vm387, %v6702, 0
      %v6782 = vsel %vm387, %v6705, 0
      %v6784 = vsel %vm387, %v6707, 0
      %v6786 = vsel %vm387, %v6710, 0
      %v6788 = vsel %vm387, %v6712, 0
      %v6790 = vsel %vm387, %v6715, 0
      %v6792 = vsel %vm387, %v6717, 0
      %v6794 = vsel %vm387, %v6720, 0
      %v6796 = vsel %vm387, %v6722, 0
      %v6798 = vsel %vm387, %v6725, 0
      %v6800 = vsel %vm387, %v6727, 0
      %v6802 = vsel %vm387, %v6730, 0
      %v6804 = vsel %vm387, %v6732, 0
      %v6806 = vsel %vm387, %v6735, 0
      %v6808 = vsel %vm387, %v6737, 0
      %v6810 = vsel %vm387, %v6740, 0
      %v6812 = vsel %vm387, %v6742, 0
      %v6814 = vsel %vm387, %v6745, 0
      %v6816 = vsel %vm387, %v6747, 0
      %v6818 = vsel %vm387, %v6750, 0
      %v6820 = vsel %vm387, %v6752, 0
      %v6822 = vsel %vm387, %v6755, 0
      %v6824 = vsel %vm387, %v6757, 0
      %v6826 = vsel %vm387, %v6760, 0
      %v6828 = vsel %vm387, %v6762, 0
      %v6830 = vsel %vm387, %v6765, 0
      %v6832 = vsel %vm387, %v6767, 0
      %v6834 = vsel %vm387, %v6770, 0
      %v6836 = vsel %vm387, %v6772, 0
      %v6838 = vsel %vm387, %v6775, 0
      %v6840 = vsel %vm387, %v6777, 0
      %vm6842 = vcmask 1043456
      %v6844 = vsel %vm6842, %v6553, 0
      %6846 = vmatprep.subr.mxu0 0.0
      %6847 = vmatpush1.msra.mxu0 0.0
      %6848 = vmatprep.subr.mxu0 0.0
      %6849 = vmatpush1.msra.mxu0 0.0
      %6850 = vmatprep.subr.mxu0 0.0
      %6851 = vmatpush1.msra.mxu0 0.0
      %6852 = vmatprep.subr.mxu0 0.0
      %6853 = vmatpush1.msra.mxu0 0.0
      %6854 = vmatprep.subr.mxu0 0.0
      %6855 = vmatpush1.msra.mxu0 0.0
      %6856 = vmatprep.subr.mxu0 0.0
      %6857 = vmatpush1.msra.mxu0 0.0
      %6858 = vmatprep.subr.mxu0 0.0
      %6859 = vmatpush1.msra.mxu0 0.0
      %6860 = vmatprep.subr.mxu0 0.0
      %6861 = vmatpush1.msra.mxu0 0.0
      %6862 = vmatprep.subr.mxu0 0.0
      %6863 = vmatpush1.msra.mxu0 0.0
      %6864 = vmatprep.subr.mxu0 0.0
      %6865 = vmatpush1.msra.mxu0 0.0
      %6866 = vmatprep.subr.mxu0 0.0
      %6867 = vmatpush1.msra.mxu0 0.0
      %6868 = vmatprep.subr.mxu0 0.0
      %6869 = vmatpush1.msra.mxu0 0.0
      %6870 = vmatprep.subr.mxu0 0.0
      %6871 = vmatpush1.msra.mxu0 0.0
      %6872 = vmatprep.subr.mxu0 0.0
      %6873 = vmatpush1.msra.mxu0 0.0
      %6874 = vmatprep.subr.mxu0 0.0
      %6875 = vmatpush1.msra.mxu0 0.0
      %6876 = vmatprep.subr.mxu0 0.0
      %6877 = vmatpush1.msra.mxu0 %v6844
      %6878 = vmatprep.subr.mxu0 0.0
      %6879 = vmatpush2.msra.mxu0 0.0
      %6880 = vmatprep.subr.mxu0 0.0
      %6881 = vmatpush2.msra.mxu0 0.0
      %6882 = vmatprep.subr.mxu0 0.0
      %6883 = vmatpush2.msra.mxu0 0.0
      %6884 = vmatprep.subr.mxu0 0.0
      %6885 = vmatpush2.msra.mxu0 0.0
      %6886 = vmatprep.subr.mxu0 0.0
      %6887 = vmatpush2.msra.mxu0 0.0
      %6888 = vmatprep.subr.mxu0 0.0
      %6889 = vmatpush2.msra.mxu0 0.0
      %6890 = vmatprep.subr.mxu0 0.0
      %6891 = vmatpush2.msra.mxu0 0.0
      %6892 = vmatprep.subr.mxu0 0.0
      %6893 = vmatpush2.msra.mxu0 0.0
      %6894 = vmatprep.subr.mxu0 0.0
      %6895 = vmatpush2.msra.mxu0 0.0
      %6896 = vmatprep.subr.mxu0 0.0
      %6897 = vmatpush2.msra.mxu0 0.0
      %6898 = vmatprep.subr.mxu0 0.0
      %6899 = vmatpush2.msra.mxu0 0.0
      %6900 = vmatprep.subr.mxu0 0.0
      %6901 = vmatpush2.msra.mxu0 0.0
      %6902 = vmatprep.subr.mxu0 0.0
      %6903 = vmatpush2.msra.mxu0 0.0
      %6904 = vmatprep.subr.mxu0 0.0
      %6905 = vmatpush2.msra.mxu0 0.0
      %6906 = vmatprep.subr.mxu0 0.0
      %6907 = vmatpush2.msra.mxu0 0.0
      %6908 = vmatprep.subr.mxu0 0.0
      %6909 = vmatpush2.msra.mxu0 0.0
      %6910 = vmatprep.mubr.f32.mxu0 0.0
      %6911 = vmatmul.mubr.f32.gmra.mxu0 %v6778
      %v6912 = vpop.f32.mrf.mxu0
      %v6913 = vadd.f32 0.0, %v6912
      %v6914 = vpop.f32.mrf.mxu0
      %6915 = vmatprep.mubr.f32.mxu0 0.0
      %6916 = vmatmul.mubr.f32.gmra.mxu0 %v6780
      %v6917 = vpop.f32.mrf.mxu0
      %v6918 = vadd.f32 0.0, %v6917
      %v6919 = vpop.f32.mrf.mxu0
      %6920 = vmatprep.mubr.f32.mxu0 0.0
      %6921 = vmatmul.mubr.f32.gmra.mxu0 %v6782
      %v6922 = vpop.f32.mrf.mxu0
      %v6923 = vadd.f32 0.0, %v6922
      %v6924 = vpop.f32.mrf.mxu0
      %6925 = vmatprep.mubr.f32.mxu0 0.0
      %6926 = vmatmul.mubr.f32.gmra.mxu0 %v6784
      %v6927 = vpop.f32.mrf.mxu0
      %v6928 = vadd.f32 0.0, %v6927
      %v6929 = vpop.f32.mrf.mxu0
      %6930 = vmatprep.mubr.f32.mxu0 0.0
      %6931 = vmatmul.mubr.f32.gmra.mxu0 %v6786
      %v6932 = vpop.f32.mrf.mxu0
      %v6933 = vadd.f32 0.0, %v6932
      %v6934 = vpop.f32.mrf.mxu0
      %6935 = vmatprep.mubr.f32.mxu0 0.0
      %6936 = vmatmul.mubr.f32.gmra.mxu0 %v6788
      %v6937 = vpop.f32.mrf.mxu0
      %v6938 = vadd.f32 0.0, %v6937
      %v6939 = vpop.f32.mrf.mxu0
      %6940 = vmatprep.mubr.f32.mxu0 0.0
      %6941 = vmatmul.mubr.f32.gmra.mxu0 %v6790
      %v6942 = vpop.f32.mrf.mxu0
      %v6943 = vadd.f32 0.0, %v6942
      %v6944 = vpop.f32.mrf.mxu0
      %6945 = vmatprep.mubr.f32.mxu0 0.0
      %6946 = vmatmul.mubr.f32.gmra.mxu0 %v6792
      %v6947 = vpop.f32.mrf.mxu0
      %v6948 = vadd.f32 0.0, %v6947
      %v6949 = vpop.f32.mrf.mxu0
      %6950 = vmatprep.mubr.f32.mxu0 0.0
      %6951 = vmatmul.mubr.f32.gmra.mxu0 %v6794
      %v6952 = vpop.f32.mrf.mxu0
      %v6953 = vadd.f32 0.0, %v6952
      %v6954 = vpop.f32.mrf.mxu0
      %6955 = vmatprep.mubr.f32.mxu0 0.0
      %6956 = vmatmul.mubr.f32.gmra.mxu0 %v6796
      %v6957 = vpop.f32.mrf.mxu0
      %v6958 = vadd.f32 0.0, %v6957
      %v6959 = vpop.f32.mrf.mxu0
      %6960 = vmatprep.mubr.f32.mxu0 0.0
      %6961 = vmatmul.mubr.f32.gmra.mxu0 %v6798
      %v6962 = vpop.f32.mrf.mxu0
      %v6963 = vadd.f32 0.0, %v6962
      %v6964 = vpop.f32.mrf.mxu0
      %6965 = vmatprep.mubr.f32.mxu0 0.0
      %6966 = vmatmul.mubr.f32.gmra.mxu0 %v6800
      %v6967 = vpop.f32.mrf.mxu0
      %v6968 = vadd.f32 0.0, %v6967
      %v6969 = vpop.f32.mrf.mxu0
      %6970 = vmatprep.mubr.f32.mxu0 0.0
      %6971 = vmatmul.mubr.f32.gmra.mxu0 %v6802
      %v6972 = vpop.f32.mrf.mxu0
      %v6973 = vadd.f32 0.0, %v6972
      %v6974 = vpop.f32.mrf.mxu0
      %6975 = vmatprep.mubr.f32.mxu0 0.0
      %6976 = vmatmul.mubr.f32.gmra.mxu0 %v6804
      %v6977 = vpop.f32.mrf.mxu0
      %v6978 = vadd.f32 0.0, %v6977
      %v6979 = vpop.f32.mrf.mxu0
      %6980 = vmatprep.mubr.f32.mxu0 0.0
      %6981 = vmatmul.mubr.f32.gmra.mxu0 %v6806
      %v6982 = vpop.f32.mrf.mxu0
      %v6983 = vadd.f32 0.0, %v6982
      %v6984 = vpop.f32.mrf.mxu0
      %6985 = vmatprep.mubr.f32.mxu0 0.0
      %6986 = vmatmul.mubr.f32.gmra.mxu0 %v6808
      %v6987 = vpop.f32.mrf.mxu0
      %v6988 = vadd.f32 0.0, %v6987
      %v6989 = vpop.f32.mrf.mxu0
      %6990 = vmatprep.mubr.f32.mxu0 0.0
      %6991 = vmatmul.mubr.f32.gmra.mxu0 %v6810
      %v6992 = vpop.f32.mrf.mxu0
      %v6993 = vadd.f32 0.0, %v6992
      %v6994 = vpop.f32.mrf.mxu0
      %6995 = vmatprep.mubr.f32.mxu0 0.0
      %6996 = vmatmul.mubr.f32.gmra.mxu0 %v6812
      %v6997 = vpop.f32.mrf.mxu0
      %v6998 = vadd.f32 0.0, %v6997
      %v6999 = vpop.f32.mrf.mxu0
      %7000 = vmatprep.mubr.f32.mxu0 0.0
      %7001 = vmatmul.mubr.f32.gmra.mxu0 %v6814
      %v7002 = vpop.f32.mrf.mxu0
      %v7003 = vadd.f32 0.0, %v7002
      %v7004 = vpop.f32.mrf.mxu0
      %7005 = vmatprep.mubr.f32.mxu0 0.0
      %7006 = vmatmul.mubr.f32.gmra.mxu0 %v6816
      %v7007 = vpop.f32.mrf.mxu0
      %v7008 = vadd.f32 0.0, %v7007
      %v7009 = vpop.f32.mrf.mxu0
      %7010 = vmatprep.mubr.f32.mxu0 0.0
      %7011 = vmatmul.mubr.f32.gmra.mxu0 %v6818
      %v7012 = vpop.f32.mrf.mxu0
      %v7013 = vadd.f32 0.0, %v7012
      %v7014 = vpop.f32.mrf.mxu0
      %7015 = vmatprep.mubr.f32.mxu0 0.0
      %7016 = vmatmul.mubr.f32.gmra.mxu0 %v6820
      %v7017 = vpop.f32.mrf.mxu0
      %v7018 = vadd.f32 0.0, %v7017
      %v7019 = vpop.f32.mrf.mxu0
      %7020 = vmatprep.mubr.f32.mxu0 0.0
      %7021 = vmatmul.mubr.f32.gmra.mxu0 %v6822
      %v7022 = vpop.f32.mrf.mxu0
      %v7023 = vadd.f32 0.0, %v7022
      %v7024 = vpop.f32.mrf.mxu0
      %7025 = vmatprep.mubr.f32.mxu0 0.0
      %7026 = vmatmul.mubr.f32.gmra.mxu0 %v6824
      %v7027 = vpop.f32.mrf.mxu0
      %v7028 = vadd.f32 0.0, %v7027
      %v7029 = vpop.f32.mrf.mxu0
      %7030 = vmatprep.mubr.f32.mxu0 0.0
      %7031 = vmatmul.mubr.f32.gmra.mxu0 %v6826
      %v7032 = vpop.f32.mrf.mxu0
      %v7033 = vadd.f32 0.0, %v7032
      %v7034 = vpop.f32.mrf.mxu0
      %7035 = vmatprep.mubr.f32.mxu0 0.0
      %7036 = vmatmul.mubr.f32.gmra.mxu0 %v6828
      %v7037 = vpop.f32.mrf.mxu0
      %v7038 = vadd.f32 0.0, %v7037
      %v7039 = vpop.f32.mrf.mxu0
      %7040 = vmatprep.mubr.f32.mxu0 0.0
      %7041 = vmatmul.mubr.f32.gmra.mxu0 %v6830
      %v7042 = vpop.f32.mrf.mxu0
      %v7043 = vadd.f32 0.0, %v7042
      %v7044 = vpop.f32.mrf.mxu0
      %7045 = vmatprep.mubr.f32.mxu0 0.0
      %7046 = vmatmul.mubr.f32.gmra.mxu0 %v6832
      %v7047 = vpop.f32.mrf.mxu0
      %v7048 = vadd.f32 0.0, %v7047
      %v7049 = vpop.f32.mrf.mxu0
      %7050 = vmatprep.mubr.f32.mxu0 0.0
      %7051 = vmatmul.mubr.f32.gmra.mxu0 %v6834
      %v7052 = vpop.f32.mrf.mxu0
      %v7053 = vadd.f32 0.0, %v7052
      %v7054 = vpop.f32.mrf.mxu0
      %7055 = vmatprep.mubr.f32.mxu0 0.0
      %7056 = vmatmul.mubr.f32.gmra.mxu0 %v6836
      %v7057 = vpop.f32.mrf.mxu0
      %v7058 = vadd.f32 0.0, %v7057
      %v7059 = vpop.f32.mrf.mxu0
      %7060 = vmatprep.mubr.f32.mxu0 0.0
      %7061 = vmatmul.mubr.f32.gmra.mxu0 %v6838
      %v7062 = vpop.f32.mrf.mxu0
      %v7063 = vadd.f32 0.0, %v7062
      %v7064 = vpop.f32.mrf.mxu0
      %7065 = vmatprep.mubr.f32.mxu0 0.0
      %7066 = vmatmul.mubr.f32.gmra.mxu0 %v6840
      %v7067 = vpop.f32.mrf.mxu0
      %v7068 = vadd.f32 0.0, %v7067
      %v7069 = vpop.f32.mrf.mxu0
      %7070 = vdwg.mxu0
      %v7071 = vsel %vm387, %v6595, 0
      %v7073 = vsel %vm387, %v6596, 0
      %v7075 = vsel %vm387, %v6598, 0
      %v7077 = vsel %vm387, %v6599, 0
      %v7079 = vsel %vm387, %v6601, 0
      %v7081 = vsel %vm387, %v6602, 0
      %v7083 = vsel %vm387, %v6604, 0
      %v7085 = vsel %vm387, %v6605, 0
      %v7087 = vsel %vm387, %v6607, 0
      %v7089 = vsel %vm387, %v6608, 0
      %v7091 = vsel %vm387, %v6610, 0
      %v7093 = vsel %vm387, %v6611, 0
      %v7095 = vsel %vm387, %v6613, 0
      %v7097 = vsel %vm387, %v6614, 0
      %v7099 = vsel %vm387, %v6616, 0
      %v7101 = vsel %vm387, %v6617, 0
      %v7103 = vsel %vm387, %v6619, 0
      %v7105 = vsel %vm387, %v6620, 0
      %v7107 = vsel %vm387, %v6622, 0
      %v7109 = vsel %vm387, %v6623, 0
      %v7111 = vsel %vm387, %v6625, 0
      %v7113 = vsel %vm387, %v6626, 0
      %v7115 = vsel %vm387, %v6628, 0
      %v7117 = vsel %vm387, %v6629, 0
      %v7119 = vsel %vm387, %v6631, 0
      %v7121 = vsel %vm387, %v6632, 0
      %v7123 = vsel %vm387, %v6634, 0
      %v7125 = vsel %vm387, %v6635, 0
      %v7127 = vsel %vm387, %v6637, 0
      %v7129 = vsel %vm387, %v6638, 0
      %v7131 = vsel %vm387, %v6640, 0
      %v7133 = vsel %vm387, %v6641, 0
      %v7136 = vsel %vm6842, %v6552, 0
      %7138 = vmatprep.subr.mxu0 0.0
      %7139 = vmatpush1.msra.mxu0 0.0
      %7140 = vmatprep.subr.mxu0 0.0
      %7141 = vmatpush1.msra.mxu0 0.0
      %7142 = vmatprep.subr.mxu0 0.0
      %7143 = vmatpush1.msra.mxu0 0.0
      %7144 = vmatprep.subr.mxu0 0.0
      %7145 = vmatpush1.msra.mxu0 0.0
      %7146 = vmatprep.subr.mxu0 0.0
      %7147 = vmatpush1.msra.mxu0 0.0
      %7148 = vmatprep.subr.mxu0 0.0
      %7149 = vmatpush1.msra.mxu0 0.0
      %7150 = vmatprep.subr.mxu0 0.0
      %7151 = vmatpush1.msra.mxu0 0.0
      %7152 = vmatprep.subr.mxu0 0.0
      %7153 = vmatpush1.msra.mxu0 0.0
      %7154 = vmatprep.subr.mxu0 0.0
      %7155 = vmatpush1.msra.mxu0 0.0
      %7156 = vmatprep.subr.mxu0 0.0
      %7157 = vmatpush1.msra.mxu0 0.0
      %7158 = vmatprep.subr.mxu0 0.0
      %7159 = vmatpush1.msra.mxu0 0.0
      %7160 = vmatprep.subr.mxu0 0.0
      %7161 = vmatpush1.msra.mxu0 0.0
      %7162 = vmatprep.subr.mxu0 0.0
      %7163 = vmatpush1.msra.mxu0 0.0
      %7164 = vmatprep.subr.mxu0 0.0
      %7165 = vmatpush1.msra.mxu0 0.0
      %7166 = vmatprep.subr.mxu0 0.0
      %7167 = vmatpush1.msra.mxu0 0.0
      %7168 = vmatprep.subr.mxu0 0.0
      %7169 = vmatpush1.msra.mxu0 %v7136
      %7170 = vmatprep.subr.mxu0 0.0
      %7171 = vmatpush2.msra.mxu0 0.0
      %7172 = vmatprep.subr.mxu0 0.0
      %7173 = vmatpush2.msra.mxu0 0.0
      %7174 = vmatprep.subr.mxu0 0.0
      %7175 = vmatpush2.msra.mxu0 0.0
      %7176 = vmatprep.subr.mxu0 0.0
      %7177 = vmatpush2.msra.mxu0 0.0
      %7178 = vmatprep.subr.mxu0 0.0
      %7179 = vmatpush2.msra.mxu0 0.0
      %7180 = vmatprep.subr.mxu0 0.0
      %7181 = vmatpush2.msra.mxu0 0.0
      %7182 = vmatprep.subr.mxu0 0.0
      %7183 = vmatpush2.msra.mxu0 0.0
      %7184 = vmatprep.subr.mxu0 0.0
      %7185 = vmatpush2.msra.mxu0 0.0
      %7186 = vmatprep.subr.mxu0 0.0
      %7187 = vmatpush2.msra.mxu0 0.0
      %7188 = vmatprep.subr.mxu0 0.0
      %7189 = vmatpush2.msra.mxu0 0.0
      %7190 = vmatprep.subr.mxu0 0.0
      %7191 = vmatpush2.msra.mxu0 0.0
      %7192 = vmatprep.subr.mxu0 0.0
      %7193 = vmatpush2.msra.mxu0 0.0
      %7194 = vmatprep.subr.mxu0 0.0
      %7195 = vmatpush2.msra.mxu0 0.0
      %7196 = vmatprep.subr.mxu0 0.0
      %7197 = vmatpush2.msra.mxu0 0.0
      %7198 = vmatprep.subr.mxu0 0.0
      %7199 = vmatpush2.msra.mxu0 0.0
      %7200 = vmatprep.subr.mxu0 0.0
      %7201 = vmatpush2.msra.mxu0 0.0
      %7202 = vmatprep.mubr.f32.mxu0 0.0
      %7203 = vmatmul.mubr.f32.gmra.mxu0 %v7071
      %v7204 = vpop.f32.mrf.mxu0
      %v7205 = vadd.f32 %v6913, %v7204
      %v7206 = vpop.f32.mrf.mxu0
      %7207 = vmatprep.mubr.f32.mxu0 0.0
      %7208 = vmatmul.mubr.f32.gmra.mxu0 %v7073
      %v7209 = vpop.f32.mrf.mxu0
      %v7210 = vadd.f32 %v6918, %v7209
      %v7211 = vpop.f32.mrf.mxu0
      %7212 = vmatprep.mubr.f32.mxu0 0.0
      %7213 = vmatmul.mubr.f32.gmra.mxu0 %v7075
      %v7214 = vpop.f32.mrf.mxu0
      %v7215 = vadd.f32 %v6923, %v7214
      %v7216 = vpop.f32.mrf.mxu0
      %7217 = vmatprep.mubr.f32.mxu0 0.0
      %7218 = vmatmul.mubr.f32.gmra.mxu0 %v7077
      %v7219 = vpop.f32.mrf.mxu0
      %v7220 = vadd.f32 %v6928, %v7219
      %v7221 = vpop.f32.mrf.mxu0
      %7222 = vmatprep.mubr.f32.mxu0 0.0
      %7223 = vmatmul.mubr.f32.gmra.mxu0 %v7079
      %v7224 = vpop.f32.mrf.mxu0
      %v7225 = vadd.f32 %v6933, %v7224
      %v7226 = vpop.f32.mrf.mxu0
      %7227 = vmatprep.mubr.f32.mxu0 0.0
      %7228 = vmatmul.mubr.f32.gmra.mxu0 %v7081
      %v7229 = vpop.f32.mrf.mxu0
      %v7230 = vadd.f32 %v6938, %v7229
      %v7231 = vpop.f32.mrf.mxu0
      %7232 = vmatprep.mubr.f32.mxu0 0.0
      %7233 = vmatmul.mubr.f32.gmra.mxu0 %v7083
      %v7234 = vpop.f32.mrf.mxu0
      %v7235 = vadd.f32 %v6943, %v7234
      %v7236 = vpop.f32.mrf.mxu0
      %7237 = vmatprep.mubr.f32.mxu0 0.0
      %7238 = vmatmul.mubr.f32.gmra.mxu0 %v7085
      %v7239 = vpop.f32.mrf.mxu0
      %v7240 = vadd.f32 %v6948, %v7239
      %v7241 = vpop.f32.mrf.mxu0
      %7242 = vmatprep.mubr.f32.mxu0 0.0
      %7243 = vmatmul.mubr.f32.gmra.mxu0 %v7087
      %v7244 = vpop.f32.mrf.mxu0
      %v7245 = vadd.f32 %v6953, %v7244
      %v7246 = vpop.f32.mrf.mxu0
      %7247 = vmatprep.mubr.f32.mxu0 0.0
      %7248 = vmatmul.mubr.f32.gmra.mxu0 %v7089
      %v7249 = vpop.f32.mrf.mxu0
      %v7250 = vadd.f32 %v6958, %v7249
      %v7251 = vpop.f32.mrf.mxu0
      %7252 = vmatprep.mubr.f32.mxu0 0.0
      %7253 = vmatmul.mubr.f32.gmra.mxu0 %v7091
      %v7254 = vpop.f32.mrf.mxu0
      %v7255 = vadd.f32 %v6963, %v7254
      %v7256 = vpop.f32.mrf.mxu0
      %7257 = vmatprep.mubr.f32.mxu0 0.0
      %7258 = vmatmul.mubr.f32.gmra.mxu0 %v7093
      %v7259 = vpop.f32.mrf.mxu0
      %v7260 = vadd.f32 %v6968, %v7259
      %v7261 = vpop.f32.mrf.mxu0
      %7262 = vmatprep.mubr.f32.mxu0 0.0
      %7263 = vmatmul.mubr.f32.gmra.mxu0 %v7095
      %v7264 = vpop.f32.mrf.mxu0
      %v7265 = vadd.f32 %v6973, %v7264
      %v7266 = vpop.f32.mrf.mxu0
      %7267 = vmatprep.mubr.f32.mxu0 0.0
      %7268 = vmatmul.mubr.f32.gmra.mxu0 %v7097
      %v7269 = vpop.f32.mrf.mxu0
      %v7270 = vadd.f32 %v6978, %v7269
      %v7271 = vpop.f32.mrf.mxu0
      %7272 = vmatprep.mubr.f32.mxu0 0.0
      %7273 = vmatmul.mubr.f32.gmra.mxu0 %v7099
      %v7274 = vpop.f32.mrf.mxu0
      %v7275 = vadd.f32 %v6983, %v7274
      %v7276 = vpop.f32.mrf.mxu0
      %7277 = vmatprep.mubr.f32.mxu0 0.0
      %7278 = vmatmul.mubr.f32.gmra.mxu0 %v7101
      %v7279 = vpop.f32.mrf.mxu0
      %v7280 = vadd.f32 %v6988, %v7279
      %v7281 = vpop.f32.mrf.mxu0
      %7282 = vmatprep.mubr.f32.mxu0 0.0
      %7283 = vmatmul.mubr.f32.gmra.mxu0 %v7103
      %v7284 = vpop.f32.mrf.mxu0
      %v7285 = vadd.f32 %v6993, %v7284
      %v7286 = vpop.f32.mrf.mxu0
      %7287 = vmatprep.mubr.f32.mxu0 0.0
      %7288 = vmatmul.mubr.f32.gmra.mxu0 %v7105
      %v7289 = vpop.f32.mrf.mxu0
      %v7290 = vadd.f32 %v6998, %v7289
      %v7291 = vpop.f32.mrf.mxu0
      %7292 = vmatprep.mubr.f32.mxu0 0.0
      %7293 = vmatmul.mubr.f32.gmra.mxu0 %v7107
      %v7294 = vpop.f32.mrf.mxu0
      %v7295 = vadd.f32 %v7003, %v7294
      %v7296 = vpop.f32.mrf.mxu0
      %7297 = vmatprep.mubr.f32.mxu0 0.0
      %7298 = vmatmul.mubr.f32.gmra.mxu0 %v7109
      %v7299 = vpop.f32.mrf.mxu0
      %v7300 = vadd.f32 %v7008, %v7299
      %v7301 = vpop.f32.mrf.mxu0
      %7302 = vmatprep.mubr.f32.mxu0 0.0
      %7303 = vmatmul.mubr.f32.gmra.mxu0 %v7111
      %v7304 = vpop.f32.mrf.mxu0
      %v7305 = vadd.f32 %v7013, %v7304
      %v7306 = vpop.f32.mrf.mxu0
      %7307 = vmatprep.mubr.f32.mxu0 0.0
      %7308 = vmatmul.mubr.f32.gmra.mxu0 %v7113
      %v7309 = vpop.f32.mrf.mxu0
      %v7310 = vadd.f32 %v7018, %v7309
      %v7311 = vpop.f32.mrf.mxu0
      %7312 = vmatprep.mubr.f32.mxu0 0.0
      %7313 = vmatmul.mubr.f32.gmra.mxu0 %v7115
      %v7314 = vpop.f32.mrf.mxu0
      %v7315 = vadd.f32 %v7023, %v7314
      %v7316 = vpop.f32.mrf.mxu0
      %7317 = vmatprep.mubr.f32.mxu0 0.0
      %7318 = vmatmul.mubr.f32.gmra.mxu0 %v7117
      %v7319 = vpop.f32.mrf.mxu0
      %v7320 = vadd.f32 %v7028, %v7319
      %v7321 = vpop.f32.mrf.mxu0
      %7322 = vmatprep.mubr.f32.mxu0 0.0
      %7323 = vmatmul.mubr.f32.gmra.mxu0 %v7119
      %v7324 = vpop.f32.mrf.mxu0
      %v7325 = vadd.f32 %v7033, %v7324
      %v7326 = vpop.f32.mrf.mxu0
      %7327 = vmatprep.mubr.f32.mxu0 0.0
      %7328 = vmatmul.mubr.f32.gmra.mxu0 %v7121
      %v7329 = vpop.f32.mrf.mxu0
      %v7330 = vadd.f32 %v7038, %v7329
      %v7331 = vpop.f32.mrf.mxu0
      %7332 = vmatprep.mubr.f32.mxu0 0.0
      %7333 = vmatmul.mubr.f32.gmra.mxu0 %v7123
      %v7334 = vpop.f32.mrf.mxu0
      %v7335 = vadd.f32 %v7043, %v7334
      %v7336 = vpop.f32.mrf.mxu0
      %7337 = vmatprep.mubr.f32.mxu0 0.0
      %7338 = vmatmul.mubr.f32.gmra.mxu0 %v7125
      %v7339 = vpop.f32.mrf.mxu0
      %v7340 = vadd.f32 %v7048, %v7339
      %v7341 = vpop.f32.mrf.mxu0
      %7342 = vmatprep.mubr.f32.mxu0 0.0
      %7343 = vmatmul.mubr.f32.gmra.mxu0 %v7127
      %v7344 = vpop.f32.mrf.mxu0
      %v7345 = vadd.f32 %v7053, %v7344
      %v7346 = vpop.f32.mrf.mxu0
      %7347 = vmatprep.mubr.f32.mxu0 0.0
      %7348 = vmatmul.mubr.f32.gmra.mxu0 %v7129
      %v7349 = vpop.f32.mrf.mxu0
      %v7350 = vadd.f32 %v7058, %v7349
      %v7351 = vpop.f32.mrf.mxu0
      %7352 = vmatprep.mubr.f32.mxu0 0.0
      %7353 = vmatmul.mubr.f32.gmra.mxu0 %v7131
      %v7354 = vpop.f32.mrf.mxu0
      %v7355 = vadd.f32 %v7063, %v7354
      %v7356 = vpop.f32.mrf.mxu0
      %7357 = vmatprep.mubr.f32.mxu0 0.0
      %7358 = vmatmul.mubr.f32.gmra.mxu0 %v7133
      %v7359 = vpop.f32.mrf.mxu0
      %v7360 = vadd.f32 %v7068, %v7359
      %v7361 = vpop.f32.mrf.mxu0
      %7362 = vdwg.mxu0
      %vm7363 = vcmask 1045504
      %v7364 = vrot.slane %v6595, 2
      %v7365 = vrot.slane %v6596, 2
      %v7366 = vsel %vm7363, %v7364, %v7365
      %v7367 = vrot.slane %v6597, 2
      %v7368 = vsel %vm7363, %v7365, %v7367
      %v7369 = vrot.slane %v6598, 2
      %v7370 = vrot.slane %v6599, 2
      %v7371 = vsel %vm7363, %v7369, %v7370
      %v7372 = vrot.slane %v6600, 2
      %v7373 = vsel %vm7363, %v7370, %v7372
      %v7374 = vrot.slane %v6601, 2
      %v7375 = vrot.slane %v6602, 2
      %v7376 = vsel %vm7363, %v7374, %v7375
      %v7377 = vrot.slane %v6603, 2
      %v7378 = vsel %vm7363, %v7375, %v7377
      %v7379 = vrot.slane %v6604, 2
      %v7380 = vrot.slane %v6605, 2
      %v7381 = vsel %vm7363, %v7379, %v7380
      %v7382 = vrot.slane %v6606, 2
      %v7383 = vsel %vm7363, %v7380, %v7382
      %v7384 = vrot.slane %v6607, 2
      %v7385 = vrot.slane %v6608, 2
      %v7386 = vsel %vm7363, %v7384, %v7385
      %v7387 = vrot.slane %v6609, 2
      %v7388 = vsel %vm7363, %v7385, %v7387
      %v7389 = vrot.slane %v6610, 2
      %v7390 = vrot.slane %v6611, 2
      %v7391 = vsel %vm7363, %v7389, %v7390
      %v7392 = vrot.slane %v6612, 2
      %v7393 = vsel %vm7363, %v7390, %v7392
      %v7394 = vrot.slane %v6613, 2
      %v7395 = vrot.slane %v6614, 2
      %v7396 = vsel %vm7363, %v7394, %v7395
      %v7397 = vrot.slane %v6615, 2
      %v7398 = vsel %vm7363, %v7395, %v7397
      %v7399 = vrot.slane %v6616, 2
      %v7400 = vrot.slane %v6617, 2
      %v7401 = vsel %vm7363, %v7399, %v7400
      %v7402 = vrot.slane %v6618, 2
      %v7403 = vsel %vm7363, %v7400, %v7402
      %v7404 = vrot.slane %v6619, 2
      %v7405 = vrot.slane %v6620, 2
      %v7406 = vsel %vm7363, %v7404, %v7405
      %v7407 = vrot.slane %v6621, 2
      %v7408 = vsel %vm7363, %v7405, %v7407
      %v7409 = vrot.slane %v6622, 2
      %v7410 = vrot.slane %v6623, 2
      %v7411 = vsel %vm7363, %v7409, %v7410
      %v7412 = vrot.slane %v6624, 2
      %v7413 = vsel %vm7363, %v7410, %v7412
      %v7414 = vrot.slane %v6625, 2
      %v7415 = vrot.slane %v6626, 2
      %v7416 = vsel %vm7363, %v7414, %v7415
      %v7417 = vrot.slane %v6627, 2
      %v7418 = vsel %vm7363, %v7415, %v7417
      %v7419 = vrot.slane %v6628, 2
      %v7420 = vrot.slane %v6629, 2
      %v7421 = vsel %vm7363, %v7419, %v7420
      %v7422 = vrot.slane %v6630, 2
      %v7423 = vsel %vm7363, %v7420, %v7422
      %v7424 = vrot.slane %v6631, 2
      %v7425 = vrot.slane %v6632, 2
      %v7426 = vsel %vm7363, %v7424, %v7425
      %v7427 = vrot.slane %v6633, 2
      %v7428 = vsel %vm7363, %v7425, %v7427
      %v7429 = vrot.slane %v6634, 2
      %v7430 = vrot.slane %v6635, 2
      %v7431 = vsel %vm7363, %v7429, %v7430
      %v7432 = vrot.slane %v6636, 2
      %v7433 = vsel %vm7363, %v7430, %v7432
      %v7434 = vrot.slane %v6637, 2
      %v7435 = vrot.slane %v6638, 2
      %v7436 = vsel %vm7363, %v7434, %v7435
      %v7437 = vrot.slane %v6639, 2
      %v7438 = vsel %vm7363, %v7435, %v7437
      %v7439 = vrot.slane %v6640, 2
      %v7440 = vrot.slane %v6641, 2
      %v7441 = vsel %vm7363, %v7439, %v7440
      %v7442 = vrot.slane %v6642, 2
      %v7443 = vsel %vm7363, %v7440, %v7442
      %v7444 = vsel %vm387, %v7366, 0
      %v7446 = vsel %vm387, %v7368, 0
      %v7448 = vsel %vm387, %v7371, 0
      %v7450 = vsel %vm387, %v7373, 0
      %v7452 = vsel %vm387, %v7376, 0
      %v7454 = vsel %vm387, %v7378, 0
      %v7456 = vsel %vm387, %v7381, 0
      %v7458 = vsel %vm387, %v7383, 0
      %v7460 = vsel %vm387, %v7386, 0
      %v7462 = vsel %vm387, %v7388, 0
      %v7464 = vsel %vm387, %v7391, 0
      %v7466 = vsel %vm387, %v7393, 0
      %v7468 = vsel %vm387, %v7396, 0
      %v7470 = vsel %vm387, %v7398, 0
      %v7472 = vsel %vm387, %v7401, 0
      %v7474 = vsel %vm387, %v7403, 0
      %v7476 = vsel %vm387, %v7406, 0
      %v7478 = vsel %vm387, %v7408, 0
      %v7480 = vsel %vm387, %v7411, 0
      %v7482 = vsel %vm387, %v7413, 0
      %v7484 = vsel %vm387, %v7416, 0
      %v7486 = vsel %vm387, %v7418, 0
      %v7488 = vsel %vm387, %v7421, 0
      %v7490 = vsel %vm387, %v7423, 0
      %v7492 = vsel %vm387, %v7426, 0
      %v7494 = vsel %vm387, %v7428, 0
      %v7496 = vsel %vm387, %v7431, 0
      %v7498 = vsel %vm387, %v7433, 0
      %v7500 = vsel %vm387, %v7436, 0
      %v7502 = vsel %vm387, %v7438, 0
      %v7504 = vsel %vm387, %v7441, 0
      %v7506 = vsel %vm387, %v7443, 0
      %v7509 = vsel %vm6842, %v6554, 0
      %7511 = vmatprep.subr.mxu0 0.0
      %7512 = vmatpush1.msra.mxu0 0.0
      %7513 = vmatprep.subr.mxu0 0.0
      %7514 = vmatpush1.msra.mxu0 0.0
      %7515 = vmatprep.subr.mxu0 0.0
      %7516 = vmatpush1.msra.mxu0 0.0
      %7517 = vmatprep.subr.mxu0 0.0
      %7518 = vmatpush1.msra.mxu0 0.0
      %7519 = vmatprep.subr.mxu0 0.0
      %7520 = vmatpush1.msra.mxu0 0.0
      %7521 = vmatprep.subr.mxu0 0.0
      %7522 = vmatpush1.msra.mxu0 0.0
      %7523 = vmatprep.subr.mxu0 0.0
      %7524 = vmatpush1.msra.mxu0 0.0
      %7525 = vmatprep.subr.mxu0 0.0
      %7526 = vmatpush1.msra.mxu0 0.0
      %7527 = vmatprep.subr.mxu0 0.0
      %7528 = vmatpush1.msra.mxu0 0.0
      %7529 = vmatprep.subr.mxu0 0.0
      %7530 = vmatpush1.msra.mxu0 0.0
      %7531 = vmatprep.subr.mxu0 0.0
      %7532 = vmatpush1.msra.mxu0 0.0
      %7533 = vmatprep.subr.mxu0 0.0
      %7534 = vmatpush1.msra.mxu0 0.0
      %7535 = vmatprep.subr.mxu0 0.0
      %7536 = vmatpush1.msra.mxu0 0.0
      %7537 = vmatprep.subr.mxu0 0.0
      %7538 = vmatpush1.msra.mxu0 0.0
      %7539 = vmatprep.subr.mxu0 0.0
      %7540 = vmatpush1.msra.mxu0 0.0
      %7541 = vmatprep.subr.mxu0 0.0
      %7542 = vmatpush1.msra.mxu0 %v7509
      %7543 = vmatprep.subr.mxu0 0.0
      %7544 = vmatpush2.msra.mxu0 0.0
      %7545 = vmatprep.subr.mxu0 0.0
      %7546 = vmatpush2.msra.mxu0 0.0
      %7547 = vmatprep.subr.mxu0 0.0
      %7548 = vmatpush2.msra.mxu0 0.0
      %7549 = vmatprep.subr.mxu0 0.0
      %7550 = vmatpush2.msra.mxu0 0.0
      %7551 = vmatprep.subr.mxu0 0.0
      %7552 = vmatpush2.msra.mxu0 0.0
      %7553 = vmatprep.subr.mxu0 0.0
      %7554 = vmatpush2.msra.mxu0 0.0
      %7555 = vmatprep.subr.mxu0 0.0
      %7556 = vmatpush2.msra.mxu0 0.0
      %7557 = vmatprep.subr.mxu0 0.0
      %7558 = vmatpush2.msra.mxu0 0.0
      %7559 = vmatprep.subr.mxu0 0.0
      %7560 = vmatpush2.msra.mxu0 0.0
      %7561 = vmatprep.subr.mxu0 0.0
      %7562 = vmatpush2.msra.mxu0 0.0
      %7563 = vmatprep.subr.mxu0 0.0
      %7564 = vmatpush2.msra.mxu0 0.0
      %7565 = vmatprep.subr.mxu0 0.0
      %7566 = vmatpush2.msra.mxu0 0.0
      %7567 = vmatprep.subr.mxu0 0.0
      %7568 = vmatpush2.msra.mxu0 0.0
      %7569 = vmatprep.subr.mxu0 0.0
      %7570 = vmatpush2.msra.mxu0 0.0
      %7571 = vmatprep.subr.mxu0 0.0
      %7572 = vmatpush2.msra.mxu0 0.0
      %7573 = vmatprep.subr.mxu0 0.0
      %7574 = vmatpush2.msra.mxu0 0.0
      %7575 = vmatprep.mubr.f32.mxu0 0.0
      %7576 = vmatmul.mubr.f32.gmra.mxu0 %v7444
      %v7577 = vpop.f32.mrf.mxu0
      %v7578 = vadd.f32 0.0, %v7577
      %v7579 = vpop.f32.mrf.mxu0
      %7580 = vmatprep.mubr.f32.mxu0 0.0
      %7581 = vmatmul.mubr.f32.gmra.mxu0 %v7446
      %v7582 = vpop.f32.mrf.mxu0
      %v7583 = vadd.f32 0.0, %v7582
      %v7584 = vpop.f32.mrf.mxu0
      %7585 = vmatprep.mubr.f32.mxu0 0.0
      %7586 = vmatmul.mubr.f32.gmra.mxu0 %v7448
      %v7587 = vpop.f32.mrf.mxu0
      %v7588 = vadd.f32 0.0, %v7587
      %v7589 = vpop.f32.mrf.mxu0
      %7590 = vmatprep.mubr.f32.mxu0 0.0
      %7591 = vmatmul.mubr.f32.gmra.mxu0 %v7450
      %v7592 = vpop.f32.mrf.mxu0
      %v7593 = vadd.f32 0.0, %v7592
      %v7594 = vpop.f32.mrf.mxu0
      %7595 = vmatprep.mubr.f32.mxu0 0.0
      %7596 = vmatmul.mubr.f32.gmra.mxu0 %v7452
      %v7597 = vpop.f32.mrf.mxu0
      %v7598 = vadd.f32 0.0, %v7597
      %v7599 = vpop.f32.mrf.mxu0
      %7600 = vmatprep.mubr.f32.mxu0 0.0
      %7601 = vmatmul.mubr.f32.gmra.mxu0 %v7454
      %v7602 = vpop.f32.mrf.mxu0
      %v7603 = vadd.f32 0.0, %v7602
      %v7604 = vpop.f32.mrf.mxu0
      %7605 = vmatprep.mubr.f32.mxu0 0.0
      %7606 = vmatmul.mubr.f32.gmra.mxu0 %v7456
      %v7607 = vpop.f32.mrf.mxu0
      %v7608 = vadd.f32 0.0, %v7607
      %v7609 = vpop.f32.mrf.mxu0
      %7610 = vmatprep.mubr.f32.mxu0 0.0
      %7611 = vmatmul.mubr.f32.gmra.mxu0 %v7458
      %v7612 = vpop.f32.mrf.mxu0
      %v7613 = vadd.f32 0.0, %v7612
      %v7614 = vpop.f32.mrf.mxu0
      %7615 = vmatprep.mubr.f32.mxu0 0.0
      %7616 = vmatmul.mubr.f32.gmra.mxu0 %v7460
      %v7617 = vpop.f32.mrf.mxu0
      %v7618 = vadd.f32 0.0, %v7617
      %v7619 = vpop.f32.mrf.mxu0
      %7620 = vmatprep.mubr.f32.mxu0 0.0
      %7621 = vmatmul.mubr.f32.gmra.mxu0 %v7462
      %v7622 = vpop.f32.mrf.mxu0
      %v7623 = vadd.f32 0.0, %v7622
      %v7624 = vpop.f32.mrf.mxu0
      %7625 = vmatprep.mubr.f32.mxu0 0.0
      %7626 = vmatmul.mubr.f32.gmra.mxu0 %v7464
      %v7627 = vpop.f32.mrf.mxu0
      %v7628 = vadd.f32 0.0, %v7627
      %v7629 = vpop.f32.mrf.mxu0
      %7630 = vmatprep.mubr.f32.mxu0 0.0
      %7631 = vmatmul.mubr.f32.gmra.mxu0 %v7466
      %v7632 = vpop.f32.mrf.mxu0
      %v7633 = vadd.f32 0.0, %v7632
      %v7634 = vpop.f32.mrf.mxu0
      %7635 = vmatprep.mubr.f32.mxu0 0.0
      %7636 = vmatmul.mubr.f32.gmra.mxu0 %v7468
      %v7637 = vpop.f32.mrf.mxu0
      %v7638 = vadd.f32 0.0, %v7637
      %v7639 = vpop.f32.mrf.mxu0
      %7640 = vmatprep.mubr.f32.mxu0 0.0
      %7641 = vmatmul.mubr.f32.gmra.mxu0 %v7470
      %v7642 = vpop.f32.mrf.mxu0
      %v7643 = vadd.f32 0.0, %v7642
      %v7644 = vpop.f32.mrf.mxu0
      %7645 = vmatprep.mubr.f32.mxu0 0.0
      %7646 = vmatmul.mubr.f32.gmra.mxu0 %v7472
      %v7647 = vpop.f32.mrf.mxu0
      %v7648 = vadd.f32 0.0, %v7647
      %v7649 = vpop.f32.mrf.mxu0
      %7650 = vmatprep.mubr.f32.mxu0 0.0
      %7651 = vmatmul.mubr.f32.gmra.mxu0 %v7474
      %v7652 = vpop.f32.mrf.mxu0
      %v7653 = vadd.f32 0.0, %v7652
      %v7654 = vpop.f32.mrf.mxu0
      %7655 = vmatprep.mubr.f32.mxu0 0.0
      %7656 = vmatmul.mubr.f32.gmra.mxu0 %v7476
      %v7657 = vpop.f32.mrf.mxu0
      %v7658 = vadd.f32 0.0, %v7657
      %v7659 = vpop.f32.mrf.mxu0
      %7660 = vmatprep.mubr.f32.mxu0 0.0
      %7661 = vmatmul.mubr.f32.gmra.mxu0 %v7478
      %v7662 = vpop.f32.mrf.mxu0
      %v7663 = vadd.f32 0.0, %v7662
      %v7664 = vpop.f32.mrf.mxu0
      %7665 = vmatprep.mubr.f32.mxu0 0.0
      %7666 = vmatmul.mubr.f32.gmra.mxu0 %v7480
      %v7667 = vpop.f32.mrf.mxu0
      %v7668 = vadd.f32 0.0, %v7667
      %v7669 = vpop.f32.mrf.mxu0
      %7670 = vmatprep.mubr.f32.mxu0 0.0
      %7671 = vmatmul.mubr.f32.gmra.mxu0 %v7482
      %v7672 = vpop.f32.mrf.mxu0
      %v7673 = vadd.f32 0.0, %v7672
      %v7674 = vpop.f32.mrf.mxu0
      %7675 = vmatprep.mubr.f32.mxu0 0.0
      %7676 = vmatmul.mubr.f32.gmra.mxu0 %v7484
      %v7677 = vpop.f32.mrf.mxu0
      %v7678 = vadd.f32 0.0, %v7677
      %v7679 = vpop.f32.mrf.mxu0
      %7680 = vmatprep.mubr.f32.mxu0 0.0
      %7681 = vmatmul.mubr.f32.gmra.mxu0 %v7486
      %v7682 = vpop.f32.mrf.mxu0
      %v7683 = vadd.f32 0.0, %v7682
      %v7684 = vpop.f32.mrf.mxu0
      %7685 = vmatprep.mubr.f32.mxu0 0.0
      %7686 = vmatmul.mubr.f32.gmra.mxu0 %v7488
      %v7687 = vpop.f32.mrf.mxu0
      %v7688 = vadd.f32 0.0, %v7687
      %v7689 = vpop.f32.mrf.mxu0
      %7690 = vmatprep.mubr.f32.mxu0 0.0
      %7691 = vmatmul.mubr.f32.gmra.mxu0 %v7490
      %v7692 = vpop.f32.mrf.mxu0
      %v7693 = vadd.f32 0.0, %v7692
      %v7694 = vpop.f32.mrf.mxu0
      %7695 = vmatprep.mubr.f32.mxu0 0.0
      %7696 = vmatmul.mubr.f32.gmra.mxu0 %v7492
      %v7697 = vpop.f32.mrf.mxu0
      %v7698 = vadd.f32 0.0, %v7697
      %v7699 = vpop.f32.mrf.mxu0
      %7700 = vmatprep.mubr.f32.mxu0 0.0
      %7701 = vmatmul.mubr.f32.gmra.mxu0 %v7494
      %v7702 = vpop.f32.mrf.mxu0
      %v7703 = vadd.f32 0.0, %v7702
      %v7704 = vpop.f32.mrf.mxu0
      %7705 = vmatprep.mubr.f32.mxu0 0.0
      %7706 = vmatmul.mubr.f32.gmra.mxu0 %v7496
      %v7707 = vpop.f32.mrf.mxu0
      %v7708 = vadd.f32 0.0, %v7707
      %v7709 = vpop.f32.mrf.mxu0
      %7710 = vmatprep.mubr.f32.mxu0 0.0
      %7711 = vmatmul.mubr.f32.gmra.mxu0 %v7498
      %v7712 = vpop.f32.mrf.mxu0
      %v7713 = vadd.f32 0.0, %v7712
      %v7714 = vpop.f32.mrf.mxu0
      %7715 = vmatprep.mubr.f32.mxu0 0.0
      %7716 = vmatmul.mubr.f32.gmra.mxu0 %v7500
      %v7717 = vpop.f32.mrf.mxu0
      %v7718 = vadd.f32 0.0, %v7717
      %v7719 = vpop.f32.mrf.mxu0
      %7720 = vmatprep.mubr.f32.mxu0 0.0
      %7721 = vmatmul.mubr.f32.gmra.mxu0 %v7502
      %v7722 = vpop.f32.mrf.mxu0
      %v7723 = vadd.f32 0.0, %v7722
      %v7724 = vpop.f32.mrf.mxu0
      %7725 = vmatprep.mubr.f32.mxu0 0.0
      %7726 = vmatmul.mubr.f32.gmra.mxu0 %v7504
      %v7727 = vpop.f32.mrf.mxu0
      %v7728 = vadd.f32 0.0, %v7727
      %v7729 = vpop.f32.mrf.mxu0
      %7730 = vmatprep.mubr.f32.mxu0 0.0
      %7731 = vmatmul.mubr.f32.gmra.mxu0 %v7506
      %v7732 = vpop.f32.mrf.mxu0
      %v7733 = vadd.f32 0.0, %v7732
      %v7734 = vpop.f32.mrf.mxu0
      %7735 = vdwg.mxu0
      %v7736 = vadd.f32 %v7205, %v7578
      %v7737 = vadd.f32 %v7210, %v7583
      %v7738 = vadd.f32 %v7215, %v7588
      %v7739 = vadd.f32 %v7220, %v7593
      %v7740 = vadd.f32 %v7225, %v7598
      %v7741 = vadd.f32 %v7230, %v7603
      %v7742 = vadd.f32 %v7235, %v7608
      %v7743 = vadd.f32 %v7240, %v7613
      %v7744 = vadd.f32 %v7245, %v7618
      %v7745 = vadd.f32 %v7250, %v7623
      %v7746 = vadd.f32 %v7255, %v7628
      %v7747 = vadd.f32 %v7260, %v7633
      %v7748 = vadd.f32 %v7265, %v7638
      %v7749 = vadd.f32 %v7270, %v7643
      %v7750 = vadd.f32 %v7275, %v7648
      %v7751 = vadd.f32 %v7280, %v7653
      %v7752 = vadd.f32 %v7285, %v7658
      %v7753 = vadd.f32 %v7290, %v7663
      %v7754 = vadd.f32 %v7295, %v7668
      %v7755 = vadd.f32 %v7300, %v7673
      %v7756 = vadd.f32 %v7305, %v7678
      %v7757 = vadd.f32 %v7310, %v7683
      %v7758 = vadd.f32 %v7315, %v7688
      %v7759 = vadd.f32 %v7320, %v7693
      %v7760 = vadd.f32 %v7325, %v7698
      %v7761 = vadd.f32 %v7330, %v7703
      %v7762 = vadd.f32 %v7335, %v7708
      %v7763 = vadd.f32 %v7340, %v7713
      %v7764 = vadd.f32 %v7345, %v7718
      %v7765 = vadd.f32 %v7350, %v7723
      %v7766 = vadd.f32 %v7355, %v7728
      %v7767 = vadd.f32 %v7360, %v7733
      %v7769 = vsel %vm387, %v6643, 0
      %v7772 = vsel %vm387, %v6644, 0
      %v7775 = vsel %vm6842, %v6555, 0
      %7777 = vmatprep.subr.mxu0 0.0
      %7778 = vmatpush1.msra.mxu0 0.0
      %7779 = vmatprep.subr.mxu0 0.0
      %7780 = vmatpush1.msra.mxu0 0.0
      %7781 = vmatprep.subr.mxu0 0.0
      %7782 = vmatpush1.msra.mxu0 0.0
      %7783 = vmatprep.subr.mxu0 0.0
      %7784 = vmatpush1.msra.mxu0 0.0
      %7785 = vmatprep.subr.mxu0 0.0
      %7786 = vmatpush1.msra.mxu0 0.0
      %7787 = vmatprep.subr.mxu0 0.0
      %7788 = vmatpush1.msra.mxu0 0.0
      %7789 = vmatprep.subr.mxu0 0.0
      %7790 = vmatpush1.msra.mxu0 0.0
      %7791 = vmatprep.subr.mxu0 0.0
      %7792 = vmatpush1.msra.mxu0 0.0
      %7793 = vmatprep.subr.mxu0 0.0
      %7794 = vmatpush1.msra.mxu0 0.0
      %7795 = vmatprep.subr.mxu0 0.0
      %7796 = vmatpush1.msra.mxu0 0.0
      %7797 = vmatprep.subr.mxu0 0.0
      %7798 = vmatpush1.msra.mxu0 0.0
      %7799 = vmatprep.subr.mxu0 0.0
      %7800 = vmatpush1.msra.mxu0 0.0
      %7801 = vmatprep.subr.mxu0 0.0
      %7802 = vmatpush1.msra.mxu0 0.0
      %7803 = vmatprep.subr.mxu0 0.0
      %7804 = vmatpush1.msra.mxu0 0.0
      %7805 = vmatprep.subr.mxu0 0.0
      %7806 = vmatpush1.msra.mxu0 0.0
      %7807 = vmatprep.subr.mxu0 0.0
      %7808 = vmatpush1.msra.mxu0 %v7775
      %7809 = vmatprep.subr.mxu0 0.0
      %7810 = vmatpush2.msra.mxu0 0.0
      %7811 = vmatprep.subr.mxu0 0.0
      %7812 = vmatpush2.msra.mxu0 0.0
      %7813 = vmatprep.subr.mxu0 0.0
      %7814 = vmatpush2.msra.mxu0 0.0
      %7815 = vmatprep.subr.mxu0 0.0
      %7816 = vmatpush2.msra.mxu0 0.0
      %7817 = vmatprep.subr.mxu0 0.0
      %7818 = vmatpush2.msra.mxu0 0.0
      %7819 = vmatprep.subr.mxu0 0.0
      %7820 = vmatpush2.msra.mxu0 0.0
      %7821 = vmatprep.subr.mxu0 0.0
      %7822 = vmatpush2.msra.mxu0 0.0
      %7823 = vmatprep.subr.mxu0 0.0
      %7824 = vmatpush2.msra.mxu0 0.0
      %7825 = vmatprep.subr.mxu0 0.0
      %7826 = vmatpush2.msra.mxu0 0.0
      %7827 = vmatprep.subr.mxu0 0.0
      %7828 = vmatpush2.msra.mxu0 0.0
      %7829 = vmatprep.subr.mxu0 0.0
      %7830 = vmatpush2.msra.mxu0 0.0
      %7831 = vmatprep.subr.mxu0 0.0
      %7832 = vmatpush2.msra.mxu0 0.0
      %7833 = vmatprep.subr.mxu0 0.0
      %7834 = vmatpush2.msra.mxu0 0.0
      %7835 = vmatprep.subr.mxu0 0.0
      %7836 = vmatpush2.msra.mxu0 0.0
      %7837 = vmatprep.subr.mxu0 0.0
      %7838 = vmatpush2.msra.mxu0 0.0
      %7839 = vmatprep.subr.mxu0 0.0
      %7840 = vmatpush2.msra.mxu0 0.0
      %7841 = vmatprep.mubr.f32.mxu0 0.0
      %7842 = vmatmul.mubr.f32.gmra.mxu0 %v7075
      %v7843 = vpop.f32.mrf.mxu0
      %v7844 = vadd.f32 0.0, %v7843
      %v7845 = vpop.f32.mrf.mxu0
      %7846 = vmatprep.mubr.f32.mxu0 0.0
      %7847 = vmatmul.mubr.f32.gmra.mxu0 %v7077
      %v7848 = vpop.f32.mrf.mxu0
      %v7849 = vadd.f32 0.0, %v7848
      %v7850 = vpop.f32.mrf.mxu0
      %7851 = vmatprep.mubr.f32.mxu0 0.0
      %7852 = vmatmul.mubr.f32.gmra.mxu0 %v7079
      %v7853 = vpop.f32.mrf.mxu0
      %v7854 = vadd.f32 0.0, %v7853
      %v7855 = vpop.f32.mrf.mxu0
      %7856 = vmatprep.mubr.f32.mxu0 0.0
      %7857 = vmatmul.mubr.f32.gmra.mxu0 %v7081
      %v7858 = vpop.f32.mrf.mxu0
      %v7859 = vadd.f32 0.0, %v7858
      %v7860 = vpop.f32.mrf.mxu0
      %7861 = vmatprep.mubr.f32.mxu0 0.0
      %7862 = vmatmul.mubr.f32.gmra.mxu0 %v7083
      %v7863 = vpop.f32.mrf.mxu0
      %v7864 = vadd.f32 0.0, %v7863
      %v7865 = vpop.f32.mrf.mxu0
      %7866 = vmatprep.mubr.f32.mxu0 0.0
      %7867 = vmatmul.mubr.f32.gmra.mxu0 %v7085
      %v7868 = vpop.f32.mrf.mxu0
      %v7869 = vadd.f32 0.0, %v7868
      %v7870 = vpop.f32.mrf.mxu0
      %7871 = vmatprep.mubr.f32.mxu0 0.0
      %7872 = vmatmul.mubr.f32.gmra.mxu0 %v7087
      %v7873 = vpop.f32.mrf.mxu0
      %v7874 = vadd.f32 0.0, %v7873
      %v7875 = vpop.f32.mrf.mxu0
      %7876 = vmatprep.mubr.f32.mxu0 0.0
      %7877 = vmatmul.mubr.f32.gmra.mxu0 %v7089
      %v7878 = vpop.f32.mrf.mxu0
      %v7879 = vadd.f32 0.0, %v7878
      %v7880 = vpop.f32.mrf.mxu0
      %7881 = vmatprep.mubr.f32.mxu0 0.0
      %7882 = vmatmul.mubr.f32.gmra.mxu0 %v7091
      %v7883 = vpop.f32.mrf.mxu0
      %v7884 = vadd.f32 0.0, %v7883
      %v7885 = vpop.f32.mrf.mxu0
      %7886 = vmatprep.mubr.f32.mxu0 0.0
      %7887 = vmatmul.mubr.f32.gmra.mxu0 %v7093
      %v7888 = vpop.f32.mrf.mxu0
      %v7889 = vadd.f32 0.0, %v7888
      %v7890 = vpop.f32.mrf.mxu0
      %7891 = vmatprep.mubr.f32.mxu0 0.0
      %7892 = vmatmul.mubr.f32.gmra.mxu0 %v7095
      %v7893 = vpop.f32.mrf.mxu0
      %v7894 = vadd.f32 0.0, %v7893
      %v7895 = vpop.f32.mrf.mxu0
      %7896 = vmatprep.mubr.f32.mxu0 0.0
      %7897 = vmatmul.mubr.f32.gmra.mxu0 %v7097
      %v7898 = vpop.f32.mrf.mxu0
      %v7899 = vadd.f32 0.0, %v7898
      %v7900 = vpop.f32.mrf.mxu0
      %7901 = vmatprep.mubr.f32.mxu0 0.0
      %7902 = vmatmul.mubr.f32.gmra.mxu0 %v7099
      %v7903 = vpop.f32.mrf.mxu0
      %v7904 = vadd.f32 0.0, %v7903
      %v7905 = vpop.f32.mrf.mxu0
      %7906 = vmatprep.mubr.f32.mxu0 0.0
      %7907 = vmatmul.mubr.f32.gmra.mxu0 %v7101
      %v7908 = vpop.f32.mrf.mxu0
      %v7909 = vadd.f32 0.0, %v7908
      %v7910 = vpop.f32.mrf.mxu0
      %7911 = vmatprep.mubr.f32.mxu0 0.0
      %7912 = vmatmul.mubr.f32.gmra.mxu0 %v7103
      %v7913 = vpop.f32.mrf.mxu0
      %v7914 = vadd.f32 0.0, %v7913
      %v7915 = vpop.f32.mrf.mxu0
      %7916 = vmatprep.mubr.f32.mxu0 0.0
      %7917 = vmatmul.mubr.f32.gmra.mxu0 %v7105
      %v7918 = vpop.f32.mrf.mxu0
      %v7919 = vadd.f32 0.0, %v7918
      %v7920 = vpop.f32.mrf.mxu0
      %7921 = vmatprep.mubr.f32.mxu0 0.0
      %7922 = vmatmul.mubr.f32.gmra.mxu0 %v7107
      %v7923 = vpop.f32.mrf.mxu0
      %v7924 = vadd.f32 0.0, %v7923
      %v7925 = vpop.f32.mrf.mxu0
      %7926 = vmatprep.mubr.f32.mxu0 0.0
      %7927 = vmatmul.mubr.f32.gmra.mxu0 %v7109
      %v7928 = vpop.f32.mrf.mxu0
      %v7929 = vadd.f32 0.0, %v7928
      %v7930 = vpop.f32.mrf.mxu0
      %7931 = vmatprep.mubr.f32.mxu0 0.0
      %7932 = vmatmul.mubr.f32.gmra.mxu0 %v7111
      %v7933 = vpop.f32.mrf.mxu0
      %v7934 = vadd.f32 0.0, %v7933
      %v7935 = vpop.f32.mrf.mxu0
      %7936 = vmatprep.mubr.f32.mxu0 0.0
      %7937 = vmatmul.mubr.f32.gmra.mxu0 %v7113
      %v7938 = vpop.f32.mrf.mxu0
      %v7939 = vadd.f32 0.0, %v7938
      %v7940 = vpop.f32.mrf.mxu0
      %7941 = vmatprep.mubr.f32.mxu0 0.0
      %7942 = vmatmul.mubr.f32.gmra.mxu0 %v7115
      %v7943 = vpop.f32.mrf.mxu0
      %v7944 = vadd.f32 0.0, %v7943
      %v7945 = vpop.f32.mrf.mxu0
      %7946 = vmatprep.mubr.f32.mxu0 0.0
      %7947 = vmatmul.mubr.f32.gmra.mxu0 %v7117
      %v7948 = vpop.f32.mrf.mxu0
      %v7949 = vadd.f32 0.0, %v7948
      %v7950 = vpop.f32.mrf.mxu0
      %7951 = vmatprep.mubr.f32.mxu0 0.0
      %7952 = vmatmul.mubr.f32.gmra.mxu0 %v7119
      %v7953 = vpop.f32.mrf.mxu0
      %v7954 = vadd.f32 0.0, %v7953
      %v7955 = vpop.f32.mrf.mxu0
      %7956 = vmatprep.mubr.f32.mxu0 0.0
      %7957 = vmatmul.mubr.f32.gmra.mxu0 %v7121
      %v7958 = vpop.f32.mrf.mxu0
      %v7959 = vadd.f32 0.0, %v7958
      %v7960 = vpop.f32.mrf.mxu0
      %7961 = vmatprep.mubr.f32.mxu0 0.0
      %7962 = vmatmul.mubr.f32.gmra.mxu0 %v7123
      %v7963 = vpop.f32.mrf.mxu0
      %v7964 = vadd.f32 0.0, %v7963
      %v7965 = vpop.f32.mrf.mxu0
      %7966 = vmatprep.mubr.f32.mxu0 0.0
      %7967 = vmatmul.mubr.f32.gmra.mxu0 %v7125
      %v7968 = vpop.f32.mrf.mxu0
      %v7969 = vadd.f32 0.0, %v7968
      %v7970 = vpop.f32.mrf.mxu0
      %7971 = vmatprep.mubr.f32.mxu0 0.0
      %7972 = vmatmul.mubr.f32.gmra.mxu0 %v7127
      %v7973 = vpop.f32.mrf.mxu0
      %v7974 = vadd.f32 0.0, %v7973
      %v7975 = vpop.f32.mrf.mxu0
      %7976 = vmatprep.mubr.f32.mxu0 0.0
      %7977 = vmatmul.mubr.f32.gmra.mxu0 %v7129
      %v7978 = vpop.f32.mrf.mxu0
      %v7979 = vadd.f32 0.0, %v7978
      %v7980 = vpop.f32.mrf.mxu0
      %7981 = vmatprep.mubr.f32.mxu0 0.0
      %7982 = vmatmul.mubr.f32.gmra.mxu0 %v7131
      %v7983 = vpop.f32.mrf.mxu0
      %v7984 = vadd.f32 0.0, %v7983
      %v7985 = vpop.f32.mrf.mxu0
      %7986 = vmatprep.mubr.f32.mxu0 0.0
      %7987 = vmatmul.mubr.f32.gmra.mxu0 %v7133
      %v7988 = vpop.f32.mrf.mxu0
      %v7989 = vadd.f32 0.0, %v7988
      %v7990 = vpop.f32.mrf.mxu0
      %7991 = vmatprep.mubr.f32.mxu0 0.0
      %7992 = vmatmul.mubr.f32.gmra.mxu0 %v7769
      %v7993 = vpop.f32.mrf.mxu0
      %v7994 = vadd.f32 0.0, %v7993
      %v7995 = vpop.f32.mrf.mxu0
      %7996 = vmatprep.mubr.f32.mxu0 0.0
      %7997 = vmatmul.mubr.f32.gmra.mxu0 %v7772
      %v7998 = vpop.f32.mrf.mxu0
      %v7999 = vadd.f32 0.0, %v7998
      %v8000 = vpop.f32.mrf.mxu0
      %8001 = vdwg.mxu0
      %v8002 = vadd.f32 %v7736, %v7844
      %v8003 = vadd.f32 %v7737, %v7849
      %v8004 = vadd.f32 %v7738, %v7854
      %v8005 = vadd.f32 %v7739, %v7859
      %v8006 = vadd.f32 %v7740, %v7864
      %v8007 = vadd.f32 %v7741, %v7869
      %v8008 = vadd.f32 %v7742, %v7874
      %v8009 = vadd.f32 %v7743, %v7879
      %v8010 = vadd.f32 %v7744, %v7884
      %v8011 = vadd.f32 %v7745, %v7889
      %v8012 = vadd.f32 %v7746, %v7894
      %v8013 = vadd.f32 %v7747, %v7899
      %v8014 = vadd.f32 %v7748, %v7904
      %v8015 = vadd.f32 %v7749, %v7909
      %v8016 = vadd.f32 %v7750, %v7914
      %v8017 = vadd.f32 %v7751, %v7919
      %v8018 = vadd.f32 %v7752, %v7924
      %v8019 = vadd.f32 %v7753, %v7929
      %v8020 = vadd.f32 %v7754, %v7934
      %v8021 = vadd.f32 %v7755, %v7939
      %v8022 = vadd.f32 %v7756, %v7944
      %v8023 = vadd.f32 %v7757, %v7949
      %v8024 = vadd.f32 %v7758, %v7954
      %v8025 = vadd.f32 %v7759, %v7959
      %v8026 = vadd.f32 %v7760, %v7964
      %v8027 = vadd.f32 %v7761, %v7969
      %v8028 = vadd.f32 %v7762, %v7974
      %v8029 = vadd.f32 %v7763, %v7979
      %v8030 = vadd.f32 %v7764, %v7984
      %v8031 = vadd.f32 %v7765, %v7989
      %v8032 = vadd.f32 %v7766, %v7994
      %v8033 = vadd.f32 %v7767, %v7999
      %v8035 = vrot.slane %v6643, 1
      %v8036 = vrot.slane %v6644, 1
      %v8037 = vsel %vm6697, %v8035, %v8036
      %v8038 = vrot.slane %v6645, 1
      %v8039 = vsel %vm6697, %v8036, %v8038
      %v8040 = vsel %vm387, %v8037, 0
      %v8042 = vsel %vm387, %v8039, 0
      %v8045 = vsel %vm6842, %v6556, 0
      %8047 = vmatprep.subr.mxu0 0.0
      %8048 = vmatpush1.msra.mxu0 0.0
      %8049 = vmatprep.subr.mxu0 0.0
      %8050 = vmatpush1.msra.mxu0 0.0
      %8051 = vmatprep.subr.mxu0 0.0
      %8052 = vmatpush1.msra.mxu0 0.0
      %8053 = vmatprep.subr.mxu0 0.0
      %8054 = vmatpush1.msra.mxu0 0.0
      %8055 = vmatprep.subr.mxu0 0.0
      %8056 = vmatpush1.msra.mxu0 0.0
      %8057 = vmatprep.subr.mxu0 0.0
      %8058 = vmatpush1.msra.mxu0 0.0
      %8059 = vmatprep.subr.mxu0 0.0
      %8060 = vmatpush1.msra.mxu0 0.0
      %8061 = vmatprep.subr.mxu0 0.0
      %8062 = vmatpush1.msra.mxu0 0.0
      %8063 = vmatprep.subr.mxu0 0.0
      %8064 = vmatpush1.msra.mxu0 0.0
      %8065 = vmatprep.subr.mxu0 0.0
      %8066 = vmatpush1.msra.mxu0 0.0
      %8067 = vmatprep.subr.mxu0 0.0
      %8068 = vmatpush1.msra.mxu0 0.0
      %8069 = vmatprep.subr.mxu0 0.0
      %8070 = vmatpush1.msra.mxu0 0.0
      %8071 = vmatprep.subr.mxu0 0.0
      %8072 = vmatpush1.msra.mxu0 0.0
      %8073 = vmatprep.subr.mxu0 0.0
      %8074 = vmatpush1.msra.mxu0 0.0
      %8075 = vmatprep.subr.mxu0 0.0
      %8076 = vmatpush1.msra.mxu0 0.0
      %8077 = vmatprep.subr.mxu0 0.0
      %8078 = vmatpush1.msra.mxu0 %v8045
      %8079 = vmatprep.subr.mxu0 0.0
      %8080 = vmatpush2.msra.mxu0 0.0
      %8081 = vmatprep.subr.mxu0 0.0
      %8082 = vmatpush2.msra.mxu0 0.0
      %8083 = vmatprep.subr.mxu0 0.0
      %8084 = vmatpush2.msra.mxu0 0.0
      %8085 = vmatprep.subr.mxu0 0.0
      %8086 = vmatpush2.msra.mxu0 0.0
      %8087 = vmatprep.subr.mxu0 0.0
      %8088 = vmatpush2.msra.mxu0 0.0
      %8089 = vmatprep.subr.mxu0 0.0
      %8090 = vmatpush2.msra.mxu0 0.0
      %8091 = vmatprep.subr.mxu0 0.0
      %8092 = vmatpush2.msra.mxu0 0.0
      %8093 = vmatprep.subr.mxu0 0.0
      %8094 = vmatpush2.msra.mxu0 0.0
      %8095 = vmatprep.subr.mxu0 0.0
      %8096 = vmatpush2.msra.mxu0 0.0
      %8097 = vmatprep.subr.mxu0 0.0
      %8098 = vmatpush2.msra.mxu0 0.0
      %8099 = vmatprep.subr.mxu0 0.0
      %8100 = vmatpush2.msra.mxu0 0.0
      %8101 = vmatprep.subr.mxu0 0.0
      %8102 = vmatpush2.msra.mxu0 0.0
      %8103 = vmatprep.subr.mxu0 0.0
      %8104 = vmatpush2.msra.mxu0 0.0
      %8105 = vmatprep.subr.mxu0 0.0
      %8106 = vmatpush2.msra.mxu0 0.0
      %8107 = vmatprep.subr.mxu0 0.0
      %8108 = vmatpush2.msra.mxu0 0.0
      %8109 = vmatprep.subr.mxu0 0.0
      %8110 = vmatpush2.msra.mxu0 0.0
      %8111 = vmatprep.mubr.f32.mxu0 0.0
      %8112 = vmatmul.mubr.f32.gmra.mxu0 %v6782
      %v8113 = vpop.f32.mrf.mxu0
      %v8114 = vadd.f32 0.0, %v8113
      %v8115 = vpop.f32.mrf.mxu0
      %8116 = vmatprep.mubr.f32.mxu0 0.0
      %8117 = vmatmul.mubr.f32.gmra.mxu0 %v6784
      %v8118 = vpop.f32.mrf.mxu0
      %v8119 = vadd.f32 0.0, %v8118
      %v8120 = vpop.f32.mrf.mxu0
      %8121 = vmatprep.mubr.f32.mxu0 0.0
      %8122 = vmatmul.mubr.f32.gmra.mxu0 %v6786
      %v8123 = vpop.f32.mrf.mxu0
      %v8124 = vadd.f32 0.0, %v8123
      %v8125 = vpop.f32.mrf.mxu0
      %8126 = vmatprep.mubr.f32.mxu0 0.0
      %8127 = vmatmul.mubr.f32.gmra.mxu0 %v6788
      %v8128 = vpop.f32.mrf.mxu0
      %v8129 = vadd.f32 0.0, %v8128
      %v8130 = vpop.f32.mrf.mxu0
      %8131 = vmatprep.mubr.f32.mxu0 0.0
      %8132 = vmatmul.mubr.f32.gmra.mxu0 %v6790
      %v8133 = vpop.f32.mrf.mxu0
      %v8134 = vadd.f32 0.0, %v8133
      %v8135 = vpop.f32.mrf.mxu0
      %8136 = vmatprep.mubr.f32.mxu0 0.0
      %8137 = vmatmul.mubr.f32.gmra.mxu0 %v6792
      %v8138 = vpop.f32.mrf.mxu0
      %v8139 = vadd.f32 0.0, %v8138
      %v8140 = vpop.f32.mrf.mxu0
      %8141 = vmatprep.mubr.f32.mxu0 0.0
      %8142 = vmatmul.mubr.f32.gmra.mxu0 %v6794
      %v8143 = vpop.f32.mrf.mxu0
      %v8144 = vadd.f32 0.0, %v8143
      %v8145 = vpop.f32.mrf.mxu0
      %8146 = vmatprep.mubr.f32.mxu0 0.0
      %8147 = vmatmul.mubr.f32.gmra.mxu0 %v6796
      %v8148 = vpop.f32.mrf.mxu0
      %v8149 = vadd.f32 0.0, %v8148
      %v8150 = vpop.f32.mrf.mxu0
      %8151 = vmatprep.mubr.f32.mxu0 0.0
      %8152 = vmatmul.mubr.f32.gmra.mxu0 %v6798
      %v8153 = vpop.f32.mrf.mxu0
      %v8154 = vadd.f32 0.0, %v8153
      %v8155 = vpop.f32.mrf.mxu0
      %8156 = vmatprep.mubr.f32.mxu0 0.0
      %8157 = vmatmul.mubr.f32.gmra.mxu0 %v6800
      %v8158 = vpop.f32.mrf.mxu0
      %v8159 = vadd.f32 0.0, %v8158
      %v8160 = vpop.f32.mrf.mxu0
      %8161 = vmatprep.mubr.f32.mxu0 0.0
      %8162 = vmatmul.mubr.f32.gmra.mxu0 %v6802
      %v8163 = vpop.f32.mrf.mxu0
      %v8164 = vadd.f32 0.0, %v8163
      %v8165 = vpop.f32.mrf.mxu0
      %8166 = vmatprep.mubr.f32.mxu0 0.0
      %8167 = vmatmul.mubr.f32.gmra.mxu0 %v6804
      %v8168 = vpop.f32.mrf.mxu0
      %v8169 = vadd.f32 0.0, %v8168
      %v8170 = vpop.f32.mrf.mxu0
      %8171 = vmatprep.mubr.f32.mxu0 0.0
      %8172 = vmatmul.mubr.f32.gmra.mxu0 %v6806
      %v8173 = vpop.f32.mrf.mxu0
      %v8174 = vadd.f32 0.0, %v8173
      %v8175 = vpop.f32.mrf.mxu0
      %8176 = vmatprep.mubr.f32.mxu0 0.0
      %8177 = vmatmul.mubr.f32.gmra.mxu0 %v6808
      %v8178 = vpop.f32.mrf.mxu0
      %v8179 = vadd.f32 0.0, %v8178
      %v8180 = vpop.f32.mrf.mxu0
      %8181 = vmatprep.mubr.f32.mxu0 0.0
      %8182 = vmatmul.mubr.f32.gmra.mxu0 %v6810
      %v8183 = vpop.f32.mrf.mxu0
      %v8184 = vadd.f32 0.0, %v8183
      %v8185 = vpop.f32.mrf.mxu0
      %8186 = vmatprep.mubr.f32.mxu0 0.0
      %8187 = vmatmul.mubr.f32.gmra.mxu0 %v6812
      %v8188 = vpop.f32.mrf.mxu0
      %v8189 = vadd.f32 0.0, %v8188
      %v8190 = vpop.f32.mrf.mxu0
      %8191 = vmatprep.mubr.f32.mxu0 0.0
      %8192 = vmatmul.mubr.f32.gmra.mxu0 %v6814
      %v8193 = vpop.f32.mrf.mxu0
      %v8194 = vadd.f32 0.0, %v8193
      %v8195 = vpop.f32.mrf.mxu0
      %8196 = vmatprep.mubr.f32.mxu0 0.0
      %8197 = vmatmul.mubr.f32.gmra.mxu0 %v6816
      %v8198 = vpop.f32.mrf.mxu0
      %v8199 = vadd.f32 0.0, %v8198
      %v8200 = vpop.f32.mrf.mxu0
      %8201 = vmatprep.mubr.f32.mxu0 0.0
      %8202 = vmatmul.mubr.f32.gmra.mxu0 %v6818
      %v8203 = vpop.f32.mrf.mxu0
      %v8204 = vadd.f32 0.0, %v8203
      %v8205 = vpop.f32.mrf.mxu0
      %8206 = vmatprep.mubr.f32.mxu0 0.0
      %8207 = vmatmul.mubr.f32.gmra.mxu0 %v6820
      %v8208 = vpop.f32.mrf.mxu0
      %v8209 = vadd.f32 0.0, %v8208
      %v8210 = vpop.f32.mrf.mxu0
      %8211 = vmatprep.mubr.f32.mxu0 0.0
      %8212 = vmatmul.mubr.f32.gmra.mxu0 %v6822
      %v8213 = vpop.f32.mrf.mxu0
      %v8214 = vadd.f32 0.0, %v8213
      %v8215 = vpop.f32.mrf.mxu0
      %8216 = vmatprep.mubr.f32.mxu0 0.0
      %8217 = vmatmul.mubr.f32.gmra.mxu0 %v6824
      %v8218 = vpop.f32.mrf.mxu0
      %v8219 = vadd.f32 0.0, %v8218
      %v8220 = vpop.f32.mrf.mxu0
      %8221 = vmatprep.mubr.f32.mxu0 0.0
      %8222 = vmatmul.mubr.f32.gmra.mxu0 %v6826
      %v8223 = vpop.f32.mrf.mxu0
      %v8224 = vadd.f32 0.0, %v8223
      %v8225 = vpop.f32.mrf.mxu0
      %8226 = vmatprep.mubr.f32.mxu0 0.0
      %8227 = vmatmul.mubr.f32.gmra.mxu0 %v6828
      %v8228 = vpop.f32.mrf.mxu0
      %v8229 = vadd.f32 0.0, %v8228
      %v8230 = vpop.f32.mrf.mxu0
      %8231 = vmatprep.mubr.f32.mxu0 0.0
      %8232 = vmatmul.mubr.f32.gmra.mxu0 %v6830
      %v8233 = vpop.f32.mrf.mxu0
      %v8234 = vadd.f32 0.0, %v8233
      %v8235 = vpop.f32.mrf.mxu0
      %8236 = vmatprep.mubr.f32.mxu0 0.0
      %8237 = vmatmul.mubr.f32.gmra.mxu0 %v6832
      %v8238 = vpop.f32.mrf.mxu0
      %v8239 = vadd.f32 0.0, %v8238
      %v8240 = vpop.f32.mrf.mxu0
      %8241 = vmatprep.mubr.f32.mxu0 0.0
      %8242 = vmatmul.mubr.f32.gmra.mxu0 %v6834
      %v8243 = vpop.f32.mrf.mxu0
      %v8244 = vadd.f32 0.0, %v8243
      %v8245 = vpop.f32.mrf.mxu0
      %8246 = vmatprep.mubr.f32.mxu0 0.0
      %8247 = vmatmul.mubr.f32.gmra.mxu0 %v6836
      %v8248 = vpop.f32.mrf.mxu0
      %v8249 = vadd.f32 0.0, %v8248
      %v8250 = vpop.f32.mrf.mxu0
      %8251 = vmatprep.mubr.f32.mxu0 0.0
      %8252 = vmatmul.mubr.f32.gmra.mxu0 %v6838
      %v8253 = vpop.f32.mrf.mxu0
      %v8254 = vadd.f32 0.0, %v8253
      %v8255 = vpop.f32.mrf.mxu0
      %8256 = vmatprep.mubr.f32.mxu0 0.0
      %8257 = vmatmul.mubr.f32.gmra.mxu0 %v6840
      %v8258 = vpop.f32.mrf.mxu0
      %v8259 = vadd.f32 0.0, %v8258
      %v8260 = vpop.f32.mrf.mxu0
      %8261 = vmatprep.mubr.f32.mxu0 0.0
      %8262 = vmatmul.mubr.f32.gmra.mxu0 %v8040
      %v8263 = vpop.f32.mrf.mxu0
      %v8264 = vadd.f32 0.0, %v8263
      %v8265 = vpop.f32.mrf.mxu0
      %8266 = vmatprep.mubr.f32.mxu0 0.0
      %8267 = vmatmul.mubr.f32.gmra.mxu0 %v8042
      %v8268 = vpop.f32.mrf.mxu0
      %v8269 = vadd.f32 0.0, %v8268
      %v8270 = vpop.f32.mrf.mxu0
      %8271 = vdwg.mxu0
      %v8272 = vadd.f32 %v8002, %v8114
      %v8273 = vadd.f32 %v8003, %v8119
      %v8274 = vadd.f32 %v8004, %v8124
      %v8275 = vadd.f32 %v8005, %v8129
      %v8276 = vadd.f32 %v8006, %v8134
      %v8277 = vadd.f32 %v8007, %v8139
      %v8278 = vadd.f32 %v8008, %v8144
      %v8279 = vadd.f32 %v8009, %v8149
      %v8280 = vadd.f32 %v8010, %v8154
      %v8281 = vadd.f32 %v8011, %v8159
      %v8282 = vadd.f32 %v8012, %v8164
      %v8283 = vadd.f32 %v8013, %v8169
      %v8284 = vadd.f32 %v8014, %v8174
      %v8285 = vadd.f32 %v8015, %v8179
      %v8286 = vadd.f32 %v8016, %v8184
      %v8287 = vadd.f32 %v8017, %v8189
      %v8288 = vadd.f32 %v8018, %v8194
      %v8289 = vadd.f32 %v8019, %v8199
      %v8290 = vadd.f32 %v8020, %v8204
      %v8291 = vadd.f32 %v8021, %v8209
      %v8292 = vadd.f32 %v8022, %v8214
      %v8293 = vadd.f32 %v8023, %v8219
      %v8294 = vadd.f32 %v8024, %v8224
      %v8295 = vadd.f32 %v8025, %v8229
      %v8296 = vadd.f32 %v8026, %v8234
      %v8297 = vadd.f32 %v8027, %v8239
      %v8298 = vadd.f32 %v8028, %v8244
      %v8299 = vadd.f32 %v8029, %v8249
      %v8300 = vadd.f32 %v8030, %v8254
      %v8301 = vadd.f32 %v8031, %v8259
      %v8302 = vadd.f32 %v8032, %v8264
      %v8303 = vadd.f32 %v8033, %v8269
      %v8304 = vrot.slane %v6643, 2
      %v8305 = vrot.slane %v6644, 2
      %v8306 = vsel %vm7363, %v8304, %v8305
      %v8307 = vrot.slane %v6645, 2
      %v8308 = vsel %vm7363, %v8305, %v8307
      %v8309 = vsel %vm387, %v8306, 0
      %v8311 = vsel %vm387, %v8308, 0
      %v8314 = vsel %vm6842, %v6557, 0
      %8316 = vmatprep.subr.mxu0 0.0
      %8317 = vmatpush1.msra.mxu0 0.0
      %8318 = vmatprep.subr.mxu0 0.0
      %8319 = vmatpush1.msra.mxu0 0.0
      %8320 = vmatprep.subr.mxu0 0.0
      %8321 = vmatpush1.msra.mxu0 0.0
      %8322 = vmatprep.subr.mxu0 0.0
      %8323 = vmatpush1.msra.mxu0 0.0
      %8324 = vmatprep.subr.mxu0 0.0
      %8325 = vmatpush1.msra.mxu0 0.0
      %8326 = vmatprep.subr.mxu0 0.0
      %8327 = vmatpush1.msra.mxu0 0.0
      %8328 = vmatprep.subr.mxu0 0.0
      %8329 = vmatpush1.msra.mxu0 0.0
      %8330 = vmatprep.subr.mxu0 0.0
      %8331 = vmatpush1.msra.mxu0 0.0
      %8332 = vmatprep.subr.mxu0 0.0
      %8333 = vmatpush1.msra.mxu0 0.0
      %8334 = vmatprep.subr.mxu0 0.0
      %8335 = vmatpush1.msra.mxu0 0.0
      %8336 = vmatprep.subr.mxu0 0.0
      %8337 = vmatpush1.msra.mxu0 0.0
      %8338 = vmatprep.subr.mxu0 0.0
      %8339 = vmatpush1.msra.mxu0 0.0
      %8340 = vmatprep.subr.mxu0 0.0
      %8341 = vmatpush1.msra.mxu0 0.0
      %8342 = vmatprep.subr.mxu0 0.0
      %8343 = vmatpush1.msra.mxu0 0.0
      %8344 = vmatprep.subr.mxu0 0.0
      %8345 = vmatpush1.msra.mxu0 0.0
      %8346 = vmatprep.subr.mxu0 0.0
      %8347 = vmatpush1.msra.mxu0 %v8314
      %8348 = vmatprep.subr.mxu0 0.0
      %8349 = vmatpush2.msra.mxu0 0.0
      %8350 = vmatprep.subr.mxu0 0.0
      %8351 = vmatpush2.msra.mxu0 0.0
      %8352 = vmatprep.subr.mxu0 0.0
      %8353 = vmatpush2.msra.mxu0 0.0
      %8354 = vmatprep.subr.mxu0 0.0
      %8355 = vmatpush2.msra.mxu0 0.0
      %8356 = vmatprep.subr.mxu0 0.0
      %8357 = vmatpush2.msra.mxu0 0.0
      %8358 = vmatprep.subr.mxu0 0.0
      %8359 = vmatpush2.msra.mxu0 0.0
      %8360 = vmatprep.subr.mxu0 0.0
      %8361 = vmatpush2.msra.mxu0 0.0
      %8362 = vmatprep.subr.mxu0 0.0
      %8363 = vmatpush2.msra.mxu0 0.0
      %8364 = vmatprep.subr.mxu0 0.0
      %8365 = vmatpush2.msra.mxu0 0.0
      %8366 = vmatprep.subr.mxu0 0.0
      %8367 = vmatpush2.msra.mxu0 0.0
      %8368 = vmatprep.subr.mxu0 0.0
      %8369 = vmatpush2.msra.mxu0 0.0
      %8370 = vmatprep.subr.mxu0 0.0
      %8371 = vmatpush2.msra.mxu0 0.0
      %8372 = vmatprep.subr.mxu0 0.0
      %8373 = vmatpush2.msra.mxu0 0.0
      %8374 = vmatprep.subr.mxu0 0.0
      %8375 = vmatpush2.msra.mxu0 0.0
      %8376 = vmatprep.subr.mxu0 0.0
      %8377 = vmatpush2.msra.mxu0 0.0
      %8378 = vmatprep.subr.mxu0 0.0
      %8379 = vmatpush2.msra.mxu0 0.0
      %8380 = vmatprep.mubr.f32.mxu0 0.0
      %8381 = vmatmul.mubr.f32.gmra.mxu0 %v7448
      %v8382 = vpop.f32.mrf.mxu0
      %v8383 = vadd.f32 0.0, %v8382
      %v8384 = vpop.f32.mrf.mxu0
      %8385 = vmatprep.mubr.f32.mxu0 0.0
      %8386 = vmatmul.mubr.f32.gmra.mxu0 %v7450
      %v8387 = vpop.f32.mrf.mxu0
      %v8388 = vadd.f32 0.0, %v8387
      %v8389 = vpop.f32.mrf.mxu0
      %8390 = vmatprep.mubr.f32.mxu0 0.0
      %8391 = vmatmul.mubr.f32.gmra.mxu0 %v7452
      %v8392 = vpop.f32.mrf.mxu0
      %v8393 = vadd.f32 0.0, %v8392
      %v8394 = vpop.f32.mrf.mxu0
      %8395 = vmatprep.mubr.f32.mxu0 0.0
      %8396 = vmatmul.mubr.f32.gmra.mxu0 %v7454
      %v8397 = vpop.f32.mrf.mxu0
      %v8398 = vadd.f32 0.0, %v8397
      %v8399 = vpop.f32.mrf.mxu0
      %8400 = vmatprep.mubr.f32.mxu0 0.0
      %8401 = vmatmul.mubr.f32.gmra.mxu0 %v7456
      %v8402 = vpop.f32.mrf.mxu0
      %v8403 = vadd.f32 0.0, %v8402
      %v8404 = vpop.f32.mrf.mxu0
      %8405 = vmatprep.mubr.f32.mxu0 0.0
      %8406 = vmatmul.mubr.f32.gmra.mxu0 %v7458
      %v8407 = vpop.f32.mrf.mxu0
      %v8408 = vadd.f32 0.0, %v8407
      %v8409 = vpop.f32.mrf.mxu0
      %8410 = vmatprep.mubr.f32.mxu0 0.0
      %8411 = vmatmul.mubr.f32.gmra.mxu0 %v7460
      %v8412 = vpop.f32.mrf.mxu0
      %v8413 = vadd.f32 0.0, %v8412
      %v8414 = vpop.f32.mrf.mxu0
      %8415 = vmatprep.mubr.f32.mxu0 0.0
      %8416 = vmatmul.mubr.f32.gmra.mxu0 %v7462
      %v8417 = vpop.f32.mrf.mxu0
      %v8418 = vadd.f32 0.0, %v8417
      %v8419 = vpop.f32.mrf.mxu0
      %8420 = vmatprep.mubr.f32.mxu0 0.0
      %8421 = vmatmul.mubr.f32.gmra.mxu0 %v7464
      %v8422 = vpop.f32.mrf.mxu0
      %v8423 = vadd.f32 0.0, %v8422
      %v8424 = vpop.f32.mrf.mxu0
      %8425 = vmatprep.mubr.f32.mxu0 0.0
      %8426 = vmatmul.mubr.f32.gmra.mxu0 %v7466
      %v8427 = vpop.f32.mrf.mxu0
      %v8428 = vadd.f32 0.0, %v8427
      %v8429 = vpop.f32.mrf.mxu0
      %8430 = vmatprep.mubr.f32.mxu0 0.0
      %8431 = vmatmul.mubr.f32.gmra.mxu0 %v7468
      %v8432 = vpop.f32.mrf.mxu0
      %v8433 = vadd.f32 0.0, %v8432
      %v8434 = vpop.f32.mrf.mxu0
      %8435 = vmatprep.mubr.f32.mxu0 0.0
      %8436 = vmatmul.mubr.f32.gmra.mxu0 %v7470
      %v8437 = vpop.f32.mrf.mxu0
      %v8438 = vadd.f32 0.0, %v8437
      %v8439 = vpop.f32.mrf.mxu0
      %8440 = vmatprep.mubr.f32.mxu0 0.0
      %8441 = vmatmul.mubr.f32.gmra.mxu0 %v7472
      %v8442 = vpop.f32.mrf.mxu0
      %v8443 = vadd.f32 0.0, %v8442
      %v8444 = vpop.f32.mrf.mxu0
      %8445 = vmatprep.mubr.f32.mxu0 0.0
      %8446 = vmatmul.mubr.f32.gmra.mxu0 %v7474
      %v8447 = vpop.f32.mrf.mxu0
      %v8448 = vadd.f32 0.0, %v8447
      %v8449 = vpop.f32.mrf.mxu0
      %8450 = vmatprep.mubr.f32.mxu0 0.0
      %8451 = vmatmul.mubr.f32.gmra.mxu0 %v7476
      %v8452 = vpop.f32.mrf.mxu0
      %v8453 = vadd.f32 0.0, %v8452
      %v8454 = vpop.f32.mrf.mxu0
      %8455 = vmatprep.mubr.f32.mxu0 0.0
      %8456 = vmatmul.mubr.f32.gmra.mxu0 %v7478
      %v8457 = vpop.f32.mrf.mxu0
      %v8458 = vadd.f32 0.0, %v8457
      %v8459 = vpop.f32.mrf.mxu0
      %8460 = vmatprep.mubr.f32.mxu0 0.0
      %8461 = vmatmul.mubr.f32.gmra.mxu0 %v7480
      %v8462 = vpop.f32.mrf.mxu0
      %v8463 = vadd.f32 0.0, %v8462
      %v8464 = vpop.f32.mrf.mxu0
      %8465 = vmatprep.mubr.f32.mxu0 0.0
      %8466 = vmatmul.mubr.f32.gmra.mxu0 %v7482
      %v8467 = vpop.f32.mrf.mxu0
      %v8468 = vadd.f32 0.0, %v8467
      %v8469 = vpop.f32.mrf.mxu0
      %8470 = vmatprep.mubr.f32.mxu0 0.0
      %8471 = vmatmul.mubr.f32.gmra.mxu0 %v7484
      %v8472 = vpop.f32.mrf.mxu0
      %v8473 = vadd.f32 0.0, %v8472
      %v8474 = vpop.f32.mrf.mxu0
      %8475 = vmatprep.mubr.f32.mxu0 0.0
      %8476 = vmatmul.mubr.f32.gmra.mxu0 %v7486
      %v8477 = vpop.f32.mrf.mxu0
      %v8478 = vadd.f32 0.0, %v8477
      %v8479 = vpop.f32.mrf.mxu0
      %8480 = vmatprep.mubr.f32.mxu0 0.0
      %8481 = vmatmul.mubr.f32.gmra.mxu0 %v7488
      %v8482 = vpop.f32.mrf.mxu0
      %v8483 = vadd.f32 0.0, %v8482
      %v8484 = vpop.f32.mrf.mxu0
      %8485 = vmatprep.mubr.f32.mxu0 0.0
      %8486 = vmatmul.mubr.f32.gmra.mxu0 %v7490
      %v8487 = vpop.f32.mrf.mxu0
      %v8488 = vadd.f32 0.0, %v8487
      %v8489 = vpop.f32.mrf.mxu0
      %8490 = vmatprep.mubr.f32.mxu0 0.0
      %8491 = vmatmul.mubr.f32.gmra.mxu0 %v7492
      %v8492 = vpop.f32.mrf.mxu0
      %v8493 = vadd.f32 0.0, %v8492
      %v8494 = vpop.f32.mrf.mxu0
      %8495 = vmatprep.mubr.f32.mxu0 0.0
      %8496 = vmatmul.mubr.f32.gmra.mxu0 %v7494
      %v8497 = vpop.f32.mrf.mxu0
      %v8498 = vadd.f32 0.0, %v8497
      %v8499 = vpop.f32.mrf.mxu0
      %8500 = vmatprep.mubr.f32.mxu0 0.0
      %8501 = vmatmul.mubr.f32.gmra.mxu0 %v7496
      %v8502 = vpop.f32.mrf.mxu0
      %v8503 = vadd.f32 0.0, %v8502
      %v8504 = vpop.f32.mrf.mxu0
      %8505 = vmatprep.mubr.f32.mxu0 0.0
      %8506 = vmatmul.mubr.f32.gmra.mxu0 %v7498
      %v8507 = vpop.f32.mrf.mxu0
      %v8508 = vadd.f32 0.0, %v8507
      %v8509 = vpop.f32.mrf.mxu0
      %8510 = vmatprep.mubr.f32.mxu0 0.0
      %8511 = vmatmul.mubr.f32.gmra.mxu0 %v7500
      %v8512 = vpop.f32.mrf.mxu0
      %v8513 = vadd.f32 0.0, %v8512
      %v8514 = vpop.f32.mrf.mxu0
      %8515 = vmatprep.mubr.f32.mxu0 0.0
      %8516 = vmatmul.mubr.f32.gmra.mxu0 %v7502
      %v8517 = vpop.f32.mrf.mxu0
      %v8518 = vadd.f32 0.0, %v8517
      %v8519 = vpop.f32.mrf.mxu0
      %8520 = vmatprep.mubr.f32.mxu0 0.0
      %8521 = vmatmul.mubr.f32.gmra.mxu0 %v7504
      %v8522 = vpop.f32.mrf.mxu0
      %v8523 = vadd.f32 0.0, %v8522
      %v8524 = vpop.f32.mrf.mxu0
      %8525 = vmatprep.mubr.f32.mxu0 0.0
      %8526 = vmatmul.mubr.f32.gmra.mxu0 %v7506
      %v8527 = vpop.f32.mrf.mxu0
      %v8528 = vadd.f32 0.0, %v8527
      %v8529 = vpop.f32.mrf.mxu0
      %8530 = vmatprep.mubr.f32.mxu0 0.0
      %8531 = vmatmul.mubr.f32.gmra.mxu0 %v8309
      %v8532 = vpop.f32.mrf.mxu0
      %v8533 = vadd.f32 0.0, %v8532
      %v8534 = vpop.f32.mrf.mxu0
      %8535 = vmatprep.mubr.f32.mxu0 0.0
      %8536 = vmatmul.mubr.f32.gmra.mxu0 %v8311
      %v8537 = vpop.f32.mrf.mxu0
      %v8538 = vadd.f32 0.0, %v8537
      %v8539 = vpop.f32.mrf.mxu0
      %8540 = vdwg.mxu0
      %v8541 = vadd.f32 %v8272, %v8383
      %v8542 = vadd.f32 %v8273, %v8388
      %v8543 = vadd.f32 %v8274, %v8393
      %v8544 = vadd.f32 %v8275, %v8398
      %v8545 = vadd.f32 %v8276, %v8403
      %v8546 = vadd.f32 %v8277, %v8408
      %v8547 = vadd.f32 %v8278, %v8413
      %v8548 = vadd.f32 %v8279, %v8418
      %v8549 = vadd.f32 %v8280, %v8423
      %v8550 = vadd.f32 %v8281, %v8428
      %v8551 = vadd.f32 %v8282, %v8433
      %v8552 = vadd.f32 %v8283, %v8438
      %v8553 = vadd.f32 %v8284, %v8443
      %v8554 = vadd.f32 %v8285, %v8448
      %v8555 = vadd.f32 %v8286, %v8453
      %v8556 = vadd.f32 %v8287, %v8458
      %v8557 = vadd.f32 %v8288, %v8463
      %v8558 = vadd.f32 %v8289, %v8468
      %v8559 = vadd.f32 %v8290, %v8473
      %v8560 = vadd.f32 %v8291, %v8478
      %v8561 = vadd.f32 %v8292, %v8483
      %v8562 = vadd.f32 %v8293, %v8488
      %v8563 = vadd.f32 %v8294, %v8493
      %v8564 = vadd.f32 %v8295, %v8498
      %v8565 = vadd.f32 %v8296, %v8503
      %v8566 = vadd.f32 %v8297, %v8508
      %v8567 = vadd.f32 %v8298, %v8513
      %v8568 = vadd.f32 %v8299, %v8518
      %v8569 = vadd.f32 %v8300, %v8523
      %v8570 = vadd.f32 %v8301, %v8528
      %v8571 = vadd.f32 %v8302, %v8533
      %v8572 = vadd.f32 %v8303, %v8538
      %v8574 = vsel %vm387, %v6646, 0
      %v8577 = vsel %vm387, %v6647, 0
      %v8580 = vsel %vm6842, %v6558, 0
      %8582 = vmatprep.subr.mxu0 0.0
      %8583 = vmatpush1.msra.mxu0 0.0
      %8584 = vmatprep.subr.mxu0 0.0
      %8585 = vmatpush1.msra.mxu0 0.0
      %8586 = vmatprep.subr.mxu0 0.0
      %8587 = vmatpush1.msra.mxu0 0.0
      %8588 = vmatprep.subr.mxu0 0.0
      %8589 = vmatpush1.msra.mxu0 0.0
      %8590 = vmatprep.subr.mxu0 0.0
      %8591 = vmatpush1.msra.mxu0 0.0
      %8592 = vmatprep.subr.mxu0 0.0
      %8593 = vmatpush1.msra.mxu0 0.0
      %8594 = vmatprep.subr.mxu0 0.0
      %8595 = vmatpush1.msra.mxu0 0.0
      %8596 = vmatprep.subr.mxu0 0.0
      %8597 = vmatpush1.msra.mxu0 0.0
      %8598 = vmatprep.subr.mxu0 0.0
      %8599 = vmatpush1.msra.mxu0 0.0
      %8600 = vmatprep.subr.mxu0 0.0
      %8601 = vmatpush1.msra.mxu0 0.0
      %8602 = vmatprep.subr.mxu0 0.0
      %8603 = vmatpush1.msra.mxu0 0.0
      %8604 = vmatprep.subr.mxu0 0.0
      %8605 = vmatpush1.msra.mxu0 0.0
      %8606 = vmatprep.subr.mxu0 0.0
      %8607 = vmatpush1.msra.mxu0 0.0
      %8608 = vmatprep.subr.mxu0 0.0
      %8609 = vmatpush1.msra.mxu0 0.0
      %8610 = vmatprep.subr.mxu0 0.0
      %8611 = vmatpush1.msra.mxu0 0.0
      %8612 = vmatprep.subr.mxu0 0.0
      %8613 = vmatpush1.msra.mxu0 %v8580
      %8614 = vmatprep.subr.mxu0 0.0
      %8615 = vmatpush2.msra.mxu0 0.0
      %8616 = vmatprep.subr.mxu0 0.0
      %8617 = vmatpush2.msra.mxu0 0.0
      %8618 = vmatprep.subr.mxu0 0.0
      %8619 = vmatpush2.msra.mxu0 0.0
      %8620 = vmatprep.subr.mxu0 0.0
      %8621 = vmatpush2.msra.mxu0 0.0
      %8622 = vmatprep.subr.mxu0 0.0
      %8623 = vmatpush2.msra.mxu0 0.0
      %8624 = vmatprep.subr.mxu0 0.0
      %8625 = vmatpush2.msra.mxu0 0.0
      %8626 = vmatprep.subr.mxu0 0.0
      %8627 = vmatpush2.msra.mxu0 0.0
      %8628 = vmatprep.subr.mxu0 0.0
      %8629 = vmatpush2.msra.mxu0 0.0
      %8630 = vmatprep.subr.mxu0 0.0
      %8631 = vmatpush2.msra.mxu0 0.0
      %8632 = vmatprep.subr.mxu0 0.0
      %8633 = vmatpush2.msra.mxu0 0.0
      %8634 = vmatprep.subr.mxu0 0.0
      %8635 = vmatpush2.msra.mxu0 0.0
      %8636 = vmatprep.subr.mxu0 0.0
      %8637 = vmatpush2.msra.mxu0 0.0
      %8638 = vmatprep.subr.mxu0 0.0
      %8639 = vmatpush2.msra.mxu0 0.0
      %8640 = vmatprep.subr.mxu0 0.0
      %8641 = vmatpush2.msra.mxu0 0.0
      %8642 = vmatprep.subr.mxu0 0.0
      %8643 = vmatpush2.msra.mxu0 0.0
      %8644 = vmatprep.subr.mxu0 0.0
      %8645 = vmatpush2.msra.mxu0 0.0
      %8646 = vmatprep.mubr.f32.mxu0 0.0
      %8647 = vmatmul.mubr.f32.gmra.mxu0 %v7079
      %v8648 = vpop.f32.mrf.mxu0
      %v8649 = vadd.f32 0.0, %v8648
      %v8650 = vpop.f32.mrf.mxu0
      %8651 = vmatprep.mubr.f32.mxu0 0.0
      %8652 = vmatmul.mubr.f32.gmra.mxu0 %v7081
      %v8653 = vpop.f32.mrf.mxu0
      %v8654 = vadd.f32 0.0, %v8653
      %v8655 = vpop.f32.mrf.mxu0
      %8656 = vmatprep.mubr.f32.mxu0 0.0
      %8657 = vmatmul.mubr.f32.gmra.mxu0 %v7083
      %v8658 = vpop.f32.mrf.mxu0
      %v8659 = vadd.f32 0.0, %v8658
      %v8660 = vpop.f32.mrf.mxu0
      %8661 = vmatprep.mubr.f32.mxu0 0.0
      %8662 = vmatmul.mubr.f32.gmra.mxu0 %v7085
      %v8663 = vpop.f32.mrf.mxu0
      %v8664 = vadd.f32 0.0, %v8663
      %v8665 = vpop.f32.mrf.mxu0
      %8666 = vmatprep.mubr.f32.mxu0 0.0
      %8667 = vmatmul.mubr.f32.gmra.mxu0 %v7087
      %v8668 = vpop.f32.mrf.mxu0
      %v8669 = vadd.f32 0.0, %v8668
      %v8670 = vpop.f32.mrf.mxu0
      %8671 = vmatprep.mubr.f32.mxu0 0.0
      %8672 = vmatmul.mubr.f32.gmra.mxu0 %v7089
      %v8673 = vpop.f32.mrf.mxu0
      %v8674 = vadd.f32 0.0, %v8673
      %v8675 = vpop.f32.mrf.mxu0
      %8676 = vmatprep.mubr.f32.mxu0 0.0
      %8677 = vmatmul.mubr.f32.gmra.mxu0 %v7091
      %v8678 = vpop.f32.mrf.mxu0
      %v8679 = vadd.f32 0.0, %v8678
      %v8680 = vpop.f32.mrf.mxu0
      %8681 = vmatprep.mubr.f32.mxu0 0.0
      %8682 = vmatmul.mubr.f32.gmra.mxu0 %v7093
      %v8683 = vpop.f32.mrf.mxu0
      %v8684 = vadd.f32 0.0, %v8683
      %v8685 = vpop.f32.mrf.mxu0
      %8686 = vmatprep.mubr.f32.mxu0 0.0
      %8687 = vmatmul.mubr.f32.gmra.mxu0 %v7095
      %v8688 = vpop.f32.mrf.mxu0
      %v8689 = vadd.f32 0.0, %v8688
      %v8690 = vpop.f32.mrf.mxu0
      %8691 = vmatprep.mubr.f32.mxu0 0.0
      %8692 = vmatmul.mubr.f32.gmra.mxu0 %v7097
      %v8693 = vpop.f32.mrf.mxu0
      %v8694 = vadd.f32 0.0, %v8693
      %v8695 = vpop.f32.mrf.mxu0
      %8696 = vmatprep.mubr.f32.mxu0 0.0
      %8697 = vmatmul.mubr.f32.gmra.mxu0 %v7099
      %v8698 = vpop.f32.mrf.mxu0
      %v8699 = vadd.f32 0.0, %v8698
      %v8700 = vpop.f32.mrf.mxu0
      %8701 = vmatprep.mubr.f32.mxu0 0.0
      %8702 = vmatmul.mubr.f32.gmra.mxu0 %v7101
      %v8703 = vpop.f32.mrf.mxu0
      %v8704 = vadd.f32 0.0, %v8703
      %v8705 = vpop.f32.mrf.mxu0
      %8706 = vmatprep.mubr.f32.mxu0 0.0
      %8707 = vmatmul.mubr.f32.gmra.mxu0 %v7103
      %v8708 = vpop.f32.mrf.mxu0
      %v8709 = vadd.f32 0.0, %v8708
      %v8710 = vpop.f32.mrf.mxu0
      %8711 = vmatprep.mubr.f32.mxu0 0.0
      %8712 = vmatmul.mubr.f32.gmra.mxu0 %v7105
      %v8713 = vpop.f32.mrf.mxu0
      %v8714 = vadd.f32 0.0, %v8713
      %v8715 = vpop.f32.mrf.mxu0
      %8716 = vmatprep.mubr.f32.mxu0 0.0
      %8717 = vmatmul.mubr.f32.gmra.mxu0 %v7107
      %v8718 = vpop.f32.mrf.mxu0
      %v8719 = vadd.f32 0.0, %v8718
      %v8720 = vpop.f32.mrf.mxu0
      %8721 = vmatprep.mubr.f32.mxu0 0.0
      %8722 = vmatmul.mubr.f32.gmra.mxu0 %v7109
      %v8723 = vpop.f32.mrf.mxu0
      %v8724 = vadd.f32 0.0, %v8723
      %v8725 = vpop.f32.mrf.mxu0
      %8726 = vmatprep.mubr.f32.mxu0 0.0
      %8727 = vmatmul.mubr.f32.gmra.mxu0 %v7111
      %v8728 = vpop.f32.mrf.mxu0
      %v8729 = vadd.f32 0.0, %v8728
      %v8730 = vpop.f32.mrf.mxu0
      %8731 = vmatprep.mubr.f32.mxu0 0.0
      %8732 = vmatmul.mubr.f32.gmra.mxu0 %v7113
      %v8733 = vpop.f32.mrf.mxu0
      %v8734 = vadd.f32 0.0, %v8733
      %v8735 = vpop.f32.mrf.mxu0
      %8736 = vmatprep.mubr.f32.mxu0 0.0
      %8737 = vmatmul.mubr.f32.gmra.mxu0 %v7115
      %v8738 = vpop.f32.mrf.mxu0
      %v8739 = vadd.f32 0.0, %v8738
      %v8740 = vpop.f32.mrf.mxu0
      %8741 = vmatprep.mubr.f32.mxu0 0.0
      %8742 = vmatmul.mubr.f32.gmra.mxu0 %v7117
      %v8743 = vpop.f32.mrf.mxu0
      %v8744 = vadd.f32 0.0, %v8743
      %v8745 = vpop.f32.mrf.mxu0
      %8746 = vmatprep.mubr.f32.mxu0 0.0
      %8747 = vmatmul.mubr.f32.gmra.mxu0 %v7119
      %v8748 = vpop.f32.mrf.mxu0
      %v8749 = vadd.f32 0.0, %v8748
      %v8750 = vpop.f32.mrf.mxu0
      %8751 = vmatprep.mubr.f32.mxu0 0.0
      %8752 = vmatmul.mubr.f32.gmra.mxu0 %v7121
      %v8753 = vpop.f32.mrf.mxu0
      %v8754 = vadd.f32 0.0, %v8753
      %v8755 = vpop.f32.mrf.mxu0
      %8756 = vmatprep.mubr.f32.mxu0 0.0
      %8757 = vmatmul.mubr.f32.gmra.mxu0 %v7123
      %v8758 = vpop.f32.mrf.mxu0
      %v8759 = vadd.f32 0.0, %v8758
      %v8760 = vpop.f32.mrf.mxu0
      %8761 = vmatprep.mubr.f32.mxu0 0.0
      %8762 = vmatmul.mubr.f32.gmra.mxu0 %v7125
      %v8763 = vpop.f32.mrf.mxu0
      %v8764 = vadd.f32 0.0, %v8763
      %v8765 = vpop.f32.mrf.mxu0
      %8766 = vmatprep.mubr.f32.mxu0 0.0
      %8767 = vmatmul.mubr.f32.gmra.mxu0 %v7127
      %v8768 = vpop.f32.mrf.mxu0
      %v8769 = vadd.f32 0.0, %v8768
      %v8770 = vpop.f32.mrf.mxu0
      %8771 = vmatprep.mubr.f32.mxu0 0.0
      %8772 = vmatmul.mubr.f32.gmra.mxu0 %v7129
      %v8773 = vpop.f32.mrf.mxu0
      %v8774 = vadd.f32 0.0, %v8773
      %v8775 = vpop.f32.mrf.mxu0
      %8776 = vmatprep.mubr.f32.mxu0 0.0
      %8777 = vmatmul.mubr.f32.gmra.mxu0 %v7131
      %v8778 = vpop.f32.mrf.mxu0
      %v8779 = vadd.f32 0.0, %v8778
      %v8780 = vpop.f32.mrf.mxu0
      %8781 = vmatprep.mubr.f32.mxu0 0.0
      %8782 = vmatmul.mubr.f32.gmra.mxu0 %v7133
      %v8783 = vpop.f32.mrf.mxu0
      %v8784 = vadd.f32 0.0, %v8783
      %v8785 = vpop.f32.mrf.mxu0
      %8786 = vmatprep.mubr.f32.mxu0 0.0
      %8787 = vmatmul.mubr.f32.gmra.mxu0 %v7769
      %v8788 = vpop.f32.mrf.mxu0
      %v8789 = vadd.f32 0.0, %v8788
      %v8790 = vpop.f32.mrf.mxu0
      %8791 = vmatprep.mubr.f32.mxu0 0.0
      %8792 = vmatmul.mubr.f32.gmra.mxu0 %v7772
      %v8793 = vpop.f32.mrf.mxu0
      %v8794 = vadd.f32 0.0, %v8793
      %v8795 = vpop.f32.mrf.mxu0
      %8796 = vmatprep.mubr.f32.mxu0 0.0
      %8797 = vmatmul.mubr.f32.gmra.mxu0 %v8574
      %v8798 = vpop.f32.mrf.mxu0
      %v8799 = vadd.f32 0.0, %v8798
      %v8800 = vpop.f32.mrf.mxu0
      %8801 = vmatprep.mubr.f32.mxu0 0.0
      %8802 = vmatmul.mubr.f32.gmra.mxu0 %v8577
      %v8803 = vpop.f32.mrf.mxu0
      %v8804 = vadd.f32 0.0, %v8803
      %v8805 = vpop.f32.mrf.mxu0
      %8806 = vdwg.mxu0
      %v8807 = vadd.f32 %v8541, %v8649
      %v8808 = vadd.f32 %v8542, %v8654
      %v8809 = vadd.f32 %v8543, %v8659
      %v8810 = vadd.f32 %v8544, %v8664
      %v8811 = vadd.f32 %v8545, %v8669
      %v8812 = vadd.f32 %v8546, %v8674
      %v8813 = vadd.f32 %v8547, %v8679
      %v8814 = vadd.f32 %v8548, %v8684
      %v8815 = vadd.f32 %v8549, %v8689
      %v8816 = vadd.f32 %v8550, %v8694
      %v8817 = vadd.f32 %v8551, %v8699
      %v8818 = vadd.f32 %v8552, %v8704
      %v8819 = vadd.f32 %v8553, %v8709
      %v8820 = vadd.f32 %v8554, %v8714
      %v8821 = vadd.f32 %v8555, %v8719
      %v8822 = vadd.f32 %v8556, %v8724
      %v8823 = vadd.f32 %v8557, %v8729
      %v8824 = vadd.f32 %v8558, %v8734
      %v8825 = vadd.f32 %v8559, %v8739
      %v8826 = vadd.f32 %v8560, %v8744
      %v8827 = vadd.f32 %v8561, %v8749
      %v8828 = vadd.f32 %v8562, %v8754
      %v8829 = vadd.f32 %v8563, %v8759
      %v8830 = vadd.f32 %v8564, %v8764
      %v8831 = vadd.f32 %v8565, %v8769
      %v8832 = vadd.f32 %v8566, %v8774
      %v8833 = vadd.f32 %v8567, %v8779
      %v8834 = vadd.f32 %v8568, %v8784
      %v8835 = vadd.f32 %v8569, %v8789
      %v8836 = vadd.f32 %v8570, %v8794
      %v8837 = vadd.f32 %v8571, %v8799
      %v8838 = vadd.f32 %v8572, %v8804
      %v8840 = vrot.slane %v6646, 1
      %v8841 = vrot.slane %v6647, 1
      %v8842 = vsel %vm6697, %v8840, %v8841
      %v8843 = vrot.slane %v6648, 1
      %v8844 = vsel %vm6697, %v8841, %v8843
      %v8845 = vsel %vm387, %v8842, 0
      %v8847 = vsel %vm387, %v8844, 0
      %v8850 = vsel %vm6842, %v6559, 0
      %8852 = vmatprep.subr.mxu0 0.0
      %8853 = vmatpush1.msra.mxu0 0.0
      %8854 = vmatprep.subr.mxu0 0.0
      %8855 = vmatpush1.msra.mxu0 0.0
      %8856 = vmatprep.subr.mxu0 0.0
      %8857 = vmatpush1.msra.mxu0 0.0
      %8858 = vmatprep.subr.mxu0 0.0
      %8859 = vmatpush1.msra.mxu0 0.0
      %8860 = vmatprep.subr.mxu0 0.0
      %8861 = vmatpush1.msra.mxu0 0.0
      %8862 = vmatprep.subr.mxu0 0.0
      %8863 = vmatpush1.msra.mxu0 0.0
      %8864 = vmatprep.subr.mxu0 0.0
      %8865 = vmatpush1.msra.mxu0 0.0
      %8866 = vmatprep.subr.mxu0 0.0
      %8867 = vmatpush1.msra.mxu0 0.0
      %8868 = vmatprep.subr.mxu0 0.0
      %8869 = vmatpush1.msra.mxu0 0.0
      %8870 = vmatprep.subr.mxu0 0.0
      %8871 = vmatpush1.msra.mxu0 0.0
      %8872 = vmatprep.subr.mxu0 0.0
      %8873 = vmatpush1.msra.mxu0 0.0
      %8874 = vmatprep.subr.mxu0 0.0
      %8875 = vmatpush1.msra.mxu0 0.0
      %8876 = vmatprep.subr.mxu0 0.0
      %8877 = vmatpush1.msra.mxu0 0.0
      %8878 = vmatprep.subr.mxu0 0.0
      %8879 = vmatpush1.msra.mxu0 0.0
      %8880 = vmatprep.subr.mxu0 0.0
      %8881 = vmatpush1.msra.mxu0 0.0
      %8882 = vmatprep.subr.mxu0 0.0
      %8883 = vmatpush1.msra.mxu0 %v8850
      %8884 = vmatprep.subr.mxu0 0.0
      %8885 = vmatpush2.msra.mxu0 0.0
      %8886 = vmatprep.subr.mxu0 0.0
      %8887 = vmatpush2.msra.mxu0 0.0
      %8888 = vmatprep.subr.mxu0 0.0
      %8889 = vmatpush2.msra.mxu0 0.0
      %8890 = vmatprep.subr.mxu0 0.0
      %8891 = vmatpush2.msra.mxu0 0.0
      %8892 = vmatprep.subr.mxu0 0.0
      %8893 = vmatpush2.msra.mxu0 0.0
      %8894 = vmatprep.subr.mxu0 0.0
      %8895 = vmatpush2.msra.mxu0 0.0
      %8896 = vmatprep.subr.mxu0 0.0
      %8897 = vmatpush2.msra.mxu0 0.0
      %8898 = vmatprep.subr.mxu0 0.0
      %8899 = vmatpush2.msra.mxu0 0.0
      %8900 = vmatprep.subr.mxu0 0.0
      %8901 = vmatpush2.msra.mxu0 0.0
      %8902 = vmatprep.subr.mxu0 0.0
      %8903 = vmatpush2.msra.mxu0 0.0
      %8904 = vmatprep.subr.mxu0 0.0
      %8905 = vmatpush2.msra.mxu0 0.0
      %8906 = vmatprep.subr.mxu0 0.0
      %8907 = vmatpush2.msra.mxu0 0.0
      %8908 = vmatprep.subr.mxu0 0.0
      %8909 = vmatpush2.msra.mxu0 0.0
      %8910 = vmatprep.subr.mxu0 0.0
      %8911 = vmatpush2.msra.mxu0 0.0
      %8912 = vmatprep.subr.mxu0 0.0
      %8913 = vmatpush2.msra.mxu0 0.0
      %8914 = vmatprep.subr.mxu0 0.0
      %8915 = vmatpush2.msra.mxu0 0.0
      %8916 = vmatprep.mubr.f32.mxu0 0.0
      %8917 = vmatmul.mubr.f32.gmra.mxu0 %v6786
      %v8918 = vpop.f32.mrf.mxu0
      %v8919 = vadd.f32 0.0, %v8918
      %v8920 = vpop.f32.mrf.mxu0
      %8921 = vmatprep.mubr.f32.mxu0 0.0
      %8922 = vmatmul.mubr.f32.gmra.mxu0 %v6788
      %v8923 = vpop.f32.mrf.mxu0
      %v8924 = vadd.f32 0.0, %v8923
      %v8925 = vpop.f32.mrf.mxu0
      %8926 = vmatprep.mubr.f32.mxu0 0.0
      %8927 = vmatmul.mubr.f32.gmra.mxu0 %v6790
      %v8928 = vpop.f32.mrf.mxu0
      %v8929 = vadd.f32 0.0, %v8928
      %v8930 = vpop.f32.mrf.mxu0
      %8931 = vmatprep.mubr.f32.mxu0 0.0
      %8932 = vmatmul.mubr.f32.gmra.mxu0 %v6792
      %v8933 = vpop.f32.mrf.mxu0
      %v8934 = vadd.f32 0.0, %v8933
      %v8935 = vpop.f32.mrf.mxu0
      %8936 = vmatprep.mubr.f32.mxu0 0.0
      %8937 = vmatmul.mubr.f32.gmra.mxu0 %v6794
      %v8938 = vpop.f32.mrf.mxu0
      %v8939 = vadd.f32 0.0, %v8938
      %v8940 = vpop.f32.mrf.mxu0
      %8941 = vmatprep.mubr.f32.mxu0 0.0
      %8942 = vmatmul.mubr.f32.gmra.mxu0 %v6796
      %v8943 = vpop.f32.mrf.mxu0
      %v8944 = vadd.f32 0.0, %v8943
      %v8945 = vpop.f32.mrf.mxu0
      %8946 = vmatprep.mubr.f32.mxu0 0.0
      %8947 = vmatmul.mubr.f32.gmra.mxu0 %v6798
      %v8948 = vpop.f32.mrf.mxu0
      %v8949 = vadd.f32 0.0, %v8948
      %v8950 = vpop.f32.mrf.mxu0
      %8951 = vmatprep.mubr.f32.mxu0 0.0
      %8952 = vmatmul.mubr.f32.gmra.mxu0 %v6800
      %v8953 = vpop.f32.mrf.mxu0
      %v8954 = vadd.f32 0.0, %v8953
      %v8955 = vpop.f32.mrf.mxu0
      %8956 = vmatprep.mubr.f32.mxu0 0.0
      %8957 = vmatmul.mubr.f32.gmra.mxu0 %v6802
      %v8958 = vpop.f32.mrf.mxu0
      %v8959 = vadd.f32 0.0, %v8958
      %v8960 = vpop.f32.mrf.mxu0
      %8961 = vmatprep.mubr.f32.mxu0 0.0
      %8962 = vmatmul.mubr.f32.gmra.mxu0 %v6804
      %v8963 = vpop.f32.mrf.mxu0
      %v8964 = vadd.f32 0.0, %v8963
      %v8965 = vpop.f32.mrf.mxu0
      %8966 = vmatprep.mubr.f32.mxu0 0.0
      %8967 = vmatmul.mubr.f32.gmra.mxu0 %v6806
      %v8968 = vpop.f32.mrf.mxu0
      %v8969 = vadd.f32 0.0, %v8968
      %v8970 = vpop.f32.mrf.mxu0
      %8971 = vmatprep.mubr.f32.mxu0 0.0
      %8972 = vmatmul.mubr.f32.gmra.mxu0 %v6808
      %v8973 = vpop.f32.mrf.mxu0
      %v8974 = vadd.f32 0.0, %v8973
      %v8975 = vpop.f32.mrf.mxu0
      %8976 = vmatprep.mubr.f32.mxu0 0.0
      %8977 = vmatmul.mubr.f32.gmra.mxu0 %v6810
      %v8978 = vpop.f32.mrf.mxu0
      %v8979 = vadd.f32 0.0, %v8978
      %v8980 = vpop.f32.mrf.mxu0
      %8981 = vmatprep.mubr.f32.mxu0 0.0
      %8982 = vmatmul.mubr.f32.gmra.mxu0 %v6812
      %v8983 = vpop.f32.mrf.mxu0
      %v8984 = vadd.f32 0.0, %v8983
      %v8985 = vpop.f32.mrf.mxu0
      %8986 = vmatprep.mubr.f32.mxu0 0.0
      %8987 = vmatmul.mubr.f32.gmra.mxu0 %v6814
      %v8988 = vpop.f32.mrf.mxu0
      %v8989 = vadd.f32 0.0, %v8988
      %v8990 = vpop.f32.mrf.mxu0
      %8991 = vmatprep.mubr.f32.mxu0 0.0
      %8992 = vmatmul.mubr.f32.gmra.mxu0 %v6816
      %v8993 = vpop.f32.mrf.mxu0
      %v8994 = vadd.f32 0.0, %v8993
      %v8995 = vpop.f32.mrf.mxu0
      %8996 = vmatprep.mubr.f32.mxu0 0.0
      %8997 = vmatmul.mubr.f32.gmra.mxu0 %v6818
      %v8998 = vpop.f32.mrf.mxu0
      %v8999 = vadd.f32 0.0, %v8998
      %v9000 = vpop.f32.mrf.mxu0
      %9001 = vmatprep.mubr.f32.mxu0 0.0
      %9002 = vmatmul.mubr.f32.gmra.mxu0 %v6820
      %v9003 = vpop.f32.mrf.mxu0
      %v9004 = vadd.f32 0.0, %v9003
      %v9005 = vpop.f32.mrf.mxu0
      %9006 = vmatprep.mubr.f32.mxu0 0.0
      %9007 = vmatmul.mubr.f32.gmra.mxu0 %v6822
      %v9008 = vpop.f32.mrf.mxu0
      %v9009 = vadd.f32 0.0, %v9008
      %v9010 = vpop.f32.mrf.mxu0
      %9011 = vmatprep.mubr.f32.mxu0 0.0
      %9012 = vmatmul.mubr.f32.gmra.mxu0 %v6824
      %v9013 = vpop.f32.mrf.mxu0
      %v9014 = vadd.f32 0.0, %v9013
      %v9015 = vpop.f32.mrf.mxu0
      %9016 = vmatprep.mubr.f32.mxu0 0.0
      %9017 = vmatmul.mubr.f32.gmra.mxu0 %v6826
      %v9018 = vpop.f32.mrf.mxu0
      %v9019 = vadd.f32 0.0, %v9018
      %v9020 = vpop.f32.mrf.mxu0
      %9021 = vmatprep.mubr.f32.mxu0 0.0
      %9022 = vmatmul.mubr.f32.gmra.mxu0 %v6828
      %v9023 = vpop.f32.mrf.mxu0
      %v9024 = vadd.f32 0.0, %v9023
      %v9025 = vpop.f32.mrf.mxu0
      %9026 = vmatprep.mubr.f32.mxu0 0.0
      %9027 = vmatmul.mubr.f32.gmra.mxu0 %v6830
      %v9028 = vpop.f32.mrf.mxu0
      %v9029 = vadd.f32 0.0, %v9028
      %v9030 = vpop.f32.mrf.mxu0
      %9031 = vmatprep.mubr.f32.mxu0 0.0
      %9032 = vmatmul.mubr.f32.gmra.mxu0 %v6832
      %v9033 = vpop.f32.mrf.mxu0
      %v9034 = vadd.f32 0.0, %v9033
      %v9035 = vpop.f32.mrf.mxu0
      %9036 = vmatprep.mubr.f32.mxu0 0.0
      %9037 = vmatmul.mubr.f32.gmra.mxu0 %v6834
      %v9038 = vpop.f32.mrf.mxu0
      %v9039 = vadd.f32 0.0, %v9038
      %v9040 = vpop.f32.mrf.mxu0
      %9041 = vmatprep.mubr.f32.mxu0 0.0
      %9042 = vmatmul.mubr.f32.gmra.mxu0 %v6836
      %v9043 = vpop.f32.mrf.mxu0
      %v9044 = vadd.f32 0.0, %v9043
      %v9045 = vpop.f32.mrf.mxu0
      %9046 = vmatprep.mubr.f32.mxu0 0.0
      %9047 = vmatmul.mubr.f32.gmra.mxu0 %v6838
      %v9048 = vpop.f32.mrf.mxu0
      %v9049 = vadd.f32 0.0, %v9048
      %v9050 = vpop.f32.mrf.mxu0
      %9051 = vmatprep.mubr.f32.mxu0 0.0
      %9052 = vmatmul.mubr.f32.gmra.mxu0 %v6840
      %v9053 = vpop.f32.mrf.mxu0
      %v9054 = vadd.f32 0.0, %v9053
      %v9055 = vpop.f32.mrf.mxu0
      %9056 = vmatprep.mubr.f32.mxu0 0.0
      %9057 = vmatmul.mubr.f32.gmra.mxu0 %v8040
      %v9058 = vpop.f32.mrf.mxu0
      %v9059 = vadd.f32 0.0, %v9058
      %v9060 = vpop.f32.mrf.mxu0
      %9061 = vmatprep.mubr.f32.mxu0 0.0
      %9062 = vmatmul.mubr.f32.gmra.mxu0 %v8042
      %v9063 = vpop.f32.mrf.mxu0
      %v9064 = vadd.f32 0.0, %v9063
      %v9065 = vpop.f32.mrf.mxu0
      %9066 = vmatprep.mubr.f32.mxu0 0.0
      %9067 = vmatmul.mubr.f32.gmra.mxu0 %v8845
      %v9068 = vpop.f32.mrf.mxu0
      %v9069 = vadd.f32 0.0, %v9068
      %v9070 = vpop.f32.mrf.mxu0
      %9071 = vmatprep.mubr.f32.mxu0 0.0
      %9072 = vmatmul.mubr.f32.gmra.mxu0 %v8847
      %v9073 = vpop.f32.mrf.mxu0
      %v9074 = vadd.f32 0.0, %v9073
      %v9075 = vpop.f32.mrf.mxu0
      %9076 = vdwg.mxu0
      %v9077 = vadd.f32 %v8807, %v8919
      %v9078 = vadd.f32 %v8808, %v8924
      %v9079 = vadd.f32 %v8809, %v8929
      %v9080 = vadd.f32 %v8810, %v8934
      %v9081 = vadd.f32 %v8811, %v8939
      %v9082 = vadd.f32 %v8812, %v8944
      %v9083 = vadd.f32 %v8813, %v8949
      %v9084 = vadd.f32 %v8814, %v8954
      %v9085 = vadd.f32 %v8815, %v8959
      %v9086 = vadd.f32 %v8816, %v8964
      %v9087 = vadd.f32 %v8817, %v8969
      %v9088 = vadd.f32 %v8818, %v8974
      %v9089 = vadd.f32 %v8819, %v8979
      %v9090 = vadd.f32 %v8820, %v8984
      %v9091 = vadd.f32 %v8821, %v8989
      %v9092 = vadd.f32 %v8822, %v8994
      %v9093 = vadd.f32 %v8823, %v8999
      %v9094 = vadd.f32 %v8824, %v9004
      %v9095 = vadd.f32 %v8825, %v9009
      %v9096 = vadd.f32 %v8826, %v9014
      %v9097 = vadd.f32 %v8827, %v9019
      %v9098 = vadd.f32 %v8828, %v9024
      %v9099 = vadd.f32 %v8829, %v9029
      %v9100 = vadd.f32 %v8830, %v9034
      %v9101 = vadd.f32 %v8831, %v9039
      %v9102 = vadd.f32 %v8832, %v9044
      %v9103 = vadd.f32 %v8833, %v9049
      %v9104 = vadd.f32 %v8834, %v9054
      %v9105 = vadd.f32 %v8835, %v9059
      %v9106 = vadd.f32 %v8836, %v9064
      %v9107 = vadd.f32 %v8837, %v9069
      %v9108 = vadd.f32 %v8838, %v9074
      %v9109 = vrot.slane %v6646, 2
      %v9110 = vrot.slane %v6647, 2
      %v9111 = vsel %vm7363, %v9109, %v9110
      %v9112 = vrot.slane %v6648, 2
      %v9113 = vsel %vm7363, %v9110, %v9112
      %v9114 = vsel %vm387, %v9111, 0
      %v9116 = vsel %vm387, %v9113, 0
      %v9119 = vsel %vm6842, %v6560, 0
      %9121 = vmatprep.subr.mxu0 0.0
      %9122 = vmatpush1.msra.mxu0 0.0
      %9123 = vmatprep.subr.mxu0 0.0
      %9124 = vmatpush1.msra.mxu0 0.0
      %9125 = vmatprep.subr.mxu0 0.0
      %9126 = vmatpush1.msra.mxu0 0.0
      %9127 = vmatprep.subr.mxu0 0.0
      %9128 = vmatpush1.msra.mxu0 0.0
      %9129 = vmatprep.subr.mxu0 0.0
      %9130 = vmatpush1.msra.mxu0 0.0
      %9131 = vmatprep.subr.mxu0 0.0
      %9132 = vmatpush1.msra.mxu0 0.0
      %9133 = vmatprep.subr.mxu0 0.0
      %9134 = vmatpush1.msra.mxu0 0.0
      %9135 = vmatprep.subr.mxu0 0.0
      %9136 = vmatpush1.msra.mxu0 0.0
      %9137 = vmatprep.subr.mxu0 0.0
      %9138 = vmatpush1.msra.mxu0 0.0
      %9139 = vmatprep.subr.mxu0 0.0
      %9140 = vmatpush1.msra.mxu0 0.0
      %9141 = vmatprep.subr.mxu0 0.0
      %9142 = vmatpush1.msra.mxu0 0.0
      %9143 = vmatprep.subr.mxu0 0.0
      %9144 = vmatpush1.msra.mxu0 0.0
      %9145 = vmatprep.subr.mxu0 0.0
      %9146 = vmatpush1.msra.mxu0 0.0
      %9147 = vmatprep.subr.mxu0 0.0
      %9148 = vmatpush1.msra.mxu0 0.0
      %9149 = vmatprep.subr.mxu0 0.0
      %9150 = vmatpush1.msra.mxu0 0.0
      %9151 = vmatprep.subr.mxu0 0.0
      %9152 = vmatpush1.msra.mxu0 %v9119
      %9153 = vmatprep.subr.mxu0 0.0
      %9154 = vmatpush2.msra.mxu0 0.0
      %9155 = vmatprep.subr.mxu0 0.0
      %9156 = vmatpush2.msra.mxu0 0.0
      %9157 = vmatprep.subr.mxu0 0.0
      %9158 = vmatpush2.msra.mxu0 0.0
      %9159 = vmatprep.subr.mxu0 0.0
      %9160 = vmatpush2.msra.mxu0 0.0
      %9161 = vmatprep.subr.mxu0 0.0
      %9162 = vmatpush2.msra.mxu0 0.0
      %9163 = vmatprep.subr.mxu0 0.0
      %9164 = vmatpush2.msra.mxu0 0.0
      %9165 = vmatprep.subr.mxu0 0.0
      %9166 = vmatpush2.msra.mxu0 0.0
      %9167 = vmatprep.subr.mxu0 0.0
      %9168 = vmatpush2.msra.mxu0 0.0
      %9169 = vmatprep.subr.mxu0 0.0
      %9170 = vmatpush2.msra.mxu0 0.0
      %9171 = vmatprep.subr.mxu0 0.0
      %9172 = vmatpush2.msra.mxu0 0.0
      %9173 = vmatprep.subr.mxu0 0.0
      %9174 = vmatpush2.msra.mxu0 0.0
      %9175 = vmatprep.subr.mxu0 0.0
      %9176 = vmatpush2.msra.mxu0 0.0
      %9177 = vmatprep.subr.mxu0 0.0
      %9178 = vmatpush2.msra.mxu0 0.0
      %9179 = vmatprep.subr.mxu0 0.0
      %9180 = vmatpush2.msra.mxu0 0.0
      %9181 = vmatprep.subr.mxu0 0.0
      %9182 = vmatpush2.msra.mxu0 0.0
      %9183 = vmatprep.subr.mxu0 0.0
      %9184 = vmatpush2.msra.mxu0 0.0
      %9185 = vmatprep.mubr.f32.mxu0 0.0
      %9186 = vmatmul.mubr.f32.gmra.mxu0 %v7452
      %v9187 = vpop.f32.mrf.mxu0
      %v9188 = vadd.f32 0.0, %v9187
      %v9189 = vpop.f32.mrf.mxu0
      %9190 = vmatprep.mubr.f32.mxu0 0.0
      %9191 = vmatmul.mubr.f32.gmra.mxu0 %v7454
      %v9192 = vpop.f32.mrf.mxu0
      %v9193 = vadd.f32 0.0, %v9192
      %v9194 = vpop.f32.mrf.mxu0
      %9195 = vmatprep.mubr.f32.mxu0 0.0
      %9196 = vmatmul.mubr.f32.gmra.mxu0 %v7456
      %v9197 = vpop.f32.mrf.mxu0
      %v9198 = vadd.f32 0.0, %v9197
      %v9199 = vpop.f32.mrf.mxu0
      %9200 = vmatprep.mubr.f32.mxu0 0.0
      %9201 = vmatmul.mubr.f32.gmra.mxu0 %v7458
      %v9202 = vpop.f32.mrf.mxu0
      %v9203 = vadd.f32 0.0, %v9202
      %v9204 = vpop.f32.mrf.mxu0
      %9205 = vmatprep.mubr.f32.mxu0 0.0
      %9206 = vmatmul.mubr.f32.gmra.mxu0 %v7460
      %v9207 = vpop.f32.mrf.mxu0
      %v9208 = vadd.f32 0.0, %v9207
      %v9209 = vpop.f32.mrf.mxu0
      %9210 = vmatprep.mubr.f32.mxu0 0.0
      %9211 = vmatmul.mubr.f32.gmra.mxu0 %v7462
      %v9212 = vpop.f32.mrf.mxu0
      %v9213 = vadd.f32 0.0, %v9212
      %v9214 = vpop.f32.mrf.mxu0
      %9215 = vmatprep.mubr.f32.mxu0 0.0
      %9216 = vmatmul.mubr.f32.gmra.mxu0 %v7464
      %v9217 = vpop.f32.mrf.mxu0
      %v9218 = vadd.f32 0.0, %v9217
      %v9219 = vpop.f32.mrf.mxu0
      %9220 = vmatprep.mubr.f32.mxu0 0.0
      %9221 = vmatmul.mubr.f32.gmra.mxu0 %v7466
      %v9222 = vpop.f32.mrf.mxu0
      %v9223 = vadd.f32 0.0, %v9222
      %v9224 = vpop.f32.mrf.mxu0
      %9225 = vmatprep.mubr.f32.mxu0 0.0
      %9226 = vmatmul.mubr.f32.gmra.mxu0 %v7468
      %v9227 = vpop.f32.mrf.mxu0
      %v9228 = vadd.f32 0.0, %v9227
      %v9229 = vpop.f32.mrf.mxu0
      %9230 = vmatprep.mubr.f32.mxu0 0.0
      %9231 = vmatmul.mubr.f32.gmra.mxu0 %v7470
      %v9232 = vpop.f32.mrf.mxu0
      %v9233 = vadd.f32 0.0, %v9232
      %v9234 = vpop.f32.mrf.mxu0
      %9235 = vmatprep.mubr.f32.mxu0 0.0
      %9236 = vmatmul.mubr.f32.gmra.mxu0 %v7472
      %v9237 = vpop.f32.mrf.mxu0
      %v9238 = vadd.f32 0.0, %v9237
      %v9239 = vpop.f32.mrf.mxu0
      %9240 = vmatprep.mubr.f32.mxu0 0.0
      %9241 = vmatmul.mubr.f32.gmra.mxu0 %v7474
      %v9242 = vpop.f32.mrf.mxu0
      %v9243 = vadd.f32 0.0, %v9242
      %v9244 = vpop.f32.mrf.mxu0
      %9245 = vmatprep.mubr.f32.mxu0 0.0
      %9246 = vmatmul.mubr.f32.gmra.mxu0 %v7476
      %v9247 = vpop.f32.mrf.mxu0
      %v9248 = vadd.f32 0.0, %v9247
      %v9249 = vpop.f32.mrf.mxu0
      %9250 = vmatprep.mubr.f32.mxu0 0.0
      %9251 = vmatmul.mubr.f32.gmra.mxu0 %v7478
      %v9252 = vpop.f32.mrf.mxu0
      %v9253 = vadd.f32 0.0, %v9252
      %v9254 = vpop.f32.mrf.mxu0
      %9255 = vmatprep.mubr.f32.mxu0 0.0
      %9256 = vmatmul.mubr.f32.gmra.mxu0 %v7480
      %v9257 = vpop.f32.mrf.mxu0
      %v9258 = vadd.f32 0.0, %v9257
      %v9259 = vpop.f32.mrf.mxu0
      %9260 = vmatprep.mubr.f32.mxu0 0.0
      %9261 = vmatmul.mubr.f32.gmra.mxu0 %v7482
      %v9262 = vpop.f32.mrf.mxu0
      %v9263 = vadd.f32 0.0, %v9262
      %v9264 = vpop.f32.mrf.mxu0
      %9265 = vmatprep.mubr.f32.mxu0 0.0
      %9266 = vmatmul.mubr.f32.gmra.mxu0 %v7484
      %v9267 = vpop.f32.mrf.mxu0
      %v9268 = vadd.f32 0.0, %v9267
      %v9269 = vpop.f32.mrf.mxu0
      %9270 = vmatprep.mubr.f32.mxu0 0.0
      %9271 = vmatmul.mubr.f32.gmra.mxu0 %v7486
      %v9272 = vpop.f32.mrf.mxu0
      %v9273 = vadd.f32 0.0, %v9272
      %v9274 = vpop.f32.mrf.mxu0
      %9275 = vmatprep.mubr.f32.mxu0 0.0
      %9276 = vmatmul.mubr.f32.gmra.mxu0 %v7488
      %v9277 = vpop.f32.mrf.mxu0
      %v9278 = vadd.f32 0.0, %v9277
      %v9279 = vpop.f32.mrf.mxu0
      %9280 = vmatprep.mubr.f32.mxu0 0.0
      %9281 = vmatmul.mubr.f32.gmra.mxu0 %v7490
      %v9282 = vpop.f32.mrf.mxu0
      %v9283 = vadd.f32 0.0, %v9282
      %v9284 = vpop.f32.mrf.mxu0
      %9285 = vmatprep.mubr.f32.mxu0 0.0
      %9286 = vmatmul.mubr.f32.gmra.mxu0 %v7492
      %v9287 = vpop.f32.mrf.mxu0
      %v9288 = vadd.f32 0.0, %v9287
      %v9289 = vpop.f32.mrf.mxu0
      %9290 = vmatprep.mubr.f32.mxu0 0.0
      %9291 = vmatmul.mubr.f32.gmra.mxu0 %v7494
      %v9292 = vpop.f32.mrf.mxu0
      %v9293 = vadd.f32 0.0, %v9292
      %v9294 = vpop.f32.mrf.mxu0
      %9295 = vmatprep.mubr.f32.mxu0 0.0
      %9296 = vmatmul.mubr.f32.gmra.mxu0 %v7496
      %v9297 = vpop.f32.mrf.mxu0
      %v9298 = vadd.f32 0.0, %v9297
      %v9299 = vpop.f32.mrf.mxu0
      %9300 = vmatprep.mubr.f32.mxu0 0.0
      %9301 = vmatmul.mubr.f32.gmra.mxu0 %v7498
      %v9302 = vpop.f32.mrf.mxu0
      %v9303 = vadd.f32 0.0, %v9302
      %v9304 = vpop.f32.mrf.mxu0
      %9305 = vmatprep.mubr.f32.mxu0 0.0
      %9306 = vmatmul.mubr.f32.gmra.mxu0 %v7500
      %v9307 = vpop.f32.mrf.mxu0
      %v9308 = vadd.f32 0.0, %v9307
      %v9309 = vpop.f32.mrf.mxu0
      %9310 = vmatprep.mubr.f32.mxu0 0.0
      %9311 = vmatmul.mubr.f32.gmra.mxu0 %v7502
      %v9312 = vpop.f32.mrf.mxu0
      %v9313 = vadd.f32 0.0, %v9312
      %v9314 = vpop.f32.mrf.mxu0
      %9315 = vmatprep.mubr.f32.mxu0 0.0
      %9316 = vmatmul.mubr.f32.gmra.mxu0 %v7504
      %v9317 = vpop.f32.mrf.mxu0
      %v9318 = vadd.f32 0.0, %v9317
      %v9319 = vpop.f32.mrf.mxu0
      %9320 = vmatprep.mubr.f32.mxu0 0.0
      %9321 = vmatmul.mubr.f32.gmra.mxu0 %v7506
      %v9322 = vpop.f32.mrf.mxu0
      %v9323 = vadd.f32 0.0, %v9322
      %v9324 = vpop.f32.mrf.mxu0
      %9325 = vmatprep.mubr.f32.mxu0 0.0
      %9326 = vmatmul.mubr.f32.gmra.mxu0 %v8309
      %v9327 = vpop.f32.mrf.mxu0
      %v9328 = vadd.f32 0.0, %v9327
      %v9329 = vpop.f32.mrf.mxu0
      %9330 = vmatprep.mubr.f32.mxu0 0.0
      %9331 = vmatmul.mubr.f32.gmra.mxu0 %v8311
      %v9332 = vpop.f32.mrf.mxu0
      %v9333 = vadd.f32 0.0, %v9332
      %v9334 = vpop.f32.mrf.mxu0
      %9335 = vmatprep.mubr.f32.mxu0 0.0
      %9336 = vmatmul.mubr.f32.gmra.mxu0 %v9114
      %v9337 = vpop.f32.mrf.mxu0
      %v9338 = vadd.f32 0.0, %v9337
      %v9339 = vpop.f32.mrf.mxu0
      %9340 = vmatprep.mubr.f32.mxu0 0.0
      %9341 = vmatmul.mubr.f32.gmra.mxu0 %v9116
      %v9342 = vpop.f32.mrf.mxu0
      %v9343 = vadd.f32 0.0, %v9342
      %v9344 = vpop.f32.mrf.mxu0
      %9345 = vdwg.mxu0
      %v9346 = vadd.f32 %v9077, %v9188
      %v9347 = vadd.f32 %v9078, %v9193
      %v9348 = vadd.f32 %v9079, %v9198
      %v9349 = vadd.f32 %v9080, %v9203
      %v9350 = vadd.f32 %v9081, %v9208
      %v9351 = vadd.f32 %v9082, %v9213
      %v9352 = vadd.f32 %v9083, %v9218
      %v9353 = vadd.f32 %v9084, %v9223
      %v9354 = vadd.f32 %v9085, %v9228
      %v9355 = vadd.f32 %v9086, %v9233
      %v9356 = vadd.f32 %v9087, %v9238
      %v9357 = vadd.f32 %v9088, %v9243
      %v9358 = vadd.f32 %v9089, %v9248
      %v9359 = vadd.f32 %v9090, %v9253
      %v9360 = vadd.f32 %v9091, %v9258
      %v9361 = vadd.f32 %v9092, %v9263
      %v9362 = vadd.f32 %v9093, %v9268
      %v9363 = vadd.f32 %v9094, %v9273
      %v9364 = vadd.f32 %v9095, %v9278
      %v9365 = vadd.f32 %v9096, %v9283
      %v9366 = vadd.f32 %v9097, %v9288
      %v9367 = vadd.f32 %v9098, %v9293
      %v9368 = vadd.f32 %v9099, %v9298
      %v9369 = vadd.f32 %v9100, %v9303
      %v9370 = vadd.f32 %v9101, %v9308
      %v9371 = vadd.f32 %v9102, %v9313
      %v9372 = vadd.f32 %v9103, %v9318
      %v9373 = vadd.f32 %v9104, %v9323
      %v9374 = vadd.f32 %v9105, %v9328
      %v9375 = vadd.f32 %v9106, %v9333
      %v9376 = vadd.f32 %v9107, %v9338
      %v9377 = vadd.f32 %v9108, %v9343
      %v9379 = vlaneseq
      %v9380 = vshrl.u32 %v9379, 7
      %v9381 = vsub.s32 0, %v9380
      %v9382 = vrot.slane %v6561, %v9381
      %v9384 = vadd.f32 %v9346, %v9382
      %v9385 = vadd.f32 %v9347, %v9382
      %v9386 = vadd.f32 %v9348, %v9382
      %v9387 = vadd.f32 %v9349, %v9382
      %v9388 = vadd.f32 %v9350, %v9382
      %v9389 = vadd.f32 %v9351, %v9382
      %v9390 = vadd.f32 %v9352, %v9382
      %v9391 = vadd.f32 %v9353, %v9382
      %v9392 = vadd.f32 %v9354, %v9382
      %v9393 = vadd.f32 %v9355, %v9382
      %v9394 = vadd.f32 %v9356, %v9382
      %v9395 = vadd.f32 %v9357, %v9382
      %v9396 = vadd.f32 %v9358, %v9382
      %v9397 = vadd.f32 %v9359, %v9382
      %v9398 = vadd.f32 %v9360, %v9382
      %v9399 = vadd.f32 %v9361, %v9382
      %v9400 = vadd.f32 %v9362, %v9382
      %v9401 = vadd.f32 %v9363, %v9382
      %v9402 = vadd.f32 %v9364, %v9382
      %v9403 = vadd.f32 %v9365, %v9382
      %v9404 = vadd.f32 %v9366, %v9382
      %v9405 = vadd.f32 %v9367, %v9382
      %v9406 = vadd.f32 %v9368, %v9382
      %v9407 = vadd.f32 %v9369, %v9382
      %v9408 = vadd.f32 %v9370, %v9382
      %v9409 = vadd.f32 %v9371, %v9382
      %v9410 = vadd.f32 %v9372, %v9382
      %v9411 = vadd.f32 %v9373, %v9382
      %v9412 = vadd.f32 %v9374, %v9382
      %v9413 = vadd.f32 %v9375, %v9382
      %v9414 = vadd.f32 %v9376, %v9382
      %v9415 = vadd.f32 %v9377, %v9382
      %v9416 = vadd.f32 %v443, %v9384
      %v9417 = vadd.f32 %v444, %v9385
      %v9418 = vadd.f32 %v445, %v9386
      %v9419 = vadd.f32 %v446, %v9387
      %v9420 = vadd.f32 %v447, %v9388
      %v9421 = vadd.f32 %v448, %v9389
      %v9422 = vadd.f32 %v449, %v9390
      %v9423 = vadd.f32 %v450, %v9391
      %v9424 = vadd.f32 %v451, %v9392
      %v9425 = vadd.f32 %v452, %v9393
      %v9426 = vadd.f32 %v453, %v9394
      %v9427 = vadd.f32 %v454, %v9395
      %v9428 = vadd.f32 %v455, %v9396
      %v9429 = vadd.f32 %v456, %v9397
      %v9430 = vadd.f32 %v457, %v9398
      %v9431 = vadd.f32 %v458, %v9399
      %v9432 = vadd.f32 %v459, %v9400
      %v9433 = vadd.f32 %v460, %v9401
      %v9434 = vadd.f32 %v461, %v9402
      %v9435 = vadd.f32 %v462, %v9403
      %v9436 = vadd.f32 %v463, %v9404
      %v9437 = vadd.f32 %v464, %v9405
      %v9438 = vadd.f32 %v465, %v9406
      %v9439 = vadd.f32 %v466, %v9407
      %v9440 = vadd.f32 %v467, %v9408
      %v9441 = vadd.f32 %v468, %v9409
      %v9442 = vadd.f32 %v469, %v9410
      %v9443 = vadd.f32 %v470, %v9411
      %v9444 = vadd.f32 %v471, %v9412
      %v9445 = vadd.f32 %v472, %v9413
      %v9446 = vadd.f32 %v473, %v9414
      %v9447 = vadd.f32 %v474, %v9415
      %9448 = vst.msk [vmem:[%s386] sm:$0xff] %vm387, %v9416
      %9449 = vst.msk [vmem:[%s386 + $0x8] sm:$0xff] %vm387, %v9417
      %9450 = vst.msk [vmem:[%s386 + $0x10] sm:$0xff] %vm387, %v9418
      %9451 = vst.msk [vmem:[%s386 + $0x18] sm:$0xff] %vm387, %v9419
      %9452 = vst.msk [vmem:[%s386 + $0x20] sm:$0xff] %vm387, %v9420
      %9453 = vst.msk [vmem:[%s386 + $0x28] sm:$0xff] %vm387, %v9421
      %9454 = vst.msk [vmem:[%s386 + $0x30] sm:$0xff] %vm387, %v9422
      %9455 = vst.msk [vmem:[%s386 + $0x38] sm:$0xff] %vm387, %v9423
      %9456 = vst.msk [vmem:[%s386 + $0x40] sm:$0xff] %vm387, %v9424
      %9457 = vst.msk [vmem:[%s386 + $0x48] sm:$0xff] %vm387, %v9425
      %9458 = vst.msk [vmem:[%s386 + $0x50] sm:$0xff] %vm387, %v9426
      %9459 = vst.msk [vmem:[%s386 + $0x58] sm:$0xff] %vm387, %v9427
      %9460 = vst.msk [vmem:[%s386 + $0x60] sm:$0xff] %vm387, %v9428
      %9461 = vst.msk [vmem:[%s386 + $0x68] sm:$0xff] %vm387, %v9429
      %9462 = vst.msk [vmem:[%s386 + $0x70] sm:$0xff] %vm387, %v9430
      %9463 = vst.msk [vmem:[%s386 + $0x78] sm:$0xff] %vm387, %v9431
      %9464 = vst.msk [vmem:[%s386 + $0x80] sm:$0xff] %vm387, %v9432
      %9465 = vst.msk [vmem:[%s386 + $0x88] sm:$0xff] %vm387, %v9433
      %9466 = vst.msk [vmem:[%s386 + $0x90] sm:$0xff] %vm387, %v9434
      %9467 = vst.msk [vmem:[%s386 + $0x98] sm:$0xff] %vm387, %v9435
      %9468 = vst.msk [vmem:[%s386 + $0xa0] sm:$0xff] %vm387, %v9436
      %9469 = vst.msk [vmem:[%s386 + $0xa8] sm:$0xff] %vm387, %v9437
      %9470 = vst.msk [vmem:[%s386 + $0xb0] sm:$0xff] %vm387, %v9438
      %9471 = vst.msk [vmem:[%s386 + $0xb8] sm:$0xff] %vm387, %v9439
      %9472 = vst.msk [vmem:[%s386 + $0xc0] sm:$0xff] %vm387, %v9440
      %9473 = vst.msk [vmem:[%s386 + $0xc8] sm:$0xff] %vm387, %v9441
      %9474 = vst.msk [vmem:[%s386 + $0xd0] sm:$0xff] %vm387, %v9442
      %9475 = vst.msk [vmem:[%s386 + $0xd8] sm:$0xff] %vm387, %v9443
      %9476 = vst.msk [vmem:[%s386 + $0xe0] sm:$0xff] %vm387, %v9444
      %9477 = vst.msk [vmem:[%s386 + $0xe8] sm:$0xff] %vm387, %v9445
      %9478 = vst.msk [vmem:[%s386 + $0xf0] sm:$0xff] %vm387, %v9446
      %9479 = vst.msk [vmem:[%s386 + $0xf8] sm:$0xff] %vm387, %v9447
      %p9480 = scmp.lt.s32.totalorder %s22, 1
      %s9481 = scalar_select %p9480, %s22, 1
      %s9482 = smul.addr %s9481, 32
      %s9483 = smul.addr %s9482, 8
      %s9484 = scalar_lea.vmem %s11, %s9483
      // Predicated region
      $region72: #{residual_group_forward.1} parent=63 // pred_check
        %p9485 = pneg %p276
      $region73: #{residual_group_forward.1} parent=63 // pred_check_branch
        %9487 = sbr.rel (%p9485) target = $region75
      $region74: #{residual_group_forward.1} parent=63 // pred_region
        _
      $region75: #{residual_group_forward.1} parent=63 // pred_fallthru
        _
    $region64: #{residual_group_forward.1} parent=5 // pred_fallthru
      _
    %p9488 = scmp.le.s32.totalorder 2, %s17
    // Predicated region
    $region76: #{residual_group_forward.1} parent=5 // pred_check
      %p9489 = pneg %p9488
    $region77: #{residual_group_forward.1} parent=5 // pred_check_branch
      %9491 = sbr.rel (%p9489) target = $region79
    $region78: #{residual_group_forward.1} parent=5 // pred_region
      %s9492 = ssub.s32 %s17, 2
      // Predicated region
      $region80: #{residual_group_forward.1} parent=78 // pred_check
        %p9493 = pneg %p282
      $region81: #{residual_group_forward.1} parent=78 // pred_check_branch
        %9495 = sbr.rel (%p9493) target = $region83
      $region82: #{residual_group_forward.1} parent=78 // pred_region
        %p9496 = scmp.lt.s32.totalorder %s23, 1
        %s9497 = scalar_select %p9496, %s23, 1
        %s9498 = smul.addr %s9497, 32
        %s9499 = smul.addr %s9498, 8
        %s9500 = scalar_lea.vmem %s11, %s9499
      $region83: #{residual_group_forward.1} parent=78 // pred_fallthru
        _
    $region79: #{residual_group_forward.1} parent=5 // pred_fallthru
      _
  $region6: #{residual_group_forward.1} parent=0 // loop_footer
    %s21 = sadd.s32 1, %s17
  $region7: #{residual_group_forward.1} parent=0 // loop_footer_branch
    %16 = sbr.rel target = $region3
  $region8: #{residual_group_forward.1} parent=0 // loop_exit
    _

</llo_original>
